<compile_context>
chip_gen: v6e
topology: v6e:2x2x1
jax: 0.10.0
libtpu: 0.0.40
codegen_flags: <defaults>
</compile_context>

<pallas_src>
import jax
import jax.numpy as jnp
from jax.experimental import pallas as pl
from jax.experimental.pallas import tpu as pltpu

# ---- synthetic config (the module's __init__ only fixes num_labels; the rest
# ---- comes from the pretrained config, which we replace with small values) ---
VOCAB       = 1000
MAX_POS     = 16
SEQ         = 8
HIDDEN      = 128
NUM_HEADS   = 4
HEAD_DIM    = HIDDEN // NUM_HEADS
FFN         = 4 * HIDDEN
NUM_LAYERS  = 2
NUM_LABELS  = 8
LPAD        = 128                                  # lane-dense padded label dim
VPAD        = ((VOCAB + 127) // 128) * 128         # lane-aligned padded vocab
LN_EPS      = 1e-12
IGNORE_IDX  = -100
NEG_INF     = -1e9


# --------------------------- kernel helpers ---------------------------------
def _layernorm(x, gamma, beta):
    mu = jnp.mean(x, axis=-1, keepdims=True)
    var = jnp.mean((x - mu) ** 2, axis=-1, keepdims=True)
    return (x - mu) * jax.lax.rsqrt(var + LN_EPS) * gamma + beta


# --------------------------- fused forward kernel ----------------------------
def fused_forward_kernel(ids_ref, mask_ref, labels_ref,
                         emb_ref, pos_ref, emb_g_ref, emb_b_ref,
                         wqkv_ref, bqkv_ref, wo_ref, bo_ref,
                         ln1g_ref, ln1b_ref, w1_ref, b1_ref, w2_ref, b2_ref,
                         ln2g_ref, ln2b_ref, wc_ref, bc_ref,
                         logits_ref, loss_ref, *maybe_hs_ref):
    hs_ref = maybe_hs_ref[0] if maybe_hs_ref else None
    B, S = ids_ref.shape
    H, NH, HD = HIDDEN, NUM_HEADS, HEAD_DIM
    BS = B * S

    # ----- fused token-embedding gather (one-hot matmul; MXU is idle anyway) --
    ids = ids_ref[...]
    viota = jax.lax.broadcasted_iota(jnp.int32, (B, S, VPAD), 2)
    onehot = (viota == ids[..., None]).astype(jnp.float32).reshape(BS, VPAD)
    tok = jnp.dot(onehot, emb_ref[...], preferred_element_type=jnp.float32)   # (BS,H)

    # ----- positional embedding + embedding LayerNorm -------------------------
    x3 = tok.reshape(B, S, H) + pos_ref[...][None]
    h = _layernorm(x3.reshape(BS, H), emb_g_ref[...], emb_b_ref[...])
    if hs_ref is not None:
        hs_ref[0] = h.reshape(B, S, H)

    # ----- additive attention bias, built once (pure broadcast, no concats) ---
    neg = (1.0 - mask_ref[...]) * NEG_INF        # (B,S)
    bias = neg[:, None, :]                        # (B,1,S) broadcasts over queries

    # ----- encoder layers (static unroll; all weights live in VMEM) -----------
    # TODO(synk): for production model sizes, stream per-layer weights via a
    # layer grid axis + BlockSpec index maps (double-buffered) instead of
    # stacking all layers in one VMEM block (v7x has only 64 MiB VMEM).
    for li in range(NUM_LAYERS):
        hb = h.astype(jnp.bfloat16)
        # fused QKV projection: single MXU launch (1/sqrt(HD) pre-folded into q)
        qkv = jnp.dot(hb, wqkv_ref[li],
                      preferred_element_type=jnp.float32) + bqkv_ref[li]      # (BS,3H)
        qkv3 = qkv.reshape(B, S, 3 * H)
        wo_l = wo_ref[li]                                                     # (H,H) bf16

        attn = None
        for hh in range(NH):
            q_h = qkv3[:, :, hh * HD          : hh * HD + HD]                 # (B,S,HD)
            k_h = qkv3[:, :, H + hh * HD      : H + hh * HD + HD]
            v_h = qkv3[:, :, 2 * H + hh * HD  : 2 * H + hh * HD + HD]

            s = jnp.einsum('bqd,bkd->bqk', q_h, k_h,
                           preferred_element_type=jnp.float32) + bias         # (B,S,S)
            m = jnp.max(s, axis=-1, keepdims=True)
            p = jnp.exp(s - m)                                                # f32 softmax
            p = p * pl.reciprocal(jnp.sum(p, axis=-1, keepdims=True), approx=True)
            ctx = jnp.einsum('bqk,bkd->bqd', p, v_h,
                             preferred_element_type=jnp.float32)              # (B,S,HD)
            # head merge folded into the output projection (no lane concat):
            contrib = jnp.dot(ctx.reshape(BS, HD).astype(jnp.bfloat16),
                              wo_l[hh * HD:(hh + 1) * HD, :],
                              preferred_element_type=jnp.float32)             # (BS,H)
            attn = contrib if attn is None else attn + contrib
        attn = attn + bo_ref[li]

        # TODO(synk): dropout inside the transformer is identity in eval mode.
        h1 = _layernorm(h + attn, ln1g_ref[li], ln1b_ref[li])

        f = jnp.dot(h1.astype(jnp.bfloat16), w1_ref[li],
                    preferred_element_type=jnp.float32) + b1_ref[li]
        # TODO(synk): HF BERT uses exact erf-GELU; tanh approx used (EUP friendly).
        f = jax.nn.gelu(f, approximate=True)
        f = jnp.dot(f.astype(jnp.bfloat16), w2_ref[li],
                    preferred_element_type=jnp.float32) + b2_ref[li]
        h = _layernorm(h1 + f, ln2g_ref[li], ln2b_ref[li])
        if hs_ref is not None:
            hs_ref[li + 1] = h.reshape(B, S, H)

    # ----- classifier: lane-dense padded logits (padded cols pinned at -1e9) --
    logits = jnp.dot(h.astype(jnp.bfloat16), wc_ref[...],
                     preferred_element_type=jnp.float32) + bc_ref[...]        # (BS,LPAD)
    logits3 = logits.reshape(B, S, LPAD)
    logits_ref[...] = logits3

    # ----- masked token-level cross entropy (HF convention: label == -100) ----
    labels = labels_ref[...]                                                  # (B,S) int32
    m3 = jnp.max(logits3, axis=-1, keepdims=True)
    lse = m3[..., 0] + jnp.log(jnp.sum(jnp.exp(logits3 - m3), axis=-1))       # (B,S)
    liota = jax.lax.broadcasted_iota(jnp.int32, (B, S, LPAD), 2)
    lonehot = (liota == labels[..., None]).astype(jnp.float32)
    label_logit = jnp.sum(lonehot * logits3, axis=-1)                         # (B,S)
    active = (labels != IGNORE_IDX).astype(jnp.float32)
    per_tok = (lse - label_logit) * active
    loss_ref[0] = jnp.sum(per_tok) / jnp.maximum(jnp.sum(active), 1.0)        # SMEM scalar


# ------------------------------ pallas wrapper --------------------------------
def _full_spec(a):
    nd = a.ndim
    return pl.BlockSpec(a.shape, lambda i, _nd=nd: (0,) * _nd)


def fused_transformer_call(ids, mask_f, labels, packed, output_hidden_states):
    B, S = ids.shape
    args = [ids, mask_f, labels,
            packed["emb"], packed["pos"][:S],
            packed["emb_g"], packed["emb_b"],
            packed["wqkv"], packed["bqkv"], packed["wo"], packed["bo"],
            packed["ln1g"], packed["ln1b"], packed["w1"], packed["b1"],
            packed["w2"], packed["b2"], packed["ln2g"], packed["ln2b"],
            packed["wc"], packed["bc"]]

    out_shape = [jax.ShapeDtypeStruct((B, S, LPAD), jnp.float32),
                 jax.ShapeDtypeStruct((1,), jnp.float32)]
    out_specs = [pl.BlockSpec((B, S, LPAD), lambda i: (0, 0, 0)),
                 pl.BlockSpec(memory_space=pltpu.MemorySpace.SMEM)]
    if output_hidden_states:
        out_shape.append(
            jax.ShapeDtypeStruct((NUM_LAYERS + 1, B, S, HIDDEN), jnp.float32))
        out_specs.append(
            pl.BlockSpec((NUM_LAYERS + 1, B, S, HIDDEN), lambda i: (0, 0, 0, 0)))

    # TODO(synk): for v7x, add a "parallel" leading grid axis over row tiles so
    # both TensorCores get work once batch*seq is large enough to split.
    return pl.pallas_call(
        fused_forward_kernel,
        out_shape=tuple(out_shape),
        grid=(1,),
        in_specs=[_full_spec(a) for a in args],
        out_specs=tuple(out_specs),
        compiler_params=pltpu.CompilerParams(dimension_semantics=("arbitrary",)),
    )(*args)


# ------------------------------- parameters -----------------------------------
def init_params(key):
    std = 0.02

    def dense(k, shape):
        return jax.random.normal(k, shape, jnp.float32) * std

    keys = jax.random.split(key, 4 + NUM_LAYERS)
    params = {
        "tok_emb": dense(keys[0], (VOCAB, HIDDEN)),
        "pos_emb": dense(keys[1], (MAX_POS, HIDDEN)),
        "emb_ln_g": jnp.ones((HIDDEN,), jnp.float32),
        "emb_ln_b": jnp.zeros((HIDDEN,), jnp.float32),
        "wc": dense(keys[2], (HIDDEN, NUM_LABELS)),
        "bc": jnp.zeros((1, NUM_LABELS), jnp.float32),
        "layers": [],
    }
    for li in range(NUM_LAYERS):
        lk = jax.random.split(keys[4 + li], 6)
        layer = {
            "wq": dense(lk[0], (HIDDEN, HIDDEN)), "bq": jnp.zeros((1, HIDDEN), jnp.float32),
            "wk": dense(lk[1], (HIDDEN, HIDDEN)), "bk": jnp.zeros((1, HIDDEN), jnp.float32),
            "wv": dense(lk[2], (HIDDEN, HIDDEN)), "bv": jnp.zeros((1, HIDDEN), jnp.float32),
            "wo": dense(lk[3], (HIDDEN, HIDDEN)), "bo": jnp.zeros((1, HIDDEN), jnp.float32),
            "ln1g": jnp.ones((1, HIDDEN), jnp.float32), "ln1b": jnp.zeros((1, HIDDEN), jnp.float32),
            "w1": dense(lk[4], (HIDDEN, FFN)), "b1": jnp.zeros((1, FFN), jnp.float32),
            "w2": dense(lk[5], (FFN, HIDDEN)), "b2": jnp.zeros((1, HIDDEN), jnp.float32),
            "ln2g": jnp.ones((1, HIDDEN), jnp.float32), "ln2b": jnp.zeros((1, HIDDEN), jnp.float32),
        }
        params["layers"].append(layer)
    return params


def pack_params(params):
    """Fuse QKV into one (H,3H) weight (with 1/sqrt(HD) folded into q), stack
    per-layer weights along a leading layer axis, pad the embedding table to a
    lane-aligned vocab and the classifier to a lane-dense 128-wide label dim
    (padded bias columns pinned at -1e9). Matmul weights bf16, rest f32."""
    scale = 1.0 / (HEAD_DIM ** 0.5)
    layers = params["layers"]

    def stack(name):
        return jnp.stack([l[name] for l in layers], axis=0)

    wqkv = jnp.concatenate([stack("wq") * scale, stack("wk"), stack("wv")], axis=-1)
    bqkv = jnp.concatenate([stack("bq") * scale, stack("bk"), stack("bv")], axis=-1)

    emb_pad = jnp.zeros((VPAD, HIDDEN), jnp.float32).at[:VOCAB].set(params["tok_emb"])
    wc_pad = (jnp.zeros((HIDDEN, LPAD), jnp.float32)
              .at[:, :NUM_LABELS].set(params["wc"])).astype(jnp.bfloat16)
    bc_pad = (jnp.full((1, LPAD), NEG_INF, jnp.float32)
              .at[:, :NUM_LABELS].set(params["bc"]))

    return {
        "emb": emb_pad,                                   # f32, exact lookup
        "pos": params["pos_emb"],                         # (MAX_POS, H) f32
        "emb_g": params["emb_ln_g"].reshape(1, HIDDEN),
        "emb_b": params["emb_ln_b"].reshape(1, HIDDEN),
        "wqkv": wqkv.astype(jnp.bfloat16), "bqkv": bqkv,
        "wo": stack("wo").astype(jnp.bfloat16), "bo": stack("bo"),
        "ln1g": stack("ln1g"), "ln1b": stack("ln1b"),
        "w1": stack("w1").astype(jnp.bfloat16), "b1": stack("b1"),
        "w2": stack("w2").astype(jnp.bfloat16), "b2": stack("b2"),
        "ln2g": stack("ln2g"), "ln2b": stack("ln2b"),
        "wc": wc_pad, "bc": bc_pad,
    }


# ------------------------------- forward pass ---------------------------------
def transformer_forward(packed, input_ids, attention_mask, labels,
                        output_hidden_states=False):
    mask_f = attention_mask.astype(jnp.float32)
    outs = fused_transformer_call(input_ids.astype(jnp.int32), mask_f,
                                  labels.astype(jnp.int32), packed,
                                  output_hidden_states)
    logits_pad, loss = outs[0], outs[1]
    out = {"loss": loss[0], "logits": logits_pad[..., :NUM_LABELS]}
    if output_hidden_states:
        hs = outs[2]
        out["hidden_states"] = tuple(hs[i] for i in range(NUM_LAYERS + 1))
    return out


# ----------------------------------- main --------------------------------------
if __name__ == "__main__":
    key = jax.random.PRNGKey(0)
    pkey, ikey, lkey = jax.random.split(key, 3)

    params = init_params(pkey)
    packed = pack_params(params)

    B, S = 2, SEQ
    input_ids = jax.random.randint(ikey, (B, S), 0, VOCAB, dtype=jnp.int32)
    attention_mask = jnp.array([[1] * S, [1] * (S - 3) + [0] * 3], dtype=jnp.int32)
    labels = jax.random.randint(lkey, (B, S), 0, NUM_LABELS, dtype=jnp.int32)
    # ignore padded positions in the loss (HF convention: label == -100)
    labels = jnp.where(attention_mask == 1, labels, IGNORE_IDX)

    # full path (with hidden-state writeback)
    outputs = transformer_forward(packed, input_ids, attention_mask, labels,
                                  output_hidden_states=True)
    jax.block_until_ready(outputs["loss"])
    jax.block_until_ready(outputs["logits"])

    assert outputs["logits"].shape == (B, S, NUM_LABELS)
    assert outputs["loss"].shape == ()
    assert len(outputs["hidden_states"]) == NUM_LAYERS + 1

    # loss-only fast path (no hidden-state HBM writeback)
    outputs_fast = transformer_forward(packed, input_ids, attention_mask, labels)
    jax.block_until_ready(outputs_fast["loss"])
    assert abs(float(outputs_fast["loss"]) - float(outputs["loss"])) < 1e-5

    print("KERNEL_OK")
</pallas_src>

<mosaic_0001>
module attributes {stable_mosaic.version = 11 : i64} {
  func.func @fused_forward_kernel(%arg0: i32, %arg1: memref<2x8xi32, #tpu.memory_space<vmem>>, %arg2: memref<2x8xf32, #tpu.memory_space<vmem>>, %arg3: memref<2x8xi32, #tpu.memory_space<vmem>>, %arg4: memref<1024x128xf32, #tpu.memory_space<vmem>>, %arg5: memref<8x128xf32, #tpu.memory_space<vmem>>, %arg6: memref<1x128xf32, #tpu.memory_space<vmem>>, %arg7: memref<1x128xf32, #tpu.memory_space<vmem>>, %arg8: memref<2x128x384xbf16, #tpu.memory_space<vmem>>, %arg9: memref<2x1x384xf32, #tpu.memory_space<vmem>>, %arg10: memref<2x128x128xbf16, #tpu.memory_space<vmem>>, %arg11: memref<2x1x128xf32, #tpu.memory_space<vmem>>, %arg12: memref<2x1x128xf32, #tpu.memory_space<vmem>>, %arg13: memref<2x1x128xf32, #tpu.memory_space<vmem>>, %arg14: memref<2x128x512xbf16, #tpu.memory_space<vmem>>, %arg15: memref<2x1x512xf32, #tpu.memory_space<vmem>>, %arg16: memref<2x512x128xbf16, #tpu.memory_space<vmem>>, %arg17: memref<2x1x128xf32, #tpu.memory_space<vmem>>, %arg18: memref<2x1x128xf32, #tpu.memory_space<vmem>>, %arg19: memref<2x1x128xf32, #tpu.memory_space<vmem>>, %arg20: memref<128x128xbf16, #tpu.memory_space<vmem>>, %arg21: memref<1x128xf32, #tpu.memory_space<vmem>>, %arg22: memref<2x8x128xf32, #tpu.memory_space<vmem>>, %arg23: memref<1xf32, #tpu.memory_space<smem>>, %arg24: memref<3x2x8x128xf32, #tpu.memory_space<vmem>>) attributes {dimension_semantics = [#tpu.dimension_semantics<arbitrary>], iteration_bounds = array<i64: 1>, scalar_prefetch = 0 : i64, scratch_operands = 0 : i64, tpu.core_type = #tpu.core_type<tc>, window_params = [{pipeline_mode = #tpu.pipeline_mode<synchronous>, transform_indices = @transform_0, window_bounds = array<i64: 2, 8>}, {pipeline_mode = #tpu.pipeline_mode<synchronous>, transform_indices = @transform_1, window_bounds = array<i64: 2, 8>}, {pipeline_mode = #tpu.pipeline_mode<synchronous>, transform_indices = @transform_2, window_bounds = array<i64: 2, 8>}, {pipeline_mode = #tpu.pipeline_mode<synchronous>, transform_indices = @transform_3, window_bounds = array<i64: 1024, 128>}, {pipeline_mode = #tpu.pipeline_mode<synchronous>, transform_indices = @transform_4, window_bounds = array<i64: 8, 128>}, {pipeline_mode = #tpu.pipeline_mode<synchronous>, transform_indices = @transform_5, window_bounds = array<i64: 1, 128>}, {pipeline_mode = #tpu.pipeline_mode<synchronous>, transform_indices = @transform_6, window_bounds = array<i64: 1, 128>}, {pipeline_mode = #tpu.pipeline_mode<synchronous>, transform_indices = @transform_7, window_bounds = array<i64: 2, 128, 384>}, {pipeline_mode = #tpu.pipeline_mode<synchronous>, transform_indices = @transform_8, window_bounds = array<i64: 2, 1, 384>}, {pipeline_mode = #tpu.pipeline_mode<synchronous>, transform_indices = @transform_9, window_bounds = array<i64: 2, 128, 128>}, {pipeline_mode = #tpu.pipeline_mode<synchronous>, transform_indices = @transform_10, window_bounds = array<i64: 2, 1, 128>}, {pipeline_mode = #tpu.pipeline_mode<synchronous>, transform_indices = @transform_11, window_bounds = array<i64: 2, 1, 128>}, {pipeline_mode = #tpu.pipeline_mode<synchronous>, transform_indices = @transform_12, window_bounds = array<i64: 2, 1, 128>}, {pipeline_mode = #tpu.pipeline_mode<synchronous>, transform_indices = @transform_13, window_bounds = array<i64: 2, 128, 512>}, {pipeline_mode = #tpu.pipeline_mode<synchronous>, transform_indices = @transform_14, window_bounds = array<i64: 2, 1, 512>}, {pipeline_mode = #tpu.pipeline_mode<synchronous>, transform_indices = @transform_15, window_bounds = array<i64: 2, 512, 128>}, {pipeline_mode = #tpu.pipeline_mode<synchronous>, transform_indices = @transform_16, window_bounds = array<i64: 2, 1, 128>}, {pipeline_mode = #tpu.pipeline_mode<synchronous>, transform_indices = @transform_17, window_bounds = array<i64: 2, 1, 128>}, {pipeline_mode = #tpu.pipeline_mode<synchronous>, transform_indices = @transform_18, window_bounds = array<i64: 2, 1, 128>}, {pipeline_mode = #tpu.pipeline_mode<synchronous>, transform_indices = @transform_19, window_bounds = array<i64: 128, 128>}, {pipeline_mode = #tpu.pipeline_mode<synchronous>, transform_indices = @transform_20, window_bounds = array<i64: 1, 128>}, {pipeline_mode = #tpu.pipeline_mode<synchronous>, transform_indices = @transform_21, window_bounds = array<i64: 2, 8, 128>}, {transform_indices = @transform_22, window_bounds = array<i64: 1>}, {pipeline_mode = #tpu.pipeline_mode<synchronous>, transform_indices = @transform_23, window_bounds = array<i64: 3, 2, 8, 128>}]} {
    %c0 = arith.constant 0 : index
    %c0_0 = arith.constant 0 : index
    %0 = vector.load %arg1[%c0, %c0_0] : memref<2x8xi32, #tpu.memory_space<vmem>>, vector<2x8xi32>
    %1 = tpu.iota {dimensions = array<i32: 2>} : vector<2x8x1024xi32>
    %2 = vector.shape_cast %0 : vector<2x8xi32> to vector<2x8x1xi32>
    %3 = vector.broadcast %2 : vector<2x8x1xi32> to vector<2x8x1024xi32>
    %4 = arith.cmpi eq, %1, %3 : vector<2x8x1024xi32>
    %5 = arith.extui %4 : vector<2x8x1024xi1> to vector<2x8x1024xi32>
    %6 = arith.sitofp %5 : vector<2x8x1024xi32> to vector<2x8x1024xf32>
    %7 = vector.shape_cast %6 : vector<2x8x1024xf32> to vector<16x1024xf32>
    %c0_1 = arith.constant 0 : index
    %c0_2 = arith.constant 0 : index
    %8 = vector.load %arg4[%c0_1, %c0_2] : memref<1024x128xf32, #tpu.memory_space<vmem>>, vector<1024x128xf32>
    %cst = arith.constant dense<0.000000e+00> : vector<16x128xf32>
    %9 = tpu.matmul %7, %8, %cst {dimension_numbers = #tpu.dot_dimension_numbers<[1], [0], [0], [1], [0, 0, 1, 1], [], []>} : vector<16x1024xf32>, vector<1024x128xf32>, vector<16x128xf32> -> vector<16x128xf32>
    %10 = vector.shape_cast %9 : vector<16x128xf32> to vector<2x8x128xf32>
    %c0_3 = arith.constant 0 : index
    %c0_4 = arith.constant 0 : index
    %11 = vector.load %arg5[%c0_3, %c0_4] : memref<8x128xf32, #tpu.memory_space<vmem>>, vector<8x128xf32>
    %12 = vector.shape_cast %11 : vector<8x128xf32> to vector<1x8x128xf32>
    %13 = vector.broadcast %12 : vector<1x8x128xf32> to vector<2x8x128xf32>
    %14 = arith.addf %10, %13 : vector<2x8x128xf32>
    %15 = vector.shape_cast %14 : vector<2x8x128xf32> to vector<16x128xf32>
    %c0_5 = arith.constant 0 : index
    %c0_6 = arith.constant 0 : index
    %16 = vector.load %arg6[%c0_5, %c0_6] : memref<1x128xf32, #tpu.memory_space<vmem>>, vector<1x128xf32>
    %c0_7 = arith.constant 0 : index
    %c0_8 = arith.constant 0 : index
    %17 = vector.load %arg7[%c0_7, %c0_8] : memref<1x128xf32, #tpu.memory_space<vmem>>, vector<1x128xf32>
    %cst_9 = arith.constant dense<0.000000e+00> : vector<16xf32>
    %18 = vector.multi_reduction <add>, %15, %cst_9 [1] : vector<16x128xf32> to vector<16xf32>
    %19 = vector.shape_cast %18 : vector<16xf32> to vector<16x1xf32>
    %cst_10 = arith.constant 1.280000e+02 : f32
    %20 = vector.broadcast %cst_10 : f32 to vector<16x1xf32>
    %21 = arith.divf %19, %20 : vector<16x1xf32>
    %22 = vector.broadcast %21 : vector<16x1xf32> to vector<16x128xf32>
    %23 = arith.subf %15, %22 : vector<16x128xf32>
    %24 = arith.mulf %23, %23 : vector<16x128xf32>
    %cst_11 = arith.constant dense<0.000000e+00> : vector<16xf32>
    %25 = vector.multi_reduction <add>, %24, %cst_11 [1] : vector<16x128xf32> to vector<16xf32>
    %26 = vector.shape_cast %25 : vector<16xf32> to vector<16x1xf32>
    %cst_12 = arith.constant 1.280000e+02 : f32
    %27 = vector.broadcast %cst_12 : f32 to vector<16x1xf32>
    %28 = arith.divf %26, %27 : vector<16x1xf32>
    %29 = vector.broadcast %21 : vector<16x1xf32> to vector<16x128xf32>
    %30 = arith.subf %15, %29 : vector<16x128xf32>
    %cst_13 = arith.constant 9.99999996E-13 : f32
    %31 = vector.broadcast %cst_13 : f32 to vector<16x1xf32>
    %32 = arith.addf %28, %31 : vector<16x1xf32>
    %33 = math.rsqrt %32 : vector<16x1xf32>
    %34 = vector.broadcast %33 : vector<16x1xf32> to vector<16x128xf32>
    %35 = arith.mulf %30, %34 : vector<16x128xf32>
    %36 = vector.broadcast %16 : vector<1x128xf32> to vector<16x128xf32>
    %37 = arith.mulf %35, %36 : vector<16x128xf32>
    %38 = vector.broadcast %17 : vector<1x128xf32> to vector<16x128xf32>
    %39 = arith.addf %37, %38 : vector<16x128xf32>
    %40 = vector.shape_cast %39 : vector<16x128xf32> to vector<2x8x128xf32>
    %c0_14 = arith.constant 0 : index
    %c0_15 = arith.constant 0 : index
    %c0_16 = arith.constant 0 : index
    %c0_17 = arith.constant 0 : index
    %41 = vector.load %arg24[%c0_14, %c0_15, %c0_16, %c0_17] : memref<3x2x8x128xf32, #tpu.memory_space<vmem>>, vector<1x2x8x128xf32>
    %42 = vector.shape_cast %41 : vector<1x2x8x128xf32> to vector<2x8x128xf32>
    %43 = vector.shape_cast %40 : vector<2x8x128xf32> to vector<1x2x8x128xf32>
    tpu.vector_store %arg24[%c0_14, %c0_15, %c0_16, %c0_17], %43 {strides = array<i32>} : memref<3x2x8x128xf32, #tpu.memory_space<vmem>>, vector<1x2x8x128xf32>,
    %c0_18 = arith.constant 0 : index
    %c0_19 = arith.constant 0 : index
    %44 = vector.load %arg2[%c0_18, %c0_19] : memref<2x8xf32, #tpu.memory_space<vmem>>, vector<2x8xf32>
    %cst_20 = arith.constant 1.000000e+00 : f32
    %45 = vector.broadcast %cst_20 : f32 to vector<2x8xf32>
    %46 = arith.subf %45, %44 : vector<2x8xf32>
    %cst_21 = arith.constant -1.000000e+09 : f32
    %47 = vector.broadcast %cst_21 : f32 to vector<2x8xf32>
    %48 = arith.mulf %46, %47 : vector<2x8xf32>
    %49 = vector.shape_cast %48 : vector<2x8xf32> to vector<2x1x8xf32>
    %50 = arith.truncf %39 : vector<16x128xf32> to vector<16x128xbf16>
    %c0_22 = arith.constant 0 : index
    %c0_23 = arith.constant 0 : index
    %c0_24 = arith.constant 0 : index
    %51 = vector.load %arg8[%c0_22, %c0_23, %c0_24] : memref<2x128x384xbf16, #tpu.memory_space<vmem>>, vector<1x128x384xbf16>
    %52 = vector.shape_cast %51 : vector<1x128x384xbf16> to vector<128x384xbf16>
    %cst_25 = arith.constant dense<0.000000e+00> : vector<16x384xf32>
    %53 = tpu.matmul %50, %52, %cst_25 {dimension_numbers = #tpu.dot_dimension_numbers<[1], [0], [0], [1], [0, 0, 1, 1], [], []>} : vector<16x128xbf16>, vector<128x384xbf16>, vector<16x384xf32> -> vector<16x384xf32>
    %c0_26 = arith.constant 0 : index
    %c0_27 = arith.constant 0 : index
    %c0_28 = arith.constant 0 : index
    %54 = vector.load %arg9[%c0_26, %c0_27, %c0_28] : memref<2x1x384xf32, #tpu.memory_space<vmem>>, vector<1x1x384xf32>
    %55 = vector.shape_cast %54 : vector<1x1x384xf32> to vector<1x384xf32>
    %56 = vector.broadcast %55 : vector<1x384xf32> to vector<16x384xf32>
    %57 = arith.addf %53, %56 : vector<16x384xf32>
    %58 = vector.shape_cast %57 : vector<16x384xf32> to vector<2x8x384xf32>
    %c0_29 = arith.constant 0 : index
    %c0_30 = arith.constant 0 : index
    %c0_31 = arith.constant 0 : index
    %59 = vector.load %arg10[%c0_29, %c0_30, %c0_31] : memref<2x128x128xbf16, #tpu.memory_space<vmem>>, vector<1x128x128xbf16>
    %60 = vector.shape_cast %59 : vector<1x128x128xbf16> to vector<128x128xbf16>
    %61 = vector.extract_strided_slice %58 {offsets = [0, 0, 0], sizes = [2, 8, 32], strides = [1, 1, 1]} : vector<2x8x384xf32> to vector<2x8x32xf32>
    %62 = vector.extract_strided_slice %58 {offsets = [0, 0, 128], sizes = [2, 8, 32], strides = [1, 1, 1]} : vector<2x8x384xf32> to vector<2x8x32xf32>
    %63 = vector.extract_strided_slice %58 {offsets = [0, 0, 256], sizes = [2, 8, 32], strides = [1, 1, 1]} : vector<2x8x384xf32> to vector<2x8x32xf32>
    "tpu.trace_start"() <{level = 10 : i32, message = "bqd,bkd->bqk"}> : () -> ()
    %cst_32 = arith.constant dense<0.000000e+00> : vector<2x8x8xf32>
    %64 = tpu.matmul %61, %62, %cst_32 {dimension_numbers = #tpu.dot_dimension_numbers<[2], [2], [1], [1], [0, 0, 0, 1, 1, 1], [0], [0]>} : vector<2x8x32xf32>, vector<2x8x32xf32>, vector<2x8x8xf32> -> vector<2x8x8xf32>
    "tpu.trace_stop"() : () -> ()
    %65 = vector.broadcast %49 : vector<2x1x8xf32> to vector<2x8x8xf32>
    %66 = arith.addf %64, %65 : vector<2x8x8xf32>
    %cst_33 = arith.constant dense<0xFF800000> : vector<2x8xf32>
    %67 = vector.multi_reduction <maximumf>, %66, %cst_33 [2] : vector<2x8x8xf32> to vector<2x8xf32>
    %68 = vector.shape_cast %67 : vector<2x8xf32> to vector<2x8x1xf32>
    %69 = vector.broadcast %68 : vector<2x8x1xf32> to vector<2x8x8xf32>
    %70 = arith.subf %66, %69 : vector<2x8x8xf32>
    %71 = math.exp %70 : vector<2x8x8xf32>
    %cst_34 = arith.constant dense<0.000000e+00> : vector<2x8xf32>
    %72 = vector.multi_reduction <add>, %71, %cst_34 [2] : vector<2x8x8xf32> to vector<2x8xf32>
    %73 = vector.shape_cast %72 : vector<2x8xf32> to vector<2x8x1xf32>
    %74 = tpu.reciprocal %73 {approx = true} : vector<2x8x1xf32> -> vector<2x8x1xf32>
    %75 = vector.broadcast %74 : vector<2x8x1xf32> to vector<2x8x8xf32>
    %76 = arith.mulf %71, %75 : vector<2x8x8xf32>
    "tpu.trace_start"() <{level = 10 : i32, message = "bqk,bkd->bqd"}> : () -> ()
    %cst_35 = arith.constant dense<0.000000e+00> : vector<2x8x32xf32>
    %77 = tpu.matmul %76, %63, %cst_35 {dimension_numbers = #tpu.dot_dimension_numbers<[2], [1], [1], [2], [0, 0, 0, 1, 1, 2], [0], [0]>} : vector<2x8x8xf32>, vector<2x8x32xf32>, vector<2x8x32xf32> -> vector<2x8x32xf32>
    "tpu.trace_stop"() : () -> ()
    %78 = vector.shape_cast %77 : vector<2x8x32xf32> to vector<16x32xf32>
    %79 = arith.truncf %78 : vector<16x32xf32> to vector<16x32xbf16>
    %80 = vector.extract_strided_slice %60 {offsets = [0, 0], sizes = [32, 128], strides = [1, 1]} : vector<128x128xbf16> to vector<32x128xbf16>
    %cst_36 = arith.constant dense<0.000000e+00> : vector<16x128xf32>
    %81 = tpu.matmul %79, %80, %cst_36 {dimension_numbers = #tpu.dot_dimension_numbers<[1], [0], [0], [1], [0, 0, 1, 1], [], []>} : vector<16x32xbf16>, vector<32x128xbf16>, vector<16x128xf32> -> vector<16x128xf32>
    %82 = vector.extract_strided_slice %58 {offsets = [0, 0, 32], sizes = [2, 8, 32], strides = [1, 1, 1]} : vector<2x8x384xf32> to vector<2x8x32xf32>
    %83 = vector.extract_strided_slice %58 {offsets = [0, 0, 160], sizes = [2, 8, 32], strides = [1, 1, 1]} : vector<2x8x384xf32> to vector<2x8x32xf32>
    %84 = vector.extract_strided_slice %58 {offsets = [0, 0, 288], sizes = [2, 8, 32], strides = [1, 1, 1]} : vector<2x8x384xf32> to vector<2x8x32xf32>
    "tpu.trace_start"() <{level = 10 : i32, message = "bqd,bkd->bqk"}> : () -> ()
    %cst_37 = arith.constant dense<0.000000e+00> : vector<2x8x8xf32>
    %85 = tpu.matmul %82, %83, %cst_37 {dimension_numbers = #tpu.dot_dimension_numbers<[2], [2], [1], [1], [0, 0, 0, 1, 1, 1], [0], [0]>} : vector<2x8x32xf32>, vector<2x8x32xf32>, vector<2x8x8xf32> -> vector<2x8x8xf32>
    "tpu.trace_stop"() : () -> ()
    %86 = vector.broadcast %49 : vector<2x1x8xf32> to vector<2x8x8xf32>
    %87 = arith.addf %85, %86 : vector<2x8x8xf32>
    %cst_38 = arith.constant dense<0xFF800000> : vector<2x8xf32>
    %88 = vector.multi_reduction <maximumf>, %87, %cst_38 [2] : vector<2x8x8xf32> to vector<2x8xf32>
    %89 = vector.shape_cast %88 : vector<2x8xf32> to vector<2x8x1xf32>
    %90 = vector.broadcast %89 : vector<2x8x1xf32> to vector<2x8x8xf32>
    %91 = arith.subf %87, %90 : vector<2x8x8xf32>
    %92 = math.exp %91 : vector<2x8x8xf32>
    %cst_39 = arith.constant dense<0.000000e+00> : vector<2x8xf32>
    %93 = vector.multi_reduction <add>, %92, %cst_39 [2] : vector<2x8x8xf32> to vector<2x8xf32>
    %94 = vector.shape_cast %93 : vector<2x8xf32> to vector<2x8x1xf32>
    %95 = tpu.reciprocal %94 {approx = true} : vector<2x8x1xf32> -> vector<2x8x1xf32>
    %96 = vector.broadcast %95 : vector<2x8x1xf32> to vector<2x8x8xf32>
    %97 = arith.mulf %92, %96 : vector<2x8x8xf32>
    "tpu.trace_start"() <{level = 10 : i32, message = "bqk,bkd->bqd"}> : () -> ()
    %cst_40 = arith.constant dense<0.000000e+00> : vector<2x8x32xf32>
    %98 = tpu.matmul %97, %84, %cst_40 {dimension_numbers = #tpu.dot_dimension_numbers<[2], [1], [1], [2], [0, 0, 0, 1, 1, 2], [0], [0]>} : vector<2x8x8xf32>, vector<2x8x32xf32>, vector<2x8x32xf32> -> vector<2x8x32xf32>
    "tpu.trace_stop"() : () -> ()
    %99 = vector.shape_cast %98 : vector<2x8x32xf32> to vector<16x32xf32>
    %100 = arith.truncf %99 : vector<16x32xf32> to vector<16x32xbf16>
    %101 = vector.extract_strided_slice %60 {offsets = [32, 0], sizes = [32, 128], strides = [1, 1]} : vector<128x128xbf16> to vector<32x128xbf16>
    %cst_41 = arith.constant dense<0.000000e+00> : vector<16x128xf32>
    %102 = tpu.matmul %100, %101, %cst_41 {dimension_numbers = #tpu.dot_dimension_numbers<[1], [0], [0], [1], [0, 0, 1, 1], [], []>} : vector<16x32xbf16>, vector<32x128xbf16>, vector<16x128xf32> -> vector<16x128xf32>
    %103 = arith.addf %81, %102 : vector<16x128xf32>
    %104 = vector.extract_strided_slice %58 {offsets = [0, 0, 64], sizes = [2, 8, 32], strides = [1, 1, 1]} : vector<2x8x384xf32> to vector<2x8x32xf32>
    %105 = vector.extract_strided_slice %58 {offsets = [0, 0, 192], sizes = [2, 8, 32], strides = [1, 1, 1]} : vector<2x8x384xf32> to vector<2x8x32xf32>
    %106 = vector.extract_strided_slice %58 {offsets = [0, 0, 320], sizes = [2, 8, 32], strides = [1, 1, 1]} : vector<2x8x384xf32> to vector<2x8x32xf32>
    "tpu.trace_start"() <{level = 10 : i32, message = "bqd,bkd->bqk"}> : () -> ()
    %cst_42 = arith.constant dense<0.000000e+00> : vector<2x8x8xf32>
    %107 = tpu.matmul %104, %105, %cst_42 {dimension_numbers = #tpu.dot_dimension_numbers<[2], [2], [1], [1], [0, 0, 0, 1, 1, 1], [0], [0]>} : vector<2x8x32xf32>, vector<2x8x32xf32>, vector<2x8x8xf32> -> vector<2x8x8xf32>
    "tpu.trace_stop"() : () -> ()
    %108 = vector.broadcast %49 : vector<2x1x8xf32> to vector<2x8x8xf32>
    %109 = arith.addf %107, %108 : vector<2x8x8xf32>
    %cst_43 = arith.constant dense<0xFF800000> : vector<2x8xf32>
    %110 = vector.multi_reduction <maximumf>, %109, %cst_43 [2] : vector<2x8x8xf32> to vector<2x8xf32>
    %111 = vector.shape_cast %110 : vector<2x8xf32> to vector<2x8x1xf32>
    %112 = vector.broadcast %111 : vector<2x8x1xf32> to vector<2x8x8xf32>
    %113 = arith.subf %109, %112 : vector<2x8x8xf32>
    %114 = math.exp %113 : vector<2x8x8xf32>
    %cst_44 = arith.constant dense<0.000000e+00> : vector<2x8xf32>
    %115 = vector.multi_reduction <add>, %114, %cst_44 [2] : vector<2x8x8xf32> to vector<2x8xf32>
    %116 = vector.shape_cast %115 : vector<2x8xf32> to vector<2x8x1xf32>
    %117 = tpu.reciprocal %116 {approx = true} : vector<2x8x1xf32> -> vector<2x8x1xf32>
    %118 = vector.broadcast %117 : vector<2x8x1xf32> to vector<2x8x8xf32>
    %119 = arith.mulf %114, %118 : vector<2x8x8xf32>
    "tpu.trace_start"() <{level = 10 : i32, message = "bqk,bkd->bqd"}> : () -> ()
    %cst_45 = arith.constant dense<0.000000e+00> : vector<2x8x32xf32>
    %120 = tpu.matmul %119, %106, %cst_45 {dimension_numbers = #tpu.dot_dimension_numbers<[2], [1], [1], [2], [0, 0, 0, 1, 1, 2], [0], [0]>} : vector<2x8x8xf32>, vector<2x8x32xf32>, vector<2x8x32xf32> -> vector<2x8x32xf32>
    "tpu.trace_stop"() : () -> ()
    %121 = vector.shape_cast %120 : vector<2x8x32xf32> to vector<16x32xf32>
    %122 = arith.truncf %121 : vector<16x32xf32> to vector<16x32xbf16>
    %123 = vector.extract_strided_slice %60 {offsets = [64, 0], sizes = [32, 128], strides = [1, 1]} : vector<128x128xbf16> to vector<32x128xbf16>
    %cst_46 = arith.constant dense<0.000000e+00> : vector<16x128xf32>
    %124 = tpu.matmul %122, %123, %cst_46 {dimension_numbers = #tpu.dot_dimension_numbers<[1], [0], [0], [1], [0, 0, 1, 1], [], []>} : vector<16x32xbf16>, vector<32x128xbf16>, vector<16x128xf32> -> vector<16x128xf32>
    %125 = arith.addf %103, %124 : vector<16x128xf32>
    %126 = vector.extract_strided_slice %58 {offsets = [0, 0, 96], sizes = [2, 8, 32], strides = [1, 1, 1]} : vector<2x8x384xf32> to vector<2x8x32xf32>
    %127 = vector.extract_strided_slice %58 {offsets = [0, 0, 224], sizes = [2, 8, 32], strides = [1, 1, 1]} : vector<2x8x384xf32> to vector<2x8x32xf32>
    %128 = vector.extract_strided_slice %58 {offsets = [0, 0, 352], sizes = [2, 8, 32], strides = [1, 1, 1]} : vector<2x8x384xf32> to vector<2x8x32xf32>
    "tpu.trace_start"() <{level = 10 : i32, message = "bqd,bkd->bqk"}> : () -> ()
    %cst_47 = arith.constant dense<0.000000e+00> : vector<2x8x8xf32>
    %129 = tpu.matmul %126, %127, %cst_47 {dimension_numbers = #tpu.dot_dimension_numbers<[2], [2], [1], [1], [0, 0, 0, 1, 1, 1], [0], [0]>} : vector<2x8x32xf32>, vector<2x8x32xf32>, vector<2x8x8xf32> -> vector<2x8x8xf32>
    "tpu.trace_stop"() : () -> ()
    %130 = vector.broadcast %49 : vector<2x1x8xf32> to vector<2x8x8xf32>
    %131 = arith.addf %129, %130 : vector<2x8x8xf32>
    %cst_48 = arith.constant dense<0xFF800000> : vector<2x8xf32>
    %132 = vector.multi_reduction <maximumf>, %131, %cst_48 [2] : vector<2x8x8xf32> to vector<2x8xf32>
    %133 = vector.shape_cast %132 : vector<2x8xf32> to vector<2x8x1xf32>
    %134 = vector.broadcast %133 : vector<2x8x1xf32> to vector<2x8x8xf32>
    %135 = arith.subf %131, %134 : vector<2x8x8xf32>
    %136 = math.exp %135 : vector<2x8x8xf32>
    %cst_49 = arith.constant dense<0.000000e+00> : vector<2x8xf32>
    %137 = vector.multi_reduction <add>, %136, %cst_49 [2] : vector<2x8x8xf32> to vector<2x8xf32>
    %138 = vector.shape_cast %137 : vector<2x8xf32> to vector<2x8x1xf32>
    %139 = tpu.reciprocal %138 {approx = true} : vector<2x8x1xf32> -> vector<2x8x1xf32>
    %140 = vector.broadcast %139 : vector<2x8x1xf32> to vector<2x8x8xf32>
    %141 = arith.mulf %136, %140 : vector<2x8x8xf32>
    "tpu.trace_start"() <{level = 10 : i32, message = "bqk,bkd->bqd"}> : () -> ()
    %cst_50 = arith.constant dense<0.000000e+00> : vector<2x8x32xf32>
    %142 = tpu.matmul %141, %128, %cst_50 {dimension_numbers = #tpu.dot_dimension_numbers<[2], [1], [1], [2], [0, 0, 0, 1, 1, 2], [0], [0]>} : vector<2x8x8xf32>, vector<2x8x32xf32>, vector<2x8x32xf32> -> vector<2x8x32xf32>
    "tpu.trace_stop"() : () -> ()
    %143 = vector.shape_cast %142 : vector<2x8x32xf32> to vector<16x32xf32>
    %144 = arith.truncf %143 : vector<16x32xf32> to vector<16x32xbf16>
    %145 = vector.extract_strided_slice %60 {offsets = [96, 0], sizes = [32, 128], strides = [1, 1]} : vector<128x128xbf16> to vector<32x128xbf16>
    %cst_51 = arith.constant dense<0.000000e+00> : vector<16x128xf32>
    %146 = tpu.matmul %144, %145, %cst_51 {dimension_numbers = #tpu.dot_dimension_numbers<[1], [0], [0], [1], [0, 0, 1, 1], [], []>} : vector<16x32xbf16>, vector<32x128xbf16>, vector<16x128xf32> -> vector<16x128xf32>
    %147 = arith.addf %125, %146 : vector<16x128xf32>
    %c0_52 = arith.constant 0 : index
    %c0_53 = arith.constant 0 : index
    %c0_54 = arith.constant 0 : index
    %148 = vector.load %arg11[%c0_52, %c0_53, %c0_54] : memref<2x1x128xf32, #tpu.memory_space<vmem>>, vector<1x1x128xf32>
    %149 = vector.shape_cast %148 : vector<1x1x128xf32> to vector<1x128xf32>
    %150 = vector.broadcast %149 : vector<1x128xf32> to vector<16x128xf32>
    %151 = arith.addf %147, %150 : vector<16x128xf32>
    %152 = arith.addf %39, %151 : vector<16x128xf32>
    %c0_55 = arith.constant 0 : index
    %c0_56 = arith.constant 0 : index
    %c0_57 = arith.constant 0 : index
    %153 = vector.load %arg12[%c0_55, %c0_56, %c0_57] : memref<2x1x128xf32, #tpu.memory_space<vmem>>, vector<1x1x128xf32>
    %154 = vector.shape_cast %153 : vector<1x1x128xf32> to vector<1x128xf32>
    %c0_58 = arith.constant 0 : index
    %c0_59 = arith.constant 0 : index
    %c0_60 = arith.constant 0 : index
    %155 = vector.load %arg13[%c0_58, %c0_59, %c0_60] : memref<2x1x128xf32, #tpu.memory_space<vmem>>, vector<1x1x128xf32>
    %156 = vector.shape_cast %155 : vector<1x1x128xf32> to vector<1x128xf32>
    %cst_61 = arith.constant dense<0.000000e+00> : vector<16xf32>
    %157 = vector.multi_reduction <add>, %152, %cst_61 [1] : vector<16x128xf32> to vector<16xf32>
    %158 = vector.shape_cast %157 : vector<16xf32> to vector<16x1xf32>
    %cst_62 = arith.constant 1.280000e+02 : f32
    %159 = vector.broadcast %cst_62 : f32 to vector<16x1xf32>
    %160 = arith.divf %158, %159 : vector<16x1xf32>
    %161 = vector.broadcast %160 : vector<16x1xf32> to vector<16x128xf32>
    %162 = arith.subf %152, %161 : vector<16x128xf32>
    %163 = arith.mulf %162, %162 : vector<16x128xf32>
    %cst_63 = arith.constant dense<0.000000e+00> : vector<16xf32>
    %164 = vector.multi_reduction <add>, %163, %cst_63 [1] : vector<16x128xf32> to vector<16xf32>
    %165 = vector.shape_cast %164 : vector<16xf32> to vector<16x1xf32>
    %cst_64 = arith.constant 1.280000e+02 : f32
    %166 = vector.broadcast %cst_64 : f32 to vector<16x1xf32>
    %167 = arith.divf %165, %166 : vector<16x1xf32>
    %168 = vector.broadcast %160 : vector<16x1xf32> to vector<16x128xf32>
    %169 = arith.subf %152, %168 : vector<16x128xf32>
    %cst_65 = arith.constant 9.99999996E-13 : f32
    %170 = vector.broadcast %cst_65 : f32 to vector<16x1xf32>
    %171 = arith.addf %167, %170 : vector<16x1xf32>
    %172 = math.rsqrt %171 : vector<16x1xf32>
    %173 = vector.broadcast %172 : vector<16x1xf32> to vector<16x128xf32>
    %174 = arith.mulf %169, %173 : vector<16x128xf32>
    %175 = vector.broadcast %154 : vector<1x128xf32> to vector<16x128xf32>
    %176 = arith.mulf %174, %175 : vector<16x128xf32>
    %177 = vector.broadcast %156 : vector<1x128xf32> to vector<16x128xf32>
    %178 = arith.addf %176, %177 : vector<16x128xf32>
    %179 = arith.truncf %178 : vector<16x128xf32> to vector<16x128xbf16>
    %c0_66 = arith.constant 0 : index
    %c0_67 = arith.constant 0 : index
    %c0_68 = arith.constant 0 : index
    %180 = vector.load %arg14[%c0_66, %c0_67, %c0_68] : memref<2x128x512xbf16, #tpu.memory_space<vmem>>, vector<1x128x512xbf16>
    %181 = vector.shape_cast %180 : vector<1x128x512xbf16> to vector<128x512xbf16>
    %cst_69 = arith.constant dense<0.000000e+00> : vector<16x512xf32>
    %182 = tpu.matmul %179, %181, %cst_69 {dimension_numbers = #tpu.dot_dimension_numbers<[1], [0], [0], [1], [0, 0, 1, 1], [], []>} : vector<16x128xbf16>, vector<128x512xbf16>, vector<16x512xf32> -> vector<16x512xf32>
    %c0_70 = arith.constant 0 : index
    %c0_71 = arith.constant 0 : index
    %c0_72 = arith.constant 0 : index
    %183 = vector.load %arg15[%c0_70, %c0_71, %c0_72] : memref<2x1x512xf32, #tpu.memory_space<vmem>>, vector<1x1x512xf32>
    %184 = vector.shape_cast %183 : vector<1x1x512xf32> to vector<1x512xf32>
    %185 = vector.broadcast %184 : vector<1x512xf32> to vector<16x512xf32>
    %186 = arith.addf %182, %185 : vector<16x512xf32>
    %187 = arith.mulf %186, %186 : vector<16x512xf32>
    %188 = arith.mulf %186, %187 : vector<16x512xf32>
    %cst_73 = arith.constant 4.471500e-02 : f32
    %189 = vector.broadcast %cst_73 : f32 to vector<16x512xf32>
    %190 = arith.mulf %189, %188 : vector<16x512xf32>
    %191 = arith.addf %186, %190 : vector<16x512xf32>
    %cst_74 = arith.constant 0.797884583 : f32
    %192 = vector.broadcast %cst_74 : f32 to vector<16x512xf32>
    %193 = arith.mulf %192, %191 : vector<16x512xf32>
    %194 = math.tanh %193 : vector<16x512xf32>
    %cst_75 = arith.constant 1.000000e+00 : f32
    %195 = vector.broadcast %cst_75 : f32 to vector<16x512xf32>
    %196 = arith.addf %195, %194 : vector<16x512xf32>
    %cst_76 = arith.constant 5.000000e-01 : f32
    %197 = vector.broadcast %cst_76 : f32 to vector<16x512xf32>
    %198 = arith.mulf %197, %196 : vector<16x512xf32>
    %199 = arith.mulf %186, %198 : vector<16x512xf32>
    %200 = arith.truncf %199 : vector<16x512xf32> to vector<16x512xbf16>
    %c0_77 = arith.constant 0 : index
    %c0_78 = arith.constant 0 : index
    %c0_79 = arith.constant 0 : index
    %201 = vector.load %arg16[%c0_77, %c0_78, %c0_79] : memref<2x512x128xbf16, #tpu.memory_space<vmem>>, vector<1x512x128xbf16>
    %202 = vector.shape_cast %201 : vector<1x512x128xbf16> to vector<512x128xbf16>
    %cst_80 = arith.constant dense<0.000000e+00> : vector<16x128xf32>
    %203 = tpu.matmul %200, %202, %cst_80 {dimension_numbers = #tpu.dot_dimension_numbers<[1], [0], [0], [1], [0, 0, 1, 1], [], []>} : vector<16x512xbf16>, vector<512x128xbf16>, vector<16x128xf32> -> vector<16x128xf32>
    %c0_81 = arith.constant 0 : index
    %c0_82 = arith.constant 0 : index
    %c0_83 = arith.constant 0 : index
    %204 = vector.load %arg17[%c0_81, %c0_82, %c0_83] : memref<2x1x128xf32, #tpu.memory_space<vmem>>, vector<1x1x128xf32>
    %205 = vector.shape_cast %204 : vector<1x1x128xf32> to vector<1x128xf32>
    %206 = vector.broadcast %205 : vector<1x128xf32> to vector<16x128xf32>
    %207 = arith.addf %203, %206 : vector<16x128xf32>
    %208 = arith.addf %178, %207 : vector<16x128xf32>
    %c0_84 = arith.constant 0 : index
    %c0_85 = arith.constant 0 : index
    %c0_86 = arith.constant 0 : index
    %209 = vector.load %arg18[%c0_84, %c0_85, %c0_86] : memref<2x1x128xf32, #tpu.memory_space<vmem>>, vector<1x1x128xf32>
    %210 = vector.shape_cast %209 : vector<1x1x128xf32> to vector<1x128xf32>
    %c0_87 = arith.constant 0 : index
    %c0_88 = arith.constant 0 : index
    %c0_89 = arith.constant 0 : index
    %211 = vector.load %arg19[%c0_87, %c0_88, %c0_89] : memref<2x1x128xf32, #tpu.memory_space<vmem>>, vector<1x1x128xf32>
    %212 = vector.shape_cast %211 : vector<1x1x128xf32> to vector<1x128xf32>
    %cst_90 = arith.constant dense<0.000000e+00> : vector<16xf32>
    %213 = vector.multi_reduction <add>, %208, %cst_90 [1] : vector<16x128xf32> to vector<16xf32>
    %214 = vector.shape_cast %213 : vector<16xf32> to vector<16x1xf32>
    %cst_91 = arith.constant 1.280000e+02 : f32
    %215 = vector.broadcast %cst_91 : f32 to vector<16x1xf32>
    %216 = arith.divf %214, %215 : vector<16x1xf32>
    %217 = vector.broadcast %216 : vector<16x1xf32> to vector<16x128xf32>
    %218 = arith.subf %208, %217 : vector<16x128xf32>
    %219 = arith.mulf %218, %218 : vector<16x128xf32>
    %cst_92 = arith.constant dense<0.000000e+00> : vector<16xf32>
    %220 = vector.multi_reduction <add>, %219, %cst_92 [1] : vector<16x128xf32> to vector<16xf32>
    %221 = vector.shape_cast %220 : vector<16xf32> to vector<16x1xf32>
    %cst_93 = arith.constant 1.280000e+02 : f32
    %222 = vector.broadcast %cst_93 : f32 to vector<16x1xf32>
    %223 = arith.divf %221, %222 : vector<16x1xf32>
    %224 = vector.broadcast %216 : vector<16x1xf32> to vector<16x128xf32>
    %225 = arith.subf %208, %224 : vector<16x128xf32>
    %cst_94 = arith.constant 9.99999996E-13 : f32
    %226 = vector.broadcast %cst_94 : f32 to vector<16x1xf32>
    %227 = arith.addf %223, %226 : vector<16x1xf32>
    %228 = math.rsqrt %227 : vector<16x1xf32>
    %229 = vector.broadcast %228 : vector<16x1xf32> to vector<16x128xf32>
    %230 = arith.mulf %225, %229 : vector<16x128xf32>
    %231 = vector.broadcast %210 : vector<1x128xf32> to vector<16x128xf32>
    %232 = arith.mulf %230, %231 : vector<16x128xf32>
    %233 = vector.broadcast %212 : vector<1x128xf32> to vector<16x128xf32>
    %234 = arith.addf %232, %233 : vector<16x128xf32>
    %235 = vector.shape_cast %234 : vector<16x128xf32> to vector<2x8x128xf32>
    %c1 = arith.constant 1 : index
    %c0_95 = arith.constant 0 : index
    %c0_96 = arith.constant 0 : index
    %c0_97 = arith.constant 0 : index
    %236 = vector.load %arg24[%c1, %c0_95, %c0_96, %c0_97] : memref<3x2x8x128xf32, #tpu.memory_space<vmem>>, vector<1x2x8x128xf32>
    %237 = vector.shape_cast %236 : vector<1x2x8x128xf32> to vector<2x8x128xf32>
    %238 = vector.shape_cast %235 : vector<2x8x128xf32> to vector<1x2x8x128xf32>
    tpu.vector_store %arg24[%c1, %c0_95, %c0_96, %c0_97], %238 {strides = array<i32>} : memref<3x2x8x128xf32, #tpu.memory_space<vmem>>, vector<1x2x8x128xf32>,
    %239 = arith.truncf %234 : vector<16x128xf32> to vector<16x128xbf16>
    %c1_98 = arith.constant 1 : index
    %c0_99 = arith.constant 0 : index
    %c0_100 = arith.constant 0 : index
    %240 = vector.load %arg8[%c1_98, %c0_99, %c0_100] : memref<2x128x384xbf16, #tpu.memory_space<vmem>>, vector<1x128x384xbf16>
    %241 = vector.shape_cast %240 : vector<1x128x384xbf16> to vector<128x384xbf16>
    %cst_101 = arith.constant dense<0.000000e+00> : vector<16x384xf32>
    %242 = tpu.matmul %239, %241, %cst_101 {dimension_numbers = #tpu.dot_dimension_numbers<[1], [0], [0], [1], [0, 0, 1, 1], [], []>} : vector<16x128xbf16>, vector<128x384xbf16>, vector<16x384xf32> -> vector<16x384xf32>
    %c1_102 = arith.constant 1 : index
    %c0_103 = arith.constant 0 : index
    %c0_104 = arith.constant 0 : index
    %243 = vector.load %arg9[%c1_102, %c0_103, %c0_104] : memref<2x1x384xf32, #tpu.memory_space<vmem>>, vector<1x1x384xf32>
    %244 = vector.shape_cast %243 : vector<1x1x384xf32> to vector<1x384xf32>
    %245 = vector.broadcast %244 : vector<1x384xf32> to vector<16x384xf32>
    %246 = arith.addf %242, %245 : vector<16x384xf32>
    %247 = vector.shape_cast %246 : vector<16x384xf32> to vector<2x8x384xf32>
    %c1_105 = arith.constant 1 : index
    %c0_106 = arith.constant 0 : index
    %c0_107 = arith.constant 0 : index
    %248 = vector.load %arg10[%c1_105, %c0_106, %c0_107] : memref<2x128x128xbf16, #tpu.memory_space<vmem>>, vector<1x128x128xbf16>
    %249 = vector.shape_cast %248 : vector<1x128x128xbf16> to vector<128x128xbf16>
    %250 = vector.extract_strided_slice %247 {offsets = [0, 0, 0], sizes = [2, 8, 32], strides = [1, 1, 1]} : vector<2x8x384xf32> to vector<2x8x32xf32>
    %251 = vector.extract_strided_slice %247 {offsets = [0, 0, 128], sizes = [2, 8, 32], strides = [1, 1, 1]} : vector<2x8x384xf32> to vector<2x8x32xf32>
    %252 = vector.extract_strided_slice %247 {offsets = [0, 0, 256], sizes = [2, 8, 32], strides = [1, 1, 1]} : vector<2x8x384xf32> to vector<2x8x32xf32>
    "tpu.trace_start"() <{level = 10 : i32, message = "bqd,bkd->bqk"}> : () -> ()
    %cst_108 = arith.constant dense<0.000000e+00> : vector<2x8x8xf32>
    %253 = tpu.matmul %250, %251, %cst_108 {dimension_numbers = #tpu.dot_dimension_numbers<[2], [2], [1], [1], [0, 0, 0, 1, 1, 1], [0], [0]>} : vector<2x8x32xf32>, vector<2x8x32xf32>, vector<2x8x8xf32> -> vector<2x8x8xf32>
    "tpu.trace_stop"() : () -> ()
    %254 = vector.broadcast %49 : vector<2x1x8xf32> to vector<2x8x8xf32>
    %255 = arith.addf %253, %254 : vector<2x8x8xf32>
    %cst_109 = arith.constant dense<0xFF800000> : vector<2x8xf32>
    %256 = vector.multi_reduction <maximumf>, %255, %cst_109 [2] : vector<2x8x8xf32> to vector<2x8xf32>
    %257 = vector.shape_cast %256 : vector<2x8xf32> to vector<2x8x1xf32>
    %258 = vector.broadcast %257 : vector<2x8x1xf32> to vector<2x8x8xf32>
    %259 = arith.subf %255, %258 : vector<2x8x8xf32>
    %260 = math.exp %259 : vector<2x8x8xf32>
    %cst_110 = arith.constant dense<0.000000e+00> : vector<2x8xf32>
    %261 = vector.multi_reduction <add>, %260, %cst_110 [2] : vector<2x8x8xf32> to vector<2x8xf32>
    %262 = vector.shape_cast %261 : vector<2x8xf32> to vector<2x8x1xf32>
    %263 = tpu.reciprocal %262 {approx = true} : vector<2x8x1xf32> -> vector<2x8x1xf32>
    %264 = vector.broadcast %263 : vector<2x8x1xf32> to vector<2x8x8xf32>
    %265 = arith.mulf %260, %264 : vector<2x8x8xf32>
    "tpu.trace_start"() <{level = 10 : i32, message = "bqk,bkd->bqd"}> : () -> ()
    %cst_111 = arith.constant dense<0.000000e+00> : vector<2x8x32xf32>
    %266 = tpu.matmul %265, %252, %cst_111 {dimension_numbers = #tpu.dot_dimension_numbers<[2], [1], [1], [2], [0, 0, 0, 1, 1, 2], [0], [0]>} : vector<2x8x8xf32>, vector<2x8x32xf32>, vector<2x8x32xf32> -> vector<2x8x32xf32>
    "tpu.trace_stop"() : () -> ()
    %267 = vector.shape_cast %266 : vector<2x8x32xf32> to vector<16x32xf32>
    %268 = arith.truncf %267 : vector<16x32xf32> to vector<16x32xbf16>
    %269 = vector.extract_strided_slice %249 {offsets = [0, 0], sizes = [32, 128], strides = [1, 1]} : vector<128x128xbf16> to vector<32x128xbf16>
    %cst_112 = arith.constant dense<0.000000e+00> : vector<16x128xf32>
    %270 = tpu.matmul %268, %269, %cst_112 {dimension_numbers = #tpu.dot_dimension_numbers<[1], [0], [0], [1], [0, 0, 1, 1], [], []>} : vector<16x32xbf16>, vector<32x128xbf16>, vector<16x128xf32> -> vector<16x128xf32>
    %271 = vector.extract_strided_slice %247 {offsets = [0, 0, 32], sizes = [2, 8, 32], strides = [1, 1, 1]} : vector<2x8x384xf32> to vector<2x8x32xf32>
    %272 = vector.extract_strided_slice %247 {offsets = [0, 0, 160], sizes = [2, 8, 32], strides = [1, 1, 1]} : vector<2x8x384xf32> to vector<2x8x32xf32>
    %273 = vector.extract_strided_slice %247 {offsets = [0, 0, 288], sizes = [2, 8, 32], strides = [1, 1, 1]} : vector<2x8x384xf32> to vector<2x8x32xf32>
    "tpu.trace_start"() <{level = 10 : i32, message = "bqd,bkd->bqk"}> : () -> ()
    %cst_113 = arith.constant dense<0.000000e+00> : vector<2x8x8xf32>
    %274 = tpu.matmul %271, %272, %cst_113 {dimension_numbers = #tpu.dot_dimension_numbers<[2], [2], [1], [1], [0, 0, 0, 1, 1, 1], [0], [0]>} : vector<2x8x32xf32>, vector<2x8x32xf32>, vector<2x8x8xf32> -> vector<2x8x8xf32>
    "tpu.trace_stop"() : () -> ()
    %275 = vector.broadcast %49 : vector<2x1x8xf32> to vector<2x8x8xf32>
    %276 = arith.addf %274, %275 : vector<2x8x8xf32>
    %cst_114 = arith.constant dense<0xFF800000> : vector<2x8xf32>
    %277 = vector.multi_reduction <maximumf>, %276, %cst_114 [2] : vector<2x8x8xf32> to vector<2x8xf32>
    %278 = vector.shape_cast %277 : vector<2x8xf32> to vector<2x8x1xf32>
    %279 = vector.broadcast %278 : vector<2x8x1xf32> to vector<2x8x8xf32>
    %280 = arith.subf %276, %279 : vector<2x8x8xf32>
    %281 = math.exp %280 : vector<2x8x8xf32>
    %cst_115 = arith.constant dense<0.000000e+00> : vector<2x8xf32>
    %282 = vector.multi_reduction <add>, %281, %cst_115 [2] : vector<2x8x8xf32> to vector<2x8xf32>
    %283 = vector.shape_cast %282 : vector<2x8xf32> to vector<2x8x1xf32>
    %284 = tpu.reciprocal %283 {approx = true} : vector<2x8x1xf32> -> vector<2x8x1xf32>
    %285 = vector.broadcast %284 : vector<2x8x1xf32> to vector<2x8x8xf32>
    %286 = arith.mulf %281, %285 : vector<2x8x8xf32>
    "tpu.trace_start"() <{level = 10 : i32, message = "bqk,bkd->bqd"}> : () -> ()
    %cst_116 = arith.constant dense<0.000000e+00> : vector<2x8x32xf32>
    %287 = tpu.matmul %286, %273, %cst_116 {dimension_numbers = #tpu.dot_dimension_numbers<[2], [1], [1], [2], [0, 0, 0, 1, 1, 2], [0], [0]>} : vector<2x8x8xf32>, vector<2x8x32xf32>, vector<2x8x32xf32> -> vector<2x8x32xf32>
    "tpu.trace_stop"() : () -> ()
    %288 = vector.shape_cast %287 : vector<2x8x32xf32> to vector<16x32xf32>
    %289 = arith.truncf %288 : vector<16x32xf32> to vector<16x32xbf16>
    %290 = vector.extract_strided_slice %249 {offsets = [32, 0], sizes = [32, 128], strides = [1, 1]} : vector<128x128xbf16> to vector<32x128xbf16>
    %cst_117 = arith.constant dense<0.000000e+00> : vector<16x128xf32>
    %291 = tpu.matmul %289, %290, %cst_117 {dimension_numbers = #tpu.dot_dimension_numbers<[1], [0], [0], [1], [0, 0, 1, 1], [], []>} : vector<16x32xbf16>, vector<32x128xbf16>, vector<16x128xf32> -> vector<16x128xf32>
    %292 = arith.addf %270, %291 : vector<16x128xf32>
    %293 = vector.extract_strided_slice %247 {offsets = [0, 0, 64], sizes = [2, 8, 32], strides = [1, 1, 1]} : vector<2x8x384xf32> to vector<2x8x32xf32>
    %294 = vector.extract_strided_slice %247 {offsets = [0, 0, 192], sizes = [2, 8, 32], strides = [1, 1, 1]} : vector<2x8x384xf32> to vector<2x8x32xf32>
    %295 = vector.extract_strided_slice %247 {offsets = [0, 0, 320], sizes = [2, 8, 32], strides = [1, 1, 1]} : vector<2x8x384xf32> to vector<2x8x32xf32>
    "tpu.trace_start"() <{level = 10 : i32, message = "bqd,bkd->bqk"}> : () -> ()
    %cst_118 = arith.constant dense<0.000000e+00> : vector<2x8x8xf32>
    %296 = tpu.matmul %293, %294, %cst_118 {dimension_numbers = #tpu.dot_dimension_numbers<[2], [2], [1], [1], [0, 0, 0, 1, 1, 1], [0], [0]>} : vector<2x8x32xf32>, vector<2x8x32xf32>, vector<2x8x8xf32> -> vector<2x8x8xf32>
    "tpu.trace_stop"() : () -> ()
    %297 = vector.broadcast %49 : vector<2x1x8xf32> to vector<2x8x8xf32>
    %298 = arith.addf %296, %297 : vector<2x8x8xf32>
    %cst_119 = arith.constant dense<0xFF800000> : vector<2x8xf32>
    %299 = vector.multi_reduction <maximumf>, %298, %cst_119 [2] : vector<2x8x8xf32> to vector<2x8xf32>
    %300 = vector.shape_cast %299 : vector<2x8xf32> to vector<2x8x1xf32>
    %301 = vector.broadcast %300 : vector<2x8x1xf32> to vector<2x8x8xf32>
    %302 = arith.subf %298, %301 : vector<2x8x8xf32>
    %303 = math.exp %302 : vector<2x8x8xf32>
    %cst_120 = arith.constant dense<0.000000e+00> : vector<2x8xf32>
    %304 = vector.multi_reduction <add>, %303, %cst_120 [2] : vector<2x8x8xf32> to vector<2x8xf32>
    %305 = vector.shape_cast %304 : vector<2x8xf32> to vector<2x8x1xf32>
    %306 = tpu.reciprocal %305 {approx = true} : vector<2x8x1xf32> -> vector<2x8x1xf32>
    %307 = vector.broadcast %306 : vector<2x8x1xf32> to vector<2x8x8xf32>
    %308 = arith.mulf %303, %307 : vector<2x8x8xf32>
    "tpu.trace_start"() <{level = 10 : i32, message = "bqk,bkd->bqd"}> : () -> ()
    %cst_121 = arith.constant dense<0.000000e+00> : vector<2x8x32xf32>
    %309 = tpu.matmul %308, %295, %cst_121 {dimension_numbers = #tpu.dot_dimension_numbers<[2], [1], [1], [2], [0, 0, 0, 1, 1, 2], [0], [0]>} : vector<2x8x8xf32>, vector<2x8x32xf32>, vector<2x8x32xf32> -> vector<2x8x32xf32>
    "tpu.trace_stop"() : () -> ()
    %310 = vector.shape_cast %309 : vector<2x8x32xf32> to vector<16x32xf32>
    %311 = arith.truncf %310 : vector<16x32xf32> to vector<16x32xbf16>
    %312 = vector.extract_strided_slice %249 {offsets = [64, 0], sizes = [32, 128], strides = [1, 1]} : vector<128x128xbf16> to vector<32x128xbf16>
    %cst_122 = arith.constant dense<0.000000e+00> : vector<16x128xf32>
    %313 = tpu.matmul %311, %312, %cst_122 {dimension_numbers = #tpu.dot_dimension_numbers<[1], [0], [0], [1], [0, 0, 1, 1], [], []>} : vector<16x32xbf16>, vector<32x128xbf16>, vector<16x128xf32> -> vector<16x128xf32>
    %314 = arith.addf %292, %313 : vector<16x128xf32>
    %315 = vector.extract_strided_slice %247 {offsets = [0, 0, 96], sizes = [2, 8, 32], strides = [1, 1, 1]} : vector<2x8x384xf32> to vector<2x8x32xf32>
    %316 = vector.extract_strided_slice %247 {offsets = [0, 0, 224], sizes = [2, 8, 32], strides = [1, 1, 1]} : vector<2x8x384xf32> to vector<2x8x32xf32>
    %317 = vector.extract_strided_slice %247 {offsets = [0, 0, 352], sizes = [2, 8, 32], strides = [1, 1, 1]} : vector<2x8x384xf32> to vector<2x8x32xf32>
    "tpu.trace_start"() <{level = 10 : i32, message = "bqd,bkd->bqk"}> : () -> ()
    %cst_123 = arith.constant dense<0.000000e+00> : vector<2x8x8xf32>
    %318 = tpu.matmul %315, %316, %cst_123 {dimension_numbers = #tpu.dot_dimension_numbers<[2], [2], [1], [1], [0, 0, 0, 1, 1, 1], [0], [0]>} : vector<2x8x32xf32>, vector<2x8x32xf32>, vector<2x8x8xf32> -> vector<2x8x8xf32>
    "tpu.trace_stop"() : () -> ()
    %319 = vector.broadcast %49 : vector<2x1x8xf32> to vector<2x8x8xf32>
    %320 = arith.addf %318, %319 : vector<2x8x8xf32>
    %cst_124 = arith.constant dense<0xFF800000> : vector<2x8xf32>
    %321 = vector.multi_reduction <maximumf>, %320, %cst_124 [2] : vector<2x8x8xf32> to vector<2x8xf32>
    %322 = vector.shape_cast %321 : vector<2x8xf32> to vector<2x8x1xf32>
    %323 = vector.broadcast %322 : vector<2x8x1xf32> to vector<2x8x8xf32>
    %324 = arith.subf %320, %323 : vector<2x8x8xf32>
    %325 = math.exp %324 : vector<2x8x8xf32>
    %cst_125 = arith.constant dense<0.000000e+00> : vector<2x8xf32>
    %326 = vector.multi_reduction <add>, %325, %cst_125 [2] : vector<2x8x8xf32> to vector<2x8xf32>
    %327 = vector.shape_cast %326 : vector<2x8xf32> to vector<2x8x1xf32>
    %328 = tpu.reciprocal %327 {approx = true} : vector<2x8x1xf32> -> vector<2x8x1xf32>
    %329 = vector.broadcast %328 : vector<2x8x1xf32> to vector<2x8x8xf32>
    %330 = arith.mulf %325, %329 : vector<2x8x8xf32>
    "tpu.trace_start"() <{level = 10 : i32, message = "bqk,bkd->bqd"}> : () -> ()
    %cst_126 = arith.constant dense<0.000000e+00> : vector<2x8x32xf32>
    %331 = tpu.matmul %330, %317, %cst_126 {dimension_numbers = #tpu.dot_dimension_numbers<[2], [1], [1], [2], [0, 0, 0, 1, 1, 2], [0], [0]>} : vector<2x8x8xf32>, vector<2x8x32xf32>, vector<2x8x32xf32> -> vector<2x8x32xf32>
    "tpu.trace_stop"() : () -> ()
    %332 = vector.shape_cast %331 : vector<2x8x32xf32> to vector<16x32xf32>
    %333 = arith.truncf %332 : vector<16x32xf32> to vector<16x32xbf16>
    %334 = vector.extract_strided_slice %249 {offsets = [96, 0], sizes = [32, 128], strides = [1, 1]} : vector<128x128xbf16> to vector<32x128xbf16>
    %cst_127 = arith.constant dense<0.000000e+00> : vector<16x128xf32>
    %335 = tpu.matmul %333, %334, %cst_127 {dimension_numbers = #tpu.dot_dimension_numbers<[1], [0], [0], [1], [0, 0, 1, 1], [], []>} : vector<16x32xbf16>, vector<32x128xbf16>, vector<16x128xf32> -> vector<16x128xf32>
    %336 = arith.addf %314, %335 : vector<16x128xf32>
    %c1_128 = arith.constant 1 : index
    %c0_129 = arith.constant 0 : index
    %c0_130 = arith.constant 0 : index
    %337 = vector.load %arg11[%c1_128, %c0_129, %c0_130] : memref<2x1x128xf32, #tpu.memory_space<vmem>>, vector<1x1x128xf32>
    %338 = vector.shape_cast %337 : vector<1x1x128xf32> to vector<1x128xf32>
    %339 = vector.broadcast %338 : vector<1x128xf32> to vector<16x128xf32>
    %340 = arith.addf %336, %339 : vector<16x128xf32>
    %341 = arith.addf %234, %340 : vector<16x128xf32>
    %c1_131 = arith.constant 1 : index
    %c0_132 = arith.constant 0 : index
    %c0_133 = arith.constant 0 : index
    %342 = vector.load %arg12[%c1_131, %c0_132, %c0_133] : memref<2x1x128xf32, #tpu.memory_space<vmem>>, vector<1x1x128xf32>
    %343 = vector.shape_cast %342 : vector<1x1x128xf32> to vector<1x128xf32>
    %c1_134 = arith.constant 1 : index
    %c0_135 = arith.constant 0 : index
    %c0_136 = arith.constant 0 : index
    %344 = vector.load %arg13[%c1_134, %c0_135, %c0_136] : memref<2x1x128xf32, #tpu.memory_space<vmem>>, vector<1x1x128xf32>
    %345 = vector.shape_cast %344 : vector<1x1x128xf32> to vector<1x128xf32>
    %cst_137 = arith.constant dense<0.000000e+00> : vector<16xf32>
    %346 = vector.multi_reduction <add>, %341, %cst_137 [1] : vector<16x128xf32> to vector<16xf32>
    %347 = vector.shape_cast %346 : vector<16xf32> to vector<16x1xf32>
    %cst_138 = arith.constant 1.280000e+02 : f32
    %348 = vector.broadcast %cst_138 : f32 to vector<16x1xf32>
    %349 = arith.divf %347, %348 : vector<16x1xf32>
    %350 = vector.broadcast %349 : vector<16x1xf32> to vector<16x128xf32>
    %351 = arith.subf %341, %350 : vector<16x128xf32>
    %352 = arith.mulf %351, %351 : vector<16x128xf32>
    %cst_139 = arith.constant dense<0.000000e+00> : vector<16xf32>
    %353 = vector.multi_reduction <add>, %352, %cst_139 [1] : vector<16x128xf32> to vector<16xf32>
    %354 = vector.shape_cast %353 : vector<16xf32> to vector<16x1xf32>
    %cst_140 = arith.constant 1.280000e+02 : f32
    %355 = vector.broadcast %cst_140 : f32 to vector<16x1xf32>
    %356 = arith.divf %354, %355 : vector<16x1xf32>
    %357 = vector.broadcast %349 : vector<16x1xf32> to vector<16x128xf32>
    %358 = arith.subf %341, %357 : vector<16x128xf32>
    %cst_141 = arith.constant 9.99999996E-13 : f32
    %359 = vector.broadcast %cst_141 : f32 to vector<16x1xf32>
    %360 = arith.addf %356, %359 : vector<16x1xf32>
    %361 = math.rsqrt %360 : vector<16x1xf32>
    %362 = vector.broadcast %361 : vector<16x1xf32> to vector<16x128xf32>
    %363 = arith.mulf %358, %362 : vector<16x128xf32>
    %364 = vector.broadcast %343 : vector<1x128xf32> to vector<16x128xf32>
    %365 = arith.mulf %363, %364 : vector<16x128xf32>
    %366 = vector.broadcast %345 : vector<1x128xf32> to vector<16x128xf32>
    %367 = arith.addf %365, %366 : vector<16x128xf32>
    %368 = arith.truncf %367 : vector<16x128xf32> to vector<16x128xbf16>
    %c1_142 = arith.constant 1 : index
    %c0_143 = arith.constant 0 : index
    %c0_144 = arith.constant 0 : index
    %369 = vector.load %arg14[%c1_142, %c0_143, %c0_144] : memref<2x128x512xbf16, #tpu.memory_space<vmem>>, vector<1x128x512xbf16>
    %370 = vector.shape_cast %369 : vector<1x128x512xbf16> to vector<128x512xbf16>
    %cst_145 = arith.constant dense<0.000000e+00> : vector<16x512xf32>
    %371 = tpu.matmul %368, %370, %cst_145 {dimension_numbers = #tpu.dot_dimension_numbers<[1], [0], [0], [1], [0, 0, 1, 1], [], []>} : vector<16x128xbf16>, vector<128x512xbf16>, vector<16x512xf32> -> vector<16x512xf32>
    %c1_146 = arith.constant 1 : index
    %c0_147 = arith.constant 0 : index
    %c0_148 = arith.constant 0 : index
    %372 = vector.load %arg15[%c1_146, %c0_147, %c0_148] : memref<2x1x512xf32, #tpu.memory_space<vmem>>, vector<1x1x512xf32>
    %373 = vector.shape_cast %372 : vector<1x1x512xf32> to vector<1x512xf32>
    %374 = vector.broadcast %373 : vector<1x512xf32> to vector<16x512xf32>
    %375 = arith.addf %371, %374 : vector<16x512xf32>
    %376 = arith.mulf %375, %375 : vector<16x512xf32>
    %377 = arith.mulf %375, %376 : vector<16x512xf32>
    %cst_149 = arith.constant 4.471500e-02 : f32
    %378 = vector.broadcast %cst_149 : f32 to vector<16x512xf32>
    %379 = arith.mulf %378, %377 : vector<16x512xf32>
    %380 = arith.addf %375, %379 : vector<16x512xf32>
    %cst_150 = arith.constant 0.797884583 : f32
    %381 = vector.broadcast %cst_150 : f32 to vector<16x512xf32>
    %382 = arith.mulf %381, %380 : vector<16x512xf32>
    %383 = math.tanh %382 : vector<16x512xf32>
    %cst_151 = arith.constant 1.000000e+00 : f32
    %384 = vector.broadcast %cst_151 : f32 to vector<16x512xf32>
    %385 = arith.addf %384, %383 : vector<16x512xf32>
    %cst_152 = arith.constant 5.000000e-01 : f32
    %386 = vector.broadcast %cst_152 : f32 to vector<16x512xf32>
    %387 = arith.mulf %386, %385 : vector<16x512xf32>
    %388 = arith.mulf %375, %387 : vector<16x512xf32>
    %389 = arith.truncf %388 : vector<16x512xf32> to vector<16x512xbf16>
    %c1_153 = arith.constant 1 : index
    %c0_154 = arith.constant 0 : index
    %c0_155 = arith.constant 0 : index
    %390 = vector.load %arg16[%c1_153, %c0_154, %c0_155] : memref<2x512x128xbf16, #tpu.memory_space<vmem>>, vector<1x512x128xbf16>
    %391 = vector.shape_cast %390 : vector<1x512x128xbf16> to vector<512x128xbf16>
    %cst_156 = arith.constant dense<0.000000e+00> : vector<16x128xf32>
    %392 = tpu.matmul %389, %391, %cst_156 {dimension_numbers = #tpu.dot_dimension_numbers<[1], [0], [0], [1], [0, 0, 1, 1], [], []>} : vector<16x512xbf16>, vector<512x128xbf16>, vector<16x128xf32> -> vector<16x128xf32>
    %c1_157 = arith.constant 1 : index
    %c0_158 = arith.constant 0 : index
    %c0_159 = arith.constant 0 : index
    %393 = vector.load %arg17[%c1_157, %c0_158, %c0_159] : memref<2x1x128xf32, #tpu.memory_space<vmem>>, vector<1x1x128xf32>
    %394 = vector.shape_cast %393 : vector<1x1x128xf32> to vector<1x128xf32>
    %395 = vector.broadcast %394 : vector<1x128xf32> to vector<16x128xf32>
    %396 = arith.addf %392, %395 : vector<16x128xf32>
    %397 = arith.addf %367, %396 : vector<16x128xf32>
    %c1_160 = arith.constant 1 : index
    %c0_161 = arith.constant 0 : index
    %c0_162 = arith.constant 0 : index
    %398 = vector.load %arg18[%c1_160, %c0_161, %c0_162] : memref<2x1x128xf32, #tpu.memory_space<vmem>>, vector<1x1x128xf32>
    %399 = vector.shape_cast %398 : vector<1x1x128xf32> to vector<1x128xf32>
    %c1_163 = arith.constant 1 : index
    %c0_164 = arith.constant 0 : index
    %c0_165 = arith.constant 0 : index
    %400 = vector.load %arg19[%c1_163, %c0_164, %c0_165] : memref<2x1x128xf32, #tpu.memory_space<vmem>>, vector<1x1x128xf32>
    %401 = vector.shape_cast %400 : vector<1x1x128xf32> to vector<1x128xf32>
    %cst_166 = arith.constant dense<0.000000e+00> : vector<16xf32>
    %402 = vector.multi_reduction <add>, %397, %cst_166 [1] : vector<16x128xf32> to vector<16xf32>
    %403 = vector.shape_cast %402 : vector<16xf32> to vector<16x1xf32>
    %cst_167 = arith.constant 1.280000e+02 : f32
    %404 = vector.broadcast %cst_167 : f32 to vector<16x1xf32>
    %405 = arith.divf %403, %404 : vector<16x1xf32>
    %406 = vector.broadcast %405 : vector<16x1xf32> to vector<16x128xf32>
    %407 = arith.subf %397, %406 : vector<16x128xf32>
    %408 = arith.mulf %407, %407 : vector<16x128xf32>
    %cst_168 = arith.constant dense<0.000000e+00> : vector<16xf32>
    %409 = vector.multi_reduction <add>, %408, %cst_168 [1] : vector<16x128xf32> to vector<16xf32>
    %410 = vector.shape_cast %409 : vector<16xf32> to vector<16x1xf32>
    %cst_169 = arith.constant 1.280000e+02 : f32
    %411 = vector.broadcast %cst_169 : f32 to vector<16x1xf32>
    %412 = arith.divf %410, %411 : vector<16x1xf32>
    %413 = vector.broadcast %405 : vector<16x1xf32> to vector<16x128xf32>
    %414 = arith.subf %397, %413 : vector<16x128xf32>
    %cst_170 = arith.constant 9.99999996E-13 : f32
    %415 = vector.broadcast %cst_170 : f32 to vector<16x1xf32>
    %416 = arith.addf %412, %415 : vector<16x1xf32>
    %417 = math.rsqrt %416 : vector<16x1xf32>
    %418 = vector.broadcast %417 : vector<16x1xf32> to vector<16x128xf32>
    %419 = arith.mulf %414, %418 : vector<16x128xf32>
    %420 = vector.broadcast %399 : vector<1x128xf32> to vector<16x128xf32>
    %421 = arith.mulf %419, %420 : vector<16x128xf32>
    %422 = vector.broadcast %401 : vector<1x128xf32> to vector<16x128xf32>
    %423 = arith.addf %421, %422 : vector<16x128xf32>
    %424 = vector.shape_cast %423 : vector<16x128xf32> to vector<2x8x128xf32>
    %c2 = arith.constant 2 : index
    %c0_171 = arith.constant 0 : index
    %c0_172 = arith.constant 0 : index
    %c0_173 = arith.constant 0 : index
    %425 = vector.load %arg24[%c2, %c0_171, %c0_172, %c0_173] : memref<3x2x8x128xf32, #tpu.memory_space<vmem>>, vector<1x2x8x128xf32>
    %426 = vector.shape_cast %425 : vector<1x2x8x128xf32> to vector<2x8x128xf32>
    %427 = vector.shape_cast %424 : vector<2x8x128xf32> to vector<1x2x8x128xf32>
    tpu.vector_store %arg24[%c2, %c0_171, %c0_172, %c0_173], %427 {strides = array<i32>} : memref<3x2x8x128xf32, #tpu.memory_space<vmem>>, vector<1x2x8x128xf32>,
    %428 = arith.truncf %423 : vector<16x128xf32> to vector<16x128xbf16>
    %c0_174 = arith.constant 0 : index
    %c0_175 = arith.constant 0 : index
    %429 = vector.load %arg20[%c0_174, %c0_175] : memref<128x128xbf16, #tpu.memory_space<vmem>>, vector<128x128xbf16>
    %cst_176 = arith.constant dense<0.000000e+00> : vector<16x128xf32>
    %430 = tpu.matmul %428, %429, %cst_176 {dimension_numbers = #tpu.dot_dimension_numbers<[1], [0], [0], [1], [0, 0, 1, 1], [], []>} : vector<16x128xbf16>, vector<128x128xbf16>, vector<16x128xf32> -> vector<16x128xf32>
    %c0_177 = arith.constant 0 : index
    %c0_178 = arith.constant 0 : index
    %431 = vector.load %arg21[%c0_177, %c0_178] : memref<1x128xf32, #tpu.memory_space<vmem>>, vector<1x128xf32>
    %432 = vector.broadcast %431 : vector<1x128xf32> to vector<16x128xf32>
    %433 = arith.addf %430, %432 : vector<16x128xf32>
    %434 = vector.shape_cast %433 : vector<16x128xf32> to vector<2x8x128xf32>
    %c0_179 = arith.constant 0 : index
    %c0_180 = arith.constant 0 : index
    %c0_181 = arith.constant 0 : index
    %435 = vector.load %arg22[%c0_179, %c0_180, %c0_181] : memref<2x8x128xf32, #tpu.memory_space<vmem>>, vector<2x8x128xf32>
    tpu.vector_store %arg22[%c0_179, %c0_180, %c0_181], %434 {strides = array<i32>} : memref<2x8x128xf32, #tpu.memory_space<vmem>>, vector<2x8x128xf32>,
    %c0_182 = arith.constant 0 : index
    %c0_183 = arith.constant 0 : index
    %436 = vector.load %arg3[%c0_182, %c0_183] : memref<2x8xi32, #tpu.memory_space<vmem>>, vector<2x8xi32>
    %cst_184 = arith.constant dense<0xFF800000> : vector<2x8xf32>
    %437 = vector.multi_reduction <maximumf>, %434, %cst_184 [2] : vector<2x8x128xf32> to vector<2x8xf32>
    %438 = vector.shape_cast %437 : vector<2x8xf32> to vector<2x8x1xf32>
    %439 = vector.shape_cast %438 : vector<2x8x1xf32> to vector<2x8xf32>
    %440 = vector.broadcast %438 : vector<2x8x1xf32> to vector<2x8x128xf32>
    %441 = arith.subf %434, %440 : vector<2x8x128xf32>
    %442 = math.exp %441 : vector<2x8x128xf32>
    %cst_185 = arith.constant dense<0.000000e+00> : vector<2x8xf32>
    %443 = vector.multi_reduction <add>, %442, %cst_185 [2] : vector<2x8x128xf32> to vector<2x8xf32>
    %444 = math.log %443 : vector<2x8xf32>
    %445 = arith.addf %439, %444 : vector<2x8xf32>
    %446 = tpu.iota {dimensions = array<i32: 2>} : vector<2x8x128xi32>
    %447 = vector.shape_cast %436 : vector<2x8xi32> to vector<2x8x1xi32>
    %448 = vector.broadcast %447 : vector<2x8x1xi32> to vector<2x8x128xi32>
    %449 = arith.cmpi eq, %446, %448 : vector<2x8x128xi32>
    %450 = arith.extui %449 : vector<2x8x128xi1> to vector<2x8x128xi32>
    %451 = arith.sitofp %450 : vector<2x8x128xi32> to vector<2x8x128xf32>
    %452 = arith.mulf %451, %434 : vector<2x8x128xf32>
    %cst_186 = arith.constant dense<0.000000e+00> : vector<2x8xf32>
    %453 = vector.multi_reduction <add>, %452, %cst_186 [2] : vector<2x8x128xf32> to vector<2x8xf32>
    %c-100_i32 = arith.constant -100 : i32
    %454 = vector.broadcast %c-100_i32 : i32 to vector<2x8xi32>
    %455 = arith.cmpi ne, %436, %454 : vector<2x8xi32>
    %456 = arith.extui %455 : vector<2x8xi1> to vector<2x8xi32>
    %457 = arith.sitofp %456 : vector<2x8xi32> to vector<2x8xf32>
    %458 = arith.subf %445, %453 : vector<2x8xf32>
    %459 = arith.mulf %458, %457 : vector<2x8xf32>
    %460 = vector.shape_cast %459 : vector<2x8xf32> to vector<1x2x8xf32>
    %cst_187 = arith.constant dense<0.000000e+00> : vector<1xf32>
    %461 = vector.multi_reduction <add>, %460, %cst_187 [1, 2] : vector<1x2x8xf32> to vector<1xf32>
    %462 = vector.shape_cast %461 : vector<1xf32> to vector<1x1x1xf32>
    %463 = vector.extract %462[0, 0, 0] : f32 from vector<1x1x1xf32>
    %464 = vector.shape_cast %457 : vector<2x8xf32> to vector<1x2x8xf32>
    %cst_188 = arith.constant dense<0.000000e+00> : vector<1xf32>
    %465 = vector.multi_reduction <add>, %464, %cst_188 [1, 2] : vector<1x2x8xf32> to vector<1xf32>
    %466 = vector.shape_cast %465 : vector<1xf32> to vector<1x1x1xf32>
    %467 = vector.extract %466[0, 0, 0] : f32 from vector<1x1x1xf32>
    %cst_189 = arith.constant 1.000000e+00 : f32
    %468 = arith.maximumf %467, %cst_189 : f32
    %469 = arith.divf %463, %468 : f32
    %c0_190 = arith.constant 0 : index
    %470 = memref.load %arg23[%c0_190] : memref<1xf32, #tpu.memory_space<smem>>
    memref.store %469, %arg23[%c0_190] : memref<1xf32, #tpu.memory_space<smem>>
    return
  }
  func.func @transform_0(%arg0: i32) -> (i32, i32) {
    %c0_i32 = arith.constant 0 : i32
    %c0_i32_0 = arith.constant 0 : i32
    %c0_i32_1 = arith.constant 0 : i32
    return %c0_i32, %c0_i32_0 : i32, i32
  }
  func.func @transform_1(%arg0: i32) -> (i32, i32) {
    %c0_i32 = arith.constant 0 : i32
    %c0_i32_0 = arith.constant 0 : i32
    %c0_i32_1 = arith.constant 0 : i32
    return %c0_i32, %c0_i32_0 : i32, i32
  }
  func.func @transform_2(%arg0: i32) -> (i32, i32) {
    %c0_i32 = arith.constant 0 : i32
    %c0_i32_0 = arith.constant 0 : i32
    %c0_i32_1 = arith.constant 0 : i32
    return %c0_i32, %c0_i32_0 : i32, i32
  }
  func.func @transform_3(%arg0: i32) -> (i32, i32) {
    %c0_i32 = arith.constant 0 : i32
    %c0_i32_0 = arith.constant 0 : i32
    %c0_i32_1 = arith.constant 0 : i32
    return %c0_i32, %c0_i32_0 : i32, i32
  }
  func.func @transform_4(%arg0: i32) -> (i32, i32) {
    %c0_i32 = arith.constant 0 : i32
    %c0_i32_0 = arith.constant 0 : i32
    %c0_i32_1 = arith.constant 0 : i32
    return %c0_i32, %c0_i32_0 : i32, i32
  }
  func.func @transform_5(%arg0: i32) -> (i32, i32) {
    %c0_i32 = arith.constant 0 : i32
    %c0_i32_0 = arith.constant 0 : i32
    %c0_i32_1 = arith.constant 0 : i32
    return %c0_i32, %c0_i32_0 : i32, i32
  }
  func.func @transform_6(%arg0: i32) -> (i32, i32) {
    %c0_i32 = arith.constant 0 : i32
    %c0_i32_0 = arith.constant 0 : i32
    %c0_i32_1 = arith.constant 0 : i32
    return %c0_i32, %c0_i32_0 : i32, i32
  }
  func.func @transform_7(%arg0: i32) -> (i32, i32, i32) {
    %c0_i32 = arith.constant 0 : i32
    %c0_i32_0 = arith.constant 0 : i32
    %c0_i32_1 = arith.constant 0 : i32
    %c0_i32_2 = arith.constant 0 : i32
    return %c0_i32, %c0_i32_0, %c0_i32_1 : i32, i32, i32
  }
  func.func @transform_8(%arg0: i32) -> (i32, i32, i32) {
    %c0_i32 = arith.constant 0 : i32
    %c0_i32_0 = arith.constant 0 : i32
    %c0_i32_1 = arith.constant 0 : i32
    %c0_i32_2 = arith.constant 0 : i32
    return %c0_i32, %c0_i32_0, %c0_i32_1 : i32, i32, i32
  }
  func.func @transform_9(%arg0: i32) -> (i32, i32, i32) {
    %c0_i32 = arith.constant 0 : i32
    %c0_i32_0 = arith.constant 0 : i32
    %c0_i32_1 = arith.constant 0 : i32
    %c0_i32_2 = arith.constant 0 : i32
    return %c0_i32, %c0_i32_0, %c0_i32_1 : i32, i32, i32
  }
  func.func @transform_10(%arg0: i32) -> (i32, i32, i32) {
    %c0_i32 = arith.constant 0 : i32
    %c0_i32_0 = arith.constant 0 : i32
    %c0_i32_1 = arith.constant 0 : i32
    %c0_i32_2 = arith.constant 0 : i32
    return %c0_i32, %c0_i32_0, %c0_i32_1 : i32, i32, i32
  }
  func.func @transform_11(%arg0: i32) -> (i32, i32, i32) {
    %c0_i32 = arith.constant 0 : i32
    %c0_i32_0 = arith.constant 0 : i32
    %c0_i32_1 = arith.constant 0 : i32
    %c0_i32_2 = arith.constant 0 : i32
    return %c0_i32, %c0_i32_0, %c0_i32_1 : i32, i32, i32
  }
  func.func @transform_12(%arg0: i32) -> (i32, i32, i32) {
    %c0_i32 = arith.constant 0 : i32
    %c0_i32_0 = arith.constant 0 : i32
    %c0_i32_1 = arith.constant 0 : i32
    %c0_i32_2 = arith.constant 0 : i32
    return %c0_i32, %c0_i32_0, %c0_i32_1 : i32, i32, i32
  }
  func.func @transform_13(%arg0: i32) -> (i32, i32, i32) {
    %c0_i32 = arith.constant 0 : i32
    %c0_i32_0 = arith.constant 0 : i32
    %c0_i32_1 = arith.constant 0 : i32
    %c0_i32_2 = arith.constant 0 : i32
    return %c0_i32, %c0_i32_0, %c0_i32_1 : i32, i32, i32
  }
  func.func @transform_14(%arg0: i32) -> (i32, i32, i32) {
    %c0_i32 = arith.constant 0 : i32
    %c0_i32_0 = arith.constant 0 : i32
    %c0_i32_1 = arith.constant 0 : i32
    %c0_i32_2 = arith.constant 0 : i32
    return %c0_i32, %c0_i32_0, %c0_i32_1 : i32, i32, i32
  }
  func.func @transform_15(%arg0: i32) -> (i32, i32, i32) {
    %c0_i32 = arith.constant 0 : i32
    %c0_i32_0 = arith.constant 0 : i32
    %c0_i32_1 = arith.constant 0 : i32
    %c0_i32_2 = arith.constant 0 : i32
    return %c0_i32, %c0_i32_0, %c0_i32_1 : i32, i32, i32
  }
  func.func @transform_16(%arg0: i32) -> (i32, i32, i32) {
    %c0_i32 = arith.constant 0 : i32
    %c0_i32_0 = arith.constant 0 : i32
    %c0_i32_1 = arith.constant 0 : i32
    %c0_i32_2 = arith.constant 0 : i32
    return %c0_i32, %c0_i32_0, %c0_i32_1 : i32, i32, i32
  }
  func.func @transform_17(%arg0: i32) -> (i32, i32, i32) {
    %c0_i32 = arith.constant 0 : i32
    %c0_i32_0 = arith.constant 0 : i32
    %c0_i32_1 = arith.constant 0 : i32
    %c0_i32_2 = arith.constant 0 : i32
    return %c0_i32, %c0_i32_0, %c0_i32_1 : i32, i32, i32
  }
  func.func @transform_18(%arg0: i32) -> (i32, i32, i32) {
    %c0_i32 = arith.constant 0 : i32
    %c0_i32_0 = arith.constant 0 : i32
    %c0_i32_1 = arith.constant 0 : i32
    %c0_i32_2 = arith.constant 0 : i32
    return %c0_i32, %c0_i32_0, %c0_i32_1 : i32, i32, i32
  }
  func.func @transform_19(%arg0: i32) -> (i32, i32) {
    %c0_i32 = arith.constant 0 : i32
    %c0_i32_0 = arith.constant 0 : i32
    %c0_i32_1 = arith.constant 0 : i32
    return %c0_i32, %c0_i32_0 : i32, i32
  }
  func.func @transform_20(%arg0: i32) -> (i32, i32) {
    %c0_i32 = arith.constant 0 : i32
    %c0_i32_0 = arith.constant 0 : i32
    %c0_i32_1 = arith.constant 0 : i32
    return %c0_i32, %c0_i32_0 : i32, i32
  }
  func.func @transform_21(%arg0: i32) -> (i32, i32, i32) {
    %c0_i32 = arith.constant 0 : i32
    %c0_i32_0 = arith.constant 0 : i32
    %c0_i32_1 = arith.constant 0 : i32
    %c0_i32_2 = arith.constant 0 : i32
    return %c0_i32, %c0_i32_0, %c0_i32_1 : i32, i32, i32
  }
  func.func @transform_22(%arg0: i32) -> i32 {
    %c0_i32 = arith.constant 0 : i32
    %c0_i32_0 = arith.constant 0 : i32
    return %c0_i32 : i32
  }
  func.func @transform_23(%arg0: i32) -> (i32, i32, i32, i32) {
    %c0_i32 = arith.constant 0 : i32
    %c0_i32_0 = arith.constant 0 : i32
    %c0_i32_1 = arith.constant 0 : i32
    %c0_i32_2 = arith.constant 0 : i32
    %c0_i32_3 = arith.constant 0 : i32
    return %c0_i32, %c0_i32_0, %c0_i32_1, %c0_i32_2 : i32, i32, i32, i32
  }
}

</mosaic_0001>

<llo_original>
// kernel: tpu_custom_call.1
$region0: #{tpu_custom_call.1}
  #allocation0 [shape = 'u32[]', space=smem, size = 0x4, offset = 0x4, fixed_abs, tag = 'smem constant byte address 0x4 - core index']
  #allocation1 [shape = 'u32[144,128]{1,0:T(1,128)}', space=vmem, size = 0x12000, scoped, tag = 'internal scratch']
  %s0 = inlined_call_operand.hbm [shape: s32[2,8], index: 0, kind: input, shape index: {}]
  %s1 = inlined_call_operand.hbm [shape: f32[2,8], index: 1, kind: input, shape index: {}]
  %s2 = inlined_call_operand.vmem [shape: s32[2,8], index: 2, kind: input, shape index: {}]
  %s3 = inlined_call_operand.hbm [shape: f32[1024,128], index: 3, kind: input, shape index: {}]
  %s4 = inlined_call_operand.hbm [shape: f32[8,128], index: 4, kind: input, shape index: {}]
  %s5 = inlined_call_operand.hbm [shape: f32[1,128], index: 5, kind: input, shape index: {}]
  %s6 = inlined_call_operand.hbm [shape: f32[1,128], index: 6, kind: input, shape index: {}]
  %s7 = inlined_call_operand.hbm [shape: bf16[2,128,384], index: 7, kind: input, shape index: {}]
  %s8 = inlined_call_operand.vmem [shape: f32[2,1,384], index: 8, kind: input, shape index: {}]
  %s9 = inlined_call_operand.hbm [shape: bf16[2,128,128], index: 9, kind: input, shape index: {}]
  %s10 = inlined_call_operand.vmem [shape: f32[2,1,128], index: 10, kind: input, shape index: {}]
  %s11 = inlined_call_operand.vmem [shape: f32[2,1,128], index: 11, kind: input, shape index: {}]
  %s12 = inlined_call_operand.hbm [shape: f32[2,1,128], index: 12, kind: input, shape index: {}]
  %s13 = inlined_call_operand.hbm [shape: bf16[2,128,512], index: 13, kind: input, shape index: {}]
  %s14 = inlined_call_operand.vmem [shape: f32[2,1,512], index: 14, kind: input, shape index: {}]
  %s15 = inlined_call_operand.hbm [shape: bf16[2,512,128], index: 15, kind: input, shape index: {}]
  %s16 = inlined_call_operand.vmem [shape: f32[2,1,128], index: 16, kind: input, shape index: {}]
  %s17 = inlined_call_operand.vmem [shape: f32[2,1,128], index: 17, kind: input, shape index: {}]
  %s18 = inlined_call_operand.vmem [shape: f32[2,1,128], index: 18, kind: input, shape index: {}]
  %s19 = inlined_call_operand.hbm [shape: bf16[128,128], index: 19, kind: input, shape index: {}]
  %s20 = inlined_call_operand.vmem [shape: f32[1,128], index: 20, kind: input, shape index: {}]
  %s21 = inlined_call_operand.hbm [shape: f32[2,8,128], index: 21, kind: output, shape index: {0}]
  %s22 = inlined_call_operand.hbm [shape: f32[1], index: 22, kind: output, shape index: {1}]
  %s23 = inlined_call_operand.hbm [shape: f32[3,2,8,128], index: 23, kind: output, shape index: {2}]
  %24 = xla_tuple %s21, %s22, %s23
  %s25 = sld [smem:[#allocation0]]
  $region158: #{tpu_custom_call.1} parent=0
    _
  %s27 = ssub.s32 1, %s25
  %s28 = scalar_select 0, %s27, %s25
  $region1: #{tpu_custom_call.1} parent=0
    #allocation2 [shape = 'u8[1024]{0}', space=vmem, size = 0x400, scoped, tag = 'input window, operand 0, single buffered']
    #allocation3 [shape = 's32[1]{0}', space=sflag, size = 0x4, scoped, tag = 'scoped memory for tpu_custom_call.1']
    #allocation4 [shape = 's32[1]{0}', space=sflag, size = 0x4, scoped, tag = 'scoped memory for tpu_custom_call.1']
    #allocation5 [shape = 's32[1]{0}', space=sflag, size = 0x4, scoped, tag = 'scoped memory for tpu_custom_call.1']
    #allocation6 [shape = 'u8[1024]{0}', space=vmem, size = 0x400, scoped, tag = 'input window, operand 1, single buffered']
    #allocation7 [shape = 's32[1]{0}', space=sflag, size = 0x4, scoped, tag = 'scoped memory for tpu_custom_call.1']
    #allocation8 [shape = 'u8[524288]{0}', space=vmem, size = 0x80000, scoped, tag = 'input window, operand 3, single buffered']
    #allocation9 [shape = 'u8[4096]{0}', space=vmem, size = 0x1000, scoped, tag = 'input window, operand 4, single buffered']
    #allocation10 [shape = 's32[1]{0}', space=sflag, size = 0x4, scoped, tag = 'scoped memory for tpu_custom_call.1']
    #allocation11 [shape = 'u8[512]{0}', space=vmem, size = 0x400, scoped, tag = 'input window, operand 5, single buffered']
    #allocation12 [shape = 'u8[512]{0}', space=vmem, size = 0x400, scoped, tag = 'input window, operand 6, single buffered']
    #allocation13 [shape = 's32[1]{0}', space=sflag, size = 0x4, scoped, tag = 'scoped memory for tpu_custom_call.1']
    #allocation14 [shape = 'u8[196608]{0}', space=vmem, size = 0x30000, scoped, tag = 'input window, operand 7, single buffered']
    #allocation15 [shape = 'u8[65536]{0}', space=vmem, size = 0x10000, scoped, tag = 'input window, operand 9, single buffered']
    #allocation16 [shape = 's32[1]{0}', space=sflag, size = 0x4, scoped, tag = 'scoped memory for tpu_custom_call.1']
    #allocation17 [shape = 'u8[1024]{0}', space=vmem, size = 0x400, scoped, tag = 'input window, operand 12, single buffered']
    #allocation18 [shape = 'u8[262144]{0}', space=vmem, size = 0x40000, scoped, tag = 'input window, operand 13, single buffered']
    #allocation19 [shape = 's32[1]{0}', space=sflag, size = 0x4, scoped, tag = 'scoped memory for tpu_custom_call.1']
    #allocation20 [shape = 'u8[262144]{0}', space=vmem, size = 0x40000, scoped, tag = 'input window, operand 15, single buffered']
    #allocation21 [shape = 'u8[32768]{0}', space=vmem, size = 0x8000, scoped, tag = 'input window, operand 19, single buffered']
    #allocation22 [shape = 's32[1]{0}', space=sflag, size = 0x4, scoped, tag = 'scoped memory for tpu_custom_call.1']
    #allocation23 [shape = 'u8[8192]{0}', space=vmem, size = 0x2000, scoped, tag = 'output window, operand 0, single buffered']
    #allocation24 [shape = 'u8[512]{0}', space=smem, size = 0x200, scoped, tag = 'output window, operand 1, single buffered']
    #allocation25 [shape = 'u8[24576]{0}', space=vmem, size = 0x6000, scoped, tag = 'output window, operand 2, single buffered']
    #allocation26 [shape = 's32[1]{0}', space=sflag, size = 0x4, scoped, tag = 'scoped memory for tpu_custom_call.1']
    %29 = vsyncpa [#allocation3], 0
    %30 = vsyncpa [#allocation7], 0
    %31 = vsyncpa [#allocation10], 0
    %32 = vsyncpa [#allocation13], 0
    %33 = vsyncpa [#allocation16], 0
    %34 = vsyncpa [#allocation19], 0
    %35 = vsyncpa [#allocation22], 0
    %36 = vsyncpa [#allocation4], 0
    %37 = vsyncpa [#allocation5], 0
    %38 = vsyncpa [#allocation26], 0
    // Predicated region
    $region2: #{tpu_custom_call.1} parent=1 // pred_check
      _
    $region3: #{tpu_custom_call.1} parent=1 // pred_check_branch
      %40 = sbr.rel (0) target = $region5
    $region4: #{tpu_custom_call.1} parent=1 // pred_region
      %s42 = ssub.s32 32, 32
      %43 = vsyncadd [#allocation3], %s42
      %s45 = sshll.u32 [#allocation2], 4
      %s46 = int_to_ptr.vmem [resolvable:$true] %s45
      %48 = dma.hbm_to_vmem [thread:$0]  %s0, 32, %s46, [#allocation3]
    $region5: #{tpu_custom_call.1} parent=1 // pred_fallthru
      _
    // Predicated region
    $region6: #{tpu_custom_call.1} parent=1 // pred_check
      _
    $region7: #{tpu_custom_call.1} parent=1 // pred_check_branch
      %50 = sbr.rel (0) target = $region9
    $region8: #{tpu_custom_call.1} parent=1 // pred_region
      %s52 = ssub.s32 32, 32
      %53 = vsyncadd [#allocation7], %s52
      %s55 = sshll.u32 [#allocation6], 4
      %s56 = int_to_ptr.vmem [resolvable:$true] %s55
      %58 = dma.hbm_to_vmem [thread:$0]  %s1, 32, %s56, [#allocation7]
    $region9: #{tpu_custom_call.1} parent=1 // pred_fallthru
      _
    // Predicated region
    $region10: #{tpu_custom_call.1} parent=1 // pred_check
      _
    $region11: #{tpu_custom_call.1} parent=1 // pred_check_branch
      %60 = sbr.rel (0) target = $region13
    $region12: #{tpu_custom_call.1} parent=1 // pred_region
      _
    $region13: #{tpu_custom_call.1} parent=1 // pred_fallthru
      _
    // Predicated region
    $region14: #{tpu_custom_call.1} parent=1 // pred_check
      _
    $region15: #{tpu_custom_call.1} parent=1 // pred_check_branch
      %62 = sbr.rel (0) target = $region17
    $region16: #{tpu_custom_call.1} parent=1 // pred_region
      %s64 = ssub.s32 16384, 16384
      %65 = vsyncadd [#allocation7], %s64
      %s66 = sshll.u32 [#allocation8], 4
      %s67 = int_to_ptr.vmem [resolvable:$true] %s66
      %72 = dma.hbm_to_vmem [thread:$0]  %s3, 16384, %s67, [#allocation7], 128, 128, 8
    $region17: #{tpu_custom_call.1} parent=1 // pred_fallthru
      _
    // Predicated region
    $region18: #{tpu_custom_call.1} parent=1 // pred_check
      _
    $region19: #{tpu_custom_call.1} parent=1 // pred_check_branch
      %74 = sbr.rel (0) target = $region21
    $region20: #{tpu_custom_call.1} parent=1 // pred_region
      %s76 = ssub.s32 128, 128
      %77 = vsyncadd [#allocation10], %s76
      %s79 = sshll.u32 [#allocation9], 4
      %s80 = int_to_ptr.vmem [resolvable:$true] %s79
      %82 = dma.hbm_to_vmem [thread:$0]  %s4, 128, %s80, [#allocation10]
    $region21: #{tpu_custom_call.1} parent=1 // pred_fallthru
      _
    // Predicated region
    $region22: #{tpu_custom_call.1} parent=1 // pred_check
      _
    $region23: #{tpu_custom_call.1} parent=1 // pred_check_branch
      %84 = sbr.rel (0) target = $region25
    $region24: #{tpu_custom_call.1} parent=1 // pred_region
      %s86 = ssub.s32 16, 16
      %87 = vsyncadd [#allocation10], %s86
      %s89 = sshll.u32 [#allocation11], 4
      %s90 = int_to_ptr.vmem [resolvable:$true] %s89
      %92 = dma.hbm_to_vmem [thread:$0]  %s5, 16, %s90, [#allocation10]
    $region25: #{tpu_custom_call.1} parent=1 // pred_fallthru
      _
    // Predicated region
    $region26: #{tpu_custom_call.1} parent=1 // pred_check
      _
    $region27: #{tpu_custom_call.1} parent=1 // pred_check_branch
      %94 = sbr.rel (0) target = $region29
    $region28: #{tpu_custom_call.1} parent=1 // pred_region
      %s96 = ssub.s32 16, 16
      %97 = vsyncadd [#allocation13], %s96
      %s99 = sshll.u32 [#allocation12], 4
      %s100 = int_to_ptr.vmem [resolvable:$true] %s99
      %102 = dma.hbm_to_vmem [thread:$0]  %s6, 16, %s100, [#allocation13]
    $region29: #{tpu_custom_call.1} parent=1 // pred_fallthru
      _
    // Predicated region
    $region30: #{tpu_custom_call.1} parent=1 // pred_check
      _
    $region31: #{tpu_custom_call.1} parent=1 // pred_check_branch
      %104 = sbr.rel (0) target = $region33
    $region32: #{tpu_custom_call.1} parent=1 // pred_region
      %s106 = ssub.s32 6144, 6144
      %107 = vsyncadd [#allocation13], %s106
      %s108 = sshll.u32 [#allocation14], 4
      %s109 = int_to_ptr.vmem [resolvable:$true] %s108
      %114 = dma.hbm_to_vmem [thread:$0]  %s7, 6144, %s109, [#allocation13], 192, 192, 12
    $region33: #{tpu_custom_call.1} parent=1 // pred_fallthru
      _
    // Predicated region
    $region34: #{tpu_custom_call.1} parent=1 // pred_check
      _
    $region35: #{tpu_custom_call.1} parent=1 // pred_check_branch
      %116 = sbr.rel (0) target = $region37
    $region36: #{tpu_custom_call.1} parent=1 // pred_region
      _
    $region37: #{tpu_custom_call.1} parent=1 // pred_fallthru
      _
    // Predicated region
    $region38: #{tpu_custom_call.1} parent=1 // pred_check
      _
    $region39: #{tpu_custom_call.1} parent=1 // pred_check_branch
      %118 = sbr.rel (0) target = $region41
    $region40: #{tpu_custom_call.1} parent=1 // pred_region
      %s120 = ssub.s32 2048, 2048
      %121 = vsyncadd [#allocation16], %s120
      %s122 = sshll.u32 [#allocation15], 4
      %s123 = int_to_ptr.vmem [resolvable:$true] %s122
      %128 = dma.hbm_to_vmem [thread:$0]  %s9, 2048, %s123, [#allocation16], 64, 64, 4
    $region41: #{tpu_custom_call.1} parent=1 // pred_fallthru
      _
    // Predicated region
    $region42: #{tpu_custom_call.1} parent=1 // pred_check
      _
    $region43: #{tpu_custom_call.1} parent=1 // pred_check_branch
      %130 = sbr.rel (0) target = $region45
    $region44: #{tpu_custom_call.1} parent=1 // pred_region
      _
    $region45: #{tpu_custom_call.1} parent=1 // pred_fallthru
      _
    // Predicated region
    $region46: #{tpu_custom_call.1} parent=1 // pred_check
      _
    $region47: #{tpu_custom_call.1} parent=1 // pred_check_branch
      %132 = sbr.rel (0) target = $region49
    $region48: #{tpu_custom_call.1} parent=1 // pred_region
      _
    $region49: #{tpu_custom_call.1} parent=1 // pred_fallthru
      _
    // Predicated region
    $region50: #{tpu_custom_call.1} parent=1 // pred_check
      _
    $region51: #{tpu_custom_call.1} parent=1 // pred_check_branch
      %134 = sbr.rel (0) target = $region53
    $region52: #{tpu_custom_call.1} parent=1 // pred_region
      %s136 = ssub.s32 32, 32
      %137 = vsyncadd [#allocation16], %s136
      %s138 = sshll.u32 [#allocation17], 4
      %s139 = int_to_ptr.vmem [resolvable:$true] %s138
      %144 = dma.hbm_to_vmem [thread:$0]  %s12, 32, %s139, [#allocation16], 16, 16, 1
    $region53: #{tpu_custom_call.1} parent=1 // pred_fallthru
      _
    // Predicated region
    $region54: #{tpu_custom_call.1} parent=1 // pred_check
      _
    $region55: #{tpu_custom_call.1} parent=1 // pred_check_branch
      %146 = sbr.rel (0) target = $region57
    $region56: #{tpu_custom_call.1} parent=1 // pred_region
      %s148 = ssub.s32 8192, 8192
      %149 = vsyncadd [#allocation19], %s148
      %s150 = sshll.u32 [#allocation18], 4
      %s151 = int_to_ptr.vmem [resolvable:$true] %s150
      %156 = dma.hbm_to_vmem [thread:$0]  %s13, 8192, %s151, [#allocation19], 256, 256, 16
    $region57: #{tpu_custom_call.1} parent=1 // pred_fallthru
      _
    // Predicated region
    $region58: #{tpu_custom_call.1} parent=1 // pred_check
      _
    $region59: #{tpu_custom_call.1} parent=1 // pred_check_branch
      %158 = sbr.rel (0) target = $region61
    $region60: #{tpu_custom_call.1} parent=1 // pred_region
      _
    $region61: #{tpu_custom_call.1} parent=1 // pred_fallthru
      _
    // Predicated region
    $region62: #{tpu_custom_call.1} parent=1 // pred_check
      _
    $region63: #{tpu_custom_call.1} parent=1 // pred_check_branch
      %160 = sbr.rel (0) target = $region65
    $region64: #{tpu_custom_call.1} parent=1 // pred_region
      %s162 = ssub.s32 8192, 8192
      %163 = vsyncadd [#allocation19], %s162
      %s164 = sshll.u32 [#allocation20], 4
      %s165 = int_to_ptr.vmem [resolvable:$true] %s164
      %170 = dma.hbm_to_vmem [thread:$0]  %s15, 8192, %s165, [#allocation19], 64, 64, 4
    $region65: #{tpu_custom_call.1} parent=1 // pred_fallthru
      _
    // Predicated region
    $region66: #{tpu_custom_call.1} parent=1 // pred_check
      _
    $region67: #{tpu_custom_call.1} parent=1 // pred_check_branch
      %172 = sbr.rel (0) target = $region69
    $region68: #{tpu_custom_call.1} parent=1 // pred_region
      _
    $region69: #{tpu_custom_call.1} parent=1 // pred_fallthru
      _
    // Predicated region
    $region70: #{tpu_custom_call.1} parent=1 // pred_check
      _
    $region71: #{tpu_custom_call.1} parent=1 // pred_check_branch
      %174 = sbr.rel (0) target = $region73
    $region72: #{tpu_custom_call.1} parent=1 // pred_region
      _
    $region73: #{tpu_custom_call.1} parent=1 // pred_fallthru
      _
    // Predicated region
    $region74: #{tpu_custom_call.1} parent=1 // pred_check
      _
    $region75: #{tpu_custom_call.1} parent=1 // pred_check_branch
      %176 = sbr.rel (0) target = $region77
    $region76: #{tpu_custom_call.1} parent=1 // pred_region
      _
    $region77: #{tpu_custom_call.1} parent=1 // pred_fallthru
      _
    // Predicated region
    $region78: #{tpu_custom_call.1} parent=1 // pred_check
      _
    $region79: #{tpu_custom_call.1} parent=1 // pred_check_branch
      %178 = sbr.rel (0) target = $region81
    $region80: #{tpu_custom_call.1} parent=1 // pred_region
      %s180 = ssub.s32 1024, 1024
      %181 = vsyncadd [#allocation22], %s180
      %s182 = sshll.u32 [#allocation21], 4
      %s183 = int_to_ptr.vmem [resolvable:$true] %s182
      %188 = dma.hbm_to_vmem [thread:$0]  %s19, 1024, %s183, [#allocation22], 64, 64, 4
    $region81: #{tpu_custom_call.1} parent=1 // pred_fallthru
      _
    // Predicated region
    $region82: #{tpu_custom_call.1} parent=1 // pred_check
      _
    $region83: #{tpu_custom_call.1} parent=1 // pred_check_branch
      %190 = sbr.rel (0) target = $region85
    $region84: #{tpu_custom_call.1} parent=1 // pred_region
      _
    $region85: #{tpu_custom_call.1} parent=1 // pred_fallthru
      _
    // Predicated region
    $region86: #{tpu_custom_call.1} parent=1 // pred_check
      _
    $region87: #{tpu_custom_call.1} parent=1 // pred_check_branch
      %192 = sbr.rel (0) target = $region89
    $region88: #{tpu_custom_call.1} parent=1 // pred_region
      %193 = dma.done [#allocation3], 32
    $region89: #{tpu_custom_call.1} parent=1 // pred_fallthru
      _
    // Predicated region
    $region90: #{tpu_custom_call.1} parent=1 // pred_check
      _
    $region91: #{tpu_custom_call.1} parent=1 // pred_check_branch
      %195 = sbr.rel (0) target = $region93
    $region92: #{tpu_custom_call.1} parent=1 // pred_region
      %196 = dma.done [#allocation7], 32
    $region93: #{tpu_custom_call.1} parent=1 // pred_fallthru
      _
    // Predicated region
    $region94: #{tpu_custom_call.1} parent=1 // pred_check
      _
    $region95: #{tpu_custom_call.1} parent=1 // pred_check_branch
      %198 = sbr.rel (0) target = $region97
    $region96: #{tpu_custom_call.1} parent=1 // pred_region
      %199 = dma.done [#allocation7], 16384
    $region97: #{tpu_custom_call.1} parent=1 // pred_fallthru
      _
    // Predicated region
    $region98: #{tpu_custom_call.1} parent=1 // pred_check
      _
    $region99: #{tpu_custom_call.1} parent=1 // pred_check_branch
      %201 = sbr.rel (0) target = $region101
    $region100: #{tpu_custom_call.1} parent=1 // pred_region
      %202 = dma.done [#allocation10], 128
    $region101: #{tpu_custom_call.1} parent=1 // pred_fallthru
      _
    // Predicated region
    $region102: #{tpu_custom_call.1} parent=1 // pred_check
      _
    $region103: #{tpu_custom_call.1} parent=1 // pred_check_branch
      %204 = sbr.rel (0) target = $region105
    $region104: #{tpu_custom_call.1} parent=1 // pred_region
      %205 = dma.done [#allocation10], 16
    $region105: #{tpu_custom_call.1} parent=1 // pred_fallthru
      _
    // Predicated region
    $region106: #{tpu_custom_call.1} parent=1 // pred_check
      _
    $region107: #{tpu_custom_call.1} parent=1 // pred_check_branch
      %207 = sbr.rel (0) target = $region109
    $region108: #{tpu_custom_call.1} parent=1 // pred_region
      %208 = dma.done [#allocation13], 16
    $region109: #{tpu_custom_call.1} parent=1 // pred_fallthru
      _
    // Predicated region
    $region110: #{tpu_custom_call.1} parent=1 // pred_check
      _
    $region111: #{tpu_custom_call.1} parent=1 // pred_check_branch
      %210 = sbr.rel (0) target = $region113
    $region112: #{tpu_custom_call.1} parent=1 // pred_region
      %211 = dma.done [#allocation13], 6144
    $region113: #{tpu_custom_call.1} parent=1 // pred_fallthru
      _
    // Predicated region
    $region114: #{tpu_custom_call.1} parent=1 // pred_check
      _
    $region115: #{tpu_custom_call.1} parent=1 // pred_check_branch
      %213 = sbr.rel (0) target = $region117
    $region116: #{tpu_custom_call.1} parent=1 // pred_region
      %214 = dma.done [#allocation16], 2048
    $region117: #{tpu_custom_call.1} parent=1 // pred_fallthru
      _
    // Predicated region
    $region118: #{tpu_custom_call.1} parent=1 // pred_check
      _
    $region119: #{tpu_custom_call.1} parent=1 // pred_check_branch
      %216 = sbr.rel (0) target = $region121
    $region120: #{tpu_custom_call.1} parent=1 // pred_region
      %217 = dma.done [#allocation16], 32
    $region121: #{tpu_custom_call.1} parent=1 // pred_fallthru
      _
    // Predicated region
    $region122: #{tpu_custom_call.1} parent=1 // pred_check
      _
    $region123: #{tpu_custom_call.1} parent=1 // pred_check_branch
      %219 = sbr.rel (0) target = $region125
    $region124: #{tpu_custom_call.1} parent=1 // pred_region
      %220 = dma.done [#allocation19], 8192
    $region125: #{tpu_custom_call.1} parent=1 // pred_fallthru
      _
    // Predicated region
    $region126: #{tpu_custom_call.1} parent=1 // pred_check
      _
    $region127: #{tpu_custom_call.1} parent=1 // pred_check_branch
      %222 = sbr.rel (0) target = $region129
    $region128: #{tpu_custom_call.1} parent=1 // pred_region
      %223 = dma.done [#allocation19], 8192
    $region129: #{tpu_custom_call.1} parent=1 // pred_fallthru
      _
    // Predicated region
    $region130: #{tpu_custom_call.1} parent=1 // pred_check
      _
    $region131: #{tpu_custom_call.1} parent=1 // pred_check_branch
      %225 = sbr.rel (0) target = $region133
    $region132: #{tpu_custom_call.1} parent=1 // pred_region
      %226 = dma.done [#allocation22], 1024
    $region133: #{tpu_custom_call.1} parent=1 // pred_fallthru
      _
    %v228 = vld [vmem:[#allocation2] sm:$0x3]
    %v229 = vlaneseq
    %v230 = vand.u32 %v229, 127
    %v231 = vadd.s32 %v230, 128
    %v232 = vadd.s32 %v230, 256
    %v233 = vadd.s32 %v230, 384
    %v234 = vadd.s32 %v230, 512
    %v235 = vadd.s32 %v230, 640
    %v236 = vadd.s32 %v230, 768
    %v237 = vadd.s32 %v230, 896
    %v238 = vlaneseq
    %v239 = vshrl.u32 %v238, 7
    %v240 = vsub.s32 0, %v239
    %v241 = vrot.slane %v228, %v240
    %243 = vbcast.lane.b32.xlu0 %v241, 256
    %v244 = vpop.permute.xlu0 %243
    %v245 = vlaneseq
    %v246 = vshrl.u32 %v245, 7
    %v247 = vsub.s32 1, %v246
    %v248 = vrot.slane %v228, %v247
    %250 = vbcast.lane.b32.xlu0 %v248, 256
    %v251 = vpop.permute.xlu0 %250
    %vm252 = vcmp.eq.s32.totalorder %v230, %v244
    %vm253 = vcmp.eq.s32.totalorder %v231, %v244
    %vm254 = vcmp.eq.s32.totalorder %v232, %v244
    %vm255 = vcmp.eq.s32.totalorder %v233, %v244
    %vm256 = vcmp.eq.s32.totalorder %v234, %v244
    %vm257 = vcmp.eq.s32.totalorder %v235, %v244
    %vm258 = vcmp.eq.s32.totalorder %v236, %v244
    %vm259 = vcmp.eq.s32.totalorder %v237, %v244
    %vm260 = vcmp.eq.s32.totalorder %v230, %v251
    %vm261 = vcmp.eq.s32.totalorder %v231, %v251
    %vm262 = vcmp.eq.s32.totalorder %v232, %v251
    %vm263 = vcmp.eq.s32.totalorder %v233, %v251
    %vm264 = vcmp.eq.s32.totalorder %v234, %v251
    %vm265 = vcmp.eq.s32.totalorder %v235, %v251
    %vm266 = vcmp.eq.s32.totalorder %v236, %v251
    %vm267 = vcmp.eq.s32.totalorder %v237, %v251
    %v268 = vsel %vm252, 1, 0
    %v269 = vsel %vm253, 1, 0
    %v270 = vsel %vm254, 1, 0
    %v271 = vsel %vm255, 1, 0
    %v272 = vsel %vm256, 1, 0
    %v273 = vsel %vm257, 1, 0
    %v274 = vsel %vm258, 1, 0
    %v275 = vsel %vm259, 1, 0
    %v276 = vsel %vm260, 1, 0
    %v277 = vsel %vm261, 1, 0
    %v278 = vsel %vm262, 1, 0
    %v279 = vsel %vm263, 1, 0
    %v280 = vsel %vm264, 1, 0
    %v281 = vsel %vm265, 1, 0
    %v282 = vsel %vm266, 1, 0
    %v283 = vsel %vm267, 1, 0
    %v284 = vcvt.s32.f32 %v268
    %v285 = vcvt.s32.f32 %v269
    %v286 = vcvt.s32.f32 %v270
    %v287 = vcvt.s32.f32 %v271
    %v288 = vcvt.s32.f32 %v272
    %v289 = vcvt.s32.f32 %v273
    %v290 = vcvt.s32.f32 %v274
    %v291 = vcvt.s32.f32 %v275
    %v292 = vcvt.s32.f32 %v276
    %v293 = vcvt.s32.f32 %v277
    %v294 = vcvt.s32.f32 %v278
    %v295 = vcvt.s32.f32 %v279
    %v296 = vcvt.s32.f32 %v280
    %v297 = vcvt.s32.f32 %v281
    %v298 = vcvt.s32.f32 %v282
    %v299 = vcvt.s32.f32 %v283
    %v300 = vld [vmem:[#allocation8] sm:$0xff]
    %v301 = vld [vmem:[#allocation8 + $0x8] sm:$0xff]
    %v302 = vld [vmem:[#allocation8 + $0x10] sm:$0xff]
    %v303 = vld [vmem:[#allocation8 + $0x18] sm:$0xff]
    %v304 = vld [vmem:[#allocation8 + $0x20] sm:$0xff]
    %v305 = vld [vmem:[#allocation8 + $0x28] sm:$0xff]
    %v306 = vld [vmem:[#allocation8 + $0x30] sm:$0xff]
    %v307 = vld [vmem:[#allocation8 + $0x38] sm:$0xff]
    %v308 = vld [vmem:[#allocation8 + $0x40] sm:$0xff]
    %v309 = vld [vmem:[#allocation8 + $0x48] sm:$0xff]
    %v310 = vld [vmem:[#allocation8 + $0x50] sm:$0xff]
    %v311 = vld [vmem:[#allocation8 + $0x58] sm:$0xff]
    %v312 = vld [vmem:[#allocation8 + $0x60] sm:$0xff]
    %v313 = vld [vmem:[#allocation8 + $0x68] sm:$0xff]
    %v314 = vld [vmem:[#allocation8 + $0x70] sm:$0xff]
    %v315 = vld [vmem:[#allocation8 + $0x78] sm:$0xff]
    %v316 = vld [vmem:[#allocation8 + $0x80] sm:$0xff]
    %v317 = vld [vmem:[#allocation8 + $0x88] sm:$0xff]
    %v318 = vld [vmem:[#allocation8 + $0x90] sm:$0xff]
    %v319 = vld [vmem:[#allocation8 + $0x98] sm:$0xff]
    %v320 = vld [vmem:[#allocation8 + $0xa0] sm:$0xff]
    %v321 = vld [vmem:[#allocation8 + $0xa8] sm:$0xff]
    %v322 = vld [vmem:[#allocation8 + $0xb0] sm:$0xff]
    %v323 = vld [vmem:[#allocation8 + $0xb8] sm:$0xff]
    %v324 = vld [vmem:[#allocation8 + $0xc0] sm:$0xff]
    %v325 = vld [vmem:[#allocation8 + $0xc8] sm:$0xff]
    %v326 = vld [vmem:[#allocation8 + $0xd0] sm:$0xff]
    %v327 = vld [vmem:[#allocation8 + $0xd8] sm:$0xff]
    %v328 = vld [vmem:[#allocation8 + $0xe0] sm:$0xff]
    %v329 = vld [vmem:[#allocation8 + $0xe8] sm:$0xff]
    %v330 = vld [vmem:[#allocation8 + $0xf0] sm:$0xff]
    %v331 = vld [vmem:[#allocation8 + $0xf8] sm:$0xff]
    %v332 = vld [vmem:[#allocation8 + $0x100] sm:$0xff]
    %v333 = vld [vmem:[#allocation8 + $0x108] sm:$0xff]
    %v334 = vld [vmem:[#allocation8 + $0x110] sm:$0xff]
    %v335 = vld [vmem:[#allocation8 + $0x118] sm:$0xff]
    %v336 = vld [vmem:[#allocation8 + $0x120] sm:$0xff]
    %v337 = vld [vmem:[#allocation8 + $0x128] sm:$0xff]
    %v338 = vld [vmem:[#allocation8 + $0x130] sm:$0xff]
    %v339 = vld [vmem:[#allocation8 + $0x138] sm:$0xff]
    %v340 = vld [vmem:[#allocation8 + $0x140] sm:$0xff]
    %v341 = vld [vmem:[#allocation8 + $0x148] sm:$0xff]
    %v342 = vld [vmem:[#allocation8 + $0x150] sm:$0xff]
    %v343 = vld [vmem:[#allocation8 + $0x158] sm:$0xff]
    %v344 = vld [vmem:[#allocation8 + $0x160] sm:$0xff]
    %v345 = vld [vmem:[#allocation8 + $0x168] sm:$0xff]
    %v346 = vld [vmem:[#allocation8 + $0x170] sm:$0xff]
    %v347 = vld [vmem:[#allocation8 + $0x178] sm:$0xff]
    %v348 = vld [vmem:[#allocation8 + $0x180] sm:$0xff]
    %v349 = vld [vmem:[#allocation8 + $0x188] sm:$0xff]
    %v350 = vld [vmem:[#allocation8 + $0x190] sm:$0xff]
    %v351 = vld [vmem:[#allocation8 + $0x198] sm:$0xff]
    %v352 = vld [vmem:[#allocation8 + $0x1a0] sm:$0xff]
    %v353 = vld [vmem:[#allocation8 + $0x1a8] sm:$0xff]
    %v354 = vld [vmem:[#allocation8 + $0x1b0] sm:$0xff]
    %v355 = vld [vmem:[#allocation8 + $0x1b8] sm:$0xff]
    %v356 = vld [vmem:[#allocation8 + $0x1c0] sm:$0xff]
    %v357 = vld [vmem:[#allocation8 + $0x1c8] sm:$0xff]
    %v358 = vld [vmem:[#allocation8 + $0x1d0] sm:$0xff]
    %v359 = vld [vmem:[#allocation8 + $0x1d8] sm:$0xff]
    %v360 = vld [vmem:[#allocation8 + $0x1e0] sm:$0xff]
    %v361 = vld [vmem:[#allocation8 + $0x1e8] sm:$0xff]
    %v362 = vld [vmem:[#allocation8 + $0x1f0] sm:$0xff]
    %v363 = vld [vmem:[#allocation8 + $0x1f8] sm:$0xff]
    %v364 = vld [vmem:[#allocation8 + $0x200] sm:$0xff]
    %v365 = vld [vmem:[#allocation8 + $0x208] sm:$0xff]
    %v366 = vld [vmem:[#allocation8 + $0x210] sm:$0xff]
    %v367 = vld [vmem:[#allocation8 + $0x218] sm:$0xff]
    %v368 = vld [vmem:[#allocation8 + $0x220] sm:$0xff]
    %v369 = vld [vmem:[#allocation8 + $0x228] sm:$0xff]
    %v370 = vld [vmem:[#allocation8 + $0x230] sm:$0xff]
    %v371 = vld [vmem:[#allocation8 + $0x238] sm:$0xff]
    %v372 = vld [vmem:[#allocation8 + $0x240] sm:$0xff]
    %v373 = vld [vmem:[#allocation8 + $0x248] sm:$0xff]
    %v374 = vld [vmem:[#allocation8 + $0x250] sm:$0xff]
    %v375 = vld [vmem:[#allocation8 + $0x258] sm:$0xff]
    %v376 = vld [vmem:[#allocation8 + $0x260] sm:$0xff]
    %v377 = vld [vmem:[#allocation8 + $0x268] sm:$0xff]
    %v378 = vld [vmem:[#allocation8 + $0x270] sm:$0xff]
    %v379 = vld [vmem:[#allocation8 + $0x278] sm:$0xff]
    %v380 = vld [vmem:[#allocation8 + $0x280] sm:$0xff]
    %v381 = vld [vmem:[#allocation8 + $0x288] sm:$0xff]
    %v382 = vld [vmem:[#allocation8 + $0x290] sm:$0xff]
    %v383 = vld [vmem:[#allocation8 + $0x298] sm:$0xff]
    %v384 = vld [vmem:[#allocation8 + $0x2a0] sm:$0xff]
    %v385 = vld [vmem:[#allocation8 + $0x2a8] sm:$0xff]
    %v386 = vld [vmem:[#allocation8 + $0x2b0] sm:$0xff]
    %v387 = vld [vmem:[#allocation8 + $0x2b8] sm:$0xff]
    %v388 = vld [vmem:[#allocation8 + $0x2c0] sm:$0xff]
    %v389 = vld [vmem:[#allocation8 + $0x2c8] sm:$0xff]
    %v390 = vld [vmem:[#allocation8 + $0x2d0] sm:$0xff]
    %v391 = vld [vmem:[#allocation8 + $0x2d8] sm:$0xff]
    %v392 = vld [vmem:[#allocation8 + $0x2e0] sm:$0xff]
    %v393 = vld [vmem:[#allocation8 + $0x2e8] sm:$0xff]
    %v394 = vld [vmem:[#allocation8 + $0x2f0] sm:$0xff]
    %v395 = vld [vmem:[#allocation8 + $0x2f8] sm:$0xff]
    %v396 = vld [vmem:[#allocation8 + $0x300] sm:$0xff]
    %v397 = vld [vmem:[#allocation8 + $0x308] sm:$0xff]
    %v398 = vld [vmem:[#allocation8 + $0x310] sm:$0xff]
    %v399 = vld [vmem:[#allocation8 + $0x318] sm:$0xff]
    %v400 = vld [vmem:[#allocation8 + $0x320] sm:$0xff]
    %v401 = vld [vmem:[#allocation8 + $0x328] sm:$0xff]
    %v402 = vld [vmem:[#allocation8 + $0x330] sm:$0xff]
    %v403 = vld [vmem:[#allocation8 + $0x338] sm:$0xff]
    %v404 = vld [vmem:[#allocation8 + $0x340] sm:$0xff]
    %v405 = vld [vmem:[#allocation8 + $0x348] sm:$0xff]
    %v406 = vld [vmem:[#allocation8 + $0x350] sm:$0xff]
    %v407 = vld [vmem:[#allocation8 + $0x358] sm:$0xff]
    %v408 = vld [vmem:[#allocation8 + $0x360] sm:$0xff]
    %v409 = vld [vmem:[#allocation8 + $0x368] sm:$0xff]
    %v410 = vld [vmem:[#allocation8 + $0x370] sm:$0xff]
    %v411 = vld [vmem:[#allocation8 + $0x378] sm:$0xff]
    %v412 = vld [vmem:[#allocation8 + $0x380] sm:$0xff]
    %v413 = vld [vmem:[#allocation8 + $0x388] sm:$0xff]
    %v414 = vld [vmem:[#allocation8 + $0x390] sm:$0xff]
    %v415 = vld [vmem:[#allocation8 + $0x398] sm:$0xff]
    %v416 = vld [vmem:[#allocation8 + $0x3a0] sm:$0xff]
    %v417 = vld [vmem:[#allocation8 + $0x3a8] sm:$0xff]
    %v418 = vld [vmem:[#allocation8 + $0x3b0] sm:$0xff]
    %v419 = vld [vmem:[#allocation8 + $0x3b8] sm:$0xff]
    %v420 = vld [vmem:[#allocation8 + $0x3c0] sm:$0xff]
    %v421 = vld [vmem:[#allocation8 + $0x3c8] sm:$0xff]
    %v422 = vld [vmem:[#allocation8 + $0x3d0] sm:$0xff]
    %v423 = vld [vmem:[#allocation8 + $0x3d8] sm:$0xff]
    %v424 = vld [vmem:[#allocation8 + $0x3e0] sm:$0xff]
    %v425 = vld [vmem:[#allocation8 + $0x3e8] sm:$0xff]
    %v426 = vld [vmem:[#allocation8 + $0x3f0] sm:$0xff]
    %v427 = vld [vmem:[#allocation8 + $0x3f8] sm:$0xff]
    %428 = vmatprep.subr.mxu0 0.0
    %429 = vmatpush1.msra.mxu0 %v315
    %430 = vmatprep.subr.mxu0 0.0
    %431 = vmatpush1.msra.mxu0 %v314
    %432 = vmatprep.subr.mxu0 0.0
    %433 = vmatpush1.msra.mxu0 %v313
    %434 = vmatprep.subr.mxu0 0.0
    %435 = vmatpush1.msra.mxu0 %v312
    %436 = vmatprep.subr.mxu0 0.0
    %437 = vmatpush1.msra.mxu0 %v311
    %438 = vmatprep.subr.mxu0 0.0
    %439 = vmatpush1.msra.mxu0 %v310
    %440 = vmatprep.subr.mxu0 0.0
    %441 = vmatpush1.msra.mxu0 %v309
    %442 = vmatprep.subr.mxu0 0.0
    %443 = vmatpush1.msra.mxu0 %v308
    %444 = vmatprep.subr.mxu0 0.0
    %445 = vmatpush1.msra.mxu0 %v307
    %446 = vmatprep.subr.mxu0 0.0
    %447 = vmatpush1.msra.mxu0 %v306
    %448 = vmatprep.subr.mxu0 0.0
    %449 = vmatpush1.msra.mxu0 %v305
    %450 = vmatprep.subr.mxu0 0.0
    %451 = vmatpush1.msra.mxu0 %v304
    %452 = vmatprep.subr.mxu0 0.0
    %453 = vmatpush1.msra.mxu0 %v303
    %454 = vmatprep.subr.mxu0 0.0
    %455 = vmatpush1.msra.mxu0 %v302
    %456 = vmatprep.subr.mxu0 0.0
    %457 = vmatpush1.msra.mxu0 %v301
    %458 = vmatprep.subr.mxu0 0.0
    %459 = vmatpush1.msra.mxu0 %v300
    %460 = vmatprep.subr.mxu0 0.0
    %461 = vmatpush2.msra.mxu0 %v331
    %462 = vmatprep.subr.mxu0 0.0
    %463 = vmatpush2.msra.mxu0 %v330
    %464 = vmatprep.subr.mxu0 0.0
    %465 = vmatpush2.msra.mxu0 %v329
    %466 = vmatprep.subr.mxu0 0.0
    %467 = vmatpush2.msra.mxu0 %v328
    %468 = vmatprep.subr.mxu0 0.0
    %469 = vmatpush2.msra.mxu0 %v327
    %470 = vmatprep.subr.mxu0 0.0
    %471 = vmatpush2.msra.mxu0 %v326
    %472 = vmatprep.subr.mxu0 0.0
    %473 = vmatpush2.msra.mxu0 %v325
    %474 = vmatprep.subr.mxu0 0.0
    %475 = vmatpush2.msra.mxu0 %v324
    %476 = vmatprep.subr.mxu0 0.0
    %477 = vmatpush2.msra.mxu0 %v323
    %478 = vmatprep.subr.mxu0 0.0
    %479 = vmatpush2.msra.mxu0 %v322
    %480 = vmatprep.subr.mxu0 0.0
    %481 = vmatpush2.msra.mxu0 %v321
    %482 = vmatprep.subr.mxu0 0.0
    %483 = vmatpush2.msra.mxu0 %v320
    %484 = vmatprep.subr.mxu0 0.0
    %485 = vmatpush2.msra.mxu0 %v319
    %486 = vmatprep.subr.mxu0 0.0
    %487 = vmatpush2.msra.mxu0 %v318
    %488 = vmatprep.subr.mxu0 0.0
    %489 = vmatpush2.msra.mxu0 %v317
    %490 = vmatprep.subr.mxu0 0.0
    %491 = vmatpush2.msra.mxu0 %v316
    %492 = vmatprep.mubr.f32.mxu0 %v285
    %493 = vmatmul.mubr.f32.gmra.mxu0 %v284
    %v494 = vpop.f32.mrf.mxu0
    %v495 = vadd.f32 0.0, %v494
    %v496 = vpop.f32.mrf.mxu0
    %497 = vmatprep.mubr.f32.mxu0 %v293
    %498 = vmatmul.mubr.f32.gmra.mxu0 %v292
    %v499 = vpop.f32.mrf.mxu0
    %v500 = vadd.f32 0.0, %v499
    %v501 = vpop.f32.mrf.mxu0
    %502 = vdwg.mxu0
    %503 = vmatprep.subr.mxu0 0.0
    %504 = vmatpush1.msra.mxu0 %v347
    %505 = vmatprep.subr.mxu0 0.0
    %506 = vmatpush1.msra.mxu0 %v346
    %507 = vmatprep.subr.mxu0 0.0
    %508 = vmatpush1.msra.mxu0 %v345
    %509 = vmatprep.subr.mxu0 0.0
    %510 = vmatpush1.msra.mxu0 %v344
    %511 = vmatprep.subr.mxu0 0.0
    %512 = vmatpush1.msra.mxu0 %v343
    %513 = vmatprep.subr.mxu0 0.0
    %514 = vmatpush1.msra.mxu0 %v342
    %515 = vmatprep.subr.mxu0 0.0
    %516 = vmatpush1.msra.mxu0 %v341
    %517 = vmatprep.subr.mxu0 0.0
    %518 = vmatpush1.msra.mxu0 %v340
    %519 = vmatprep.subr.mxu0 0.0
    %520 = vmatpush1.msra.mxu0 %v339
    %521 = vmatprep.subr.mxu0 0.0
    %522 = vmatpush1.msra.mxu0 %v338
    %523 = vmatprep.subr.mxu0 0.0
    %524 = vmatpush1.msra.mxu0 %v337
    %525 = vmatprep.subr.mxu0 0.0
    %526 = vmatpush1.msra.mxu0 %v336
    %527 = vmatprep.subr.mxu0 0.0
    %528 = vmatpush1.msra.mxu0 %v335
    %529 = vmatprep.subr.mxu0 0.0
    %530 = vmatpush1.msra.mxu0 %v334
    %531 = vmatprep.subr.mxu0 0.0
    %532 = vmatpush1.msra.mxu0 %v333
    %533 = vmatprep.subr.mxu0 0.0
    %534 = vmatpush1.msra.mxu0 %v332
    %535 = vmatprep.subr.mxu0 0.0
    %536 = vmatpush2.msra.mxu0 %v363
    %537 = vmatprep.subr.mxu0 0.0
    %538 = vmatpush2.msra.mxu0 %v362
    %539 = vmatprep.subr.mxu0 0.0
    %540 = vmatpush2.msra.mxu0 %v361
    %541 = vmatprep.subr.mxu0 0.0
    %542 = vmatpush2.msra.mxu0 %v360
    %543 = vmatprep.subr.mxu0 0.0
    %544 = vmatpush2.msra.mxu0 %v359
    %545 = vmatprep.subr.mxu0 0.0
    %546 = vmatpush2.msra.mxu0 %v358
    %547 = vmatprep.subr.mxu0 0.0
    %548 = vmatpush2.msra.mxu0 %v357
    %549 = vmatprep.subr.mxu0 0.0
    %550 = vmatpush2.msra.mxu0 %v356
    %551 = vmatprep.subr.mxu0 0.0
    %552 = vmatpush2.msra.mxu0 %v355
    %553 = vmatprep.subr.mxu0 0.0
    %554 = vmatpush2.msra.mxu0 %v354
    %555 = vmatprep.subr.mxu0 0.0
    %556 = vmatpush2.msra.mxu0 %v353
    %557 = vmatprep.subr.mxu0 0.0
    %558 = vmatpush2.msra.mxu0 %v352
    %559 = vmatprep.subr.mxu0 0.0
    %560 = vmatpush2.msra.mxu0 %v351
    %561 = vmatprep.subr.mxu0 0.0
    %562 = vmatpush2.msra.mxu0 %v350
    %563 = vmatprep.subr.mxu0 0.0
    %564 = vmatpush2.msra.mxu0 %v349
    %565 = vmatprep.subr.mxu0 0.0
    %566 = vmatpush2.msra.mxu0 %v348
    %567 = vmatprep.mubr.f32.mxu0 %v287
    %568 = vmatmul.mubr.f32.gmra.mxu0 %v286
    %v569 = vpop.f32.mrf.mxu0
    %v570 = vadd.f32 %v495, %v569
    %v571 = vpop.f32.mrf.mxu0
    %572 = vmatprep.mubr.f32.mxu0 %v295
    %573 = vmatmul.mubr.f32.gmra.mxu0 %v294
    %v574 = vpop.f32.mrf.mxu0
    %v575 = vadd.f32 %v500, %v574
    %v576 = vpop.f32.mrf.mxu0
    %577 = vdwg.mxu0
    %578 = vmatprep.subr.mxu0 0.0
    %579 = vmatpush1.msra.mxu0 %v379
    %580 = vmatprep.subr.mxu0 0.0
    %581 = vmatpush1.msra.mxu0 %v378
    %582 = vmatprep.subr.mxu0 0.0
    %583 = vmatpush1.msra.mxu0 %v377
    %584 = vmatprep.subr.mxu0 0.0
    %585 = vmatpush1.msra.mxu0 %v376
    %586 = vmatprep.subr.mxu0 0.0
    %587 = vmatpush1.msra.mxu0 %v375
    %588 = vmatprep.subr.mxu0 0.0
    %589 = vmatpush1.msra.mxu0 %v374
    %590 = vmatprep.subr.mxu0 0.0
    %591 = vmatpush1.msra.mxu0 %v373
    %592 = vmatprep.subr.mxu0 0.0
    %593 = vmatpush1.msra.mxu0 %v372
    %594 = vmatprep.subr.mxu0 0.0
    %595 = vmatpush1.msra.mxu0 %v371
    %596 = vmatprep.subr.mxu0 0.0
    %597 = vmatpush1.msra.mxu0 %v370
    %598 = vmatprep.subr.mxu0 0.0
    %599 = vmatpush1.msra.mxu0 %v369
    %600 = vmatprep.subr.mxu0 0.0
    %601 = vmatpush1.msra.mxu0 %v368
    %602 = vmatprep.subr.mxu0 0.0
    %603 = vmatpush1.msra.mxu0 %v367
    %604 = vmatprep.subr.mxu0 0.0
    %605 = vmatpush1.msra.mxu0 %v366
    %606 = vmatprep.subr.mxu0 0.0
    %607 = vmatpush1.msra.mxu0 %v365
    %608 = vmatprep.subr.mxu0 0.0
    %609 = vmatpush1.msra.mxu0 %v364
    %610 = vmatprep.subr.mxu0 0.0
    %611 = vmatpush2.msra.mxu0 %v395
    %612 = vmatprep.subr.mxu0 0.0
    %613 = vmatpush2.msra.mxu0 %v394
    %614 = vmatprep.subr.mxu0 0.0
    %615 = vmatpush2.msra.mxu0 %v393
    %616 = vmatprep.subr.mxu0 0.0
    %617 = vmatpush2.msra.mxu0 %v392
    %618 = vmatprep.subr.mxu0 0.0
    %619 = vmatpush2.msra.mxu0 %v391
    %620 = vmatprep.subr.mxu0 0.0
    %621 = vmatpush2.msra.mxu0 %v390
    %622 = vmatprep.subr.mxu0 0.0
    %623 = vmatpush2.msra.mxu0 %v389
    %624 = vmatprep.subr.mxu0 0.0
    %625 = vmatpush2.msra.mxu0 %v388
    %626 = vmatprep.subr.mxu0 0.0
    %627 = vmatpush2.msra.mxu0 %v387
    %628 = vmatprep.subr.mxu0 0.0
    %629 = vmatpush2.msra.mxu0 %v386
    %630 = vmatprep.subr.mxu0 0.0
    %631 = vmatpush2.msra.mxu0 %v385
    %632 = vmatprep.subr.mxu0 0.0
    %633 = vmatpush2.msra.mxu0 %v384
    %634 = vmatprep.subr.mxu0 0.0
    %635 = vmatpush2.msra.mxu0 %v383
    %636 = vmatprep.subr.mxu0 0.0
    %637 = vmatpush2.msra.mxu0 %v382
    %638 = vmatprep.subr.mxu0 0.0
    %639 = vmatpush2.msra.mxu0 %v381
    %640 = vmatprep.subr.mxu0 0.0
    %641 = vmatpush2.msra.mxu0 %v380
    %642 = vmatprep.mubr.f32.mxu0 %v289
    %643 = vmatmul.mubr.f32.gmra.mxu0 %v288
    %v644 = vpop.f32.mrf.mxu0
    %v645 = vadd.f32 %v570, %v644
    %v646 = vpop.f32.mrf.mxu0
    %647 = vmatprep.mubr.f32.mxu0 %v297
    %648 = vmatmul.mubr.f32.gmra.mxu0 %v296
    %v649 = vpop.f32.mrf.mxu0
    %v650 = vadd.f32 %v575, %v649
    %v651 = vpop.f32.mrf.mxu0
    %652 = vdwg.mxu0
    %653 = vmatprep.subr.mxu0 0.0
    %654 = vmatpush1.msra.mxu0 %v411
    %655 = vmatprep.subr.mxu0 0.0
    %656 = vmatpush1.msra.mxu0 %v410
    %657 = vmatprep.subr.mxu0 0.0
    %658 = vmatpush1.msra.mxu0 %v409
    %659 = vmatprep.subr.mxu0 0.0
    %660 = vmatpush1.msra.mxu0 %v408
    %661 = vmatprep.subr.mxu0 0.0
    %662 = vmatpush1.msra.mxu0 %v407
    %663 = vmatprep.subr.mxu0 0.0
    %664 = vmatpush1.msra.mxu0 %v406
    %665 = vmatprep.subr.mxu0 0.0
    %666 = vmatpush1.msra.mxu0 %v405
    %667 = vmatprep.subr.mxu0 0.0
    %668 = vmatpush1.msra.mxu0 %v404
    %669 = vmatprep.subr.mxu0 0.0
    %670 = vmatpush1.msra.mxu0 %v403
    %671 = vmatprep.subr.mxu0 0.0
    %672 = vmatpush1.msra.mxu0 %v402
    %673 = vmatprep.subr.mxu0 0.0
    %674 = vmatpush1.msra.mxu0 %v401
    %675 = vmatprep.subr.mxu0 0.0
    %676 = vmatpush1.msra.mxu0 %v400
    %677 = vmatprep.subr.mxu0 0.0
    %678 = vmatpush1.msra.mxu0 %v399
    %679 = vmatprep.subr.mxu0 0.0
    %680 = vmatpush1.msra.mxu0 %v398
    %681 = vmatprep.subr.mxu0 0.0
    %682 = vmatpush1.msra.mxu0 %v397
    %683 = vmatprep.subr.mxu0 0.0
    %684 = vmatpush1.msra.mxu0 %v396
    %685 = vmatprep.subr.mxu0 0.0
    %686 = vmatpush2.msra.mxu0 %v427
    %687 = vmatprep.subr.mxu0 0.0
    %688 = vmatpush2.msra.mxu0 %v426
    %689 = vmatprep.subr.mxu0 0.0
    %690 = vmatpush2.msra.mxu0 %v425
    %691 = vmatprep.subr.mxu0 0.0
    %692 = vmatpush2.msra.mxu0 %v424
    %693 = vmatprep.subr.mxu0 0.0
    %694 = vmatpush2.msra.mxu0 %v423
    %695 = vmatprep.subr.mxu0 0.0
    %696 = vmatpush2.msra.mxu0 %v422
    %697 = vmatprep.subr.mxu0 0.0
    %698 = vmatpush2.msra.mxu0 %v421
    %699 = vmatprep.subr.mxu0 0.0
    %700 = vmatpush2.msra.mxu0 %v420
    %701 = vmatprep.subr.mxu0 0.0
    %702 = vmatpush2.msra.mxu0 %v419
    %703 = vmatprep.subr.mxu0 0.0
    %704 = vmatpush2.msra.mxu0 %v418
    %705 = vmatprep.subr.mxu0 0.0
    %706 = vmatpush2.msra.mxu0 %v417
    %707 = vmatprep.subr.mxu0 0.0
    %708 = vmatpush2.msra.mxu0 %v416
    %709 = vmatprep.subr.mxu0 0.0
    %710 = vmatpush2.msra.mxu0 %v415
    %711 = vmatprep.subr.mxu0 0.0
    %712 = vmatpush2.msra.mxu0 %v414
    %713 = vmatprep.subr.mxu0 0.0
    %714 = vmatpush2.msra.mxu0 %v413
    %715 = vmatprep.subr.mxu0 0.0
    %716 = vmatpush2.msra.mxu0 %v412
    %717 = vmatprep.mubr.f32.mxu0 %v291
    %718 = vmatmul.mubr.f32.gmra.mxu0 %v290
    %v719 = vpop.f32.mrf.mxu0
    %v720 = vadd.f32 %v645, %v719
    %v721 = vpop.f32.mrf.mxu0
    %722 = vmatprep.mubr.f32.mxu0 %v299
    %723 = vmatmul.mubr.f32.gmra.mxu0 %v298
    %v724 = vpop.f32.mrf.mxu0
    %v725 = vadd.f32 %v650, %v724
    %v726 = vpop.f32.mrf.mxu0
    %727 = vdwg.mxu0
    %v728 = vld [vmem:[#allocation9] sm:$0xff]
    %v729 = vadd.f32 %v720, %v728
    %v730 = vadd.f32 %v725, %v728
    %v731 = vld [vmem:[#allocation11] sm:$0x1]
    %v732 = vld [vmem:[#allocation12] sm:$0x1]
    %733 = vadd.xlane.f32.xlu0 %v729
    %v734 = vpop.xlane.xlu0 %733
    %735 = vadd.xlane.f32.xlu0 %v730
    %v736 = vpop.xlane.xlu0 %735
    %v737 = vrcp.pop 128.0
    %v738 = vmul.f32 %v734, %v737
    %v739 = vmul.f32 %v736, %v737
    %v740 = vsub.f32 %v729, %v738
    %v741 = vsub.f32 %v730, %v739
    %v742 = vmul.f32 %v740, %v740
    %v743 = vmul.f32 %v741, %v741
    %744 = vadd.xlane.f32.xlu0 %v742
    %v745 = vpop.xlane.xlu0 %744
    %746 = vadd.xlane.f32.xlu0 %v743
    %v747 = vpop.xlane.xlu0 %746
    %v748 = vmul.f32 %v745, %v737
    %v749 = vmul.f32 %v747, %v737
    %v750 = vadd.f32 %v748, 1e-12
    %v751 = vadd.f32 %v749, 1e-12
    %v752 = vrsqrt.pop %v750
    %v753 = vrsqrt.pop %v751
    %v754 = vmul.f32 %v740, %v752
    %v755 = vmul.f32 %v741, %v753
    %v757 = vlaneseq
    %v758 = vshrl.u32 %v757, 7
    %v759 = vsub.s32 0, %v758
    %v760 = vrot.slane %v731, %v759
    %v762 = vmul.f32 %v754, %v760
    %v763 = vmul.f32 %v755, %v760
    %v765 = vlaneseq
    %v766 = vshrl.u32 %v765, 7
    %v767 = vsub.s32 0, %v766
    %v768 = vrot.slane %v732, %v767
    %v770 = vadd.f32 %v762, %v768
    %v771 = vadd.f32 %v763, %v768
    %772 = vst [vmem:[#allocation25] sm:$0xff] %v770
    %773 = vst [vmem:[#allocation25 + $0x8] sm:$0xff] %v771
    %v774 = vld [vmem:[#allocation6] sm:$0x3]
    %v775 = vsub.f32 1.0, %v774
    %v776 = vmul.f32 %v775, -1e+09
    %v779 = vunpack.c.l.s4 1966171168
    %v780 = vunpack.c.0.s8 %v779
    %v781 = vlaneseq
    %v782 = vshrl.u32 %v781, 7
    %v783 = vsub.s32 %v780, %v782
    %v784 = vrot.slane %v776, %v783
    %v785 = vcombine.high %v784, %v784
    %v787 = vunpack.c.l.s4 1966171168
    %v788 = vunpack.c.0.s8 %v787
    %v789 = vlaneseq
    %v790 = vshrl.u32 %v789, 7
    %v791 = vsub.s32 %v788, %v790
    %v792 = vrot.slane %v784, %v791
    %v794 = vunpack.c.l.s4 1966171168
    %v795 = vunpack.c.0.s8 %v794
    %v796 = vlaneseq
    %v797 = vshrl.u32 %v796, 7
    %v798 = vsub.s32 %v795, %v797
    %v799 = vrot.slane %v785, %v798
    %v800 = vpack.c.bf16 %v771, %v770
    %v801 = vld [vmem:[#allocation14] sm:$0xff]
    %v802 = vld [vmem:[#allocation14 + $0x8] sm:$0xf]
    %v803 = vld [vmem:[#allocation14 + $0xc] sm:$0xff]
    %v804 = vld [vmem:[#allocation14 + $0x14] sm:$0xf]
    %v805 = vld [vmem:[#allocation14 + $0x18] sm:$0xff]
    %v806 = vld [vmem:[#allocation14 + $0x20] sm:$0xf]
    %v807 = vld [vmem:[#allocation14 + $0x24] sm:$0xff]
    %v808 = vld [vmem:[#allocation14 + $0x2c] sm:$0xf]
    %v809 = vld [vmem:[#allocation14 + $0x30] sm:$0xff]
    %v810 = vld [vmem:[#allocation14 + $0x38] sm:$0xf]
    %v811 = vld [vmem:[#allocation14 + $0x3c] sm:$0xff]
    %v812 = vld [vmem:[#allocation14 + $0x44] sm:$0xf]
    %v813 = vld [vmem:[#allocation14 + $0x48] sm:$0xff]
    %v814 = vld [vmem:[#allocation14 + $0x50] sm:$0xf]
    %v815 = vld [vmem:[#allocation14 + $0x54] sm:$0xff]
    %v816 = vld [vmem:[#allocation14 + $0x5c] sm:$0xf]
    %v817 = vld [vmem:[#allocation14 + $0x60] sm:$0xff]
    %v818 = vld [vmem:[#allocation14 + $0x68] sm:$0xf]
    %v819 = vld [vmem:[#allocation14 + $0x6c] sm:$0xff]
    %v820 = vld [vmem:[#allocation14 + $0x74] sm:$0xf]
    %v821 = vld [vmem:[#allocation14 + $0x78] sm:$0xff]
    %v822 = vld [vmem:[#allocation14 + $0x80] sm:$0xf]
    %v823 = vld [vmem:[#allocation14 + $0x84] sm:$0xff]
    %v824 = vld [vmem:[#allocation14 + $0x8c] sm:$0xf]
    %v825 = vld [vmem:[#allocation14 + $0x90] sm:$0xff]
    %v826 = vld [vmem:[#allocation14 + $0x98] sm:$0xf]
    %v827 = vld [vmem:[#allocation14 + $0x9c] sm:$0xff]
    %v828 = vld [vmem:[#allocation14 + $0xa4] sm:$0xf]
    %v829 = vld [vmem:[#allocation14 + $0xa8] sm:$0xff]
    %v830 = vld [vmem:[#allocation14 + $0xb0] sm:$0xf]
    %v831 = vld [vmem:[#allocation14 + $0xb4] sm:$0xff]
    %v832 = vld [vmem:[#allocation14 + $0xbc] sm:$0xf]
    %v833 = vld [vmem:[%s8] sm:$0x7]
    %v835 = vlaneseq
    %v836 = vshrl.u32 %v835, 7
    %v837 = vsub.s32 0, %v836
    %v838 = vrot.slane %v833, %v837
    %v839 = vlaneseq
    %v840 = vshrl.u32 %v839, 7
    %v841 = vsub.s32 1, %v840
    %v842 = vrot.slane %v833, %v841
    %v843 = vlaneseq
    %v844 = vshrl.u32 %v843, 7
    %v845 = vsub.s32 2, %v844
    %v846 = vrot.slane %v833, %v845
    %v882 = vunpack.c.l.b16 %v801
    %v883 = vunpack.c.h.b16 %v801
    %v884 = vunpack.c.l.b16 %v802
    %v885 = vunpack.c.l.b16 %v803
    %v886 = vunpack.c.h.b16 %v803
    %v887 = vunpack.c.l.b16 %v804
    %v888 = vunpack.c.l.b16 %v805
    %v889 = vunpack.c.h.b16 %v805
    %v890 = vunpack.c.l.b16 %v806
    %v891 = vunpack.c.l.b16 %v807
    %v892 = vunpack.c.h.b16 %v807
    %v893 = vunpack.c.l.b16 %v808
    %v894 = vunpack.c.l.b16 %v809
    %v895 = vunpack.c.h.b16 %v809
    %v896 = vunpack.c.l.b16 %v810
    %v897 = vunpack.c.l.b16 %v811
    %v898 = vunpack.c.h.b16 %v811
    %v899 = vunpack.c.l.b16 %v812
    %v900 = vunpack.c.l.b16 %v813
    %v901 = vunpack.c.h.b16 %v813
    %v902 = vunpack.c.l.b16 %v814
    %v903 = vunpack.c.l.b16 %v815
    %v904 = vunpack.c.h.b16 %v815
    %v905 = vunpack.c.l.b16 %v816
    %v906 = vunpack.c.l.b16 %v817
    %v907 = vunpack.c.h.b16 %v817
    %v908 = vunpack.c.l.b16 %v818
    %v909 = vunpack.c.l.b16 %v819
    %v910 = vunpack.c.h.b16 %v819
    %v911 = vunpack.c.l.b16 %v820
    %v912 = vunpack.c.l.b16 %v821
    %v913 = vunpack.c.h.b16 %v821
    %v914 = vunpack.c.l.b16 %v822
    %v915 = vunpack.c.l.b16 %v823
    %v916 = vunpack.c.h.b16 %v823
    %v917 = vunpack.c.l.b16 %v824
    %v918 = vunpack.c.l.b16 %v825
    %v919 = vunpack.c.h.b16 %v825
    %v920 = vunpack.c.l.b16 %v826
    %v921 = vunpack.c.l.b16 %v827
    %v922 = vunpack.c.h.b16 %v827
    %v923 = vunpack.c.l.b16 %v828
    %v924 = vunpack.c.l.b16 %v829
    %v925 = vunpack.c.h.b16 %v829
    %v926 = vunpack.c.l.b16 %v830
    %v927 = vunpack.c.l.b16 %v831
    %v928 = vunpack.c.h.b16 %v831
    %v929 = vunpack.c.l.b16 %v832
    %v930 = vpack.c.b16 %v885, %v882
    %v931 = vpack.c.b16 %v886, %v883
    %v932 = vpack.c.b16 %v887, %v884
    %v933 = vpack.c.b16 %v891, %v888
    %v934 = vpack.c.b16 %v892, %v889
    %v935 = vpack.c.b16 %v893, %v890
    %v936 = vpack.c.b16 %v897, %v894
    %v937 = vpack.c.b16 %v898, %v895
    %v938 = vpack.c.b16 %v899, %v896
    %v939 = vpack.c.b16 %v903, %v900
    %v940 = vpack.c.b16 %v904, %v901
    %v941 = vpack.c.b16 %v905, %v902
    %v942 = vpack.c.b16 %v909, %v906
    %v943 = vpack.c.b16 %v910, %v907
    %v944 = vpack.c.b16 %v911, %v908
    %v945 = vpack.c.b16 %v915, %v912
    %v946 = vpack.c.b16 %v916, %v913
    %v947 = vpack.c.b16 %v917, %v914
    %v948 = vpack.c.b16 %v921, %v918
    %v949 = vpack.c.b16 %v922, %v919
    %v950 = vpack.c.b16 %v923, %v920
    %v951 = vpack.c.b16 %v927, %v924
    %v952 = vpack.c.b16 %v928, %v925
    %v953 = vpack.c.b16 %v929, %v926
    %978 = vmatprep.subr.bf16.mxu0 %v952
    %979 = vmatpush1.bf16.msra.mxu0 %v951
    %980 = vmatprep.subr.bf16.mxu0 %v949
    %981 = vmatpush1.bf16.msra.mxu0 %v948
    %982 = vmatprep.subr.bf16.mxu0 %v946
    %983 = vmatpush1.bf16.msra.mxu0 %v945
    %984 = vmatprep.subr.bf16.mxu0 %v943
    %985 = vmatpush1.bf16.msra.mxu0 %v942
    %986 = vmatprep.subr.bf16.mxu0 %v940
    %987 = vmatpush1.bf16.msra.mxu0 %v939
    %988 = vmatprep.subr.bf16.mxu0 %v937
    %989 = vmatpush1.bf16.msra.mxu0 %v936
    %990 = vmatprep.subr.bf16.mxu0 %v934
    %991 = vmatpush1.bf16.msra.mxu0 %v933
    %992 = vmatprep.subr.bf16.mxu0 %v931
    %993 = vmatpush1.bf16.msra.mxu0 %v930
    %994 = vmatprep.subr.bf16.mxu0 0
    %995 = vmatpush2.bf16.msra.mxu0 0
    %996 = vmatprep.subr.bf16.mxu0 0
    %997 = vmatpush2.bf16.msra.mxu0 0
    %998 = vmatprep.subr.bf16.mxu0 0
    %999 = vmatpush2.bf16.msra.mxu0 0
    %1000 = vmatprep.subr.bf16.mxu0 0
    %1001 = vmatpush2.bf16.msra.mxu0 0
    %1002 = vmatprep.subr.bf16.mxu0 0
    %1003 = vmatpush2.bf16.msra.mxu0 0
    %1004 = vmatprep.subr.bf16.mxu0 0
    %1005 = vmatpush2.bf16.msra.mxu0 0
    %1006 = vmatprep.subr.bf16.mxu0 0
    %1007 = vmatpush2.bf16.msra.mxu0 0
    %1008 = vmatprep.subr.bf16.mxu0 0
    %1009 = vmatpush2.bf16.msra.mxu0 0
    %1010 = vmatprep.mubr.bf16.mxu0 0
    %1011 = vmatmul.mubr.bf16.gmra.mxu0 %v800
    %v1012 = vpop.f32.mrf.mxu0
    %v1013 = vadd.f32 %v838, %v1012
    %v1014 = vpop.f32.mrf.mxu0
    %v1015 = vadd.f32 %v842, %v1014
    %v1016 = vpop.f32.mrf.mxu0
    %v1017 = vadd.f32 %v838, %v1016
    %v1018 = vpop.f32.mrf.mxu0
    %v1019 = vadd.f32 %v842, %v1018
    %1020 = vdwg.mxu0
    %1021 = vmatprep.subr.bf16.mxu0 0
    %1022 = vmatpush1.bf16.msra.mxu0 %v953
    %1023 = vmatprep.subr.bf16.mxu0 0
    %1024 = vmatpush1.bf16.msra.mxu0 %v950
    %1025 = vmatprep.subr.bf16.mxu0 0
    %1026 = vmatpush1.bf16.msra.mxu0 %v947
    %1027 = vmatprep.subr.bf16.mxu0 0
    %1028 = vmatpush1.bf16.msra.mxu0 %v944
    %1029 = vmatprep.subr.bf16.mxu0 0
    %1030 = vmatpush1.bf16.msra.mxu0 %v941
    %1031 = vmatprep.subr.bf16.mxu0 0
    %1032 = vmatpush1.bf16.msra.mxu0 %v938
    %1033 = vmatprep.subr.bf16.mxu0 0
    %1034 = vmatpush1.bf16.msra.mxu0 %v935
    %1035 = vmatprep.subr.bf16.mxu0 0
    %1036 = vmatpush1.bf16.msra.mxu0 %v932
    %1037 = vmatprep.subr.bf16.mxu0 0
    %1038 = vmatpush2.bf16.msra.mxu0 0
    %1039 = vmatprep.subr.bf16.mxu0 0
    %1040 = vmatpush2.bf16.msra.mxu0 0
    %1041 = vmatprep.subr.bf16.mxu0 0
    %1042 = vmatpush2.bf16.msra.mxu0 0
    %1043 = vmatprep.subr.bf16.mxu0 0
    %1044 = vmatpush2.bf16.msra.mxu0 0
    %1045 = vmatprep.subr.bf16.mxu0 0
    %1046 = vmatpush2.bf16.msra.mxu0 0
    %1047 = vmatprep.subr.bf16.mxu0 0
    %1048 = vmatpush2.bf16.msra.mxu0 0
    %1049 = vmatprep.subr.bf16.mxu0 0
    %1050 = vmatpush2.bf16.msra.mxu0 0
    %1051 = vmatprep.subr.bf16.mxu0 0
    %1052 = vmatpush2.bf16.msra.mxu0 0
    %1053 = vmatprep.mubr.bf16.mxu0 0
    %1054 = vmatmul.mubr.bf16.gmra.mxu0 %v800
    %v1055 = vpop.f32.mrf.mxu0
    %v1056 = vadd.f32 %v846, %v1055
    %v1057 = vpop.f32.mrf.mxu0
    %v1058 = vpop.f32.mrf.mxu0
    %v1059 = vadd.f32 %v846, %v1058
    %v1060 = vpop.f32.mrf.mxu0
    %1061 = vdwg.mxu0
    %v1062 = vld [vmem:[#allocation15] sm:$0xf]
    %v1063 = vld [vmem:[#allocation15 + $0x4] sm:$0xf]
    %v1064 = vld [vmem:[#allocation15 + $0x8] sm:$0xf]
    %v1065 = vld [vmem:[#allocation15 + $0xc] sm:$0xf]
    %v1066 = vld [vmem:[#allocation15 + $0x10] sm:$0xf]
    %v1067 = vld [vmem:[#allocation15 + $0x14] sm:$0xf]
    %v1068 = vld [vmem:[#allocation15 + $0x18] sm:$0xf]
    %v1069 = vld [vmem:[#allocation15 + $0x1c] sm:$0xf]
    %v1070 = vld [vmem:[#allocation15 + $0x20] sm:$0xf]
    %v1071 = vld [vmem:[#allocation15 + $0x24] sm:$0xf]
    %v1072 = vld [vmem:[#allocation15 + $0x28] sm:$0xf]
    %v1073 = vld [vmem:[#allocation15 + $0x2c] sm:$0xf]
    %v1074 = vld [vmem:[#allocation15 + $0x30] sm:$0xf]
    %v1075 = vld [vmem:[#allocation15 + $0x34] sm:$0xf]
    %v1076 = vld [vmem:[#allocation15 + $0x38] sm:$0xf]
    %v1077 = vld [vmem:[#allocation15 + $0x3c] sm:$0xf]
    %v1078 = vlaneseq
    %v1079 = vshrl.u32 %v1078, 7
    %v1080 = vsub.s32 0, %v1079
    %v1081 = vrot.slane %v792, %v1080
    %v1082 = vlaneseq
    %v1083 = vshrl.u32 %v1082, 7
    %v1084 = vsub.s32 0, %v1083
    %v1085 = vrot.slane %v799, %v1084
    %vm1088 = vcmask 261120
    %v1090 = vsel %vm1088, %v1013, 0
    %v1093 = vsel %vm1088, %v1015, 0
    %1095 = vmatprep.subr.mxu0 0.0
    %1096 = vmatpush1.xpose.msra.mxu0 0.0
    %1097 = vmatprep.subr.mxu0 0.0
    %1098 = vmatpush1.xpose.msra.mxu0 0.0
    %1099 = vmatprep.subr.mxu0 0.0
    %1100 = vmatpush1.xpose.msra.mxu0 0.0
    %1101 = vmatprep.subr.mxu0 0.0
    %1102 = vmatpush1.xpose.msra.mxu0 0.0
    %1103 = vmatprep.subr.mxu0 0.0
    %1104 = vmatpush1.xpose.msra.mxu0 0.0
    %1105 = vmatprep.subr.mxu0 0.0
    %1106 = vmatpush1.xpose.msra.mxu0 0.0
    %1107 = vmatprep.subr.mxu0 0.0
    %1108 = vmatpush1.xpose.msra.mxu0 0.0
    %1109 = vmatprep.subr.mxu0 0.0
    %1110 = vmatpush1.xpose.msra.mxu0 0.0
    %1111 = vmatprep.subr.mxu0 0.0
    %1112 = vmatpush1.xpose.msra.mxu0 0.0
    %1113 = vmatprep.subr.mxu0 0.0
    %1114 = vmatpush1.xpose.msra.mxu0 0.0
    %1115 = vmatprep.subr.mxu0 0.0
    %1116 = vmatpush1.xpose.msra.mxu0 0.0
    %1117 = vmatprep.subr.mxu0 0.0
    %1118 = vmatpush1.xpose.msra.mxu0 0.0
    %1119 = vmatprep.subr.mxu0 0.0
    %1120 = vmatpush1.xpose.msra.mxu0 0.0
    %1121 = vmatprep.subr.mxu0 0.0
    %1122 = vmatpush1.xpose.msra.mxu0 0.0
    %1123 = vmatprep.subr.mxu0 0.0
    %1124 = vmatpush1.xpose.msra.mxu0 0.0
    %1125 = vmatprep.subr.mxu0 0.0
    %1126 = vmatpush1.xpose.msra.mxu0 %v1093
    %1127 = vmatprep.subr.mxu0 0.0
    %1128 = vmatpush2.xpose.msra.mxu0 0.0
    %1129 = vmatprep.subr.mxu0 0.0
    %1130 = vmatpush2.xpose.msra.mxu0 0.0
    %1131 = vmatprep.subr.mxu0 0.0
    %1132 = vmatpush2.xpose.msra.mxu0 0.0
    %1133 = vmatprep.subr.mxu0 0.0
    %1134 = vmatpush2.xpose.msra.mxu0 0.0
    %1135 = vmatprep.subr.mxu0 0.0
    %1136 = vmatpush2.xpose.msra.mxu0 0.0
    %1137 = vmatprep.subr.mxu0 0.0
    %1138 = vmatpush2.xpose.msra.mxu0 0.0
    %1139 = vmatprep.subr.mxu0 0.0
    %1140 = vmatpush2.xpose.msra.mxu0 0.0
    %1141 = vmatprep.subr.mxu0 0.0
    %1142 = vmatpush2.xpose.msra.mxu0 0.0
    %1143 = vmatprep.subr.mxu0 0.0
    %1144 = vmatpush2.xpose.msra.mxu0 0.0
    %1145 = vmatprep.subr.mxu0 0.0
    %1146 = vmatpush2.xpose.msra.mxu0 0.0
    %1147 = vmatprep.subr.mxu0 0.0
    %1148 = vmatpush2.xpose.msra.mxu0 0.0
    %1149 = vmatprep.subr.mxu0 0.0
    %1150 = vmatpush2.xpose.msra.mxu0 0.0
    %1151 = vmatprep.subr.mxu0 0.0
    %1152 = vmatpush2.xpose.msra.mxu0 0.0
    %1153 = vmatprep.subr.mxu0 0.0
    %1154 = vmatpush2.xpose.msra.mxu0 0.0
    %1155 = vmatprep.subr.mxu0 0.0
    %1156 = vmatpush2.xpose.msra.mxu0 0.0
    %1157 = vmatprep.subr.mxu0 0.0
    %1158 = vmatpush2.xpose.msra.mxu0 0.0
    %1159 = vmatprep.mubr.f32.mxu0 0.0
    %1160 = vmatmul.mubr.f32.gmra.mxu0 %v1090
    %v1161 = vpop.f32.mrf.mxu0
    %v1162 = vadd.f32 %v1081, %v1161
    %v1163 = vpop.f32.mrf.mxu0
    %1164 = vdwg.mxu0
    %v1166 = vsel %vm1088, %v1017, 0
    %v1169 = vsel %vm1088, %v1019, 0
    %1171 = vmatprep.subr.mxu0 0.0
    %1172 = vmatpush1.xpose.msra.mxu0 0.0
    %1173 = vmatprep.subr.mxu0 0.0
    %1174 = vmatpush1.xpose.msra.mxu0 0.0
    %1175 = vmatprep.subr.mxu0 0.0
    %1176 = vmatpush1.xpose.msra.mxu0 0.0
    %1177 = vmatprep.subr.mxu0 0.0
    %1178 = vmatpush1.xpose.msra.mxu0 0.0
    %1179 = vmatprep.subr.mxu0 0.0
    %1180 = vmatpush1.xpose.msra.mxu0 0.0
    %1181 = vmatprep.subr.mxu0 0.0
    %1182 = vmatpush1.xpose.msra.mxu0 0.0
    %1183 = vmatprep.subr.mxu0 0.0
    %1184 = vmatpush1.xpose.msra.mxu0 0.0
    %1185 = vmatprep.subr.mxu0 0.0
    %1186 = vmatpush1.xpose.msra.mxu0 0.0
    %1187 = vmatprep.subr.mxu0 0.0
    %1188 = vmatpush1.xpose.msra.mxu0 0.0
    %1189 = vmatprep.subr.mxu0 0.0
    %1190 = vmatpush1.xpose.msra.mxu0 0.0
    %1191 = vmatprep.subr.mxu0 0.0
    %1192 = vmatpush1.xpose.msra.mxu0 0.0
    %1193 = vmatprep.subr.mxu0 0.0
    %1194 = vmatpush1.xpose.msra.mxu0 0.0
    %1195 = vmatprep.subr.mxu0 0.0
    %1196 = vmatpush1.xpose.msra.mxu0 0.0
    %1197 = vmatprep.subr.mxu0 0.0
    %1198 = vmatpush1.xpose.msra.mxu0 0.0
    %1199 = vmatprep.subr.mxu0 0.0
    %1200 = vmatpush1.xpose.msra.mxu0 0.0
    %1201 = vmatprep.subr.mxu0 0.0
    %1202 = vmatpush1.xpose.msra.mxu0 %v1169
    %1203 = vmatprep.subr.mxu0 0.0
    %1204 = vmatpush2.xpose.msra.mxu0 0.0
    %1205 = vmatprep.subr.mxu0 0.0
    %1206 = vmatpush2.xpose.msra.mxu0 0.0
    %1207 = vmatprep.subr.mxu0 0.0
    %1208 = vmatpush2.xpose.msra.mxu0 0.0
    %1209 = vmatprep.subr.mxu0 0.0
    %1210 = vmatpush2.xpose.msra.mxu0 0.0
    %1211 = vmatprep.subr.mxu0 0.0
    %1212 = vmatpush2.xpose.msra.mxu0 0.0
    %1213 = vmatprep.subr.mxu0 0.0
    %1214 = vmatpush2.xpose.msra.mxu0 0.0
    %1215 = vmatprep.subr.mxu0 0.0
    %1216 = vmatpush2.xpose.msra.mxu0 0.0
    %1217 = vmatprep.subr.mxu0 0.0
    %1218 = vmatpush2.xpose.msra.mxu0 0.0
    %1219 = vmatprep.subr.mxu0 0.0
    %1220 = vmatpush2.xpose.msra.mxu0 0.0
    %1221 = vmatprep.subr.mxu0 0.0
    %1222 = vmatpush2.xpose.msra.mxu0 0.0
    %1223 = vmatprep.subr.mxu0 0.0
    %1224 = vmatpush2.xpose.msra.mxu0 0.0
    %1225 = vmatprep.subr.mxu0 0.0
    %1226 = vmatpush2.xpose.msra.mxu0 0.0
    %1227 = vmatprep.subr.mxu0 0.0
    %1228 = vmatpush2.xpose.msra.mxu0 0.0
    %1229 = vmatprep.subr.mxu0 0.0
    %1230 = vmatpush2.xpose.msra.mxu0 0.0
    %1231 = vmatprep.subr.mxu0 0.0
    %1232 = vmatpush2.xpose.msra.mxu0 0.0
    %1233 = vmatprep.subr.mxu0 0.0
    %1234 = vmatpush2.xpose.msra.mxu0 0.0
    %1235 = vmatprep.mubr.f32.mxu0 0.0
    %1236 = vmatmul.mubr.f32.gmra.mxu0 %v1166
    %v1237 = vpop.f32.mrf.mxu0
    %v1238 = vadd.f32 %v1085, %v1237
    %v1239 = vpop.f32.mrf.mxu0
    %1240 = vdwg.mxu0
    %vm1241 = vcmask 64512
    %v1242 = vsel %vm1241, %v1162, -inf
    %1243 = vmax.xlane.f32.xlu0 %v1242
    %v1244 = vpop.xlane.xlu0 %1243
    %v1245 = vsel %vm1241, %v1238, -inf
    %1246 = vmax.xlane.f32.xlu0 %v1245
    %v1247 = vpop.xlane.xlu0 %1246
    %v1248 = vsub.f32 %v1162, %v1244
    %v1249 = vsub.f32 %v1238, %v1247
    %v1250 = vmul.f32 %v1248, 1.442695
    %v1251 = vpow.pop %v1250
    %v1252 = vmul.f32 %v1249, 1.442695
    %v1253 = vpow.pop %v1252
    %v1254 = vsel %vm1241, %v1251, 0.0
    %1255 = vadd.xlane.f32.xlu0 %v1254
    %v1256 = vpop.xlane.xlu0 %1255
    %v1257 = vsel %vm1241, %v1253, 0.0
    %1258 = vadd.xlane.f32.xlu0 %v1257
    %v1259 = vpop.xlane.xlu0 %1258
    %v1260 = vrcp.pop %v1256
    %v1261 = vrcp.pop %v1259
    %v1262 = vmul.f32 %v1251, %v1260
    %v1263 = vmul.f32 %v1253, %v1261
    %v1265 = vsel %vm1241, %v1262, 0
    %1267 = vmatprep.subr.mxu0 0.0
    %1268 = vmatpush1.msra.mxu0 0.0
    %1269 = vmatprep.subr.mxu0 0.0
    %1270 = vmatpush1.msra.mxu0 0.0
    %1271 = vmatprep.subr.mxu0 0.0
    %1272 = vmatpush1.msra.mxu0 0.0
    %1273 = vmatprep.subr.mxu0 0.0
    %1274 = vmatpush1.msra.mxu0 0.0
    %1275 = vmatprep.subr.mxu0 0.0
    %1276 = vmatpush1.msra.mxu0 0.0
    %1277 = vmatprep.subr.mxu0 0.0
    %1278 = vmatpush1.msra.mxu0 0.0
    %1279 = vmatprep.subr.mxu0 0.0
    %1280 = vmatpush1.msra.mxu0 0.0
    %1281 = vmatprep.subr.mxu0 0.0
    %1282 = vmatpush1.msra.mxu0 0.0
    %1283 = vmatprep.subr.mxu0 0.0
    %1284 = vmatpush1.msra.mxu0 0.0
    %1285 = vmatprep.subr.mxu0 0.0
    %1286 = vmatpush1.msra.mxu0 0.0
    %1287 = vmatprep.subr.mxu0 0.0
    %1288 = vmatpush1.msra.mxu0 0.0
    %1289 = vmatprep.subr.mxu0 0.0
    %1290 = vmatpush1.msra.mxu0 0.0
    %1291 = vmatprep.subr.mxu0 0.0
    %1292 = vmatpush1.msra.mxu0 0.0
    %1293 = vmatprep.subr.mxu0 0.0
    %1294 = vmatpush1.msra.mxu0 0.0
    %1295 = vmatprep.subr.mxu0 0.0
    %1296 = vmatpush1.msra.mxu0 0.0
    %1297 = vmatprep.subr.mxu0 0.0
    %1298 = vmatpush1.msra.mxu0 %v1056
    %1299 = vmatprep.subr.mxu0 0.0
    %1300 = vmatpush2.msra.mxu0 0.0
    %1301 = vmatprep.subr.mxu0 0.0
    %1302 = vmatpush2.msra.mxu0 0.0
    %1303 = vmatprep.subr.mxu0 0.0
    %1304 = vmatpush2.msra.mxu0 0.0
    %1305 = vmatprep.subr.mxu0 0.0
    %1306 = vmatpush2.msra.mxu0 0.0
    %1307 = vmatprep.subr.mxu0 0.0
    %1308 = vmatpush2.msra.mxu0 0.0
    %1309 = vmatprep.subr.mxu0 0.0
    %1310 = vmatpush2.msra.mxu0 0.0
    %1311 = vmatprep.subr.mxu0 0.0
    %1312 = vmatpush2.msra.mxu0 0.0
    %1313 = vmatprep.subr.mxu0 0.0
    %1314 = vmatpush2.msra.mxu0 0.0
    %1315 = vmatprep.subr.mxu0 0.0
    %1316 = vmatpush2.msra.mxu0 0.0
    %1317 = vmatprep.subr.mxu0 0.0
    %1318 = vmatpush2.msra.mxu0 0.0
    %1319 = vmatprep.subr.mxu0 0.0
    %1320 = vmatpush2.msra.mxu0 0.0
    %1321 = vmatprep.subr.mxu0 0.0
    %1322 = vmatpush2.msra.mxu0 0.0
    %1323 = vmatprep.subr.mxu0 0.0
    %1324 = vmatpush2.msra.mxu0 0.0
    %1325 = vmatprep.subr.mxu0 0.0
    %1326 = vmatpush2.msra.mxu0 0.0
    %1327 = vmatprep.subr.mxu0 0.0
    %1328 = vmatpush2.msra.mxu0 0.0
    %1329 = vmatprep.subr.mxu0 0.0
    %1330 = vmatpush2.msra.mxu0 0.0
    %1331 = vmatprep.mubr.f32.mxu0 0.0
    %1332 = vmatmul.mubr.f32.gmra.mxu0 %v1265
    %v1333 = vpop.f32.mrf.mxu0
    %v1334 = vadd.f32 0.0, %v1333
    %v1335 = vpop.f32.mrf.mxu0
    %1336 = vdwg.mxu0
    %v1338 = vsel %vm1241, %v1263, 0
    %1340 = vmatprep.subr.mxu0 0.0
    %1341 = vmatpush1.msra.mxu0 0.0
    %1342 = vmatprep.subr.mxu0 0.0
    %1343 = vmatpush1.msra.mxu0 0.0
    %1344 = vmatprep.subr.mxu0 0.0
    %1345 = vmatpush1.msra.mxu0 0.0
    %1346 = vmatprep.subr.mxu0 0.0
    %1347 = vmatpush1.msra.mxu0 0.0
    %1348 = vmatprep.subr.mxu0 0.0
    %1349 = vmatpush1.msra.mxu0 0.0
    %1350 = vmatprep.subr.mxu0 0.0
    %1351 = vmatpush1.msra.mxu0 0.0
    %1352 = vmatprep.subr.mxu0 0.0
    %1353 = vmatpush1.msra.mxu0 0.0
    %1354 = vmatprep.subr.mxu0 0.0
    %1355 = vmatpush1.msra.mxu0 0.0
    %1356 = vmatprep.subr.mxu0 0.0
    %1357 = vmatpush1.msra.mxu0 0.0
    %1358 = vmatprep.subr.mxu0 0.0
    %1359 = vmatpush1.msra.mxu0 0.0
    %1360 = vmatprep.subr.mxu0 0.0
    %1361 = vmatpush1.msra.mxu0 0.0
    %1362 = vmatprep.subr.mxu0 0.0
    %1363 = vmatpush1.msra.mxu0 0.0
    %1364 = vmatprep.subr.mxu0 0.0
    %1365 = vmatpush1.msra.mxu0 0.0
    %1366 = vmatprep.subr.mxu0 0.0
    %1367 = vmatpush1.msra.mxu0 0.0
    %1368 = vmatprep.subr.mxu0 0.0
    %1369 = vmatpush1.msra.mxu0 0.0
    %1370 = vmatprep.subr.mxu0 0.0
    %1371 = vmatpush1.msra.mxu0 %v1059
    %1372 = vmatprep.subr.mxu0 0.0
    %1373 = vmatpush2.msra.mxu0 0.0
    %1374 = vmatprep.subr.mxu0 0.0
    %1375 = vmatpush2.msra.mxu0 0.0
    %1376 = vmatprep.subr.mxu0 0.0
    %1377 = vmatpush2.msra.mxu0 0.0
    %1378 = vmatprep.subr.mxu0 0.0
    %1379 = vmatpush2.msra.mxu0 0.0
    %1380 = vmatprep.subr.mxu0 0.0
    %1381 = vmatpush2.msra.mxu0 0.0
    %1382 = vmatprep.subr.mxu0 0.0
    %1383 = vmatpush2.msra.mxu0 0.0
    %1384 = vmatprep.subr.mxu0 0.0
    %1385 = vmatpush2.msra.mxu0 0.0
    %1386 = vmatprep.subr.mxu0 0.0
    %1387 = vmatpush2.msra.mxu0 0.0
    %1388 = vmatprep.subr.mxu0 0.0
    %1389 = vmatpush2.msra.mxu0 0.0
    %1390 = vmatprep.subr.mxu0 0.0
    %1391 = vmatpush2.msra.mxu0 0.0
    %1392 = vmatprep.subr.mxu0 0.0
    %1393 = vmatpush2.msra.mxu0 0.0
    %1394 = vmatprep.subr.mxu0 0.0
    %1395 = vmatpush2.msra.mxu0 0.0
    %1396 = vmatprep.subr.mxu0 0.0
    %1397 = vmatpush2.msra.mxu0 0.0
    %1398 = vmatprep.subr.mxu0 0.0
    %1399 = vmatpush2.msra.mxu0 0.0
    %1400 = vmatprep.subr.mxu0 0.0
    %1401 = vmatpush2.msra.mxu0 0.0
    %1402 = vmatprep.subr.mxu0 0.0
    %1403 = vmatpush2.msra.mxu0 0.0
    %1404 = vmatprep.mubr.f32.mxu0 0.0
    %1405 = vmatmul.mubr.f32.gmra.mxu0 %v1338
    %v1406 = vpop.f32.mrf.mxu0
    %v1407 = vadd.f32 0.0, %v1406
    %v1408 = vpop.f32.mrf.mxu0
    %1409 = vdwg.mxu0
    %v1410 = vpack.c.bf16 %v1407, %v1334
    %1411 = vrot.lane.b32.xlu0 %v1013, 96
    %v1412 = vpop.permute.xlu0 %1411
    %1413 = vrot.lane.b32.xlu0 %v1015, 96
    %v1414 = vpop.permute.xlu0 %1413
    %v1415 = vsel %vm1088, %v1412, 0
    %v1417 = vsel %vm1088, %v1414, 0
    %1419 = vmatprep.subr.mxu0 0.0
    %1420 = vmatpush1.xpose.msra.mxu0 0.0
    %1421 = vmatprep.subr.mxu0 0.0
    %1422 = vmatpush1.xpose.msra.mxu0 0.0
    %1423 = vmatprep.subr.mxu0 0.0
    %1424 = vmatpush1.xpose.msra.mxu0 0.0
    %1425 = vmatprep.subr.mxu0 0.0
    %1426 = vmatpush1.xpose.msra.mxu0 0.0
    %1427 = vmatprep.subr.mxu0 0.0
    %1428 = vmatpush1.xpose.msra.mxu0 0.0
    %1429 = vmatprep.subr.mxu0 0.0
    %1430 = vmatpush1.xpose.msra.mxu0 0.0
    %1431 = vmatprep.subr.mxu0 0.0
    %1432 = vmatpush1.xpose.msra.mxu0 0.0
    %1433 = vmatprep.subr.mxu0 0.0
    %1434 = vmatpush1.xpose.msra.mxu0 0.0
    %1435 = vmatprep.subr.mxu0 0.0
    %1436 = vmatpush1.xpose.msra.mxu0 0.0
    %1437 = vmatprep.subr.mxu0 0.0
    %1438 = vmatpush1.xpose.msra.mxu0 0.0
    %1439 = vmatprep.subr.mxu0 0.0
    %1440 = vmatpush1.xpose.msra.mxu0 0.0
    %1441 = vmatprep.subr.mxu0 0.0
    %1442 = vmatpush1.xpose.msra.mxu0 0.0
    %1443 = vmatprep.subr.mxu0 0.0
    %1444 = vmatpush1.xpose.msra.mxu0 0.0
    %1445 = vmatprep.subr.mxu0 0.0
    %1446 = vmatpush1.xpose.msra.mxu0 0.0
    %1447 = vmatprep.subr.mxu0 0.0
    %1448 = vmatpush1.xpose.msra.mxu0 0.0
    %1449 = vmatprep.subr.mxu0 0.0
    %1450 = vmatpush1.xpose.msra.mxu0 %v1417
    %1451 = vmatprep.subr.mxu0 0.0
    %1452 = vmatpush2.xpose.msra.mxu0 0.0
    %1453 = vmatprep.subr.mxu0 0.0
    %1454 = vmatpush2.xpose.msra.mxu0 0.0
    %1455 = vmatprep.subr.mxu0 0.0
    %1456 = vmatpush2.xpose.msra.mxu0 0.0
    %1457 = vmatprep.subr.mxu0 0.0
    %1458 = vmatpush2.xpose.msra.mxu0 0.0
    %1459 = vmatprep.subr.mxu0 0.0
    %1460 = vmatpush2.xpose.msra.mxu0 0.0
    %1461 = vmatprep.subr.mxu0 0.0
    %1462 = vmatpush2.xpose.msra.mxu0 0.0
    %1463 = vmatprep.subr.mxu0 0.0
    %1464 = vmatpush2.xpose.msra.mxu0 0.0
    %1465 = vmatprep.subr.mxu0 0.0
    %1466 = vmatpush2.xpose.msra.mxu0 0.0
    %1467 = vmatprep.subr.mxu0 0.0
    %1468 = vmatpush2.xpose.msra.mxu0 0.0
    %1469 = vmatprep.subr.mxu0 0.0
    %1470 = vmatpush2.xpose.msra.mxu0 0.0
    %1471 = vmatprep.subr.mxu0 0.0
    %1472 = vmatpush2.xpose.msra.mxu0 0.0
    %1473 = vmatprep.subr.mxu0 0.0
    %1474 = vmatpush2.xpose.msra.mxu0 0.0
    %1475 = vmatprep.subr.mxu0 0.0
    %1476 = vmatpush2.xpose.msra.mxu0 0.0
    %1477 = vmatprep.subr.mxu0 0.0
    %1478 = vmatpush2.xpose.msra.mxu0 0.0
    %1479 = vmatprep.subr.mxu0 0.0
    %1480 = vmatpush2.xpose.msra.mxu0 0.0
    %1481 = vmatprep.subr.mxu0 0.0
    %1482 = vmatpush2.xpose.msra.mxu0 0.0
    %1483 = vmatprep.mubr.f32.mxu0 0.0
    %1484 = vmatmul.mubr.f32.gmra.mxu0 %v1415
    %v1485 = vpop.f32.mrf.mxu0
    %v1486 = vadd.f32 %v1081, %v1485
    %v1487 = vpop.f32.mrf.mxu0
    %1488 = vdwg.mxu0
    %1489 = vrot.lane.b32.xlu0 %v1017, 96
    %v1490 = vpop.permute.xlu0 %1489
    %1491 = vrot.lane.b32.xlu0 %v1019, 96
    %v1492 = vpop.permute.xlu0 %1491
    %v1493 = vsel %vm1088, %v1490, 0
    %v1495 = vsel %vm1088, %v1492, 0
    %1497 = vmatprep.subr.mxu0 0.0
    %1498 = vmatpush1.xpose.msra.mxu0 0.0
    %1499 = vmatprep.subr.mxu0 0.0
    %1500 = vmatpush1.xpose.msra.mxu0 0.0
    %1501 = vmatprep.subr.mxu0 0.0
    %1502 = vmatpush1.xpose.msra.mxu0 0.0
    %1503 = vmatprep.subr.mxu0 0.0
    %1504 = vmatpush1.xpose.msra.mxu0 0.0
    %1505 = vmatprep.subr.mxu0 0.0
    %1506 = vmatpush1.xpose.msra.mxu0 0.0
    %1507 = vmatprep.subr.mxu0 0.0
    %1508 = vmatpush1.xpose.msra.mxu0 0.0
    %1509 = vmatprep.subr.mxu0 0.0
    %1510 = vmatpush1.xpose.msra.mxu0 0.0
    %1511 = vmatprep.subr.mxu0 0.0
    %1512 = vmatpush1.xpose.msra.mxu0 0.0
    %1513 = vmatprep.subr.mxu0 0.0
    %1514 = vmatpush1.xpose.msra.mxu0 0.0
    %1515 = vmatprep.subr.mxu0 0.0
    %1516 = vmatpush1.xpose.msra.mxu0 0.0
    %1517 = vmatprep.subr.mxu0 0.0
    %1518 = vmatpush1.xpose.msra.mxu0 0.0
    %1519 = vmatprep.subr.mxu0 0.0
    %1520 = vmatpush1.xpose.msra.mxu0 0.0
    %1521 = vmatprep.subr.mxu0 0.0
    %1522 = vmatpush1.xpose.msra.mxu0 0.0
    %1523 = vmatprep.subr.mxu0 0.0
    %1524 = vmatpush1.xpose.msra.mxu0 0.0
    %1525 = vmatprep.subr.mxu0 0.0
    %1526 = vmatpush1.xpose.msra.mxu0 0.0
    %1527 = vmatprep.subr.mxu0 0.0
    %1528 = vmatpush1.xpose.msra.mxu0 %v1495
    %1529 = vmatprep.subr.mxu0 0.0
    %1530 = vmatpush2.xpose.msra.mxu0 0.0
    %1531 = vmatprep.subr.mxu0 0.0
    %1532 = vmatpush2.xpose.msra.mxu0 0.0
    %1533 = vmatprep.subr.mxu0 0.0
    %1534 = vmatpush2.xpose.msra.mxu0 0.0
    %1535 = vmatprep.subr.mxu0 0.0
    %1536 = vmatpush2.xpose.msra.mxu0 0.0
    %1537 = vmatprep.subr.mxu0 0.0
    %1538 = vmatpush2.xpose.msra.mxu0 0.0
    %1539 = vmatprep.subr.mxu0 0.0
    %1540 = vmatpush2.xpose.msra.mxu0 0.0
    %1541 = vmatprep.subr.mxu0 0.0
    %1542 = vmatpush2.xpose.msra.mxu0 0.0
    %1543 = vmatprep.subr.mxu0 0.0
    %1544 = vmatpush2.xpose.msra.mxu0 0.0
    %1545 = vmatprep.subr.mxu0 0.0
    %1546 = vmatpush2.xpose.msra.mxu0 0.0
    %1547 = vmatprep.subr.mxu0 0.0
    %1548 = vmatpush2.xpose.msra.mxu0 0.0
    %1549 = vmatprep.subr.mxu0 0.0
    %1550 = vmatpush2.xpose.msra.mxu0 0.0
    %1551 = vmatprep.subr.mxu0 0.0
    %1552 = vmatpush2.xpose.msra.mxu0 0.0
    %1553 = vmatprep.subr.mxu0 0.0
    %1554 = vmatpush2.xpose.msra.mxu0 0.0
    %1555 = vmatprep.subr.mxu0 0.0
    %1556 = vmatpush2.xpose.msra.mxu0 0.0
    %1557 = vmatprep.subr.mxu0 0.0
    %1558 = vmatpush2.xpose.msra.mxu0 0.0
    %1559 = vmatprep.subr.mxu0 0.0
    %1560 = vmatpush2.xpose.msra.mxu0 0.0
    %1561 = vmatprep.mubr.f32.mxu0 0.0
    %1562 = vmatmul.mubr.f32.gmra.mxu0 %v1493
    %v1563 = vpop.f32.mrf.mxu0
    %v1564 = vadd.f32 %v1085, %v1563
    %v1565 = vpop.f32.mrf.mxu0
    %1566 = vdwg.mxu0
    %v1567 = vsel %vm1241, %v1486, -inf
    %1568 = vmax.xlane.f32.xlu0 %v1567
    %v1569 = vpop.xlane.xlu0 %1568
    %v1570 = vsel %vm1241, %v1564, -inf
    %1571 = vmax.xlane.f32.xlu0 %v1570
    %v1572 = vpop.xlane.xlu0 %1571
    %v1573 = vsub.f32 %v1486, %v1569
    %v1574 = vsub.f32 %v1564, %v1572
    %v1575 = vmul.f32 %v1573, 1.442695
    %v1576 = vpow.pop %v1575
    %v1577 = vmul.f32 %v1574, 1.442695
    %v1578 = vpow.pop %v1577
    %v1579 = vsel %vm1241, %v1576, 0.0
    %1580 = vadd.xlane.f32.xlu0 %v1579
    %v1581 = vpop.xlane.xlu0 %1580
    %v1582 = vsel %vm1241, %v1578, 0.0
    %1583 = vadd.xlane.f32.xlu0 %v1582
    %v1584 = vpop.xlane.xlu0 %1583
    %v1585 = vrcp.pop %v1581
    %v1586 = vrcp.pop %v1584
    %v1587 = vmul.f32 %v1576, %v1585
    %v1588 = vmul.f32 %v1578, %v1586
    %1590 = vrot.lane.b32.xlu0 %v1056, 96
    %v1591 = vpop.permute.xlu0 %1590
    %v1594 = vsel %vm1241, %v1587, 0
    %1596 = vmatprep.subr.mxu0 0.0
    %1597 = vmatpush1.msra.mxu0 0.0
    %1598 = vmatprep.subr.mxu0 0.0
    %1599 = vmatpush1.msra.mxu0 0.0
    %1600 = vmatprep.subr.mxu0 0.0
    %1601 = vmatpush1.msra.mxu0 0.0
    %1602 = vmatprep.subr.mxu0 0.0
    %1603 = vmatpush1.msra.mxu0 0.0
    %1604 = vmatprep.subr.mxu0 0.0
    %1605 = vmatpush1.msra.mxu0 0.0
    %1606 = vmatprep.subr.mxu0 0.0
    %1607 = vmatpush1.msra.mxu0 0.0
    %1608 = vmatprep.subr.mxu0 0.0
    %1609 = vmatpush1.msra.mxu0 0.0
    %1610 = vmatprep.subr.mxu0 0.0
    %1611 = vmatpush1.msra.mxu0 0.0
    %1612 = vmatprep.subr.mxu0 0.0
    %1613 = vmatpush1.msra.mxu0 0.0
    %1614 = vmatprep.subr.mxu0 0.0
    %1615 = vmatpush1.msra.mxu0 0.0
    %1616 = vmatprep.subr.mxu0 0.0
    %1617 = vmatpush1.msra.mxu0 0.0
    %1618 = vmatprep.subr.mxu0 0.0
    %1619 = vmatpush1.msra.mxu0 0.0
    %1620 = vmatprep.subr.mxu0 0.0
    %1621 = vmatpush1.msra.mxu0 0.0
    %1622 = vmatprep.subr.mxu0 0.0
    %1623 = vmatpush1.msra.mxu0 0.0
    %1624 = vmatprep.subr.mxu0 0.0
    %1625 = vmatpush1.msra.mxu0 0.0
    %1626 = vmatprep.subr.mxu0 0.0
    %1627 = vmatpush1.msra.mxu0 %v1591
    %1628 = vmatprep.subr.mxu0 0.0
    %1629 = vmatpush2.msra.mxu0 0.0
    %1630 = vmatprep.subr.mxu0 0.0
    %1631 = vmatpush2.msra.mxu0 0.0
    %1632 = vmatprep.subr.mxu0 0.0
    %1633 = vmatpush2.msra.mxu0 0.0
    %1634 = vmatprep.subr.mxu0 0.0
    %1635 = vmatpush2.msra.mxu0 0.0
    %1636 = vmatprep.subr.mxu0 0.0
    %1637 = vmatpush2.msra.mxu0 0.0
    %1638 = vmatprep.subr.mxu0 0.0
    %1639 = vmatpush2.msra.mxu0 0.0
    %1640 = vmatprep.subr.mxu0 0.0
    %1641 = vmatpush2.msra.mxu0 0.0
    %1642 = vmatprep.subr.mxu0 0.0
    %1643 = vmatpush2.msra.mxu0 0.0
    %1644 = vmatprep.subr.mxu0 0.0
    %1645 = vmatpush2.msra.mxu0 0.0
    %1646 = vmatprep.subr.mxu0 0.0
    %1647 = vmatpush2.msra.mxu0 0.0
    %1648 = vmatprep.subr.mxu0 0.0
    %1649 = vmatpush2.msra.mxu0 0.0
    %1650 = vmatprep.subr.mxu0 0.0
    %1651 = vmatpush2.msra.mxu0 0.0
    %1652 = vmatprep.subr.mxu0 0.0
    %1653 = vmatpush2.msra.mxu0 0.0
    %1654 = vmatprep.subr.mxu0 0.0
    %1655 = vmatpush2.msra.mxu0 0.0
    %1656 = vmatprep.subr.mxu0 0.0
    %1657 = vmatpush2.msra.mxu0 0.0
    %1658 = vmatprep.subr.mxu0 0.0
    %1659 = vmatpush2.msra.mxu0 0.0
    %1660 = vmatprep.mubr.f32.mxu0 0.0
    %1661 = vmatmul.mubr.f32.gmra.mxu0 %v1594
    %v1662 = vpop.f32.mrf.mxu0
    %v1663 = vadd.f32 0.0, %v1662
    %v1664 = vpop.f32.mrf.mxu0
    %1665 = vdwg.mxu0
    %1667 = vrot.lane.b32.xlu0 %v1059, 96
    %v1668 = vpop.permute.xlu0 %1667
    %v1671 = vsel %vm1241, %v1588, 0
    %1673 = vmatprep.subr.mxu0 0.0
    %1674 = vmatpush1.msra.mxu0 0.0
    %1675 = vmatprep.subr.mxu0 0.0
    %1676 = vmatpush1.msra.mxu0 0.0
    %1677 = vmatprep.subr.mxu0 0.0
    %1678 = vmatpush1.msra.mxu0 0.0
    %1679 = vmatprep.subr.mxu0 0.0
    %1680 = vmatpush1.msra.mxu0 0.0
    %1681 = vmatprep.subr.mxu0 0.0
    %1682 = vmatpush1.msra.mxu0 0.0
    %1683 = vmatprep.subr.mxu0 0.0
    %1684 = vmatpush1.msra.mxu0 0.0
    %1685 = vmatprep.subr.mxu0 0.0
    %1686 = vmatpush1.msra.mxu0 0.0
    %1687 = vmatprep.subr.mxu0 0.0
    %1688 = vmatpush1.msra.mxu0 0.0
    %1689 = vmatprep.subr.mxu0 0.0
    %1690 = vmatpush1.msra.mxu0 0.0
    %1691 = vmatprep.subr.mxu0 0.0
    %1692 = vmatpush1.msra.mxu0 0.0
    %1693 = vmatprep.subr.mxu0 0.0
    %1694 = vmatpush1.msra.mxu0 0.0
    %1695 = vmatprep.subr.mxu0 0.0
    %1696 = vmatpush1.msra.mxu0 0.0
    %1697 = vmatprep.subr.mxu0 0.0
    %1698 = vmatpush1.msra.mxu0 0.0
    %1699 = vmatprep.subr.mxu0 0.0
    %1700 = vmatpush1.msra.mxu0 0.0
    %1701 = vmatprep.subr.mxu0 0.0
    %1702 = vmatpush1.msra.mxu0 0.0
    %1703 = vmatprep.subr.mxu0 0.0
    %1704 = vmatpush1.msra.mxu0 %v1668
    %1705 = vmatprep.subr.mxu0 0.0
    %1706 = vmatpush2.msra.mxu0 0.0
    %1707 = vmatprep.subr.mxu0 0.0
    %1708 = vmatpush2.msra.mxu0 0.0
    %1709 = vmatprep.subr.mxu0 0.0
    %1710 = vmatpush2.msra.mxu0 0.0
    %1711 = vmatprep.subr.mxu0 0.0
    %1712 = vmatpush2.msra.mxu0 0.0
    %1713 = vmatprep.subr.mxu0 0.0
    %1714 = vmatpush2.msra.mxu0 0.0
    %1715 = vmatprep.subr.mxu0 0.0
    %1716 = vmatpush2.msra.mxu0 0.0
    %1717 = vmatprep.subr.mxu0 0.0
    %1718 = vmatpush2.msra.mxu0 0.0
    %1719 = vmatprep.subr.mxu0 0.0
    %1720 = vmatpush2.msra.mxu0 0.0
    %1721 = vmatprep.subr.mxu0 0.0
    %1722 = vmatpush2.msra.mxu0 0.0
    %1723 = vmatprep.subr.mxu0 0.0
    %1724 = vmatpush2.msra.mxu0 0.0
    %1725 = vmatprep.subr.mxu0 0.0
    %1726 = vmatpush2.msra.mxu0 0.0
    %1727 = vmatprep.subr.mxu0 0.0
    %1728 = vmatpush2.msra.mxu0 0.0
    %1729 = vmatprep.subr.mxu0 0.0
    %1730 = vmatpush2.msra.mxu0 0.0
    %1731 = vmatprep.subr.mxu0 0.0
    %1732 = vmatpush2.msra.mxu0 0.0
    %1733 = vmatprep.subr.mxu0 0.0
    %1734 = vmatpush2.msra.mxu0 0.0
    %1735 = vmatprep.subr.mxu0 0.0
    %1736 = vmatpush2.msra.mxu0 0.0
    %1737 = vmatprep.mubr.f32.mxu0 0.0
    %1738 = vmatmul.mubr.f32.gmra.mxu0 %v1671
    %v1739 = vpop.f32.mrf.mxu0
    %v1740 = vadd.f32 0.0, %v1739
    %v1741 = vpop.f32.mrf.mxu0
    %1742 = vdwg.mxu0
    %v1743 = vpack.c.bf16 %v1740, %v1663
    %v1748 = vunpack.c.l.b16 %v1066
    %v1749 = vunpack.c.l.b16 %v1067
    %v1750 = vunpack.c.l.b16 %v1068
    %v1751 = vunpack.c.l.b16 %v1069
    %v1752 = vpack.c.b16 %v1749, %v1748
    %v1753 = vpack.c.b16 %v1751, %v1750
    %v1757 = vsel %vm1088, %v1743, 0
    %1759 = vmatprep.subr.bf16.mxu0 0
    %1760 = vmatpush1.bf16.msra.mxu0 0
    %1761 = vmatprep.subr.bf16.mxu0 0
    %1762 = vmatpush1.bf16.msra.mxu0 0
    %1763 = vmatprep.subr.bf16.mxu0 0
    %1764 = vmatpush1.bf16.msra.mxu0 0
    %1765 = vmatprep.subr.bf16.mxu0 0
    %1766 = vmatpush1.bf16.msra.mxu0 0
    %1767 = vmatprep.subr.bf16.mxu0 0
    %1768 = vmatpush1.bf16.msra.mxu0 0
    %1769 = vmatprep.subr.bf16.mxu0 0
    %1770 = vmatpush1.bf16.msra.mxu0 0
    %1771 = vmatprep.subr.bf16.mxu0 0
    %1772 = vmatpush1.bf16.msra.mxu0 %v1753
    %1773 = vmatprep.subr.bf16.mxu0 0
    %1774 = vmatpush1.bf16.msra.mxu0 %v1752
    %1775 = vmatprep.subr.bf16.mxu0 0
    %1776 = vmatpush2.bf16.msra.mxu0 0
    %1777 = vmatprep.subr.bf16.mxu0 0
    %1778 = vmatpush2.bf16.msra.mxu0 0
    %1779 = vmatprep.subr.bf16.mxu0 0
    %1780 = vmatpush2.bf16.msra.mxu0 0
    %1781 = vmatprep.subr.bf16.mxu0 0
    %1782 = vmatpush2.bf16.msra.mxu0 0
    %1783 = vmatprep.subr.bf16.mxu0 0
    %1784 = vmatpush2.bf16.msra.mxu0 0
    %1785 = vmatprep.subr.bf16.mxu0 0
    %1786 = vmatpush2.bf16.msra.mxu0 0
    %1787 = vmatprep.subr.bf16.mxu0 0
    %1788 = vmatpush2.bf16.msra.mxu0 0
    %1789 = vmatprep.subr.bf16.mxu0 0
    %1790 = vmatpush2.bf16.msra.mxu0 0
    %1791 = vmatprep.mubr.bf16.mxu0 0
    %1792 = vmatmul.mubr.bf16.gmra.mxu0 %v1757
    %v1793 = vpop.f32.mrf.mxu0
    %v1794 = vadd.f32 0.0, %v1793
    %v1795 = vpop.f32.mrf.mxu0
    %v1796 = vpop.f32.mrf.mxu0
    %v1797 = vadd.f32 0.0, %v1796
    %v1798 = vpop.f32.mrf.mxu0
    %1799 = vdwg.mxu0
    %v1804 = vunpack.c.l.b16 %v1062
    %v1805 = vunpack.c.l.b16 %v1063
    %v1806 = vunpack.c.l.b16 %v1064
    %v1807 = vunpack.c.l.b16 %v1065
    %v1808 = vpack.c.b16 %v1805, %v1804
    %v1809 = vpack.c.b16 %v1807, %v1806
    %v1813 = vsel %vm1088, %v1410, 0
    %1815 = vmatprep.subr.bf16.mxu0 0
    %1816 = vmatpush1.bf16.msra.mxu0 0
    %1817 = vmatprep.subr.bf16.mxu0 0
    %1818 = vmatpush1.bf16.msra.mxu0 0
    %1819 = vmatprep.subr.bf16.mxu0 0
    %1820 = vmatpush1.bf16.msra.mxu0 0
    %1821 = vmatprep.subr.bf16.mxu0 0
    %1822 = vmatpush1.bf16.msra.mxu0 0
    %1823 = vmatprep.subr.bf16.mxu0 0
    %1824 = vmatpush1.bf16.msra.mxu0 0
    %1825 = vmatprep.subr.bf16.mxu0 0
    %1826 = vmatpush1.bf16.msra.mxu0 0
    %1827 = vmatprep.subr.bf16.mxu0 0
    %1828 = vmatpush1.bf16.msra.mxu0 %v1809
    %1829 = vmatprep.subr.bf16.mxu0 0
    %1830 = vmatpush1.bf16.msra.mxu0 %v1808
    %1831 = vmatprep.subr.bf16.mxu0 0
    %1832 = vmatpush2.bf16.msra.mxu0 0
    %1833 = vmatprep.subr.bf16.mxu0 0
    %1834 = vmatpush2.bf16.msra.mxu0 0
    %1835 = vmatprep.subr.bf16.mxu0 0
    %1836 = vmatpush2.bf16.msra.mxu0 0
    %1837 = vmatprep.subr.bf16.mxu0 0
    %1838 = vmatpush2.bf16.msra.mxu0 0
    %1839 = vmatprep.subr.bf16.mxu0 0
    %1840 = vmatpush2.bf16.msra.mxu0 0
    %1841 = vmatprep.subr.bf16.mxu0 0
    %1842 = vmatpush2.bf16.msra.mxu0 0
    %1843 = vmatprep.subr.bf16.mxu0 0
    %1844 = vmatpush2.bf16.msra.mxu0 0
    %1845 = vmatprep.subr.bf16.mxu0 0
    %1846 = vmatpush2.bf16.msra.mxu0 0
    %1847 = vmatprep.mubr.bf16.mxu0 0
    %1848 = vmatmul.mubr.bf16.gmra.mxu0 %v1813
    %v1849 = vpop.f32.mrf.mxu0
    %v1850 = vadd.f32 %v1794, %v1849
    %v1851 = vpop.f32.mrf.mxu0
    %v1852 = vpop.f32.mrf.mxu0
    %v1853 = vadd.f32 %v1797, %v1852
    %v1854 = vpop.f32.mrf.mxu0
    %1855 = vdwg.mxu0
    %1856 = vrot.lane.b32.xlu0 %v1013, 64
    %v1857 = vpop.permute.xlu0 %1856
    %1858 = vrot.lane.b32.xlu0 %v1015, 64
    %v1859 = vpop.permute.xlu0 %1858
    %v1860 = vsel %vm1088, %v1857, 0
    %v1862 = vsel %vm1088, %v1859, 0
    %1864 = vmatprep.subr.mxu0 0.0
    %1865 = vmatpush1.xpose.msra.mxu0 0.0
    %1866 = vmatprep.subr.mxu0 0.0
    %1867 = vmatpush1.xpose.msra.mxu0 0.0
    %1868 = vmatprep.subr.mxu0 0.0
    %1869 = vmatpush1.xpose.msra.mxu0 0.0
    %1870 = vmatprep.subr.mxu0 0.0
    %1871 = vmatpush1.xpose.msra.mxu0 0.0
    %1872 = vmatprep.subr.mxu0 0.0
    %1873 = vmatpush1.xpose.msra.mxu0 0.0
    %1874 = vmatprep.subr.mxu0 0.0
    %1875 = vmatpush1.xpose.msra.mxu0 0.0
    %1876 = vmatprep.subr.mxu0 0.0
    %1877 = vmatpush1.xpose.msra.mxu0 0.0
    %1878 = vmatprep.subr.mxu0 0.0
    %1879 = vmatpush1.xpose.msra.mxu0 0.0
    %1880 = vmatprep.subr.mxu0 0.0
    %1881 = vmatpush1.xpose.msra.mxu0 0.0
    %1882 = vmatprep.subr.mxu0 0.0
    %1883 = vmatpush1.xpose.msra.mxu0 0.0
    %1884 = vmatprep.subr.mxu0 0.0
    %1885 = vmatpush1.xpose.msra.mxu0 0.0
    %1886 = vmatprep.subr.mxu0 0.0
    %1887 = vmatpush1.xpose.msra.mxu0 0.0
    %1888 = vmatprep.subr.mxu0 0.0
    %1889 = vmatpush1.xpose.msra.mxu0 0.0
    %1890 = vmatprep.subr.mxu0 0.0
    %1891 = vmatpush1.xpose.msra.mxu0 0.0
    %1892 = vmatprep.subr.mxu0 0.0
    %1893 = vmatpush1.xpose.msra.mxu0 0.0
    %1894 = vmatprep.subr.mxu0 0.0
    %1895 = vmatpush1.xpose.msra.mxu0 %v1862
    %1896 = vmatprep.subr.mxu0 0.0
    %1897 = vmatpush2.xpose.msra.mxu0 0.0
    %1898 = vmatprep.subr.mxu0 0.0
    %1899 = vmatpush2.xpose.msra.mxu0 0.0
    %1900 = vmatprep.subr.mxu0 0.0
    %1901 = vmatpush2.xpose.msra.mxu0 0.0
    %1902 = vmatprep.subr.mxu0 0.0
    %1903 = vmatpush2.xpose.msra.mxu0 0.0
    %1904 = vmatprep.subr.mxu0 0.0
    %1905 = vmatpush2.xpose.msra.mxu0 0.0
    %1906 = vmatprep.subr.mxu0 0.0
    %1907 = vmatpush2.xpose.msra.mxu0 0.0
    %1908 = vmatprep.subr.mxu0 0.0
    %1909 = vmatpush2.xpose.msra.mxu0 0.0
    %1910 = vmatprep.subr.mxu0 0.0
    %1911 = vmatpush2.xpose.msra.mxu0 0.0
    %1912 = vmatprep.subr.mxu0 0.0
    %1913 = vmatpush2.xpose.msra.mxu0 0.0
    %1914 = vmatprep.subr.mxu0 0.0
    %1915 = vmatpush2.xpose.msra.mxu0 0.0
    %1916 = vmatprep.subr.mxu0 0.0
    %1917 = vmatpush2.xpose.msra.mxu0 0.0
    %1918 = vmatprep.subr.mxu0 0.0
    %1919 = vmatpush2.xpose.msra.mxu0 0.0
    %1920 = vmatprep.subr.mxu0 0.0
    %1921 = vmatpush2.xpose.msra.mxu0 0.0
    %1922 = vmatprep.subr.mxu0 0.0
    %1923 = vmatpush2.xpose.msra.mxu0 0.0
    %1924 = vmatprep.subr.mxu0 0.0
    %1925 = vmatpush2.xpose.msra.mxu0 0.0
    %1926 = vmatprep.subr.mxu0 0.0
    %1927 = vmatpush2.xpose.msra.mxu0 0.0
    %1928 = vmatprep.mubr.f32.mxu0 0.0
    %1929 = vmatmul.mubr.f32.gmra.mxu0 %v1860
    %v1930 = vpop.f32.mrf.mxu0
    %v1931 = vadd.f32 %v1081, %v1930
    %v1932 = vpop.f32.mrf.mxu0
    %1933 = vdwg.mxu0
    %1934 = vrot.lane.b32.xlu0 %v1017, 64
    %v1935 = vpop.permute.xlu0 %1934
    %1936 = vrot.lane.b32.xlu0 %v1019, 64
    %v1937 = vpop.permute.xlu0 %1936
    %v1938 = vsel %vm1088, %v1935, 0
    %v1940 = vsel %vm1088, %v1937, 0
    %1942 = vmatprep.subr.mxu0 0.0
    %1943 = vmatpush1.xpose.msra.mxu0 0.0
    %1944 = vmatprep.subr.mxu0 0.0
    %1945 = vmatpush1.xpose.msra.mxu0 0.0
    %1946 = vmatprep.subr.mxu0 0.0
    %1947 = vmatpush1.xpose.msra.mxu0 0.0
    %1948 = vmatprep.subr.mxu0 0.0
    %1949 = vmatpush1.xpose.msra.mxu0 0.0
    %1950 = vmatprep.subr.mxu0 0.0
    %1951 = vmatpush1.xpose.msra.mxu0 0.0
    %1952 = vmatprep.subr.mxu0 0.0
    %1953 = vmatpush1.xpose.msra.mxu0 0.0
    %1954 = vmatprep.subr.mxu0 0.0
    %1955 = vmatpush1.xpose.msra.mxu0 0.0
    %1956 = vmatprep.subr.mxu0 0.0
    %1957 = vmatpush1.xpose.msra.mxu0 0.0
    %1958 = vmatprep.subr.mxu0 0.0
    %1959 = vmatpush1.xpose.msra.mxu0 0.0
    %1960 = vmatprep.subr.mxu0 0.0
    %1961 = vmatpush1.xpose.msra.mxu0 0.0
    %1962 = vmatprep.subr.mxu0 0.0
    %1963 = vmatpush1.xpose.msra.mxu0 0.0
    %1964 = vmatprep.subr.mxu0 0.0
    %1965 = vmatpush1.xpose.msra.mxu0 0.0
    %1966 = vmatprep.subr.mxu0 0.0
    %1967 = vmatpush1.xpose.msra.mxu0 0.0
    %1968 = vmatprep.subr.mxu0 0.0
    %1969 = vmatpush1.xpose.msra.mxu0 0.0
    %1970 = vmatprep.subr.mxu0 0.0
    %1971 = vmatpush1.xpose.msra.mxu0 0.0
    %1972 = vmatprep.subr.mxu0 0.0
    %1973 = vmatpush1.xpose.msra.mxu0 %v1940
    %1974 = vmatprep.subr.mxu0 0.0
    %1975 = vmatpush2.xpose.msra.mxu0 0.0
    %1976 = vmatprep.subr.mxu0 0.0
    %1977 = vmatpush2.xpose.msra.mxu0 0.0
    %1978 = vmatprep.subr.mxu0 0.0
    %1979 = vmatpush2.xpose.msra.mxu0 0.0
    %1980 = vmatprep.subr.mxu0 0.0
    %1981 = vmatpush2.xpose.msra.mxu0 0.0
    %1982 = vmatprep.subr.mxu0 0.0
    %1983 = vmatpush2.xpose.msra.mxu0 0.0
    %1984 = vmatprep.subr.mxu0 0.0
    %1985 = vmatpush2.xpose.msra.mxu0 0.0
    %1986 = vmatprep.subr.mxu0 0.0
    %1987 = vmatpush2.xpose.msra.mxu0 0.0
    %1988 = vmatprep.subr.mxu0 0.0
    %1989 = vmatpush2.xpose.msra.mxu0 0.0
    %1990 = vmatprep.subr.mxu0 0.0
    %1991 = vmatpush2.xpose.msra.mxu0 0.0
    %1992 = vmatprep.subr.mxu0 0.0
    %1993 = vmatpush2.xpose.msra.mxu0 0.0
    %1994 = vmatprep.subr.mxu0 0.0
    %1995 = vmatpush2.xpose.msra.mxu0 0.0
    %1996 = vmatprep.subr.mxu0 0.0
    %1997 = vmatpush2.xpose.msra.mxu0 0.0
    %1998 = vmatprep.subr.mxu0 0.0
    %1999 = vmatpush2.xpose.msra.mxu0 0.0
    %2000 = vmatprep.subr.mxu0 0.0
    %2001 = vmatpush2.xpose.msra.mxu0 0.0
    %2002 = vmatprep.subr.mxu0 0.0
    %2003 = vmatpush2.xpose.msra.mxu0 0.0
    %2004 = vmatprep.subr.mxu0 0.0
    %2005 = vmatpush2.xpose.msra.mxu0 0.0
    %2006 = vmatprep.mubr.f32.mxu0 0.0
    %2007 = vmatmul.mubr.f32.gmra.mxu0 %v1938
    %v2008 = vpop.f32.mrf.mxu0
    %v2009 = vadd.f32 %v1085, %v2008
    %v2010 = vpop.f32.mrf.mxu0
    %2011 = vdwg.mxu0
    %v2012 = vsel %vm1241, %v1931, -inf
    %2013 = vmax.xlane.f32.xlu0 %v2012
    %v2014 = vpop.xlane.xlu0 %2013
    %v2015 = vsel %vm1241, %v2009, -inf
    %2016 = vmax.xlane.f32.xlu0 %v2015
    %v2017 = vpop.xlane.xlu0 %2016
    %v2018 = vsub.f32 %v1931, %v2014
    %v2019 = vsub.f32 %v2009, %v2017
    %v2020 = vmul.f32 %v2018, 1.442695
    %v2021 = vpow.pop %v2020
    %v2022 = vmul.f32 %v2019, 1.442695
    %v2023 = vpow.pop %v2022
    %v2024 = vsel %vm1241, %v2021, 0.0
    %2025 = vadd.xlane.f32.xlu0 %v2024
    %v2026 = vpop.xlane.xlu0 %2025
    %v2027 = vsel %vm1241, %v2023, 0.0
    %2028 = vadd.xlane.f32.xlu0 %v2027
    %v2029 = vpop.xlane.xlu0 %2028
    %v2030 = vrcp.pop %v2026
    %v2031 = vrcp.pop %v2029
    %v2032 = vmul.f32 %v2021, %v2030
    %v2033 = vmul.f32 %v2023, %v2031
    %2034 = vrot.lane.b32.xlu0 %v1056, 64
    %v2035 = vpop.permute.xlu0 %2034
    %v2038 = vsel %vm1241, %v2032, 0
    %2040 = vmatprep.subr.mxu0 0.0
    %2041 = vmatpush1.msra.mxu0 0.0
    %2042 = vmatprep.subr.mxu0 0.0
    %2043 = vmatpush1.msra.mxu0 0.0
    %2044 = vmatprep.subr.mxu0 0.0
    %2045 = vmatpush1.msra.mxu0 0.0
    %2046 = vmatprep.subr.mxu0 0.0
    %2047 = vmatpush1.msra.mxu0 0.0
    %2048 = vmatprep.subr.mxu0 0.0
    %2049 = vmatpush1.msra.mxu0 0.0
    %2050 = vmatprep.subr.mxu0 0.0
    %2051 = vmatpush1.msra.mxu0 0.0
    %2052 = vmatprep.subr.mxu0 0.0
    %2053 = vmatpush1.msra.mxu0 0.0
    %2054 = vmatprep.subr.mxu0 0.0
    %2055 = vmatpush1.msra.mxu0 0.0
    %2056 = vmatprep.subr.mxu0 0.0
    %2057 = vmatpush1.msra.mxu0 0.0
    %2058 = vmatprep.subr.mxu0 0.0
    %2059 = vmatpush1.msra.mxu0 0.0
    %2060 = vmatprep.subr.mxu0 0.0
    %2061 = vmatpush1.msra.mxu0 0.0
    %2062 = vmatprep.subr.mxu0 0.0
    %2063 = vmatpush1.msra.mxu0 0.0
    %2064 = vmatprep.subr.mxu0 0.0
    %2065 = vmatpush1.msra.mxu0 0.0
    %2066 = vmatprep.subr.mxu0 0.0
    %2067 = vmatpush1.msra.mxu0 0.0
    %2068 = vmatprep.subr.mxu0 0.0
    %2069 = vmatpush1.msra.mxu0 0.0
    %2070 = vmatprep.subr.mxu0 0.0
    %2071 = vmatpush1.msra.mxu0 %v2035
    %2072 = vmatprep.subr.mxu0 0.0
    %2073 = vmatpush2.msra.mxu0 0.0
    %2074 = vmatprep.subr.mxu0 0.0
    %2075 = vmatpush2.msra.mxu0 0.0
    %2076 = vmatprep.subr.mxu0 0.0
    %2077 = vmatpush2.msra.mxu0 0.0
    %2078 = vmatprep.subr.mxu0 0.0
    %2079 = vmatpush2.msra.mxu0 0.0
    %2080 = vmatprep.subr.mxu0 0.0
    %2081 = vmatpush2.msra.mxu0 0.0
    %2082 = vmatprep.subr.mxu0 0.0
    %2083 = vmatpush2.msra.mxu0 0.0
    %2084 = vmatprep.subr.mxu0 0.0
    %2085 = vmatpush2.msra.mxu0 0.0
    %2086 = vmatprep.subr.mxu0 0.0
    %2087 = vmatpush2.msra.mxu0 0.0
    %2088 = vmatprep.subr.mxu0 0.0
    %2089 = vmatpush2.msra.mxu0 0.0
    %2090 = vmatprep.subr.mxu0 0.0
    %2091 = vmatpush2.msra.mxu0 0.0
    %2092 = vmatprep.subr.mxu0 0.0
    %2093 = vmatpush2.msra.mxu0 0.0
    %2094 = vmatprep.subr.mxu0 0.0
    %2095 = vmatpush2.msra.mxu0 0.0
    %2096 = vmatprep.subr.mxu0 0.0
    %2097 = vmatpush2.msra.mxu0 0.0
    %2098 = vmatprep.subr.mxu0 0.0
    %2099 = vmatpush2.msra.mxu0 0.0
    %2100 = vmatprep.subr.mxu0 0.0
    %2101 = vmatpush2.msra.mxu0 0.0
    %2102 = vmatprep.subr.mxu0 0.0
    %2103 = vmatpush2.msra.mxu0 0.0
    %2104 = vmatprep.mubr.f32.mxu0 0.0
    %2105 = vmatmul.mubr.f32.gmra.mxu0 %v2038
    %v2106 = vpop.f32.mrf.mxu0
    %v2107 = vadd.f32 0.0, %v2106
    %v2108 = vpop.f32.mrf.mxu0
    %2109 = vdwg.mxu0
    %2110 = vrot.lane.b32.xlu0 %v1059, 64
    %v2111 = vpop.permute.xlu0 %2110
    %v2114 = vsel %vm1241, %v2033, 0
    %2116 = vmatprep.subr.mxu0 0.0
    %2117 = vmatpush1.msra.mxu0 0.0
    %2118 = vmatprep.subr.mxu0 0.0
    %2119 = vmatpush1.msra.mxu0 0.0
    %2120 = vmatprep.subr.mxu0 0.0
    %2121 = vmatpush1.msra.mxu0 0.0
    %2122 = vmatprep.subr.mxu0 0.0
    %2123 = vmatpush1.msra.mxu0 0.0
    %2124 = vmatprep.subr.mxu0 0.0
    %2125 = vmatpush1.msra.mxu0 0.0
    %2126 = vmatprep.subr.mxu0 0.0
    %2127 = vmatpush1.msra.mxu0 0.0
    %2128 = vmatprep.subr.mxu0 0.0
    %2129 = vmatpush1.msra.mxu0 0.0
    %2130 = vmatprep.subr.mxu0 0.0
    %2131 = vmatpush1.msra.mxu0 0.0
    %2132 = vmatprep.subr.mxu0 0.0
    %2133 = vmatpush1.msra.mxu0 0.0
    %2134 = vmatprep.subr.mxu0 0.0
    %2135 = vmatpush1.msra.mxu0 0.0
    %2136 = vmatprep.subr.mxu0 0.0
    %2137 = vmatpush1.msra.mxu0 0.0
    %2138 = vmatprep.subr.mxu0 0.0
    %2139 = vmatpush1.msra.mxu0 0.0
    %2140 = vmatprep.subr.mxu0 0.0
    %2141 = vmatpush1.msra.mxu0 0.0
    %2142 = vmatprep.subr.mxu0 0.0
    %2143 = vmatpush1.msra.mxu0 0.0
    %2144 = vmatprep.subr.mxu0 0.0
    %2145 = vmatpush1.msra.mxu0 0.0
    %2146 = vmatprep.subr.mxu0 0.0
    %2147 = vmatpush1.msra.mxu0 %v2111
    %2148 = vmatprep.subr.mxu0 0.0
    %2149 = vmatpush2.msra.mxu0 0.0
    %2150 = vmatprep.subr.mxu0 0.0
    %2151 = vmatpush2.msra.mxu0 0.0
    %2152 = vmatprep.subr.mxu0 0.0
    %2153 = vmatpush2.msra.mxu0 0.0
    %2154 = vmatprep.subr.mxu0 0.0
    %2155 = vmatpush2.msra.mxu0 0.0
    %2156 = vmatprep.subr.mxu0 0.0
    %2157 = vmatpush2.msra.mxu0 0.0
    %2158 = vmatprep.subr.mxu0 0.0
    %2159 = vmatpush2.msra.mxu0 0.0
    %2160 = vmatprep.subr.mxu0 0.0
    %2161 = vmatpush2.msra.mxu0 0.0
    %2162 = vmatprep.subr.mxu0 0.0
    %2163 = vmatpush2.msra.mxu0 0.0
    %2164 = vmatprep.subr.mxu0 0.0
    %2165 = vmatpush2.msra.mxu0 0.0
    %2166 = vmatprep.subr.mxu0 0.0
    %2167 = vmatpush2.msra.mxu0 0.0
    %2168 = vmatprep.subr.mxu0 0.0
    %2169 = vmatpush2.msra.mxu0 0.0
    %2170 = vmatprep.subr.mxu0 0.0
    %2171 = vmatpush2.msra.mxu0 0.0
    %2172 = vmatprep.subr.mxu0 0.0
    %2173 = vmatpush2.msra.mxu0 0.0
    %2174 = vmatprep.subr.mxu0 0.0
    %2175 = vmatpush2.msra.mxu0 0.0
    %2176 = vmatprep.subr.mxu0 0.0
    %2177 = vmatpush2.msra.mxu0 0.0
    %2178 = vmatprep.subr.mxu0 0.0
    %2179 = vmatpush2.msra.mxu0 0.0
    %2180 = vmatprep.mubr.f32.mxu0 0.0
    %2181 = vmatmul.mubr.f32.gmra.mxu0 %v2114
    %v2182 = vpop.f32.mrf.mxu0
    %v2183 = vadd.f32 0.0, %v2182
    %v2184 = vpop.f32.mrf.mxu0
    %2185 = vdwg.mxu0
    %v2186 = vpack.c.bf16 %v2183, %v2107
    %v2191 = vunpack.c.l.b16 %v1070
    %v2192 = vunpack.c.l.b16 %v1071
    %v2193 = vunpack.c.l.b16 %v1072
    %v2194 = vunpack.c.l.b16 %v1073
    %v2195 = vpack.c.b16 %v2192, %v2191
    %v2196 = vpack.c.b16 %v2194, %v2193
    %v2200 = vsel %vm1088, %v2186, 0
    %2202 = vmatprep.subr.bf16.mxu0 0
    %2203 = vmatpush1.bf16.msra.mxu0 0
    %2204 = vmatprep.subr.bf16.mxu0 0
    %2205 = vmatpush1.bf16.msra.mxu0 0
    %2206 = vmatprep.subr.bf16.mxu0 0
    %2207 = vmatpush1.bf16.msra.mxu0 0
    %2208 = vmatprep.subr.bf16.mxu0 0
    %2209 = vmatpush1.bf16.msra.mxu0 0
    %2210 = vmatprep.subr.bf16.mxu0 0
    %2211 = vmatpush1.bf16.msra.mxu0 0
    %2212 = vmatprep.subr.bf16.mxu0 0
    %2213 = vmatpush1.bf16.msra.mxu0 0
    %2214 = vmatprep.subr.bf16.mxu0 0
    %2215 = vmatpush1.bf16.msra.mxu0 %v2196
    %2216 = vmatprep.subr.bf16.mxu0 0
    %2217 = vmatpush1.bf16.msra.mxu0 %v2195
    %2218 = vmatprep.subr.bf16.mxu0 0
    %2219 = vmatpush2.bf16.msra.mxu0 0
    %2220 = vmatprep.subr.bf16.mxu0 0
    %2221 = vmatpush2.bf16.msra.mxu0 0
    %2222 = vmatprep.subr.bf16.mxu0 0
    %2223 = vmatpush2.bf16.msra.mxu0 0
    %2224 = vmatprep.subr.bf16.mxu0 0
    %2225 = vmatpush2.bf16.msra.mxu0 0
    %2226 = vmatprep.subr.bf16.mxu0 0
    %2227 = vmatpush2.bf16.msra.mxu0 0
    %2228 = vmatprep.subr.bf16.mxu0 0
    %2229 = vmatpush2.bf16.msra.mxu0 0
    %2230 = vmatprep.subr.bf16.mxu0 0
    %2231 = vmatpush2.bf16.msra.mxu0 0
    %2232 = vmatprep.subr.bf16.mxu0 0
    %2233 = vmatpush2.bf16.msra.mxu0 0
    %2234 = vmatprep.mubr.bf16.mxu0 0
    %2235 = vmatmul.mubr.bf16.gmra.mxu0 %v2200
    %v2236 = vpop.f32.mrf.mxu0
    %v2237 = vadd.f32 0.0, %v2236
    %v2238 = vpop.f32.mrf.mxu0
    %v2239 = vpop.f32.mrf.mxu0
    %v2240 = vadd.f32 0.0, %v2239
    %v2241 = vpop.f32.mrf.mxu0
    %2242 = vdwg.mxu0
    %v2243 = vadd.f32 %v1850, %v2237
    %v2244 = vadd.f32 %v1853, %v2240
    %2245 = vrot.lane.b32.xlu0 %v1013, 32
    %v2246 = vpop.permute.xlu0 %2245
    %2247 = vrot.lane.b32.xlu0 %v1015, 32
    %v2248 = vpop.permute.xlu0 %2247
    %v2249 = vsel %vm1088, %v2246, 0
    %v2251 = vsel %vm1088, %v2248, 0
    %2253 = vmatprep.subr.mxu0 0.0
    %2254 = vmatpush1.xpose.msra.mxu0 0.0
    %2255 = vmatprep.subr.mxu0 0.0
    %2256 = vmatpush1.xpose.msra.mxu0 0.0
    %2257 = vmatprep.subr.mxu0 0.0
    %2258 = vmatpush1.xpose.msra.mxu0 0.0
    %2259 = vmatprep.subr.mxu0 0.0
    %2260 = vmatpush1.xpose.msra.mxu0 0.0
    %2261 = vmatprep.subr.mxu0 0.0
    %2262 = vmatpush1.xpose.msra.mxu0 0.0
    %2263 = vmatprep.subr.mxu0 0.0
    %2264 = vmatpush1.xpose.msra.mxu0 0.0
    %2265 = vmatprep.subr.mxu0 0.0
    %2266 = vmatpush1.xpose.msra.mxu0 0.0
    %2267 = vmatprep.subr.mxu0 0.0
    %2268 = vmatpush1.xpose.msra.mxu0 0.0
    %2269 = vmatprep.subr.mxu0 0.0
    %2270 = vmatpush1.xpose.msra.mxu0 0.0
    %2271 = vmatprep.subr.mxu0 0.0
    %2272 = vmatpush1.xpose.msra.mxu0 0.0
    %2273 = vmatprep.subr.mxu0 0.0
    %2274 = vmatpush1.xpose.msra.mxu0 0.0
    %2275 = vmatprep.subr.mxu0 0.0
    %2276 = vmatpush1.xpose.msra.mxu0 0.0
    %2277 = vmatprep.subr.mxu0 0.0
    %2278 = vmatpush1.xpose.msra.mxu0 0.0
    %2279 = vmatprep.subr.mxu0 0.0
    %2280 = vmatpush1.xpose.msra.mxu0 0.0
    %2281 = vmatprep.subr.mxu0 0.0
    %2282 = vmatpush1.xpose.msra.mxu0 0.0
    %2283 = vmatprep.subr.mxu0 0.0
    %2284 = vmatpush1.xpose.msra.mxu0 %v2251
    %2285 = vmatprep.subr.mxu0 0.0
    %2286 = vmatpush2.xpose.msra.mxu0 0.0
    %2287 = vmatprep.subr.mxu0 0.0
    %2288 = vmatpush2.xpose.msra.mxu0 0.0
    %2289 = vmatprep.subr.mxu0 0.0
    %2290 = vmatpush2.xpose.msra.mxu0 0.0
    %2291 = vmatprep.subr.mxu0 0.0
    %2292 = vmatpush2.xpose.msra.mxu0 0.0
    %2293 = vmatprep.subr.mxu0 0.0
    %2294 = vmatpush2.xpose.msra.mxu0 0.0
    %2295 = vmatprep.subr.mxu0 0.0
    %2296 = vmatpush2.xpose.msra.mxu0 0.0
    %2297 = vmatprep.subr.mxu0 0.0
    %2298 = vmatpush2.xpose.msra.mxu0 0.0
    %2299 = vmatprep.subr.mxu0 0.0
    %2300 = vmatpush2.xpose.msra.mxu0 0.0
    %2301 = vmatprep.subr.mxu0 0.0
    %2302 = vmatpush2.xpose.msra.mxu0 0.0
    %2303 = vmatprep.subr.mxu0 0.0
    %2304 = vmatpush2.xpose.msra.mxu0 0.0
    %2305 = vmatprep.subr.mxu0 0.0
    %2306 = vmatpush2.xpose.msra.mxu0 0.0
    %2307 = vmatprep.subr.mxu0 0.0
    %2308 = vmatpush2.xpose.msra.mxu0 0.0
    %2309 = vmatprep.subr.mxu0 0.0
    %2310 = vmatpush2.xpose.msra.mxu0 0.0
    %2311 = vmatprep.subr.mxu0 0.0
    %2312 = vmatpush2.xpose.msra.mxu0 0.0
    %2313 = vmatprep.subr.mxu0 0.0
    %2314 = vmatpush2.xpose.msra.mxu0 0.0
    %2315 = vmatprep.subr.mxu0 0.0
    %2316 = vmatpush2.xpose.msra.mxu0 0.0
    %2317 = vmatprep.mubr.f32.mxu0 0.0
    %2318 = vmatmul.mubr.f32.gmra.mxu0 %v2249
    %v2319 = vpop.f32.mrf.mxu0
    %v2320 = vadd.f32 %v1081, %v2319
    %v2321 = vpop.f32.mrf.mxu0
    %2322 = vdwg.mxu0
    %2323 = vrot.lane.b32.xlu0 %v1017, 32
    %v2324 = vpop.permute.xlu0 %2323
    %2325 = vrot.lane.b32.xlu0 %v1019, 32
    %v2326 = vpop.permute.xlu0 %2325
    %v2327 = vsel %vm1088, %v2324, 0
    %v2329 = vsel %vm1088, %v2326, 0
    %2331 = vmatprep.subr.mxu0 0.0
    %2332 = vmatpush1.xpose.msra.mxu0 0.0
    %2333 = vmatprep.subr.mxu0 0.0
    %2334 = vmatpush1.xpose.msra.mxu0 0.0
    %2335 = vmatprep.subr.mxu0 0.0
    %2336 = vmatpush1.xpose.msra.mxu0 0.0
    %2337 = vmatprep.subr.mxu0 0.0
    %2338 = vmatpush1.xpose.msra.mxu0 0.0
    %2339 = vmatprep.subr.mxu0 0.0
    %2340 = vmatpush1.xpose.msra.mxu0 0.0
    %2341 = vmatprep.subr.mxu0 0.0
    %2342 = vmatpush1.xpose.msra.mxu0 0.0
    %2343 = vmatprep.subr.mxu0 0.0
    %2344 = vmatpush1.xpose.msra.mxu0 0.0
    %2345 = vmatprep.subr.mxu0 0.0
    %2346 = vmatpush1.xpose.msra.mxu0 0.0
    %2347 = vmatprep.subr.mxu0 0.0
    %2348 = vmatpush1.xpose.msra.mxu0 0.0
    %2349 = vmatprep.subr.mxu0 0.0
    %2350 = vmatpush1.xpose.msra.mxu0 0.0
    %2351 = vmatprep.subr.mxu0 0.0
    %2352 = vmatpush1.xpose.msra.mxu0 0.0
    %2353 = vmatprep.subr.mxu0 0.0
    %2354 = vmatpush1.xpose.msra.mxu0 0.0
    %2355 = vmatprep.subr.mxu0 0.0
    %2356 = vmatpush1.xpose.msra.mxu0 0.0
    %2357 = vmatprep.subr.mxu0 0.0
    %2358 = vmatpush1.xpose.msra.mxu0 0.0
    %2359 = vmatprep.subr.mxu0 0.0
    %2360 = vmatpush1.xpose.msra.mxu0 0.0
    %2361 = vmatprep.subr.mxu0 0.0
    %2362 = vmatpush1.xpose.msra.mxu0 %v2329
    %2363 = vmatprep.subr.mxu0 0.0
    %2364 = vmatpush2.xpose.msra.mxu0 0.0
    %2365 = vmatprep.subr.mxu0 0.0
    %2366 = vmatpush2.xpose.msra.mxu0 0.0
    %2367 = vmatprep.subr.mxu0 0.0
    %2368 = vmatpush2.xpose.msra.mxu0 0.0
    %2369 = vmatprep.subr.mxu0 0.0
    %2370 = vmatpush2.xpose.msra.mxu0 0.0
    %2371 = vmatprep.subr.mxu0 0.0
    %2372 = vmatpush2.xpose.msra.mxu0 0.0
    %2373 = vmatprep.subr.mxu0 0.0
    %2374 = vmatpush2.xpose.msra.mxu0 0.0
    %2375 = vmatprep.subr.mxu0 0.0
    %2376 = vmatpush2.xpose.msra.mxu0 0.0
    %2377 = vmatprep.subr.mxu0 0.0
    %2378 = vmatpush2.xpose.msra.mxu0 0.0
    %2379 = vmatprep.subr.mxu0 0.0
    %2380 = vmatpush2.xpose.msra.mxu0 0.0
    %2381 = vmatprep.subr.mxu0 0.0
    %2382 = vmatpush2.xpose.msra.mxu0 0.0
    %2383 = vmatprep.subr.mxu0 0.0
    %2384 = vmatpush2.xpose.msra.mxu0 0.0
    %2385 = vmatprep.subr.mxu0 0.0
    %2386 = vmatpush2.xpose.msra.mxu0 0.0
    %2387 = vmatprep.subr.mxu0 0.0
    %2388 = vmatpush2.xpose.msra.mxu0 0.0
    %2389 = vmatprep.subr.mxu0 0.0
    %2390 = vmatpush2.xpose.msra.mxu0 0.0
    %2391 = vmatprep.subr.mxu0 0.0
    %2392 = vmatpush2.xpose.msra.mxu0 0.0
    %2393 = vmatprep.subr.mxu0 0.0
    %2394 = vmatpush2.xpose.msra.mxu0 0.0
    %2395 = vmatprep.mubr.f32.mxu0 0.0
    %2396 = vmatmul.mubr.f32.gmra.mxu0 %v2327
    %v2397 = vpop.f32.mrf.mxu0
    %v2398 = vadd.f32 %v1085, %v2397
    %v2399 = vpop.f32.mrf.mxu0
    %2400 = vdwg.mxu0
    %v2401 = vsel %vm1241, %v2320, -inf
    %2402 = vmax.xlane.f32.xlu0 %v2401
    %v2403 = vpop.xlane.xlu0 %2402
    %v2404 = vsel %vm1241, %v2398, -inf
    %2405 = vmax.xlane.f32.xlu0 %v2404
    %v2406 = vpop.xlane.xlu0 %2405
    %v2407 = vsub.f32 %v2320, %v2403
    %v2408 = vsub.f32 %v2398, %v2406
    %v2409 = vmul.f32 %v2407, 1.442695
    %v2410 = vpow.pop %v2409
    %v2411 = vmul.f32 %v2408, 1.442695
    %v2412 = vpow.pop %v2411
    %v2413 = vsel %vm1241, %v2410, 0.0
    %2414 = vadd.xlane.f32.xlu0 %v2413
    %v2415 = vpop.xlane.xlu0 %2414
    %v2416 = vsel %vm1241, %v2412, 0.0
    %2417 = vadd.xlane.f32.xlu0 %v2416
    %v2418 = vpop.xlane.xlu0 %2417
    %v2419 = vrcp.pop %v2415
    %v2420 = vrcp.pop %v2418
    %v2421 = vmul.f32 %v2410, %v2419
    %v2422 = vmul.f32 %v2412, %v2420
    %2423 = vrot.lane.b32.xlu0 %v1056, 32
    %v2424 = vpop.permute.xlu0 %2423
    %v2427 = vsel %vm1241, %v2421, 0
    %2429 = vmatprep.subr.mxu0 0.0
    %2430 = vmatpush1.msra.mxu0 0.0
    %2431 = vmatprep.subr.mxu0 0.0
    %2432 = vmatpush1.msra.mxu0 0.0
    %2433 = vmatprep.subr.mxu0 0.0
    %2434 = vmatpush1.msra.mxu0 0.0
    %2435 = vmatprep.subr.mxu0 0.0
    %2436 = vmatpush1.msra.mxu0 0.0
    %2437 = vmatprep.subr.mxu0 0.0
    %2438 = vmatpush1.msra.mxu0 0.0
    %2439 = vmatprep.subr.mxu0 0.0
    %2440 = vmatpush1.msra.mxu0 0.0
    %2441 = vmatprep.subr.mxu0 0.0
    %2442 = vmatpush1.msra.mxu0 0.0
    %2443 = vmatprep.subr.mxu0 0.0
    %2444 = vmatpush1.msra.mxu0 0.0
    %2445 = vmatprep.subr.mxu0 0.0
    %2446 = vmatpush1.msra.mxu0 0.0
    %2447 = vmatprep.subr.mxu0 0.0
    %2448 = vmatpush1.msra.mxu0 0.0
    %2449 = vmatprep.subr.mxu0 0.0
    %2450 = vmatpush1.msra.mxu0 0.0
    %2451 = vmatprep.subr.mxu0 0.0
    %2452 = vmatpush1.msra.mxu0 0.0
    %2453 = vmatprep.subr.mxu0 0.0
    %2454 = vmatpush1.msra.mxu0 0.0
    %2455 = vmatprep.subr.mxu0 0.0
    %2456 = vmatpush1.msra.mxu0 0.0
    %2457 = vmatprep.subr.mxu0 0.0
    %2458 = vmatpush1.msra.mxu0 0.0
    %2459 = vmatprep.subr.mxu0 0.0
    %2460 = vmatpush1.msra.mxu0 %v2424
    %2461 = vmatprep.subr.mxu0 0.0
    %2462 = vmatpush2.msra.mxu0 0.0
    %2463 = vmatprep.subr.mxu0 0.0
    %2464 = vmatpush2.msra.mxu0 0.0
    %2465 = vmatprep.subr.mxu0 0.0
    %2466 = vmatpush2.msra.mxu0 0.0
    %2467 = vmatprep.subr.mxu0 0.0
    %2468 = vmatpush2.msra.mxu0 0.0
    %2469 = vmatprep.subr.mxu0 0.0
    %2470 = vmatpush2.msra.mxu0 0.0
    %2471 = vmatprep.subr.mxu0 0.0
    %2472 = vmatpush2.msra.mxu0 0.0
    %2473 = vmatprep.subr.mxu0 0.0
    %2474 = vmatpush2.msra.mxu0 0.0
    %2475 = vmatprep.subr.mxu0 0.0
    %2476 = vmatpush2.msra.mxu0 0.0
    %2477 = vmatprep.subr.mxu0 0.0
    %2478 = vmatpush2.msra.mxu0 0.0
    %2479 = vmatprep.subr.mxu0 0.0
    %2480 = vmatpush2.msra.mxu0 0.0
    %2481 = vmatprep.subr.mxu0 0.0
    %2482 = vmatpush2.msra.mxu0 0.0
    %2483 = vmatprep.subr.mxu0 0.0
    %2484 = vmatpush2.msra.mxu0 0.0
    %2485 = vmatprep.subr.mxu0 0.0
    %2486 = vmatpush2.msra.mxu0 0.0
    %2487 = vmatprep.subr.mxu0 0.0
    %2488 = vmatpush2.msra.mxu0 0.0
    %2489 = vmatprep.subr.mxu0 0.0
    %2490 = vmatpush2.msra.mxu0 0.0
    %2491 = vmatprep.subr.mxu0 0.0
    %2492 = vmatpush2.msra.mxu0 0.0
    %2493 = vmatprep.mubr.f32.mxu0 0.0
    %2494 = vmatmul.mubr.f32.gmra.mxu0 %v2427
    %v2495 = vpop.f32.mrf.mxu0
    %v2496 = vadd.f32 0.0, %v2495
    %v2497 = vpop.f32.mrf.mxu0
    %2498 = vdwg.mxu0
    %2499 = vrot.lane.b32.xlu0 %v1059, 32
    %v2500 = vpop.permute.xlu0 %2499
    %v2503 = vsel %vm1241, %v2422, 0
    %2505 = vmatprep.subr.mxu0 0.0
    %2506 = vmatpush1.msra.mxu0 0.0
    %2507 = vmatprep.subr.mxu0 0.0
    %2508 = vmatpush1.msra.mxu0 0.0
    %2509 = vmatprep.subr.mxu0 0.0
    %2510 = vmatpush1.msra.mxu0 0.0
    %2511 = vmatprep.subr.mxu0 0.0
    %2512 = vmatpush1.msra.mxu0 0.0
    %2513 = vmatprep.subr.mxu0 0.0
    %2514 = vmatpush1.msra.mxu0 0.0
    %2515 = vmatprep.subr.mxu0 0.0
    %2516 = vmatpush1.msra.mxu0 0.0
    %2517 = vmatprep.subr.mxu0 0.0
    %2518 = vmatpush1.msra.mxu0 0.0
    %2519 = vmatprep.subr.mxu0 0.0
    %2520 = vmatpush1.msra.mxu0 0.0
    %2521 = vmatprep.subr.mxu0 0.0
    %2522 = vmatpush1.msra.mxu0 0.0
    %2523 = vmatprep.subr.mxu0 0.0
    %2524 = vmatpush1.msra.mxu0 0.0
    %2525 = vmatprep.subr.mxu0 0.0
    %2526 = vmatpush1.msra.mxu0 0.0
    %2527 = vmatprep.subr.mxu0 0.0
    %2528 = vmatpush1.msra.mxu0 0.0
    %2529 = vmatprep.subr.mxu0 0.0
    %2530 = vmatpush1.msra.mxu0 0.0
    %2531 = vmatprep.subr.mxu0 0.0
    %2532 = vmatpush1.msra.mxu0 0.0
    %2533 = vmatprep.subr.mxu0 0.0
    %2534 = vmatpush1.msra.mxu0 0.0
    %2535 = vmatprep.subr.mxu0 0.0
    %2536 = vmatpush1.msra.mxu0 %v2500
    %2537 = vmatprep.subr.mxu0 0.0
    %2538 = vmatpush2.msra.mxu0 0.0
    %2539 = vmatprep.subr.mxu0 0.0
    %2540 = vmatpush2.msra.mxu0 0.0
    %2541 = vmatprep.subr.mxu0 0.0
    %2542 = vmatpush2.msra.mxu0 0.0
    %2543 = vmatprep.subr.mxu0 0.0
    %2544 = vmatpush2.msra.mxu0 0.0
    %2545 = vmatprep.subr.mxu0 0.0
    %2546 = vmatpush2.msra.mxu0 0.0
    %2547 = vmatprep.subr.mxu0 0.0
    %2548 = vmatpush2.msra.mxu0 0.0
    %2549 = vmatprep.subr.mxu0 0.0
    %2550 = vmatpush2.msra.mxu0 0.0
    %2551 = vmatprep.subr.mxu0 0.0
    %2552 = vmatpush2.msra.mxu0 0.0
    %2553 = vmatprep.subr.mxu0 0.0
    %2554 = vmatpush2.msra.mxu0 0.0
    %2555 = vmatprep.subr.mxu0 0.0
    %2556 = vmatpush2.msra.mxu0 0.0
    %2557 = vmatprep.subr.mxu0 0.0
    %2558 = vmatpush2.msra.mxu0 0.0
    %2559 = vmatprep.subr.mxu0 0.0
    %2560 = vmatpush2.msra.mxu0 0.0
    %2561 = vmatprep.subr.mxu0 0.0
    %2562 = vmatpush2.msra.mxu0 0.0
    %2563 = vmatprep.subr.mxu0 0.0
    %2564 = vmatpush2.msra.mxu0 0.0
    %2565 = vmatprep.subr.mxu0 0.0
    %2566 = vmatpush2.msra.mxu0 0.0
    %2567 = vmatprep.subr.mxu0 0.0
    %2568 = vmatpush2.msra.mxu0 0.0
    %2569 = vmatprep.mubr.f32.mxu0 0.0
    %2570 = vmatmul.mubr.f32.gmra.mxu0 %v2503
    %v2571 = vpop.f32.mrf.mxu0
    %v2572 = vadd.f32 0.0, %v2571
    %v2573 = vpop.f32.mrf.mxu0
    %2574 = vdwg.mxu0
    %v2575 = vpack.c.bf16 %v2572, %v2496
    %v2580 = vunpack.c.l.b16 %v1074
    %v2581 = vunpack.c.l.b16 %v1075
    %v2582 = vunpack.c.l.b16 %v1076
    %v2583 = vunpack.c.l.b16 %v1077
    %v2584 = vpack.c.b16 %v2581, %v2580
    %v2585 = vpack.c.b16 %v2583, %v2582
    %v2589 = vsel %vm1088, %v2575, 0
    %2591 = vmatprep.subr.bf16.mxu0 0
    %2592 = vmatpush1.bf16.msra.mxu0 0
    %2593 = vmatprep.subr.bf16.mxu0 0
    %2594 = vmatpush1.bf16.msra.mxu0 0
    %2595 = vmatprep.subr.bf16.mxu0 0
    %2596 = vmatpush1.bf16.msra.mxu0 0
    %2597 = vmatprep.subr.bf16.mxu0 0
    %2598 = vmatpush1.bf16.msra.mxu0 0
    %2599 = vmatprep.subr.bf16.mxu0 0
    %2600 = vmatpush1.bf16.msra.mxu0 0
    %2601 = vmatprep.subr.bf16.mxu0 0
    %2602 = vmatpush1.bf16.msra.mxu0 0
    %2603 = vmatprep.subr.bf16.mxu0 0
    %2604 = vmatpush1.bf16.msra.mxu0 %v2585
    %2605 = vmatprep.subr.bf16.mxu0 0
    %2606 = vmatpush1.bf16.msra.mxu0 %v2584
    %2607 = vmatprep.subr.bf16.mxu0 0
    %2608 = vmatpush2.bf16.msra.mxu0 0
    %2609 = vmatprep.subr.bf16.mxu0 0
    %2610 = vmatpush2.bf16.msra.mxu0 0
    %2611 = vmatprep.subr.bf16.mxu0 0
    %2612 = vmatpush2.bf16.msra.mxu0 0
    %2613 = vmatprep.subr.bf16.mxu0 0
    %2614 = vmatpush2.bf16.msra.mxu0 0
    %2615 = vmatprep.subr.bf16.mxu0 0
    %2616 = vmatpush2.bf16.msra.mxu0 0
    %2617 = vmatprep.subr.bf16.mxu0 0
    %2618 = vmatpush2.bf16.msra.mxu0 0
    %2619 = vmatprep.subr.bf16.mxu0 0
    %2620 = vmatpush2.bf16.msra.mxu0 0
    %2621 = vmatprep.subr.bf16.mxu0 0
    %2622 = vmatpush2.bf16.msra.mxu0 0
    %2623 = vmatprep.mubr.bf16.mxu0 0
    %2624 = vmatmul.mubr.bf16.gmra.mxu0 %v2589
    %v2625 = vpop.f32.mrf.mxu0
    %v2626 = vadd.f32 0.0, %v2625
    %v2627 = vpop.f32.mrf.mxu0
    %v2628 = vpop.f32.mrf.mxu0
    %v2629 = vadd.f32 0.0, %v2628
    %v2630 = vpop.f32.mrf.mxu0
    %2631 = vdwg.mxu0
    %v2632 = vadd.f32 %v2243, %v2626
    %v2633 = vadd.f32 %v2244, %v2629
    %v2634 = vld [vmem:[%s10] sm:$0x1]
    %v2636 = vlaneseq
    %v2637 = vshrl.u32 %v2636, 7
    %v2638 = vsub.s32 0, %v2637
    %v2639 = vrot.slane %v2634, %v2638
    %v2641 = vadd.f32 %v2632, %v2639
    %v2642 = vadd.f32 %v2633, %v2639
    %v2643 = vadd.f32 %v770, %v2641
    %v2644 = vadd.f32 %v771, %v2642
    %v2645 = vld [vmem:[%s11] sm:$0x1]
    %v2646 = vld [vmem:[#allocation17] sm:$0x1]
    %2647 = vadd.xlane.f32.xlu0 %v2643
    %v2648 = vpop.xlane.xlu0 %2647
    %2649 = vadd.xlane.f32.xlu0 %v2644
    %v2650 = vpop.xlane.xlu0 %2649
    %v2651 = vmul.f32 %v2648, %v737
    %v2652 = vmul.f32 %v2650, %v737
    %v2653 = vsub.f32 %v2643, %v2651
    %v2654 = vsub.f32 %v2644, %v2652
    %v2655 = vmul.f32 %v2653, %v2653
    %v2656 = vmul.f32 %v2654, %v2654
    %2657 = vadd.xlane.f32.xlu0 %v2655
    %v2658 = vpop.xlane.xlu0 %2657
    %2659 = vadd.xlane.f32.xlu0 %v2656
    %v2660 = vpop.xlane.xlu0 %2659
    %v2661 = vmul.f32 %v2658, %v737
    %v2662 = vmul.f32 %v2660, %v737
    %v2663 = vadd.f32 %v2661, 1e-12
    %v2664 = vadd.f32 %v2662, 1e-12
    %v2665 = vrsqrt.pop %v2663
    %v2666 = vrsqrt.pop %v2664
    %v2667 = vmul.f32 %v2653, %v2665
    %v2668 = vmul.f32 %v2654, %v2666
    %v2670 = vlaneseq
    %v2671 = vshrl.u32 %v2670, 7
    %v2672 = vsub.s32 0, %v2671
    %v2673 = vrot.slane %v2645, %v2672
    %v2675 = vmul.f32 %v2667, %v2673
    %v2676 = vmul.f32 %v2668, %v2673
    %v2678 = vlaneseq
    %v2679 = vshrl.u32 %v2678, 7
    %v2680 = vsub.s32 0, %v2679
    %v2681 = vrot.slane %v2646, %v2680
    %v2683 = vadd.f32 %v2675, %v2681
    %v2684 = vadd.f32 %v2676, %v2681
    %v2685 = vpack.c.bf16 %v2684, %v2683
    %v2686 = vld [vmem:[#allocation18] sm:$0xff]
    %v2687 = vld [vmem:[#allocation18 + $0x8] sm:$0xff]
    %v2688 = vld [vmem:[#allocation18 + $0x10] sm:$0xff]
    %v2689 = vld [vmem:[#allocation18 + $0x18] sm:$0xff]
    %v2690 = vld [vmem:[#allocation18 + $0x20] sm:$0xff]
    %v2691 = vld [vmem:[#allocation18 + $0x28] sm:$0xff]
    %v2692 = vld [vmem:[#allocation18 + $0x30] sm:$0xff]
    %v2693 = vld [vmem:[#allocation18 + $0x38] sm:$0xff]
    %v2694 = vld [vmem:[#allocation18 + $0x40] sm:$0xff]
    %v2695 = vld [vmem:[#allocation18 + $0x48] sm:$0xff]
    %v2696 = vld [vmem:[#allocation18 + $0x50] sm:$0xff]
    %v2697 = vld [vmem:[#allocation18 + $0x58] sm:$0xff]
    %v2698 = vld [vmem:[#allocation18 + $0x60] sm:$0xff]
    %v2699 = vld [vmem:[#allocation18 + $0x68] sm:$0xff]
    %v2700 = vld [vmem:[#allocation18 + $0x70] sm:$0xff]
    %v2701 = vld [vmem:[#allocation18 + $0x78] sm:$0xff]
    %v2702 = vld [vmem:[#allocation18 + $0x80] sm:$0xff]
    %v2703 = vld [vmem:[#allocation18 + $0x88] sm:$0xff]
    %v2704 = vld [vmem:[#allocation18 + $0x90] sm:$0xff]
    %v2705 = vld [vmem:[#allocation18 + $0x98] sm:$0xff]
    %v2706 = vld [vmem:[#allocation18 + $0xa0] sm:$0xff]
    %v2707 = vld [vmem:[#allocation18 + $0xa8] sm:$0xff]
    %v2708 = vld [vmem:[#allocation18 + $0xb0] sm:$0xff]
    %v2709 = vld [vmem:[#allocation18 + $0xb8] sm:$0xff]
    %v2710 = vld [vmem:[#allocation18 + $0xc0] sm:$0xff]
    %v2711 = vld [vmem:[#allocation18 + $0xc8] sm:$0xff]
    %v2712 = vld [vmem:[#allocation18 + $0xd0] sm:$0xff]
    %v2713 = vld [vmem:[#allocation18 + $0xd8] sm:$0xff]
    %v2714 = vld [vmem:[#allocation18 + $0xe0] sm:$0xff]
    %v2715 = vld [vmem:[#allocation18 + $0xe8] sm:$0xff]
    %v2716 = vld [vmem:[#allocation18 + $0xf0] sm:$0xff]
    %v2717 = vld [vmem:[#allocation18 + $0xf8] sm:$0xff]
    %v2718 = vld [vmem:[%s14] sm:$0xf]
    %v2720 = vlaneseq
    %v2721 = vshrl.u32 %v2720, 7
    %v2722 = vsub.s32 0, %v2721
    %v2723 = vrot.slane %v2718, %v2722
    %v2724 = vlaneseq
    %v2725 = vshrl.u32 %v2724, 7
    %v2726 = vsub.s32 1, %v2725
    %v2727 = vrot.slane %v2718, %v2726
    %v2728 = vlaneseq
    %v2729 = vshrl.u32 %v2728, 7
    %v2730 = vsub.s32 2, %v2729
    %v2731 = vrot.slane %v2718, %v2730
    %v2732 = vlaneseq
    %v2733 = vshrl.u32 %v2732, 7
    %v2734 = vsub.s32 3, %v2733
    %v2735 = vrot.slane %v2718, %v2734
    %v2772 = vunpack.c.l.b16 %v2686
    %v2773 = vunpack.c.h.b16 %v2686
    %v2774 = vunpack.c.l.b16 %v2687
    %v2775 = vunpack.c.h.b16 %v2687
    %v2776 = vunpack.c.l.b16 %v2688
    %v2777 = vunpack.c.h.b16 %v2688
    %v2778 = vunpack.c.l.b16 %v2689
    %v2779 = vunpack.c.h.b16 %v2689
    %v2780 = vunpack.c.l.b16 %v2690
    %v2781 = vunpack.c.h.b16 %v2690
    %v2782 = vunpack.c.l.b16 %v2691
    %v2783 = vunpack.c.h.b16 %v2691
    %v2784 = vunpack.c.l.b16 %v2692
    %v2785 = vunpack.c.h.b16 %v2692
    %v2786 = vunpack.c.l.b16 %v2693
    %v2787 = vunpack.c.h.b16 %v2693
    %v2788 = vunpack.c.l.b16 %v2694
    %v2789 = vunpack.c.h.b16 %v2694
    %v2790 = vunpack.c.l.b16 %v2695
    %v2791 = vunpack.c.h.b16 %v2695
    %v2792 = vunpack.c.l.b16 %v2696
    %v2793 = vunpack.c.h.b16 %v2696
    %v2794 = vunpack.c.l.b16 %v2697
    %v2795 = vunpack.c.h.b16 %v2697
    %v2796 = vunpack.c.l.b16 %v2698
    %v2797 = vunpack.c.h.b16 %v2698
    %v2798 = vunpack.c.l.b16 %v2699
    %v2799 = vunpack.c.h.b16 %v2699
    %v2800 = vunpack.c.l.b16 %v2700
    %v2801 = vunpack.c.h.b16 %v2700
    %v2802 = vunpack.c.l.b16 %v2701
    %v2803 = vunpack.c.h.b16 %v2701
    %v2804 = vunpack.c.l.b16 %v2702
    %v2805 = vunpack.c.h.b16 %v2702
    %v2806 = vunpack.c.l.b16 %v2703
    %v2807 = vunpack.c.h.b16 %v2703
    %v2808 = vunpack.c.l.b16 %v2704
    %v2809 = vunpack.c.h.b16 %v2704
    %v2810 = vunpack.c.l.b16 %v2705
    %v2811 = vunpack.c.h.b16 %v2705
    %v2812 = vunpack.c.l.b16 %v2706
    %v2813 = vunpack.c.h.b16 %v2706
    %v2814 = vunpack.c.l.b16 %v2707
    %v2815 = vunpack.c.h.b16 %v2707
    %v2816 = vunpack.c.l.b16 %v2708
    %v2817 = vunpack.c.h.b16 %v2708
    %v2818 = vunpack.c.l.b16 %v2709
    %v2819 = vunpack.c.h.b16 %v2709
    %v2820 = vunpack.c.l.b16 %v2710
    %v2821 = vunpack.c.h.b16 %v2710
    %v2822 = vunpack.c.l.b16 %v2711
    %v2823 = vunpack.c.h.b16 %v2711
    %v2824 = vunpack.c.l.b16 %v2712
    %v2825 = vunpack.c.h.b16 %v2712
    %v2826 = vunpack.c.l.b16 %v2713
    %v2827 = vunpack.c.h.b16 %v2713
    %v2828 = vunpack.c.l.b16 %v2714
    %v2829 = vunpack.c.h.b16 %v2714
    %v2830 = vunpack.c.l.b16 %v2715
    %v2831 = vunpack.c.h.b16 %v2715
    %v2832 = vunpack.c.l.b16 %v2716
    %v2833 = vunpack.c.h.b16 %v2716
    %v2834 = vunpack.c.l.b16 %v2717
    %v2835 = vunpack.c.h.b16 %v2717
    %v2836 = vpack.c.b16 %v2776, %v2772
    %v2837 = vpack.c.b16 %v2777, %v2773
    %v2838 = vpack.c.b16 %v2778, %v2774
    %v2839 = vpack.c.b16 %v2779, %v2775
    %v2840 = vpack.c.b16 %v2784, %v2780
    %v2841 = vpack.c.b16 %v2785, %v2781
    %v2842 = vpack.c.b16 %v2786, %v2782
    %v2843 = vpack.c.b16 %v2787, %v2783
    %v2844 = vpack.c.b16 %v2792, %v2788
    %v2845 = vpack.c.b16 %v2793, %v2789
    %v2846 = vpack.c.b16 %v2794, %v2790
    %v2847 = vpack.c.b16 %v2795, %v2791
    %v2848 = vpack.c.b16 %v2800, %v2796
    %v2849 = vpack.c.b16 %v2801, %v2797
    %v2850 = vpack.c.b16 %v2802, %v2798
    %v2851 = vpack.c.b16 %v2803, %v2799
    %v2852 = vpack.c.b16 %v2808, %v2804
    %v2853 = vpack.c.b16 %v2809, %v2805
    %v2854 = vpack.c.b16 %v2810, %v2806
    %v2855 = vpack.c.b16 %v2811, %v2807
    %v2856 = vpack.c.b16 %v2816, %v2812
    %v2857 = vpack.c.b16 %v2817, %v2813
    %v2858 = vpack.c.b16 %v2818, %v2814
    %v2859 = vpack.c.b16 %v2819, %v2815
    %v2860 = vpack.c.b16 %v2824, %v2820
    %v2861 = vpack.c.b16 %v2825, %v2821
    %v2862 = vpack.c.b16 %v2826, %v2822
    %v2863 = vpack.c.b16 %v2827, %v2823
    %v2864 = vpack.c.b16 %v2832, %v2828
    %v2865 = vpack.c.b16 %v2833, %v2829
    %v2866 = vpack.c.b16 %v2834, %v2830
    %v2867 = vpack.c.b16 %v2835, %v2831
    %2900 = vmatprep.subr.bf16.mxu0 %v2865
    %2901 = vmatpush1.bf16.msra.mxu0 %v2864
    %2902 = vmatprep.subr.bf16.mxu0 %v2861
    %2903 = vmatpush1.bf16.msra.mxu0 %v2860
    %2904 = vmatprep.subr.bf16.mxu0 %v2857
    %2905 = vmatpush1.bf16.msra.mxu0 %v2856
    %2906 = vmatprep.subr.bf16.mxu0 %v2853
    %2907 = vmatpush1.bf16.msra.mxu0 %v2852
    %2908 = vmatprep.subr.bf16.mxu0 %v2849
    %2909 = vmatpush1.bf16.msra.mxu0 %v2848
    %2910 = vmatprep.subr.bf16.mxu0 %v2845
    %2911 = vmatpush1.bf16.msra.mxu0 %v2844
    %2912 = vmatprep.subr.bf16.mxu0 %v2841
    %2913 = vmatpush1.bf16.msra.mxu0 %v2840
    %2914 = vmatprep.subr.bf16.mxu0 %v2837
    %2915 = vmatpush1.bf16.msra.mxu0 %v2836
    %2916 = vmatprep.subr.bf16.mxu0 0
    %2917 = vmatpush2.bf16.msra.mxu0 0
    %2918 = vmatprep.subr.bf16.mxu0 0
    %2919 = vmatpush2.bf16.msra.mxu0 0
    %2920 = vmatprep.subr.bf16.mxu0 0
    %2921 = vmatpush2.bf16.msra.mxu0 0
    %2922 = vmatprep.subr.bf16.mxu0 0
    %2923 = vmatpush2.bf16.msra.mxu0 0
    %2924 = vmatprep.subr.bf16.mxu0 0
    %2925 = vmatpush2.bf16.msra.mxu0 0
    %2926 = vmatprep.subr.bf16.mxu0 0
    %2927 = vmatpush2.bf16.msra.mxu0 0
    %2928 = vmatprep.subr.bf16.mxu0 0
    %2929 = vmatpush2.bf16.msra.mxu0 0
    %2930 = vmatprep.subr.bf16.mxu0 0
    %2931 = vmatpush2.bf16.msra.mxu0 0
    %2932 = vmatprep.mubr.bf16.mxu0 0
    %2933 = vmatmul.mubr.bf16.gmra.mxu0 %v2685
    %v2934 = vpop.f32.mrf.mxu0
    %v2935 = vadd.f32 %v2723, %v2934
    %v2936 = vpop.f32.mrf.mxu0
    %v2937 = vadd.f32 %v2727, %v2936
    %v2938 = vpop.f32.mrf.mxu0
    %v2939 = vadd.f32 %v2723, %v2938
    %v2940 = vpop.f32.mrf.mxu0
    %v2941 = vadd.f32 %v2727, %v2940
    %2942 = vdwg.mxu0
    %2943 = vmatprep.subr.bf16.mxu0 %v2867
    %2944 = vmatpush1.bf16.msra.mxu0 %v2866
    %2945 = vmatprep.subr.bf16.mxu0 %v2863
    %2946 = vmatpush1.bf16.msra.mxu0 %v2862
    %2947 = vmatprep.subr.bf16.mxu0 %v2859
    %2948 = vmatpush1.bf16.msra.mxu0 %v2858
    %2949 = vmatprep.subr.bf16.mxu0 %v2855
    %2950 = vmatpush1.bf16.msra.mxu0 %v2854
    %2951 = vmatprep.subr.bf16.mxu0 %v2851
    %2952 = vmatpush1.bf16.msra.mxu0 %v2850
    %2953 = vmatprep.subr.bf16.mxu0 %v2847
    %2954 = vmatpush1.bf16.msra.mxu0 %v2846
    %2955 = vmatprep.subr.bf16.mxu0 %v2843
    %2956 = vmatpush1.bf16.msra.mxu0 %v2842
    %2957 = vmatprep.subr.bf16.mxu0 %v2839
    %2958 = vmatpush1.bf16.msra.mxu0 %v2838
    %2959 = vmatprep.subr.bf16.mxu0 0
    %2960 = vmatpush2.bf16.msra.mxu0 0
    %2961 = vmatprep.subr.bf16.mxu0 0
    %2962 = vmatpush2.bf16.msra.mxu0 0
    %2963 = vmatprep.subr.bf16.mxu0 0
    %2964 = vmatpush2.bf16.msra.mxu0 0
    %2965 = vmatprep.subr.bf16.mxu0 0
    %2966 = vmatpush2.bf16.msra.mxu0 0
    %2967 = vmatprep.subr.bf16.mxu0 0
    %2968 = vmatpush2.bf16.msra.mxu0 0
    %2969 = vmatprep.subr.bf16.mxu0 0
    %2970 = vmatpush2.bf16.msra.mxu0 0
    %2971 = vmatprep.subr.bf16.mxu0 0
    %2972 = vmatpush2.bf16.msra.mxu0 0
    %2973 = vmatprep.subr.bf16.mxu0 0
    %2974 = vmatpush2.bf16.msra.mxu0 0
    %2975 = vmatprep.mubr.bf16.mxu0 0
    %2976 = vmatmul.mubr.bf16.gmra.mxu0 %v2685
    %v2977 = vpop.f32.mrf.mxu0
    %v2978 = vadd.f32 %v2731, %v2977
    %v2979 = vpop.f32.mrf.mxu0
    %v2980 = vadd.f32 %v2735, %v2979
    %v2981 = vpop.f32.mrf.mxu0
    %v2982 = vadd.f32 %v2731, %v2981
    %v2983 = vpop.f32.mrf.mxu0
    %v2984 = vadd.f32 %v2735, %v2983
    %2985 = vdwg.mxu0
    %v2986 = vmul.f32 %v2935, %v2935
    %v2987 = vmul.f32 %v2937, %v2937
    %v2988 = vmul.f32 %v2978, %v2978
    %v2989 = vmul.f32 %v2980, %v2980
    %v2990 = vmul.f32 %v2939, %v2939
    %v2991 = vmul.f32 %v2941, %v2941
    %v2992 = vmul.f32 %v2982, %v2982
    %v2993 = vmul.f32 %v2984, %v2984
    %v2994 = vmul.f32 %v2935, %v2986
    %v2995 = vmul.f32 %v2937, %v2987
    %v2996 = vmul.f32 %v2978, %v2988
    %v2997 = vmul.f32 %v2980, %v2989
    %v2998 = vmul.f32 %v2939, %v2990
    %v2999 = vmul.f32 %v2941, %v2991
    %v3000 = vmul.f32 %v2982, %v2992
    %v3001 = vmul.f32 %v2984, %v2993
    %v3002 = vmul.f32 %v2994, 0.044715
    %v3003 = vmul.f32 %v2995, 0.044715
    %v3004 = vmul.f32 %v2996, 0.044715
    %v3005 = vmul.f32 %v2997, 0.044715
    %v3006 = vmul.f32 %v2998, 0.044715
    %v3007 = vmul.f32 %v2999, 0.044715
    %v3008 = vmul.f32 %v3000, 0.044715
    %v3009 = vmul.f32 %v3001, 0.044715
    %v3010 = vadd.f32 %v2935, %v3002
    %v3011 = vadd.f32 %v2937, %v3003
    %v3012 = vadd.f32 %v2978, %v3004
    %v3013 = vadd.f32 %v2980, %v3005
    %v3014 = vadd.f32 %v2939, %v3006
    %v3015 = vadd.f32 %v2941, %v3007
    %v3016 = vadd.f32 %v2982, %v3008
    %v3017 = vadd.f32 %v2984, %v3009
    %v3018 = vmul.f32 %v3010, 0.7978846
    %v3019 = vmul.f32 %v3011, 0.7978846
    %v3020 = vmul.f32 %v3012, 0.7978846
    %v3021 = vmul.f32 %v3013, 0.7978846
    %v3022 = vmul.f32 %v3014, 0.7978846
    %v3023 = vmul.f32 %v3015, 0.7978846
    %v3024 = vmul.f32 %v3016, 0.7978846
    %v3025 = vmul.f32 %v3017, 0.7978846
    %v3026 = vtanh.pop %v3018
    %v3027 = vtanh.pop %v3019
    %v3028 = vtanh.pop %v3020
    %v3029 = vtanh.pop %v3021
    %v3030 = vtanh.pop %v3022
    %v3031 = vtanh.pop %v3023
    %v3032 = vtanh.pop %v3024
    %v3033 = vtanh.pop %v3025
    %v3034 = vadd.f32 %v3026, 1.0
    %v3035 = vadd.f32 %v3027, 1.0
    %v3036 = vadd.f32 %v3028, 1.0
    %v3037 = vadd.f32 %v3029, 1.0
    %v3038 = vadd.f32 %v3030, 1.0
    %v3039 = vadd.f32 %v3031, 1.0
    %v3040 = vadd.f32 %v3032, 1.0
    %v3041 = vadd.f32 %v3033, 1.0
    %v3042 = vmul.f32 %v3034, 0.5
    %v3043 = vmul.f32 %v3035, 0.5
    %v3044 = vmul.f32 %v3036, 0.5
    %v3045 = vmul.f32 %v3037, 0.5
    %v3046 = vmul.f32 %v3038, 0.5
    %v3047 = vmul.f32 %v3039, 0.5
    %v3048 = vmul.f32 %v3040, 0.5
    %v3049 = vmul.f32 %v3041, 0.5
    %v3050 = vmul.f32 %v2935, %v3042
    %v3051 = vmul.f32 %v2937, %v3043
    %v3052 = vmul.f32 %v2978, %v3044
    %v3053 = vmul.f32 %v2980, %v3045
    %v3054 = vmul.f32 %v2939, %v3046
    %v3055 = vmul.f32 %v2941, %v3047
    %v3056 = vmul.f32 %v2982, %v3048
    %v3057 = vmul.f32 %v2984, %v3049
    %v3058 = vpack.c.bf16 %v3054, %v3050
    %v3059 = vpack.c.bf16 %v3055, %v3051
    %v3060 = vpack.c.bf16 %v3056, %v3052
    %v3061 = vpack.c.bf16 %v3057, %v3053
    %v3062 = vld [vmem:[#allocation20] sm:$0xf]
    %v3063 = vld [vmem:[#allocation20 + $0x4] sm:$0xf]
    %v3064 = vld [vmem:[#allocation20 + $0x8] sm:$0xf]
    %v3065 = vld [vmem:[#allocation20 + $0xc] sm:$0xf]
    %v3066 = vld [vmem:[#allocation20 + $0x10] sm:$0xf]
    %v3067 = vld [vmem:[#allocation20 + $0x14] sm:$0xf]
    %v3068 = vld [vmem:[#allocation20 + $0x18] sm:$0xf]
    %v3069 = vld [vmem:[#allocation20 + $0x1c] sm:$0xf]
    %v3070 = vld [vmem:[#allocation20 + $0x20] sm:$0xf]
    %v3071 = vld [vmem:[#allocation20 + $0x24] sm:$0xf]
    %v3072 = vld [vmem:[#allocation20 + $0x28] sm:$0xf]
    %v3073 = vld [vmem:[#allocation20 + $0x2c] sm:$0xf]
    %v3074 = vld [vmem:[#allocation20 + $0x30] sm:$0xf]
    %v3075 = vld [vmem:[#allocation20 + $0x34] sm:$0xf]
    %v3076 = vld [vmem:[#allocation20 + $0x38] sm:$0xf]
    %v3077 = vld [vmem:[#allocation20 + $0x3c] sm:$0xf]
    %v3078 = vld [vmem:[#allocation20 + $0x40] sm:$0xf]
    %v3079 = vld [vmem:[#allocation20 + $0x44] sm:$0xf]
    %v3080 = vld [vmem:[#allocation20 + $0x48] sm:$0xf]
    %v3081 = vld [vmem:[#allocation20 + $0x4c] sm:$0xf]
    %v3082 = vld [vmem:[#allocation20 + $0x50] sm:$0xf]
    %v3083 = vld [vmem:[#allocation20 + $0x54] sm:$0xf]
    %v3084 = vld [vmem:[#allocation20 + $0x58] sm:$0xf]
    %v3085 = vld [vmem:[#allocation20 + $0x5c] sm:$0xf]
    %v3086 = vld [vmem:[#allocation20 + $0x60] sm:$0xf]
    %v3087 = vld [vmem:[#allocation20 + $0x64] sm:$0xf]
    %v3088 = vld [vmem:[#allocation20 + $0x68] sm:$0xf]
    %v3089 = vld [vmem:[#allocation20 + $0x6c] sm:$0xf]
    %v3090 = vld [vmem:[#allocation20 + $0x70] sm:$0xf]
    %v3091 = vld [vmem:[#allocation20 + $0x74] sm:$0xf]
    %v3092 = vld [vmem:[#allocation20 + $0x78] sm:$0xf]
    %v3093 = vld [vmem:[#allocation20 + $0x7c] sm:$0xf]
    %v3094 = vld [vmem:[#allocation20 + $0x80] sm:$0xf]
    %v3095 = vld [vmem:[#allocation20 + $0x84] sm:$0xf]
    %v3096 = vld [vmem:[#allocation20 + $0x88] sm:$0xf]
    %v3097 = vld [vmem:[#allocation20 + $0x8c] sm:$0xf]
    %v3098 = vld [vmem:[#allocation20 + $0x90] sm:$0xf]
    %v3099 = vld [vmem:[#allocation20 + $0x94] sm:$0xf]
    %v3100 = vld [vmem:[#allocation20 + $0x98] sm:$0xf]
    %v3101 = vld [vmem:[#allocation20 + $0x9c] sm:$0xf]
    %v3102 = vld [vmem:[#allocation20 + $0xa0] sm:$0xf]
    %v3103 = vld [vmem:[#allocation20 + $0xa4] sm:$0xf]
    %v3104 = vld [vmem:[#allocation20 + $0xa8] sm:$0xf]
    %v3105 = vld [vmem:[#allocation20 + $0xac] sm:$0xf]
    %v3106 = vld [vmem:[#allocation20 + $0xb0] sm:$0xf]
    %v3107 = vld [vmem:[#allocation20 + $0xb4] sm:$0xf]
    %v3108 = vld [vmem:[#allocation20 + $0xb8] sm:$0xf]
    %v3109 = vld [vmem:[#allocation20 + $0xbc] sm:$0xf]
    %v3110 = vld [vmem:[#allocation20 + $0xc0] sm:$0xf]
    %v3111 = vld [vmem:[#allocation20 + $0xc4] sm:$0xf]
    %v3112 = vld [vmem:[#allocation20 + $0xc8] sm:$0xf]
    %v3113 = vld [vmem:[#allocation20 + $0xcc] sm:$0xf]
    %v3114 = vld [vmem:[#allocation20 + $0xd0] sm:$0xf]
    %v3115 = vld [vmem:[#allocation20 + $0xd4] sm:$0xf]
    %v3116 = vld [vmem:[#allocation20 + $0xd8] sm:$0xf]
    %v3117 = vld [vmem:[#allocation20 + $0xdc] sm:$0xf]
    %v3118 = vld [vmem:[#allocation20 + $0xe0] sm:$0xf]
    %v3119 = vld [vmem:[#allocation20 + $0xe4] sm:$0xf]
    %v3120 = vld [vmem:[#allocation20 + $0xe8] sm:$0xf]
    %v3121 = vld [vmem:[#allocation20 + $0xec] sm:$0xf]
    %v3122 = vld [vmem:[#allocation20 + $0xf0] sm:$0xf]
    %v3123 = vld [vmem:[#allocation20 + $0xf4] sm:$0xf]
    %v3124 = vld [vmem:[#allocation20 + $0xf8] sm:$0xf]
    %v3125 = vld [vmem:[#allocation20 + $0xfc] sm:$0xf]
    %v3126 = vld [vmem:[%s16] sm:$0x1]
    %v3128 = vlaneseq
    %v3129 = vshrl.u32 %v3128, 7
    %v3130 = vsub.s32 0, %v3129
    %v3131 = vrot.slane %v3126, %v3130
    %v3197 = vunpack.c.l.b16 %v3062
    %v3198 = vunpack.c.l.b16 %v3063
    %v3199 = vunpack.c.l.b16 %v3064
    %v3200 = vunpack.c.l.b16 %v3065
    %v3201 = vunpack.c.l.b16 %v3066
    %v3202 = vunpack.c.l.b16 %v3067
    %v3203 = vunpack.c.l.b16 %v3068
    %v3204 = vunpack.c.l.b16 %v3069
    %v3205 = vunpack.c.l.b16 %v3070
    %v3206 = vunpack.c.l.b16 %v3071
    %v3207 = vunpack.c.l.b16 %v3072
    %v3208 = vunpack.c.l.b16 %v3073
    %v3209 = vunpack.c.l.b16 %v3074
    %v3210 = vunpack.c.l.b16 %v3075
    %v3211 = vunpack.c.l.b16 %v3076
    %v3212 = vunpack.c.l.b16 %v3077
    %v3213 = vunpack.c.l.b16 %v3078
    %v3214 = vunpack.c.l.b16 %v3079
    %v3215 = vunpack.c.l.b16 %v3080
    %v3216 = vunpack.c.l.b16 %v3081
    %v3217 = vunpack.c.l.b16 %v3082
    %v3218 = vunpack.c.l.b16 %v3083
    %v3219 = vunpack.c.l.b16 %v3084
    %v3220 = vunpack.c.l.b16 %v3085
    %v3221 = vunpack.c.l.b16 %v3086
    %v3222 = vunpack.c.l.b16 %v3087
    %v3223 = vunpack.c.l.b16 %v3088
    %v3224 = vunpack.c.l.b16 %v3089
    %v3225 = vunpack.c.l.b16 %v3090
    %v3226 = vunpack.c.l.b16 %v3091
    %v3227 = vunpack.c.l.b16 %v3092
    %v3228 = vunpack.c.l.b16 %v3093
    %v3229 = vunpack.c.l.b16 %v3094
    %v3230 = vunpack.c.l.b16 %v3095
    %v3231 = vunpack.c.l.b16 %v3096
    %v3232 = vunpack.c.l.b16 %v3097
    %v3233 = vunpack.c.l.b16 %v3098
    %v3234 = vunpack.c.l.b16 %v3099
    %v3235 = vunpack.c.l.b16 %v3100
    %v3236 = vunpack.c.l.b16 %v3101
    %v3237 = vunpack.c.l.b16 %v3102
    %v3238 = vunpack.c.l.b16 %v3103
    %v3239 = vunpack.c.l.b16 %v3104
    %v3240 = vunpack.c.l.b16 %v3105
    %v3241 = vunpack.c.l.b16 %v3106
    %v3242 = vunpack.c.l.b16 %v3107
    %v3243 = vunpack.c.l.b16 %v3108
    %v3244 = vunpack.c.l.b16 %v3109
    %v3245 = vunpack.c.l.b16 %v3110
    %v3246 = vunpack.c.l.b16 %v3111
    %v3247 = vunpack.c.l.b16 %v3112
    %v3248 = vunpack.c.l.b16 %v3113
    %v3249 = vunpack.c.l.b16 %v3114
    %v3250 = vunpack.c.l.b16 %v3115
    %v3251 = vunpack.c.l.b16 %v3116
    %v3252 = vunpack.c.l.b16 %v3117
    %v3253 = vunpack.c.l.b16 %v3118
    %v3254 = vunpack.c.l.b16 %v3119
    %v3255 = vunpack.c.l.b16 %v3120
    %v3256 = vunpack.c.l.b16 %v3121
    %v3257 = vunpack.c.l.b16 %v3122
    %v3258 = vunpack.c.l.b16 %v3123
    %v3259 = vunpack.c.l.b16 %v3124
    %v3260 = vunpack.c.l.b16 %v3125
    %v3261 = vpack.c.b16 %v3198, %v3197
    %v3262 = vpack.c.b16 %v3200, %v3199
    %v3263 = vpack.c.b16 %v3202, %v3201
    %v3264 = vpack.c.b16 %v3204, %v3203
    %v3265 = vpack.c.b16 %v3206, %v3205
    %v3266 = vpack.c.b16 %v3208, %v3207
    %v3267 = vpack.c.b16 %v3210, %v3209
    %v3268 = vpack.c.b16 %v3212, %v3211
    %v3269 = vpack.c.b16 %v3214, %v3213
    %v3270 = vpack.c.b16 %v3216, %v3215
    %v3271 = vpack.c.b16 %v3218, %v3217
    %v3272 = vpack.c.b16 %v3220, %v3219
    %v3273 = vpack.c.b16 %v3222, %v3221
    %v3274 = vpack.c.b16 %v3224, %v3223
    %v3275 = vpack.c.b16 %v3226, %v3225
    %v3276 = vpack.c.b16 %v3228, %v3227
    %v3277 = vpack.c.b16 %v3230, %v3229
    %v3278 = vpack.c.b16 %v3232, %v3231
    %v3279 = vpack.c.b16 %v3234, %v3233
    %v3280 = vpack.c.b16 %v3236, %v3235
    %v3281 = vpack.c.b16 %v3238, %v3237
    %v3282 = vpack.c.b16 %v3240, %v3239
    %v3283 = vpack.c.b16 %v3242, %v3241
    %v3284 = vpack.c.b16 %v3244, %v3243
    %v3285 = vpack.c.b16 %v3246, %v3245
    %v3286 = vpack.c.b16 %v3248, %v3247
    %v3287 = vpack.c.b16 %v3250, %v3249
    %v3288 = vpack.c.b16 %v3252, %v3251
    %v3289 = vpack.c.b16 %v3254, %v3253
    %v3290 = vpack.c.b16 %v3256, %v3255
    %v3291 = vpack.c.b16 %v3258, %v3257
    %v3292 = vpack.c.b16 %v3260, %v3259
    %3325 = vmatprep.subr.bf16.mxu0 0
    %3326 = vmatpush1.bf16.msra.mxu0 %v3268
    %3327 = vmatprep.subr.bf16.mxu0 0
    %3328 = vmatpush1.bf16.msra.mxu0 %v3267
    %3329 = vmatprep.subr.bf16.mxu0 0
    %3330 = vmatpush1.bf16.msra.mxu0 %v3266
    %3331 = vmatprep.subr.bf16.mxu0 0
    %3332 = vmatpush1.bf16.msra.mxu0 %v3265
    %3333 = vmatprep.subr.bf16.mxu0 0
    %3334 = vmatpush1.bf16.msra.mxu0 %v3264
    %3335 = vmatprep.subr.bf16.mxu0 0
    %3336 = vmatpush1.bf16.msra.mxu0 %v3263
    %3337 = vmatprep.subr.bf16.mxu0 0
    %3338 = vmatpush1.bf16.msra.mxu0 %v3262
    %3339 = vmatprep.subr.bf16.mxu0 0
    %3340 = vmatpush1.bf16.msra.mxu0 %v3261
    %3341 = vmatprep.subr.bf16.mxu0 0
    %3342 = vmatpush2.bf16.msra.mxu0 %v3276
    %3343 = vmatprep.subr.bf16.mxu0 0
    %3344 = vmatpush2.bf16.msra.mxu0 %v3275
    %3345 = vmatprep.subr.bf16.mxu0 0
    %3346 = vmatpush2.bf16.msra.mxu0 %v3274
    %3347 = vmatprep.subr.bf16.mxu0 0
    %3348 = vmatpush2.bf16.msra.mxu0 %v3273
    %3349 = vmatprep.subr.bf16.mxu0 0
    %3350 = vmatpush2.bf16.msra.mxu0 %v3272
    %3351 = vmatprep.subr.bf16.mxu0 0
    %3352 = vmatpush2.bf16.msra.mxu0 %v3271
    %3353 = vmatprep.subr.bf16.mxu0 0
    %3354 = vmatpush2.bf16.msra.mxu0 %v3270
    %3355 = vmatprep.subr.bf16.mxu0 0
    %3356 = vmatpush2.bf16.msra.mxu0 %v3269
    %3357 = vmatprep.mubr.bf16.mxu0 %v3059
    %3358 = vmatmul.mubr.bf16.gmra.mxu0 %v3058
    %v3359 = vpop.f32.mrf.mxu0
    %v3360 = vadd.f32 %v3131, %v3359
    %v3361 = vpop.f32.mrf.mxu0
    %v3362 = vpop.f32.mrf.mxu0
    %v3363 = vadd.f32 %v3131, %v3362
    %v3364 = vpop.f32.mrf.mxu0
    %3365 = vdwg.mxu0
    %3366 = vmatprep.subr.bf16.mxu0 0
    %3367 = vmatpush1.bf16.msra.mxu0 %v3284
    %3368 = vmatprep.subr.bf16.mxu0 0
    %3369 = vmatpush1.bf16.msra.mxu0 %v3283
    %3370 = vmatprep.subr.bf16.mxu0 0
    %3371 = vmatpush1.bf16.msra.mxu0 %v3282
    %3372 = vmatprep.subr.bf16.mxu0 0
    %3373 = vmatpush1.bf16.msra.mxu0 %v3281
    %3374 = vmatprep.subr.bf16.mxu0 0
    %3375 = vmatpush1.bf16.msra.mxu0 %v3280
    %3376 = vmatprep.subr.bf16.mxu0 0
    %3377 = vmatpush1.bf16.msra.mxu0 %v3279
    %3378 = vmatprep.subr.bf16.mxu0 0
    %3379 = vmatpush1.bf16.msra.mxu0 %v3278
    %3380 = vmatprep.subr.bf16.mxu0 0
    %3381 = vmatpush1.bf16.msra.mxu0 %v3277
    %3382 = vmatprep.subr.bf16.mxu0 0
    %3383 = vmatpush2.bf16.msra.mxu0 %v3292
    %3384 = vmatprep.subr.bf16.mxu0 0
    %3385 = vmatpush2.bf16.msra.mxu0 %v3291
    %3386 = vmatprep.subr.bf16.mxu0 0
    %3387 = vmatpush2.bf16.msra.mxu0 %v3290
    %3388 = vmatprep.subr.bf16.mxu0 0
    %3389 = vmatpush2.bf16.msra.mxu0 %v3289
    %3390 = vmatprep.subr.bf16.mxu0 0
    %3391 = vmatpush2.bf16.msra.mxu0 %v3288
    %3392 = vmatprep.subr.bf16.mxu0 0
    %3393 = vmatpush2.bf16.msra.mxu0 %v3287
    %3394 = vmatprep.subr.bf16.mxu0 0
    %3395 = vmatpush2.bf16.msra.mxu0 %v3286
    %3396 = vmatprep.subr.bf16.mxu0 0
    %3397 = vmatpush2.bf16.msra.mxu0 %v3285
    %3398 = vmatprep.mubr.bf16.mxu0 %v3061
    %3399 = vmatmul.mubr.bf16.gmra.mxu0 %v3060
    %v3400 = vpop.f32.mrf.mxu0
    %v3401 = vadd.f32 %v3360, %v3400
    %v3402 = vpop.f32.mrf.mxu0
    %v3403 = vpop.f32.mrf.mxu0
    %v3404 = vadd.f32 %v3363, %v3403
    %v3405 = vpop.f32.mrf.mxu0
    %3406 = vdwg.mxu0
    %v3407 = vadd.f32 %v2683, %v3401
    %v3408 = vadd.f32 %v2684, %v3404
    %v3409 = vld [vmem:[%s17] sm:$0x1]
    %v3410 = vld [vmem:[%s18] sm:$0x1]
    %3411 = vadd.xlane.f32.xlu0 %v3407
    %v3412 = vpop.xlane.xlu0 %3411
    %3413 = vadd.xlane.f32.xlu0 %v3408
    %v3414 = vpop.xlane.xlu0 %3413
    %v3415 = vmul.f32 %v3412, %v737
    %v3416 = vmul.f32 %v3414, %v737
    %v3417 = vsub.f32 %v3407, %v3415
    %v3418 = vsub.f32 %v3408, %v3416
    %v3419 = vmul.f32 %v3417, %v3417
    %v3420 = vmul.f32 %v3418, %v3418
    %3421 = vadd.xlane.f32.xlu0 %v3419
    %v3422 = vpop.xlane.xlu0 %3421
    %3423 = vadd.xlane.f32.xlu0 %v3420
    %v3424 = vpop.xlane.xlu0 %3423
    %v3425 = vmul.f32 %v3422, %v737
    %v3426 = vmul.f32 %v3424, %v737
    %v3427 = vadd.f32 %v3425, 1e-12
    %v3428 = vadd.f32 %v3426, 1e-12
    %v3429 = vrsqrt.pop %v3427
    %v3430 = vrsqrt.pop %v3428
    %v3431 = vmul.f32 %v3417, %v3429
    %v3432 = vmul.f32 %v3418, %v3430
    %v3434 = vlaneseq
    %v3435 = vshrl.u32 %v3434, 7
    %v3436 = vsub.s32 0, %v3435
    %v3437 = vrot.slane %v3409, %v3436
    %v3439 = vmul.f32 %v3431, %v3437
    %v3440 = vmul.f32 %v3432, %v3437
    %v3442 = vlaneseq
    %v3443 = vshrl.u32 %v3442, 7
    %v3444 = vsub.s32 0, %v3443
    %v3445 = vrot.slane %v3410, %v3444
    %v3447 = vadd.f32 %v3439, %v3445
    %v3448 = vadd.f32 %v3440, %v3445
    %s3449 = scalar_lea.vmem [#allocation25], 16
    %3450 = vst [vmem:[%s3449] sm:$0xff] %v3447
    %3451 = vst [vmem:[%s3449 + $0x8] sm:$0xff] %v3448
    %v3452 = vpack.c.bf16 %v3448, %v3447
    %s3453 = scalar_lea.vmem [#allocation14], 192
    %v3454 = vld [vmem:[%s3453] sm:$0xff]
    %v3455 = vld [vmem:[%s3453 + $0x8] sm:$0xf]
    %v3456 = vld [vmem:[%s3453 + $0xc] sm:$0xff]
    %v3457 = vld [vmem:[%s3453 + $0x14] sm:$0xf]
    %v3458 = vld [vmem:[%s3453 + $0x18] sm:$0xff]
    %v3459 = vld [vmem:[%s3453 + $0x20] sm:$0xf]
    %v3460 = vld [vmem:[%s3453 + $0x24] sm:$0xff]
    %v3461 = vld [vmem:[%s3453 + $0x2c] sm:$0xf]
    %v3462 = vld [vmem:[%s3453 + $0x30] sm:$0xff]
    %v3463 = vld [vmem:[%s3453 + $0x38] sm:$0xf]
    %v3464 = vld [vmem:[%s3453 + $0x3c] sm:$0xff]
    %v3465 = vld [vmem:[%s3453 + $0x44] sm:$0xf]
    %v3466 = vld [vmem:[%s3453 + $0x48] sm:$0xff]
    %v3467 = vld [vmem:[%s3453 + $0x50] sm:$0xf]
    %v3468 = vld [vmem:[%s3453 + $0x54] sm:$0xff]
    %v3469 = vld [vmem:[%s3453 + $0x5c] sm:$0xf]
    %v3470 = vld [vmem:[%s3453 + $0x60] sm:$0xff]
    %v3471 = vld [vmem:[%s3453 + $0x68] sm:$0xf]
    %v3472 = vld [vmem:[%s3453 + $0x6c] sm:$0xff]
    %v3473 = vld [vmem:[%s3453 + $0x74] sm:$0xf]
    %v3474 = vld [vmem:[%s3453 + $0x78] sm:$0xff]
    %v3475 = vld [vmem:[%s3453 + $0x80] sm:$0xf]
    %v3476 = vld [vmem:[%s3453 + $0x84] sm:$0xff]
    %v3477 = vld [vmem:[%s3453 + $0x8c] sm:$0xf]
    %v3478 = vld [vmem:[%s3453 + $0x90] sm:$0xff]
    %v3479 = vld [vmem:[%s3453 + $0x98] sm:$0xf]
    %v3480 = vld [vmem:[%s3453 + $0x9c] sm:$0xff]
    %v3481 = vld [vmem:[%s3453 + $0xa4] sm:$0xf]
    %v3482 = vld [vmem:[%s3453 + $0xa8] sm:$0xff]
    %v3483 = vld [vmem:[%s3453 + $0xb0] sm:$0xf]
    %v3484 = vld [vmem:[%s3453 + $0xb4] sm:$0xff]
    %v3485 = vld [vmem:[%s3453 + $0xbc] sm:$0xf]
    %s3486 = scalar_lea.vmem %s8, 3
    %v3487 = vld [vmem:[%s3486] sm:$0x7]
    %v3489 = vlaneseq
    %v3490 = vshrl.u32 %v3489, 7
    %v3491 = vsub.s32 0, %v3490
    %v3492 = vrot.slane %v3487, %v3491
    %v3493 = vlaneseq
    %v3494 = vshrl.u32 %v3493, 7
    %v3495 = vsub.s32 1, %v3494
    %v3496 = vrot.slane %v3487, %v3495
    %v3497 = vlaneseq
    %v3498 = vshrl.u32 %v3497, 7
    %v3499 = vsub.s32 2, %v3498
    %v3500 = vrot.slane %v3487, %v3499
    %v3536 = vunpack.c.l.b16 %v3454
    %v3537 = vunpack.c.h.b16 %v3454
    %v3538 = vunpack.c.l.b16 %v3455
    %v3539 = vunpack.c.l.b16 %v3456
    %v3540 = vunpack.c.h.b16 %v3456
    %v3541 = vunpack.c.l.b16 %v3457
    %v3542 = vunpack.c.l.b16 %v3458
    %v3543 = vunpack.c.h.b16 %v3458
    %v3544 = vunpack.c.l.b16 %v3459
    %v3545 = vunpack.c.l.b16 %v3460
    %v3546 = vunpack.c.h.b16 %v3460
    %v3547 = vunpack.c.l.b16 %v3461
    %v3548 = vunpack.c.l.b16 %v3462
    %v3549 = vunpack.c.h.b16 %v3462
    %v3550 = vunpack.c.l.b16 %v3463
    %v3551 = vunpack.c.l.b16 %v3464
    %v3552 = vunpack.c.h.b16 %v3464
    %v3553 = vunpack.c.l.b16 %v3465
    %v3554 = vunpack.c.l.b16 %v3466
    %v3555 = vunpack.c.h.b16 %v3466
    %v3556 = vunpack.c.l.b16 %v3467
    %v3557 = vunpack.c.l.b16 %v3468
    %v3558 = vunpack.c.h.b16 %v3468
    %v3559 = vunpack.c.l.b16 %v3469
    %v3560 = vunpack.c.l.b16 %v3470
    %v3561 = vunpack.c.h.b16 %v3470
    %v3562 = vunpack.c.l.b16 %v3471
    %v3563 = vunpack.c.l.b16 %v3472
    %v3564 = vunpack.c.h.b16 %v3472
    %v3565 = vunpack.c.l.b16 %v3473
    %v3566 = vunpack.c.l.b16 %v3474
    %v3567 = vunpack.c.h.b16 %v3474
    %v3568 = vunpack.c.l.b16 %v3475
    %v3569 = vunpack.c.l.b16 %v3476
    %v3570 = vunpack.c.h.b16 %v3476
    %v3571 = vunpack.c.l.b16 %v3477
    %v3572 = vunpack.c.l.b16 %v3478
    %v3573 = vunpack.c.h.b16 %v3478
    %v3574 = vunpack.c.l.b16 %v3479
    %v3575 = vunpack.c.l.b16 %v3480
    %v3576 = vunpack.c.h.b16 %v3480
    %v3577 = vunpack.c.l.b16 %v3481
    %v3578 = vunpack.c.l.b16 %v3482
    %v3579 = vunpack.c.h.b16 %v3482
    %v3580 = vunpack.c.l.b16 %v3483
    %v3581 = vunpack.c.l.b16 %v3484
    %v3582 = vunpack.c.h.b16 %v3484
    %v3583 = vunpack.c.l.b16 %v3485
    %v3584 = vpack.c.b16 %v3539, %v3536
    %v3585 = vpack.c.b16 %v3540, %v3537
    %v3586 = vpack.c.b16 %v3541, %v3538
    %v3587 = vpack.c.b16 %v3545, %v3542
    %v3588 = vpack.c.b16 %v3546, %v3543
    %v3589 = vpack.c.b16 %v3547, %v3544
    %v3590 = vpack.c.b16 %v3551, %v3548
    %v3591 = vpack.c.b16 %v3552, %v3549
    %v3592 = vpack.c.b16 %v3553, %v3550
    %v3593 = vpack.c.b16 %v3557, %v3554
    %v3594 = vpack.c.b16 %v3558, %v3555
    %v3595 = vpack.c.b16 %v3559, %v3556
    %v3596 = vpack.c.b16 %v3563, %v3560
    %v3597 = vpack.c.b16 %v3564, %v3561
    %v3598 = vpack.c.b16 %v3565, %v3562
    %v3599 = vpack.c.b16 %v3569, %v3566
    %v3600 = vpack.c.b16 %v3570, %v3567
    %v3601 = vpack.c.b16 %v3571, %v3568
    %v3602 = vpack.c.b16 %v3575, %v3572
    %v3603 = vpack.c.b16 %v3576, %v3573
    %v3604 = vpack.c.b16 %v3577, %v3574
    %v3605 = vpack.c.b16 %v3581, %v3578
    %v3606 = vpack.c.b16 %v3582, %v3579
    %v3607 = vpack.c.b16 %v3583, %v3580
    %3632 = vmatprep.subr.bf16.mxu0 %v3606
    %3633 = vmatpush1.bf16.msra.mxu0 %v3605
    %3634 = vmatprep.subr.bf16.mxu0 %v3603
    %3635 = vmatpush1.bf16.msra.mxu0 %v3602
    %3636 = vmatprep.subr.bf16.mxu0 %v3600
    %3637 = vmatpush1.bf16.msra.mxu0 %v3599
    %3638 = vmatprep.subr.bf16.mxu0 %v3597
    %3639 = vmatpush1.bf16.msra.mxu0 %v3596
    %3640 = vmatprep.subr.bf16.mxu0 %v3594
    %3641 = vmatpush1.bf16.msra.mxu0 %v3593
    %3642 = vmatprep.subr.bf16.mxu0 %v3591
    %3643 = vmatpush1.bf16.msra.mxu0 %v3590
    %3644 = vmatprep.subr.bf16.mxu0 %v3588
    %3645 = vmatpush1.bf16.msra.mxu0 %v3587
    %3646 = vmatprep.subr.bf16.mxu0 %v3585
    %3647 = vmatpush1.bf16.msra.mxu0 %v3584
    %3648 = vmatprep.subr.bf16.mxu0 0
    %3649 = vmatpush2.bf16.msra.mxu0 0
    %3650 = vmatprep.subr.bf16.mxu0 0
    %3651 = vmatpush2.bf16.msra.mxu0 0
    %3652 = vmatprep.subr.bf16.mxu0 0
    %3653 = vmatpush2.bf16.msra.mxu0 0
    %3654 = vmatprep.subr.bf16.mxu0 0
    %3655 = vmatpush2.bf16.msra.mxu0 0
    %3656 = vmatprep.subr.bf16.mxu0 0
    %3657 = vmatpush2.bf16.msra.mxu0 0
    %3658 = vmatprep.subr.bf16.mxu0 0
    %3659 = vmatpush2.bf16.msra.mxu0 0
    %3660 = vmatprep.subr.bf16.mxu0 0
    %3661 = vmatpush2.bf16.msra.mxu0 0
    %3662 = vmatprep.subr.bf16.mxu0 0
    %3663 = vmatpush2.bf16.msra.mxu0 0
    %3664 = vmatprep.mubr.bf16.mxu0 0
    %3665 = vmatmul.mubr.bf16.gmra.mxu0 %v3452
    %v3666 = vpop.f32.mrf.mxu0
    %v3667 = vadd.f32 %v3492, %v3666
    %v3668 = vpop.f32.mrf.mxu0
    %v3669 = vadd.f32 %v3496, %v3668
    %v3670 = vpop.f32.mrf.mxu0
    %v3671 = vadd.f32 %v3492, %v3670
    %v3672 = vpop.f32.mrf.mxu0
    %v3673 = vadd.f32 %v3496, %v3672
    %3674 = vdwg.mxu0
    %3675 = vmatprep.subr.bf16.mxu0 0
    %3676 = vmatpush1.bf16.msra.mxu0 %v3607
    %3677 = vmatprep.subr.bf16.mxu0 0
    %3678 = vmatpush1.bf16.msra.mxu0 %v3604
    %3679 = vmatprep.subr.bf16.mxu0 0
    %3680 = vmatpush1.bf16.msra.mxu0 %v3601
    %3681 = vmatprep.subr.bf16.mxu0 0
    %3682 = vmatpush1.bf16.msra.mxu0 %v3598
    %3683 = vmatprep.subr.bf16.mxu0 0
    %3684 = vmatpush1.bf16.msra.mxu0 %v3595
    %3685 = vmatprep.subr.bf16.mxu0 0
    %3686 = vmatpush1.bf16.msra.mxu0 %v3592
    %3687 = vmatprep.subr.bf16.mxu0 0
    %3688 = vmatpush1.bf16.msra.mxu0 %v3589
    %3689 = vmatprep.subr.bf16.mxu0 0
    %3690 = vmatpush1.bf16.msra.mxu0 %v3586
    %3691 = vmatprep.subr.bf16.mxu0 0
    %3692 = vmatpush2.bf16.msra.mxu0 0
    %3693 = vmatprep.subr.bf16.mxu0 0
    %3694 = vmatpush2.bf16.msra.mxu0 0
    %3695 = vmatprep.subr.bf16.mxu0 0
    %3696 = vmatpush2.bf16.msra.mxu0 0
    %3697 = vmatprep.subr.bf16.mxu0 0
    %3698 = vmatpush2.bf16.msra.mxu0 0
    %3699 = vmatprep.subr.bf16.mxu0 0
    %3700 = vmatpush2.bf16.msra.mxu0 0
    %3701 = vmatprep.subr.bf16.mxu0 0
    %3702 = vmatpush2.bf16.msra.mxu0 0
    %3703 = vmatprep.subr.bf16.mxu0 0
    %3704 = vmatpush2.bf16.msra.mxu0 0
    %3705 = vmatprep.subr.bf16.mxu0 0
    %3706 = vmatpush2.bf16.msra.mxu0 0
    %3707 = vmatprep.mubr.bf16.mxu0 0
    %3708 = vmatmul.mubr.bf16.gmra.mxu0 %v3452
    %v3709 = vpop.f32.mrf.mxu0
    %v3710 = vadd.f32 %v3500, %v3709
    %v3711 = vpop.f32.mrf.mxu0
    %v3712 = vpop.f32.mrf.mxu0
    %v3713 = vadd.f32 %v3500, %v3712
    %v3714 = vpop.f32.mrf.mxu0
    %3715 = vdwg.mxu0
    %s3716 = scalar_lea.vmem [#allocation15], 64
    %v3717 = vld [vmem:[%s3716] sm:$0xf]
    %v3718 = vld [vmem:[%s3716 + $0x4] sm:$0xf]
    %v3719 = vld [vmem:[%s3716 + $0x8] sm:$0xf]
    %v3720 = vld [vmem:[%s3716 + $0xc] sm:$0xf]
    %v3721 = vld [vmem:[%s3716 + $0x10] sm:$0xf]
    %v3722 = vld [vmem:[%s3716 + $0x14] sm:$0xf]
    %v3723 = vld [vmem:[%s3716 + $0x18] sm:$0xf]
    %v3724 = vld [vmem:[%s3716 + $0x1c] sm:$0xf]
    %v3725 = vld [vmem:[%s3716 + $0x20] sm:$0xf]
    %v3726 = vld [vmem:[%s3716 + $0x24] sm:$0xf]
    %v3727 = vld [vmem:[%s3716 + $0x28] sm:$0xf]
    %v3728 = vld [vmem:[%s3716 + $0x2c] sm:$0xf]
    %v3729 = vld [vmem:[%s3716 + $0x30] sm:$0xf]
    %v3730 = vld [vmem:[%s3716 + $0x34] sm:$0xf]
    %v3731 = vld [vmem:[%s3716 + $0x38] sm:$0xf]
    %v3732 = vld [vmem:[%s3716 + $0x3c] sm:$0xf]
    %v3734 = vsel %vm1088, %v3667, 0
    %v3737 = vsel %vm1088, %v3669, 0
    %3739 = vmatprep.subr.mxu0 0.0
    %3740 = vmatpush1.xpose.msra.mxu0 0.0
    %3741 = vmatprep.subr.mxu0 0.0
    %3742 = vmatpush1.xpose.msra.mxu0 0.0
    %3743 = vmatprep.subr.mxu0 0.0
    %3744 = vmatpush1.xpose.msra.mxu0 0.0
    %3745 = vmatprep.subr.mxu0 0.0
    %3746 = vmatpush1.xpose.msra.mxu0 0.0
    %3747 = vmatprep.subr.mxu0 0.0
    %3748 = vmatpush1.xpose.msra.mxu0 0.0
    %3749 = vmatprep.subr.mxu0 0.0
    %3750 = vmatpush1.xpose.msra.mxu0 0.0
    %3751 = vmatprep.subr.mxu0 0.0
    %3752 = vmatpush1.xpose.msra.mxu0 0.0
    %3753 = vmatprep.subr.mxu0 0.0
    %3754 = vmatpush1.xpose.msra.mxu0 0.0
    %3755 = vmatprep.subr.mxu0 0.0
    %3756 = vmatpush1.xpose.msra.mxu0 0.0
    %3757 = vmatprep.subr.mxu0 0.0
    %3758 = vmatpush1.xpose.msra.mxu0 0.0
    %3759 = vmatprep.subr.mxu0 0.0
    %3760 = vmatpush1.xpose.msra.mxu0 0.0
    %3761 = vmatprep.subr.mxu0 0.0
    %3762 = vmatpush1.xpose.msra.mxu0 0.0
    %3763 = vmatprep.subr.mxu0 0.0
    %3764 = vmatpush1.xpose.msra.mxu0 0.0
    %3765 = vmatprep.subr.mxu0 0.0
    %3766 = vmatpush1.xpose.msra.mxu0 0.0
    %3767 = vmatprep.subr.mxu0 0.0
    %3768 = vmatpush1.xpose.msra.mxu0 0.0
    %3769 = vmatprep.subr.mxu0 0.0
    %3770 = vmatpush1.xpose.msra.mxu0 %v3737
    %3771 = vmatprep.subr.mxu0 0.0
    %3772 = vmatpush2.xpose.msra.mxu0 0.0
    %3773 = vmatprep.subr.mxu0 0.0
    %3774 = vmatpush2.xpose.msra.mxu0 0.0
    %3775 = vmatprep.subr.mxu0 0.0
    %3776 = vmatpush2.xpose.msra.mxu0 0.0
    %3777 = vmatprep.subr.mxu0 0.0
    %3778 = vmatpush2.xpose.msra.mxu0 0.0
    %3779 = vmatprep.subr.mxu0 0.0
    %3780 = vmatpush2.xpose.msra.mxu0 0.0
    %3781 = vmatprep.subr.mxu0 0.0
    %3782 = vmatpush2.xpose.msra.mxu0 0.0
    %3783 = vmatprep.subr.mxu0 0.0
    %3784 = vmatpush2.xpose.msra.mxu0 0.0
    %3785 = vmatprep.subr.mxu0 0.0
    %3786 = vmatpush2.xpose.msra.mxu0 0.0
    %3787 = vmatprep.subr.mxu0 0.0
    %3788 = vmatpush2.xpose.msra.mxu0 0.0
    %3789 = vmatprep.subr.mxu0 0.0
    %3790 = vmatpush2.xpose.msra.mxu0 0.0
    %3791 = vmatprep.subr.mxu0 0.0
    %3792 = vmatpush2.xpose.msra.mxu0 0.0
    %3793 = vmatprep.subr.mxu0 0.0
    %3794 = vmatpush2.xpose.msra.mxu0 0.0
    %3795 = vmatprep.subr.mxu0 0.0
    %3796 = vmatpush2.xpose.msra.mxu0 0.0
    %3797 = vmatprep.subr.mxu0 0.0
    %3798 = vmatpush2.xpose.msra.mxu0 0.0
    %3799 = vmatprep.subr.mxu0 0.0
    %3800 = vmatpush2.xpose.msra.mxu0 0.0
    %3801 = vmatprep.subr.mxu0 0.0
    %3802 = vmatpush2.xpose.msra.mxu0 0.0
    %3803 = vmatprep.mubr.f32.mxu0 0.0
    %3804 = vmatmul.mubr.f32.gmra.mxu0 %v3734
    %v3805 = vpop.f32.mrf.mxu0
    %v3806 = vadd.f32 %v1081, %v3805
    %v3807 = vpop.f32.mrf.mxu0
    %3808 = vdwg.mxu0
    %v3810 = vsel %vm1088, %v3671, 0
    %v3813 = vsel %vm1088, %v3673, 0
    %3815 = vmatprep.subr.mxu0 0.0
    %3816 = vmatpush1.xpose.msra.mxu0 0.0
    %3817 = vmatprep.subr.mxu0 0.0
    %3818 = vmatpush1.xpose.msra.mxu0 0.0
    %3819 = vmatprep.subr.mxu0 0.0
    %3820 = vmatpush1.xpose.msra.mxu0 0.0
    %3821 = vmatprep.subr.mxu0 0.0
    %3822 = vmatpush1.xpose.msra.mxu0 0.0
    %3823 = vmatprep.subr.mxu0 0.0
    %3824 = vmatpush1.xpose.msra.mxu0 0.0
    %3825 = vmatprep.subr.mxu0 0.0
    %3826 = vmatpush1.xpose.msra.mxu0 0.0
    %3827 = vmatprep.subr.mxu0 0.0
    %3828 = vmatpush1.xpose.msra.mxu0 0.0
    %3829 = vmatprep.subr.mxu0 0.0
    %3830 = vmatpush1.xpose.msra.mxu0 0.0
    %3831 = vmatprep.subr.mxu0 0.0
    %3832 = vmatpush1.xpose.msra.mxu0 0.0
    %3833 = vmatprep.subr.mxu0 0.0
    %3834 = vmatpush1.xpose.msra.mxu0 0.0
    %3835 = vmatprep.subr.mxu0 0.0
    %3836 = vmatpush1.xpose.msra.mxu0 0.0
    %3837 = vmatprep.subr.mxu0 0.0
    %3838 = vmatpush1.xpose.msra.mxu0 0.0
    %3839 = vmatprep.subr.mxu0 0.0
    %3840 = vmatpush1.xpose.msra.mxu0 0.0
    %3841 = vmatprep.subr.mxu0 0.0
    %3842 = vmatpush1.xpose.msra.mxu0 0.0
    %3843 = vmatprep.subr.mxu0 0.0
    %3844 = vmatpush1.xpose.msra.mxu0 0.0
    %3845 = vmatprep.subr.mxu0 0.0
    %3846 = vmatpush1.xpose.msra.mxu0 %v3813
    %3847 = vmatprep.subr.mxu0 0.0
    %3848 = vmatpush2.xpose.msra.mxu0 0.0
    %3849 = vmatprep.subr.mxu0 0.0
    %3850 = vmatpush2.xpose.msra.mxu0 0.0
    %3851 = vmatprep.subr.mxu0 0.0
    %3852 = vmatpush2.xpose.msra.mxu0 0.0
    %3853 = vmatprep.subr.mxu0 0.0
    %3854 = vmatpush2.xpose.msra.mxu0 0.0
    %3855 = vmatprep.subr.mxu0 0.0
    %3856 = vmatpush2.xpose.msra.mxu0 0.0
    %3857 = vmatprep.subr.mxu0 0.0
    %3858 = vmatpush2.xpose.msra.mxu0 0.0
    %3859 = vmatprep.subr.mxu0 0.0
    %3860 = vmatpush2.xpose.msra.mxu0 0.0
    %3861 = vmatprep.subr.mxu0 0.0
    %3862 = vmatpush2.xpose.msra.mxu0 0.0
    %3863 = vmatprep.subr.mxu0 0.0
    %3864 = vmatpush2.xpose.msra.mxu0 0.0
    %3865 = vmatprep.subr.mxu0 0.0
    %3866 = vmatpush2.xpose.msra.mxu0 0.0
    %3867 = vmatprep.subr.mxu0 0.0
    %3868 = vmatpush2.xpose.msra.mxu0 0.0
    %3869 = vmatprep.subr.mxu0 0.0
    %3870 = vmatpush2.xpose.msra.mxu0 0.0
    %3871 = vmatprep.subr.mxu0 0.0
    %3872 = vmatpush2.xpose.msra.mxu0 0.0
    %3873 = vmatprep.subr.mxu0 0.0
    %3874 = vmatpush2.xpose.msra.mxu0 0.0
    %3875 = vmatprep.subr.mxu0 0.0
    %3876 = vmatpush2.xpose.msra.mxu0 0.0
    %3877 = vmatprep.subr.mxu0 0.0
    %3878 = vmatpush2.xpose.msra.mxu0 0.0
    %3879 = vmatprep.mubr.f32.mxu0 0.0
    %3880 = vmatmul.mubr.f32.gmra.mxu0 %v3810
    %v3881 = vpop.f32.mrf.mxu0
    %v3882 = vadd.f32 %v1085, %v3881
    %v3883 = vpop.f32.mrf.mxu0
    %3884 = vdwg.mxu0
    %v3885 = vsel %vm1241, %v3806, -inf
    %3886 = vmax.xlane.f32.xlu0 %v3885
    %v3887 = vpop.xlane.xlu0 %3886
    %v3888 = vsel %vm1241, %v3882, -inf
    %3889 = vmax.xlane.f32.xlu0 %v3888
    %v3890 = vpop.xlane.xlu0 %3889
    %v3891 = vsub.f32 %v3806, %v3887
    %v3892 = vsub.f32 %v3882, %v3890
    %v3893 = vmul.f32 %v3891, 1.442695
    %v3894 = vpow.pop %v3893
    %v3895 = vmul.f32 %v3892, 1.442695
    %v3896 = vpow.pop %v3895
    %v3897 = vsel %vm1241, %v3894, 0.0
    %3898 = vadd.xlane.f32.xlu0 %v3897
    %v3899 = vpop.xlane.xlu0 %3898
    %v3900 = vsel %vm1241, %v3896, 0.0
    %3901 = vadd.xlane.f32.xlu0 %v3900
    %v3902 = vpop.xlane.xlu0 %3901
    %v3903 = vrcp.pop %v3899
    %v3904 = vrcp.pop %v3902
    %v3905 = vmul.f32 %v3894, %v3903
    %v3906 = vmul.f32 %v3896, %v3904
    %v3908 = vsel %vm1241, %v3905, 0
    %3910 = vmatprep.subr.mxu0 0.0
    %3911 = vmatpush1.msra.mxu0 0.0
    %3912 = vmatprep.subr.mxu0 0.0
    %3913 = vmatpush1.msra.mxu0 0.0
    %3914 = vmatprep.subr.mxu0 0.0
    %3915 = vmatpush1.msra.mxu0 0.0
    %3916 = vmatprep.subr.mxu0 0.0
    %3917 = vmatpush1.msra.mxu0 0.0
    %3918 = vmatprep.subr.mxu0 0.0
    %3919 = vmatpush1.msra.mxu0 0.0
    %3920 = vmatprep.subr.mxu0 0.0
    %3921 = vmatpush1.msra.mxu0 0.0
    %3922 = vmatprep.subr.mxu0 0.0
    %3923 = vmatpush1.msra.mxu0 0.0
    %3924 = vmatprep.subr.mxu0 0.0
    %3925 = vmatpush1.msra.mxu0 0.0
    %3926 = vmatprep.subr.mxu0 0.0
    %3927 = vmatpush1.msra.mxu0 0.0
    %3928 = vmatprep.subr.mxu0 0.0
    %3929 = vmatpush1.msra.mxu0 0.0
    %3930 = vmatprep.subr.mxu0 0.0
    %3931 = vmatpush1.msra.mxu0 0.0
    %3932 = vmatprep.subr.mxu0 0.0
    %3933 = vmatpush1.msra.mxu0 0.0
    %3934 = vmatprep.subr.mxu0 0.0
    %3935 = vmatpush1.msra.mxu0 0.0
    %3936 = vmatprep.subr.mxu0 0.0
    %3937 = vmatpush1.msra.mxu0 0.0
    %3938 = vmatprep.subr.mxu0 0.0
    %3939 = vmatpush1.msra.mxu0 0.0
    %3940 = vmatprep.subr.mxu0 0.0
    %3941 = vmatpush1.msra.mxu0 %v3710
    %3942 = vmatprep.subr.mxu0 0.0
    %3943 = vmatpush2.msra.mxu0 0.0
    %3944 = vmatprep.subr.mxu0 0.0
    %3945 = vmatpush2.msra.mxu0 0.0
    %3946 = vmatprep.subr.mxu0 0.0
    %3947 = vmatpush2.msra.mxu0 0.0
    %3948 = vmatprep.subr.mxu0 0.0
    %3949 = vmatpush2.msra.mxu0 0.0
    %3950 = vmatprep.subr.mxu0 0.0
    %3951 = vmatpush2.msra.mxu0 0.0
    %3952 = vmatprep.subr.mxu0 0.0
    %3953 = vmatpush2.msra.mxu0 0.0
    %3954 = vmatprep.subr.mxu0 0.0
    %3955 = vmatpush2.msra.mxu0 0.0
    %3956 = vmatprep.subr.mxu0 0.0
    %3957 = vmatpush2.msra.mxu0 0.0
    %3958 = vmatprep.subr.mxu0 0.0
    %3959 = vmatpush2.msra.mxu0 0.0
    %3960 = vmatprep.subr.mxu0 0.0
    %3961 = vmatpush2.msra.mxu0 0.0
    %3962 = vmatprep.subr.mxu0 0.0
    %3963 = vmatpush2.msra.mxu0 0.0
    %3964 = vmatprep.subr.mxu0 0.0
    %3965 = vmatpush2.msra.mxu0 0.0
    %3966 = vmatprep.subr.mxu0 0.0
    %3967 = vmatpush2.msra.mxu0 0.0
    %3968 = vmatprep.subr.mxu0 0.0
    %3969 = vmatpush2.msra.mxu0 0.0
    %3970 = vmatprep.subr.mxu0 0.0
    %3971 = vmatpush2.msra.mxu0 0.0
    %3972 = vmatprep.subr.mxu0 0.0
    %3973 = vmatpush2.msra.mxu0 0.0
    %3974 = vmatprep.mubr.f32.mxu0 0.0
    %3975 = vmatmul.mubr.f32.gmra.mxu0 %v3908
    %v3976 = vpop.f32.mrf.mxu0
    %v3977 = vadd.f32 0.0, %v3976
    %v3978 = vpop.f32.mrf.mxu0
    %3979 = vdwg.mxu0
    %v3981 = vsel %vm1241, %v3906, 0
    %3983 = vmatprep.subr.mxu0 0.0
    %3984 = vmatpush1.msra.mxu0 0.0
    %3985 = vmatprep.subr.mxu0 0.0
    %3986 = vmatpush1.msra.mxu0 0.0
    %3987 = vmatprep.subr.mxu0 0.0
    %3988 = vmatpush1.msra.mxu0 0.0
    %3989 = vmatprep.subr.mxu0 0.0
    %3990 = vmatpush1.msra.mxu0 0.0
    %3991 = vmatprep.subr.mxu0 0.0
    %3992 = vmatpush1.msra.mxu0 0.0
    %3993 = vmatprep.subr.mxu0 0.0
    %3994 = vmatpush1.msra.mxu0 0.0
    %3995 = vmatprep.subr.mxu0 0.0
    %3996 = vmatpush1.msra.mxu0 0.0
    %3997 = vmatprep.subr.mxu0 0.0
    %3998 = vmatpush1.msra.mxu0 0.0
    %3999 = vmatprep.subr.mxu0 0.0
    %4000 = vmatpush1.msra.mxu0 0.0
    %4001 = vmatprep.subr.mxu0 0.0
    %4002 = vmatpush1.msra.mxu0 0.0
    %4003 = vmatprep.subr.mxu0 0.0
    %4004 = vmatpush1.msra.mxu0 0.0
    %4005 = vmatprep.subr.mxu0 0.0
    %4006 = vmatpush1.msra.mxu0 0.0
    %4007 = vmatprep.subr.mxu0 0.0
    %4008 = vmatpush1.msra.mxu0 0.0
    %4009 = vmatprep.subr.mxu0 0.0
    %4010 = vmatpush1.msra.mxu0 0.0
    %4011 = vmatprep.subr.mxu0 0.0
    %4012 = vmatpush1.msra.mxu0 0.0
    %4013 = vmatprep.subr.mxu0 0.0
    %4014 = vmatpush1.msra.mxu0 %v3713
    %4015 = vmatprep.subr.mxu0 0.0
    %4016 = vmatpush2.msra.mxu0 0.0
    %4017 = vmatprep.subr.mxu0 0.0
    %4018 = vmatpush2.msra.mxu0 0.0
    %4019 = vmatprep.subr.mxu0 0.0
    %4020 = vmatpush2.msra.mxu0 0.0
    %4021 = vmatprep.subr.mxu0 0.0
    %4022 = vmatpush2.msra.mxu0 0.0
    %4023 = vmatprep.subr.mxu0 0.0
    %4024 = vmatpush2.msra.mxu0 0.0
    %4025 = vmatprep.subr.mxu0 0.0
    %4026 = vmatpush2.msra.mxu0 0.0
    %4027 = vmatprep.subr.mxu0 0.0
    %4028 = vmatpush2.msra.mxu0 0.0
    %4029 = vmatprep.subr.mxu0 0.0
    %4030 = vmatpush2.msra.mxu0 0.0
    %4031 = vmatprep.subr.mxu0 0.0
    %4032 = vmatpush2.msra.mxu0 0.0
    %4033 = vmatprep.subr.mxu0 0.0
    %4034 = vmatpush2.msra.mxu0 0.0
    %4035 = vmatprep.subr.mxu0 0.0
    %4036 = vmatpush2.msra.mxu0 0.0
    %4037 = vmatprep.subr.mxu0 0.0
    %4038 = vmatpush2.msra.mxu0 0.0
    %4039 = vmatprep.subr.mxu0 0.0
    %4040 = vmatpush2.msra.mxu0 0.0
    %4041 = vmatprep.subr.mxu0 0.0
    %4042 = vmatpush2.msra.mxu0 0.0
    %4043 = vmatprep.subr.mxu0 0.0
    %4044 = vmatpush2.msra.mxu0 0.0
    %4045 = vmatprep.subr.mxu0 0.0
    %4046 = vmatpush2.msra.mxu0 0.0
    %4047 = vmatprep.mubr.f32.mxu0 0.0
    %4048 = vmatmul.mubr.f32.gmra.mxu0 %v3981
    %v4049 = vpop.f32.mrf.mxu0
    %v4050 = vadd.f32 0.0, %v4049
    %v4051 = vpop.f32.mrf.mxu0
    %4052 = vdwg.mxu0
    %v4053 = vpack.c.bf16 %v4050, %v3977
    %4054 = vrot.lane.b32.xlu0 %v3667, 96
    %v4055 = vpop.permute.xlu0 %4054
    %4056 = vrot.lane.b32.xlu0 %v3669, 96
    %v4057 = vpop.permute.xlu0 %4056
    %v4058 = vsel %vm1088, %v4055, 0
    %v4060 = vsel %vm1088, %v4057, 0
    %4062 = vmatprep.subr.mxu0 0.0
    %4063 = vmatpush1.xpose.msra.mxu0 0.0
    %4064 = vmatprep.subr.mxu0 0.0
    %4065 = vmatpush1.xpose.msra.mxu0 0.0
    %4066 = vmatprep.subr.mxu0 0.0
    %4067 = vmatpush1.xpose.msra.mxu0 0.0
    %4068 = vmatprep.subr.mxu0 0.0
    %4069 = vmatpush1.xpose.msra.mxu0 0.0
    %4070 = vmatprep.subr.mxu0 0.0
    %4071 = vmatpush1.xpose.msra.mxu0 0.0
    %4072 = vmatprep.subr.mxu0 0.0
    %4073 = vmatpush1.xpose.msra.mxu0 0.0
    %4074 = vmatprep.subr.mxu0 0.0
    %4075 = vmatpush1.xpose.msra.mxu0 0.0
    %4076 = vmatprep.subr.mxu0 0.0
    %4077 = vmatpush1.xpose.msra.mxu0 0.0
    %4078 = vmatprep.subr.mxu0 0.0
    %4079 = vmatpush1.xpose.msra.mxu0 0.0
    %4080 = vmatprep.subr.mxu0 0.0
    %4081 = vmatpush1.xpose.msra.mxu0 0.0
    %4082 = vmatprep.subr.mxu0 0.0
    %4083 = vmatpush1.xpose.msra.mxu0 0.0
    %4084 = vmatprep.subr.mxu0 0.0
    %4085 = vmatpush1.xpose.msra.mxu0 0.0
    %4086 = vmatprep.subr.mxu0 0.0
    %4087 = vmatpush1.xpose.msra.mxu0 0.0
    %4088 = vmatprep.subr.mxu0 0.0
    %4089 = vmatpush1.xpose.msra.mxu0 0.0
    %4090 = vmatprep.subr.mxu0 0.0
    %4091 = vmatpush1.xpose.msra.mxu0 0.0
    %4092 = vmatprep.subr.mxu0 0.0
    %4093 = vmatpush1.xpose.msra.mxu0 %v4060
    %4094 = vmatprep.subr.mxu0 0.0
    %4095 = vmatpush2.xpose.msra.mxu0 0.0
    %4096 = vmatprep.subr.mxu0 0.0
    %4097 = vmatpush2.xpose.msra.mxu0 0.0
    %4098 = vmatprep.subr.mxu0 0.0
    %4099 = vmatpush2.xpose.msra.mxu0 0.0
    %4100 = vmatprep.subr.mxu0 0.0
    %4101 = vmatpush2.xpose.msra.mxu0 0.0
    %4102 = vmatprep.subr.mxu0 0.0
    %4103 = vmatpush2.xpose.msra.mxu0 0.0
    %4104 = vmatprep.subr.mxu0 0.0
    %4105 = vmatpush2.xpose.msra.mxu0 0.0
    %4106 = vmatprep.subr.mxu0 0.0
    %4107 = vmatpush2.xpose.msra.mxu0 0.0
    %4108 = vmatprep.subr.mxu0 0.0
    %4109 = vmatpush2.xpose.msra.mxu0 0.0
    %4110 = vmatprep.subr.mxu0 0.0
    %4111 = vmatpush2.xpose.msra.mxu0 0.0
    %4112 = vmatprep.subr.mxu0 0.0
    %4113 = vmatpush2.xpose.msra.mxu0 0.0
    %4114 = vmatprep.subr.mxu0 0.0
    %4115 = vmatpush2.xpose.msra.mxu0 0.0
    %4116 = vmatprep.subr.mxu0 0.0
    %4117 = vmatpush2.xpose.msra.mxu0 0.0
    %4118 = vmatprep.subr.mxu0 0.0
    %4119 = vmatpush2.xpose.msra.mxu0 0.0
    %4120 = vmatprep.subr.mxu0 0.0
    %4121 = vmatpush2.xpose.msra.mxu0 0.0
    %4122 = vmatprep.subr.mxu0 0.0
    %4123 = vmatpush2.xpose.msra.mxu0 0.0
    %4124 = vmatprep.subr.mxu0 0.0
    %4125 = vmatpush2.xpose.msra.mxu0 0.0
    %4126 = vmatprep.mubr.f32.mxu0 0.0
    %4127 = vmatmul.mubr.f32.gmra.mxu0 %v4058
    %v4128 = vpop.f32.mrf.mxu0
    %v4129 = vadd.f32 %v1081, %v4128
    %v4130 = vpop.f32.mrf.mxu0
    %4131 = vdwg.mxu0
    %4132 = vrot.lane.b32.xlu0 %v3671, 96
    %v4133 = vpop.permute.xlu0 %4132
    %4134 = vrot.lane.b32.xlu0 %v3673, 96
    %v4135 = vpop.permute.xlu0 %4134
    %v4136 = vsel %vm1088, %v4133, 0
    %v4138 = vsel %vm1088, %v4135, 0
    %4140 = vmatprep.subr.mxu0 0.0
    %4141 = vmatpush1.xpose.msra.mxu0 0.0
    %4142 = vmatprep.subr.mxu0 0.0
    %4143 = vmatpush1.xpose.msra.mxu0 0.0
    %4144 = vmatprep.subr.mxu0 0.0
    %4145 = vmatpush1.xpose.msra.mxu0 0.0
    %4146 = vmatprep.subr.mxu0 0.0
    %4147 = vmatpush1.xpose.msra.mxu0 0.0
    %4148 = vmatprep.subr.mxu0 0.0
    %4149 = vmatpush1.xpose.msra.mxu0 0.0
    %4150 = vmatprep.subr.mxu0 0.0
    %4151 = vmatpush1.xpose.msra.mxu0 0.0
    %4152 = vmatprep.subr.mxu0 0.0
    %4153 = vmatpush1.xpose.msra.mxu0 0.0
    %4154 = vmatprep.subr.mxu0 0.0
    %4155 = vmatpush1.xpose.msra.mxu0 0.0
    %4156 = vmatprep.subr.mxu0 0.0
    %4157 = vmatpush1.xpose.msra.mxu0 0.0
    %4158 = vmatprep.subr.mxu0 0.0
    %4159 = vmatpush1.xpose.msra.mxu0 0.0
    %4160 = vmatprep.subr.mxu0 0.0
    %4161 = vmatpush1.xpose.msra.mxu0 0.0
    %4162 = vmatprep.subr.mxu0 0.0
    %4163 = vmatpush1.xpose.msra.mxu0 0.0
    %4164 = vmatprep.subr.mxu0 0.0
    %4165 = vmatpush1.xpose.msra.mxu0 0.0
    %4166 = vmatprep.subr.mxu0 0.0
    %4167 = vmatpush1.xpose.msra.mxu0 0.0
    %4168 = vmatprep.subr.mxu0 0.0
    %4169 = vmatpush1.xpose.msra.mxu0 0.0
    %4170 = vmatprep.subr.mxu0 0.0
    %4171 = vmatpush1.xpose.msra.mxu0 %v4138
    %4172 = vmatprep.subr.mxu0 0.0
    %4173 = vmatpush2.xpose.msra.mxu0 0.0
    %4174 = vmatprep.subr.mxu0 0.0
    %4175 = vmatpush2.xpose.msra.mxu0 0.0
    %4176 = vmatprep.subr.mxu0 0.0
    %4177 = vmatpush2.xpose.msra.mxu0 0.0
    %4178 = vmatprep.subr.mxu0 0.0
    %4179 = vmatpush2.xpose.msra.mxu0 0.0
    %4180 = vmatprep.subr.mxu0 0.0
    %4181 = vmatpush2.xpose.msra.mxu0 0.0
    %4182 = vmatprep.subr.mxu0 0.0
    %4183 = vmatpush2.xpose.msra.mxu0 0.0
    %4184 = vmatprep.subr.mxu0 0.0
    %4185 = vmatpush2.xpose.msra.mxu0 0.0
    %4186 = vmatprep.subr.mxu0 0.0
    %4187 = vmatpush2.xpose.msra.mxu0 0.0
    %4188 = vmatprep.subr.mxu0 0.0
    %4189 = vmatpush2.xpose.msra.mxu0 0.0
    %4190 = vmatprep.subr.mxu0 0.0
    %4191 = vmatpush2.xpose.msra.mxu0 0.0
    %4192 = vmatprep.subr.mxu0 0.0
    %4193 = vmatpush2.xpose.msra.mxu0 0.0
    %4194 = vmatprep.subr.mxu0 0.0
    %4195 = vmatpush2.xpose.msra.mxu0 0.0
    %4196 = vmatprep.subr.mxu0 0.0
    %4197 = vmatpush2.xpose.msra.mxu0 0.0
    %4198 = vmatprep.subr.mxu0 0.0
    %4199 = vmatpush2.xpose.msra.mxu0 0.0
    %4200 = vmatprep.subr.mxu0 0.0
    %4201 = vmatpush2.xpose.msra.mxu0 0.0
    %4202 = vmatprep.subr.mxu0 0.0
    %4203 = vmatpush2.xpose.msra.mxu0 0.0
    %4204 = vmatprep.mubr.f32.mxu0 0.0
    %4205 = vmatmul.mubr.f32.gmra.mxu0 %v4136
    %v4206 = vpop.f32.mrf.mxu0
    %v4207 = vadd.f32 %v1085, %v4206
    %v4208 = vpop.f32.mrf.mxu0
    %4209 = vdwg.mxu0
    %v4210 = vsel %vm1241, %v4129, -inf
    %4211 = vmax.xlane.f32.xlu0 %v4210
    %v4212 = vpop.xlane.xlu0 %4211
    %v4213 = vsel %vm1241, %v4207, -inf
    %4214 = vmax.xlane.f32.xlu0 %v4213
    %v4215 = vpop.xlane.xlu0 %4214
    %v4216 = vsub.f32 %v4129, %v4212
    %v4217 = vsub.f32 %v4207, %v4215
    %v4218 = vmul.f32 %v4216, 1.442695
    %v4219 = vpow.pop %v4218
    %v4220 = vmul.f32 %v4217, 1.442695
    %v4221 = vpow.pop %v4220
    %v4222 = vsel %vm1241, %v4219, 0.0
    %4223 = vadd.xlane.f32.xlu0 %v4222
    %v4224 = vpop.xlane.xlu0 %4223
    %v4225 = vsel %vm1241, %v4221, 0.0
    %4226 = vadd.xlane.f32.xlu0 %v4225
    %v4227 = vpop.xlane.xlu0 %4226
    %v4228 = vrcp.pop %v4224
    %v4229 = vrcp.pop %v4227
    %v4230 = vmul.f32 %v4219, %v4228
    %v4231 = vmul.f32 %v4221, %v4229
    %4233 = vrot.lane.b32.xlu0 %v3710, 96
    %v4234 = vpop.permute.xlu0 %4233
    %v4237 = vsel %vm1241, %v4230, 0
    %4239 = vmatprep.subr.mxu0 0.0
    %4240 = vmatpush1.msra.mxu0 0.0
    %4241 = vmatprep.subr.mxu0 0.0
    %4242 = vmatpush1.msra.mxu0 0.0
    %4243 = vmatprep.subr.mxu0 0.0
    %4244 = vmatpush1.msra.mxu0 0.0
    %4245 = vmatprep.subr.mxu0 0.0
    %4246 = vmatpush1.msra.mxu0 0.0
    %4247 = vmatprep.subr.mxu0 0.0
    %4248 = vmatpush1.msra.mxu0 0.0
    %4249 = vmatprep.subr.mxu0 0.0
    %4250 = vmatpush1.msra.mxu0 0.0
    %4251 = vmatprep.subr.mxu0 0.0
    %4252 = vmatpush1.msra.mxu0 0.0
    %4253 = vmatprep.subr.mxu0 0.0
    %4254 = vmatpush1.msra.mxu0 0.0
    %4255 = vmatprep.subr.mxu0 0.0
    %4256 = vmatpush1.msra.mxu0 0.0
    %4257 = vmatprep.subr.mxu0 0.0
    %4258 = vmatpush1.msra.mxu0 0.0
    %4259 = vmatprep.subr.mxu0 0.0
    %4260 = vmatpush1.msra.mxu0 0.0
    %4261 = vmatprep.subr.mxu0 0.0
    %4262 = vmatpush1.msra.mxu0 0.0
    %4263 = vmatprep.subr.mxu0 0.0
    %4264 = vmatpush1.msra.mxu0 0.0
    %4265 = vmatprep.subr.mxu0 0.0
    %4266 = vmatpush1.msra.mxu0 0.0
    %4267 = vmatprep.subr.mxu0 0.0
    %4268 = vmatpush1.msra.mxu0 0.0
    %4269 = vmatprep.subr.mxu0 0.0
    %4270 = vmatpush1.msra.mxu0 %v4234
    %4271 = vmatprep.subr.mxu0 0.0
    %4272 = vmatpush2.msra.mxu0 0.0
    %4273 = vmatprep.subr.mxu0 0.0
    %4274 = vmatpush2.msra.mxu0 0.0
    %4275 = vmatprep.subr.mxu0 0.0
    %4276 = vmatpush2.msra.mxu0 0.0
    %4277 = vmatprep.subr.mxu0 0.0
    %4278 = vmatpush2.msra.mxu0 0.0
    %4279 = vmatprep.subr.mxu0 0.0
    %4280 = vmatpush2.msra.mxu0 0.0
    %4281 = vmatprep.subr.mxu0 0.0
    %4282 = vmatpush2.msra.mxu0 0.0
    %4283 = vmatprep.subr.mxu0 0.0
    %4284 = vmatpush2.msra.mxu0 0.0
    %4285 = vmatprep.subr.mxu0 0.0
    %4286 = vmatpush2.msra.mxu0 0.0
    %4287 = vmatprep.subr.mxu0 0.0
    %4288 = vmatpush2.msra.mxu0 0.0
    %4289 = vmatprep.subr.mxu0 0.0
    %4290 = vmatpush2.msra.mxu0 0.0
    %4291 = vmatprep.subr.mxu0 0.0
    %4292 = vmatpush2.msra.mxu0 0.0
    %4293 = vmatprep.subr.mxu0 0.0
    %4294 = vmatpush2.msra.mxu0 0.0
    %4295 = vmatprep.subr.mxu0 0.0
    %4296 = vmatpush2.msra.mxu0 0.0
    %4297 = vmatprep.subr.mxu0 0.0
    %4298 = vmatpush2.msra.mxu0 0.0
    %4299 = vmatprep.subr.mxu0 0.0
    %4300 = vmatpush2.msra.mxu0 0.0
    %4301 = vmatprep.subr.mxu0 0.0
    %4302 = vmatpush2.msra.mxu0 0.0
    %4303 = vmatprep.mubr.f32.mxu0 0.0
    %4304 = vmatmul.mubr.f32.gmra.mxu0 %v4237
    %v4305 = vpop.f32.mrf.mxu0
    %v4306 = vadd.f32 0.0, %v4305
    %v4307 = vpop.f32.mrf.mxu0
    %4308 = vdwg.mxu0
    %4310 = vrot.lane.b32.xlu0 %v3713, 96
    %v4311 = vpop.permute.xlu0 %4310
    %v4314 = vsel %vm1241, %v4231, 0
    %4316 = vmatprep.subr.mxu0 0.0
    %4317 = vmatpush1.msra.mxu0 0.0
    %4318 = vmatprep.subr.mxu0 0.0
    %4319 = vmatpush1.msra.mxu0 0.0
    %4320 = vmatprep.subr.mxu0 0.0
    %4321 = vmatpush1.msra.mxu0 0.0
    %4322 = vmatprep.subr.mxu0 0.0
    %4323 = vmatpush1.msra.mxu0 0.0
    %4324 = vmatprep.subr.mxu0 0.0
    %4325 = vmatpush1.msra.mxu0 0.0
    %4326 = vmatprep.subr.mxu0 0.0
    %4327 = vmatpush1.msra.mxu0 0.0
    %4328 = vmatprep.subr.mxu0 0.0
    %4329 = vmatpush1.msra.mxu0 0.0
    %4330 = vmatprep.subr.mxu0 0.0
    %4331 = vmatpush1.msra.mxu0 0.0
    %4332 = vmatprep.subr.mxu0 0.0
    %4333 = vmatpush1.msra.mxu0 0.0
    %4334 = vmatprep.subr.mxu0 0.0
    %4335 = vmatpush1.msra.mxu0 0.0
    %4336 = vmatprep.subr.mxu0 0.0
    %4337 = vmatpush1.msra.mxu0 0.0
    %4338 = vmatprep.subr.mxu0 0.0
    %4339 = vmatpush1.msra.mxu0 0.0
    %4340 = vmatprep.subr.mxu0 0.0
    %4341 = vmatpush1.msra.mxu0 0.0
    %4342 = vmatprep.subr.mxu0 0.0
    %4343 = vmatpush1.msra.mxu0 0.0
    %4344 = vmatprep.subr.mxu0 0.0
    %4345 = vmatpush1.msra.mxu0 0.0
    %4346 = vmatprep.subr.mxu0 0.0
    %4347 = vmatpush1.msra.mxu0 %v4311
    %4348 = vmatprep.subr.mxu0 0.0
    %4349 = vmatpush2.msra.mxu0 0.0
    %4350 = vmatprep.subr.mxu0 0.0
    %4351 = vmatpush2.msra.mxu0 0.0
    %4352 = vmatprep.subr.mxu0 0.0
    %4353 = vmatpush2.msra.mxu0 0.0
    %4354 = vmatprep.subr.mxu0 0.0
    %4355 = vmatpush2.msra.mxu0 0.0
    %4356 = vmatprep.subr.mxu0 0.0
    %4357 = vmatpush2.msra.mxu0 0.0
    %4358 = vmatprep.subr.mxu0 0.0
    %4359 = vmatpush2.msra.mxu0 0.0
    %4360 = vmatprep.subr.mxu0 0.0
    %4361 = vmatpush2.msra.mxu0 0.0
    %4362 = vmatprep.subr.mxu0 0.0
    %4363 = vmatpush2.msra.mxu0 0.0
    %4364 = vmatprep.subr.mxu0 0.0
    %4365 = vmatpush2.msra.mxu0 0.0
    %4366 = vmatprep.subr.mxu0 0.0
    %4367 = vmatpush2.msra.mxu0 0.0
    %4368 = vmatprep.subr.mxu0 0.0
    %4369 = vmatpush2.msra.mxu0 0.0
    %4370 = vmatprep.subr.mxu0 0.0
    %4371 = vmatpush2.msra.mxu0 0.0
    %4372 = vmatprep.subr.mxu0 0.0
    %4373 = vmatpush2.msra.mxu0 0.0
    %4374 = vmatprep.subr.mxu0 0.0
    %4375 = vmatpush2.msra.mxu0 0.0
    %4376 = vmatprep.subr.mxu0 0.0
    %4377 = vmatpush2.msra.mxu0 0.0
    %4378 = vmatprep.subr.mxu0 0.0
    %4379 = vmatpush2.msra.mxu0 0.0
    %4380 = vmatprep.mubr.f32.mxu0 0.0
    %4381 = vmatmul.mubr.f32.gmra.mxu0 %v4314
    %v4382 = vpop.f32.mrf.mxu0
    %v4383 = vadd.f32 0.0, %v4382
    %v4384 = vpop.f32.mrf.mxu0
    %4385 = vdwg.mxu0
    %v4386 = vpack.c.bf16 %v4383, %v4306
    %v4391 = vunpack.c.l.b16 %v3721
    %v4392 = vunpack.c.l.b16 %v3722
    %v4393 = vunpack.c.l.b16 %v3723
    %v4394 = vunpack.c.l.b16 %v3724
    %v4395 = vpack.c.b16 %v4392, %v4391
    %v4396 = vpack.c.b16 %v4394, %v4393
    %v4400 = vsel %vm1088, %v4386, 0
    %4402 = vmatprep.subr.bf16.mxu0 0
    %4403 = vmatpush1.bf16.msra.mxu0 0
    %4404 = vmatprep.subr.bf16.mxu0 0
    %4405 = vmatpush1.bf16.msra.mxu0 0
    %4406 = vmatprep.subr.bf16.mxu0 0
    %4407 = vmatpush1.bf16.msra.mxu0 0
    %4408 = vmatprep.subr.bf16.mxu0 0
    %4409 = vmatpush1.bf16.msra.mxu0 0
    %4410 = vmatprep.subr.bf16.mxu0 0
    %4411 = vmatpush1.bf16.msra.mxu0 0
    %4412 = vmatprep.subr.bf16.mxu0 0
    %4413 = vmatpush1.bf16.msra.mxu0 0
    %4414 = vmatprep.subr.bf16.mxu0 0
    %4415 = vmatpush1.bf16.msra.mxu0 %v4396
    %4416 = vmatprep.subr.bf16.mxu0 0
    %4417 = vmatpush1.bf16.msra.mxu0 %v4395
    %4418 = vmatprep.subr.bf16.mxu0 0
    %4419 = vmatpush2.bf16.msra.mxu0 0
    %4420 = vmatprep.subr.bf16.mxu0 0
    %4421 = vmatpush2.bf16.msra.mxu0 0
    %4422 = vmatprep.subr.bf16.mxu0 0
    %4423 = vmatpush2.bf16.msra.mxu0 0
    %4424 = vmatprep.subr.bf16.mxu0 0
    %4425 = vmatpush2.bf16.msra.mxu0 0
    %4426 = vmatprep.subr.bf16.mxu0 0
    %4427 = vmatpush2.bf16.msra.mxu0 0
    %4428 = vmatprep.subr.bf16.mxu0 0
    %4429 = vmatpush2.bf16.msra.mxu0 0
    %4430 = vmatprep.subr.bf16.mxu0 0
    %4431 = vmatpush2.bf16.msra.mxu0 0
    %4432 = vmatprep.subr.bf16.mxu0 0
    %4433 = vmatpush2.bf16.msra.mxu0 0
    %4434 = vmatprep.mubr.bf16.mxu0 0
    %4435 = vmatmul.mubr.bf16.gmra.mxu0 %v4400
    %v4436 = vpop.f32.mrf.mxu0
    %v4437 = vadd.f32 0.0, %v4436
    %v4438 = vpop.f32.mrf.mxu0
    %v4439 = vpop.f32.mrf.mxu0
    %v4440 = vadd.f32 0.0, %v4439
    %v4441 = vpop.f32.mrf.mxu0
    %4442 = vdwg.mxu0
    %v4447 = vunpack.c.l.b16 %v3717
    %v4448 = vunpack.c.l.b16 %v3718
    %v4449 = vunpack.c.l.b16 %v3719
    %v4450 = vunpack.c.l.b16 %v3720
    %v4451 = vpack.c.b16 %v4448, %v4447
    %v4452 = vpack.c.b16 %v4450, %v4449
    %v4456 = vsel %vm1088, %v4053, 0
    %4458 = vmatprep.subr.bf16.mxu0 0
    %4459 = vmatpush1.bf16.msra.mxu0 0
    %4460 = vmatprep.subr.bf16.mxu0 0
    %4461 = vmatpush1.bf16.msra.mxu0 0
    %4462 = vmatprep.subr.bf16.mxu0 0
    %4463 = vmatpush1.bf16.msra.mxu0 0
    %4464 = vmatprep.subr.bf16.mxu0 0
    %4465 = vmatpush1.bf16.msra.mxu0 0
    %4466 = vmatprep.subr.bf16.mxu0 0
    %4467 = vmatpush1.bf16.msra.mxu0 0
    %4468 = vmatprep.subr.bf16.mxu0 0
    %4469 = vmatpush1.bf16.msra.mxu0 0
    %4470 = vmatprep.subr.bf16.mxu0 0
    %4471 = vmatpush1.bf16.msra.mxu0 %v4452
    %4472 = vmatprep.subr.bf16.mxu0 0
    %4473 = vmatpush1.bf16.msra.mxu0 %v4451
    %4474 = vmatprep.subr.bf16.mxu0 0
    %4475 = vmatpush2.bf16.msra.mxu0 0
    %4476 = vmatprep.subr.bf16.mxu0 0
    %4477 = vmatpush2.bf16.msra.mxu0 0
    %4478 = vmatprep.subr.bf16.mxu0 0
    %4479 = vmatpush2.bf16.msra.mxu0 0
    %4480 = vmatprep.subr.bf16.mxu0 0
    %4481 = vmatpush2.bf16.msra.mxu0 0
    %4482 = vmatprep.subr.bf16.mxu0 0
    %4483 = vmatpush2.bf16.msra.mxu0 0
    %4484 = vmatprep.subr.bf16.mxu0 0
    %4485 = vmatpush2.bf16.msra.mxu0 0
    %4486 = vmatprep.subr.bf16.mxu0 0
    %4487 = vmatpush2.bf16.msra.mxu0 0
    %4488 = vmatprep.subr.bf16.mxu0 0
    %4489 = vmatpush2.bf16.msra.mxu0 0
    %4490 = vmatprep.mubr.bf16.mxu0 0
    %4491 = vmatmul.mubr.bf16.gmra.mxu0 %v4456
    %v4492 = vpop.f32.mrf.mxu0
    %v4493 = vadd.f32 %v4437, %v4492
    %v4494 = vpop.f32.mrf.mxu0
    %v4495 = vpop.f32.mrf.mxu0
    %v4496 = vadd.f32 %v4440, %v4495
    %v4497 = vpop.f32.mrf.mxu0
    %4498 = vdwg.mxu0
    %4499 = vrot.lane.b32.xlu0 %v3667, 64
    %v4500 = vpop.permute.xlu0 %4499
    %4501 = vrot.lane.b32.xlu0 %v3669, 64
    %v4502 = vpop.permute.xlu0 %4501
    %v4503 = vsel %vm1088, %v4500, 0
    %v4505 = vsel %vm1088, %v4502, 0
    %4507 = vmatprep.subr.mxu0 0.0
    %4508 = vmatpush1.xpose.msra.mxu0 0.0
    %4509 = vmatprep.subr.mxu0 0.0
    %4510 = vmatpush1.xpose.msra.mxu0 0.0
    %4511 = vmatprep.subr.mxu0 0.0
    %4512 = vmatpush1.xpose.msra.mxu0 0.0
    %4513 = vmatprep.subr.mxu0 0.0
    %4514 = vmatpush1.xpose.msra.mxu0 0.0
    %4515 = vmatprep.subr.mxu0 0.0
    %4516 = vmatpush1.xpose.msra.mxu0 0.0
    %4517 = vmatprep.subr.mxu0 0.0
    %4518 = vmatpush1.xpose.msra.mxu0 0.0
    %4519 = vmatprep.subr.mxu0 0.0
    %4520 = vmatpush1.xpose.msra.mxu0 0.0
    %4521 = vmatprep.subr.mxu0 0.0
    %4522 = vmatpush1.xpose.msra.mxu0 0.0
    %4523 = vmatprep.subr.mxu0 0.0
    %4524 = vmatpush1.xpose.msra.mxu0 0.0
    %4525 = vmatprep.subr.mxu0 0.0
    %4526 = vmatpush1.xpose.msra.mxu0 0.0
    %4527 = vmatprep.subr.mxu0 0.0
    %4528 = vmatpush1.xpose.msra.mxu0 0.0
    %4529 = vmatprep.subr.mxu0 0.0
    %4530 = vmatpush1.xpose.msra.mxu0 0.0
    %4531 = vmatprep.subr.mxu0 0.0
    %4532 = vmatpush1.xpose.msra.mxu0 0.0
    %4533 = vmatprep.subr.mxu0 0.0
    %4534 = vmatpush1.xpose.msra.mxu0 0.0
    %4535 = vmatprep.subr.mxu0 0.0
    %4536 = vmatpush1.xpose.msra.mxu0 0.0
    %4537 = vmatprep.subr.mxu0 0.0
    %4538 = vmatpush1.xpose.msra.mxu0 %v4505
    %4539 = vmatprep.subr.mxu0 0.0
    %4540 = vmatpush2.xpose.msra.mxu0 0.0
    %4541 = vmatprep.subr.mxu0 0.0
    %4542 = vmatpush2.xpose.msra.mxu0 0.0
    %4543 = vmatprep.subr.mxu0 0.0
    %4544 = vmatpush2.xpose.msra.mxu0 0.0
    %4545 = vmatprep.subr.mxu0 0.0
    %4546 = vmatpush2.xpose.msra.mxu0 0.0
    %4547 = vmatprep.subr.mxu0 0.0
    %4548 = vmatpush2.xpose.msra.mxu0 0.0
    %4549 = vmatprep.subr.mxu0 0.0
    %4550 = vmatpush2.xpose.msra.mxu0 0.0
    %4551 = vmatprep.subr.mxu0 0.0
    %4552 = vmatpush2.xpose.msra.mxu0 0.0
    %4553 = vmatprep.subr.mxu0 0.0
    %4554 = vmatpush2.xpose.msra.mxu0 0.0
    %4555 = vmatprep.subr.mxu0 0.0
    %4556 = vmatpush2.xpose.msra.mxu0 0.0
    %4557 = vmatprep.subr.mxu0 0.0
    %4558 = vmatpush2.xpose.msra.mxu0 0.0
    %4559 = vmatprep.subr.mxu0 0.0
    %4560 = vmatpush2.xpose.msra.mxu0 0.0
    %4561 = vmatprep.subr.mxu0 0.0
    %4562 = vmatpush2.xpose.msra.mxu0 0.0
    %4563 = vmatprep.subr.mxu0 0.0
    %4564 = vmatpush2.xpose.msra.mxu0 0.0
    %4565 = vmatprep.subr.mxu0 0.0
    %4566 = vmatpush2.xpose.msra.mxu0 0.0
    %4567 = vmatprep.subr.mxu0 0.0
    %4568 = vmatpush2.xpose.msra.mxu0 0.0
    %4569 = vmatprep.subr.mxu0 0.0
    %4570 = vmatpush2.xpose.msra.mxu0 0.0
    %4571 = vmatprep.mubr.f32.mxu0 0.0
    %4572 = vmatmul.mubr.f32.gmra.mxu0 %v4503
    %v4573 = vpop.f32.mrf.mxu0
    %v4574 = vadd.f32 %v1081, %v4573
    %v4575 = vpop.f32.mrf.mxu0
    %4576 = vdwg.mxu0
    %4577 = vrot.lane.b32.xlu0 %v3671, 64
    %v4578 = vpop.permute.xlu0 %4577
    %4579 = vrot.lane.b32.xlu0 %v3673, 64
    %v4580 = vpop.permute.xlu0 %4579
    %v4581 = vsel %vm1088, %v4578, 0
    %v4583 = vsel %vm1088, %v4580, 0
    %4585 = vmatprep.subr.mxu0 0.0
    %4586 = vmatpush1.xpose.msra.mxu0 0.0
    %4587 = vmatprep.subr.mxu0 0.0
    %4588 = vmatpush1.xpose.msra.mxu0 0.0
    %4589 = vmatprep.subr.mxu0 0.0
    %4590 = vmatpush1.xpose.msra.mxu0 0.0
    %4591 = vmatprep.subr.mxu0 0.0
    %4592 = vmatpush1.xpose.msra.mxu0 0.0
    %4593 = vmatprep.subr.mxu0 0.0
    %4594 = vmatpush1.xpose.msra.mxu0 0.0
    %4595 = vmatprep.subr.mxu0 0.0
    %4596 = vmatpush1.xpose.msra.mxu0 0.0
    %4597 = vmatprep.subr.mxu0 0.0
    %4598 = vmatpush1.xpose.msra.mxu0 0.0
    %4599 = vmatprep.subr.mxu0 0.0
    %4600 = vmatpush1.xpose.msra.mxu0 0.0
    %4601 = vmatprep.subr.mxu0 0.0
    %4602 = vmatpush1.xpose.msra.mxu0 0.0
    %4603 = vmatprep.subr.mxu0 0.0
    %4604 = vmatpush1.xpose.msra.mxu0 0.0
    %4605 = vmatprep.subr.mxu0 0.0
    %4606 = vmatpush1.xpose.msra.mxu0 0.0
    %4607 = vmatprep.subr.mxu0 0.0
    %4608 = vmatpush1.xpose.msra.mxu0 0.0
    %4609 = vmatprep.subr.mxu0 0.0
    %4610 = vmatpush1.xpose.msra.mxu0 0.0
    %4611 = vmatprep.subr.mxu0 0.0
    %4612 = vmatpush1.xpose.msra.mxu0 0.0
    %4613 = vmatprep.subr.mxu0 0.0
    %4614 = vmatpush1.xpose.msra.mxu0 0.0
    %4615 = vmatprep.subr.mxu0 0.0
    %4616 = vmatpush1.xpose.msra.mxu0 %v4583
    %4617 = vmatprep.subr.mxu0 0.0
    %4618 = vmatpush2.xpose.msra.mxu0 0.0
    %4619 = vmatprep.subr.mxu0 0.0
    %4620 = vmatpush2.xpose.msra.mxu0 0.0
    %4621 = vmatprep.subr.mxu0 0.0
    %4622 = vmatpush2.xpose.msra.mxu0 0.0
    %4623 = vmatprep.subr.mxu0 0.0
    %4624 = vmatpush2.xpose.msra.mxu0 0.0
    %4625 = vmatprep.subr.mxu0 0.0
    %4626 = vmatpush2.xpose.msra.mxu0 0.0
    %4627 = vmatprep.subr.mxu0 0.0
    %4628 = vmatpush2.xpose.msra.mxu0 0.0
    %4629 = vmatprep.subr.mxu0 0.0
    %4630 = vmatpush2.xpose.msra.mxu0 0.0
    %4631 = vmatprep.subr.mxu0 0.0
    %4632 = vmatpush2.xpose.msra.mxu0 0.0
    %4633 = vmatprep.subr.mxu0 0.0
    %4634 = vmatpush2.xpose.msra.mxu0 0.0
    %4635 = vmatprep.subr.mxu0 0.0
    %4636 = vmatpush2.xpose.msra.mxu0 0.0
    %4637 = vmatprep.subr.mxu0 0.0
    %4638 = vmatpush2.xpose.msra.mxu0 0.0
    %4639 = vmatprep.subr.mxu0 0.0
    %4640 = vmatpush2.xpose.msra.mxu0 0.0
    %4641 = vmatprep.subr.mxu0 0.0
    %4642 = vmatpush2.xpose.msra.mxu0 0.0
    %4643 = vmatprep.subr.mxu0 0.0
    %4644 = vmatpush2.xpose.msra.mxu0 0.0
    %4645 = vmatprep.subr.mxu0 0.0
    %4646 = vmatpush2.xpose.msra.mxu0 0.0
    %4647 = vmatprep.subr.mxu0 0.0
    %4648 = vmatpush2.xpose.msra.mxu0 0.0
    %4649 = vmatprep.mubr.f32.mxu0 0.0
    %4650 = vmatmul.mubr.f32.gmra.mxu0 %v4581
    %v4651 = vpop.f32.mrf.mxu0
    %v4652 = vadd.f32 %v1085, %v4651
    %v4653 = vpop.f32.mrf.mxu0
    %4654 = vdwg.mxu0
    %v4655 = vsel %vm1241, %v4574, -inf
    %4656 = vmax.xlane.f32.xlu0 %v4655
    %v4657 = vpop.xlane.xlu0 %4656
    %v4658 = vsel %vm1241, %v4652, -inf
    %4659 = vmax.xlane.f32.xlu0 %v4658
    %v4660 = vpop.xlane.xlu0 %4659
    %v4661 = vsub.f32 %v4574, %v4657
    %v4662 = vsub.f32 %v4652, %v4660
    %v4663 = vmul.f32 %v4661, 1.442695
    %v4664 = vpow.pop %v4663
    %v4665 = vmul.f32 %v4662, 1.442695
    %v4666 = vpow.pop %v4665
    %v4667 = vsel %vm1241, %v4664, 0.0
    %4668 = vadd.xlane.f32.xlu0 %v4667
    %v4669 = vpop.xlane.xlu0 %4668
    %v4670 = vsel %vm1241, %v4666, 0.0
    %4671 = vadd.xlane.f32.xlu0 %v4670
    %v4672 = vpop.xlane.xlu0 %4671
    %v4673 = vrcp.pop %v4669
    %v4674 = vrcp.pop %v4672
    %v4675 = vmul.f32 %v4664, %v4673
    %v4676 = vmul.f32 %v4666, %v4674
    %4677 = vrot.lane.b32.xlu0 %v3710, 64
    %v4678 = vpop.permute.xlu0 %4677
    %v4681 = vsel %vm1241, %v4675, 0
    %4683 = vmatprep.subr.mxu0 0.0
    %4684 = vmatpush1.msra.mxu0 0.0
    %4685 = vmatprep.subr.mxu0 0.0
    %4686 = vmatpush1.msra.mxu0 0.0
    %4687 = vmatprep.subr.mxu0 0.0
    %4688 = vmatpush1.msra.mxu0 0.0
    %4689 = vmatprep.subr.mxu0 0.0
    %4690 = vmatpush1.msra.mxu0 0.0
    %4691 = vmatprep.subr.mxu0 0.0
    %4692 = vmatpush1.msra.mxu0 0.0
    %4693 = vmatprep.subr.mxu0 0.0
    %4694 = vmatpush1.msra.mxu0 0.0
    %4695 = vmatprep.subr.mxu0 0.0
    %4696 = vmatpush1.msra.mxu0 0.0
    %4697 = vmatprep.subr.mxu0 0.0
    %4698 = vmatpush1.msra.mxu0 0.0
    %4699 = vmatprep.subr.mxu0 0.0
    %4700 = vmatpush1.msra.mxu0 0.0
    %4701 = vmatprep.subr.mxu0 0.0
    %4702 = vmatpush1.msra.mxu0 0.0
    %4703 = vmatprep.subr.mxu0 0.0
    %4704 = vmatpush1.msra.mxu0 0.0
    %4705 = vmatprep.subr.mxu0 0.0
    %4706 = vmatpush1.msra.mxu0 0.0
    %4707 = vmatprep.subr.mxu0 0.0
    %4708 = vmatpush1.msra.mxu0 0.0
    %4709 = vmatprep.subr.mxu0 0.0
    %4710 = vmatpush1.msra.mxu0 0.0
    %4711 = vmatprep.subr.mxu0 0.0
    %4712 = vmatpush1.msra.mxu0 0.0
    %4713 = vmatprep.subr.mxu0 0.0
    %4714 = vmatpush1.msra.mxu0 %v4678
    %4715 = vmatprep.subr.mxu0 0.0
    %4716 = vmatpush2.msra.mxu0 0.0
    %4717 = vmatprep.subr.mxu0 0.0
    %4718 = vmatpush2.msra.mxu0 0.0
    %4719 = vmatprep.subr.mxu0 0.0
    %4720 = vmatpush2.msra.mxu0 0.0
    %4721 = vmatprep.subr.mxu0 0.0
    %4722 = vmatpush2.msra.mxu0 0.0
    %4723 = vmatprep.subr.mxu0 0.0
    %4724 = vmatpush2.msra.mxu0 0.0
    %4725 = vmatprep.subr.mxu0 0.0
    %4726 = vmatpush2.msra.mxu0 0.0
    %4727 = vmatprep.subr.mxu0 0.0
    %4728 = vmatpush2.msra.mxu0 0.0
    %4729 = vmatprep.subr.mxu0 0.0
    %4730 = vmatpush2.msra.mxu0 0.0
    %4731 = vmatprep.subr.mxu0 0.0
    %4732 = vmatpush2.msra.mxu0 0.0
    %4733 = vmatprep.subr.mxu0 0.0
    %4734 = vmatpush2.msra.mxu0 0.0
    %4735 = vmatprep.subr.mxu0 0.0
    %4736 = vmatpush2.msra.mxu0 0.0
    %4737 = vmatprep.subr.mxu0 0.0
    %4738 = vmatpush2.msra.mxu0 0.0
    %4739 = vmatprep.subr.mxu0 0.0
    %4740 = vmatpush2.msra.mxu0 0.0
    %4741 = vmatprep.subr.mxu0 0.0
    %4742 = vmatpush2.msra.mxu0 0.0
    %4743 = vmatprep.subr.mxu0 0.0
    %4744 = vmatpush2.msra.mxu0 0.0
    %4745 = vmatprep.subr.mxu0 0.0
    %4746 = vmatpush2.msra.mxu0 0.0
    %4747 = vmatprep.mubr.f32.mxu0 0.0
    %4748 = vmatmul.mubr.f32.gmra.mxu0 %v4681
    %v4749 = vpop.f32.mrf.mxu0
    %v4750 = vadd.f32 0.0, %v4749
    %v4751 = vpop.f32.mrf.mxu0
    %4752 = vdwg.mxu0
    %4753 = vrot.lane.b32.xlu0 %v3713, 64
    %v4754 = vpop.permute.xlu0 %4753
    %v4757 = vsel %vm1241, %v4676, 0
    %4759 = vmatprep.subr.mxu0 0.0
    %4760 = vmatpush1.msra.mxu0 0.0
    %4761 = vmatprep.subr.mxu0 0.0
    %4762 = vmatpush1.msra.mxu0 0.0
    %4763 = vmatprep.subr.mxu0 0.0
    %4764 = vmatpush1.msra.mxu0 0.0
    %4765 = vmatprep.subr.mxu0 0.0
    %4766 = vmatpush1.msra.mxu0 0.0
    %4767 = vmatprep.subr.mxu0 0.0
    %4768 = vmatpush1.msra.mxu0 0.0
    %4769 = vmatprep.subr.mxu0 0.0
    %4770 = vmatpush1.msra.mxu0 0.0
    %4771 = vmatprep.subr.mxu0 0.0
    %4772 = vmatpush1.msra.mxu0 0.0
    %4773 = vmatprep.subr.mxu0 0.0
    %4774 = vmatpush1.msra.mxu0 0.0
    %4775 = vmatprep.subr.mxu0 0.0
    %4776 = vmatpush1.msra.mxu0 0.0
    %4777 = vmatprep.subr.mxu0 0.0
    %4778 = vmatpush1.msra.mxu0 0.0
    %4779 = vmatprep.subr.mxu0 0.0
    %4780 = vmatpush1.msra.mxu0 0.0
    %4781 = vmatprep.subr.mxu0 0.0
    %4782 = vmatpush1.msra.mxu0 0.0
    %4783 = vmatprep.subr.mxu0 0.0
    %4784 = vmatpush1.msra.mxu0 0.0
    %4785 = vmatprep.subr.mxu0 0.0
    %4786 = vmatpush1.msra.mxu0 0.0
    %4787 = vmatprep.subr.mxu0 0.0
    %4788 = vmatpush1.msra.mxu0 0.0
    %4789 = vmatprep.subr.mxu0 0.0
    %4790 = vmatpush1.msra.mxu0 %v4754
    %4791 = vmatprep.subr.mxu0 0.0
    %4792 = vmatpush2.msra.mxu0 0.0
    %4793 = vmatprep.subr.mxu0 0.0
    %4794 = vmatpush2.msra.mxu0 0.0
    %4795 = vmatprep.subr.mxu0 0.0
    %4796 = vmatpush2.msra.mxu0 0.0
    %4797 = vmatprep.subr.mxu0 0.0
    %4798 = vmatpush2.msra.mxu0 0.0
    %4799 = vmatprep.subr.mxu0 0.0
    %4800 = vmatpush2.msra.mxu0 0.0
    %4801 = vmatprep.subr.mxu0 0.0
    %4802 = vmatpush2.msra.mxu0 0.0
    %4803 = vmatprep.subr.mxu0 0.0
    %4804 = vmatpush2.msra.mxu0 0.0
    %4805 = vmatprep.subr.mxu0 0.0
    %4806 = vmatpush2.msra.mxu0 0.0
    %4807 = vmatprep.subr.mxu0 0.0
    %4808 = vmatpush2.msra.mxu0 0.0
    %4809 = vmatprep.subr.mxu0 0.0
    %4810 = vmatpush2.msra.mxu0 0.0
    %4811 = vmatprep.subr.mxu0 0.0
    %4812 = vmatpush2.msra.mxu0 0.0
    %4813 = vmatprep.subr.mxu0 0.0
    %4814 = vmatpush2.msra.mxu0 0.0
    %4815 = vmatprep.subr.mxu0 0.0
    %4816 = vmatpush2.msra.mxu0 0.0
    %4817 = vmatprep.subr.mxu0 0.0
    %4818 = vmatpush2.msra.mxu0 0.0
    %4819 = vmatprep.subr.mxu0 0.0
    %4820 = vmatpush2.msra.mxu0 0.0
    %4821 = vmatprep.subr.mxu0 0.0
    %4822 = vmatpush2.msra.mxu0 0.0
    %4823 = vmatprep.mubr.f32.mxu0 0.0
    %4824 = vmatmul.mubr.f32.gmra.mxu0 %v4757
    %v4825 = vpop.f32.mrf.mxu0
    %v4826 = vadd.f32 0.0, %v4825
    %v4827 = vpop.f32.mrf.mxu0
    %4828 = vdwg.mxu0
    %v4829 = vpack.c.bf16 %v4826, %v4750
    %v4834 = vunpack.c.l.b16 %v3725
    %v4835 = vunpack.c.l.b16 %v3726
    %v4836 = vunpack.c.l.b16 %v3727
    %v4837 = vunpack.c.l.b16 %v3728
    %v4838 = vpack.c.b16 %v4835, %v4834
    %v4839 = vpack.c.b16 %v4837, %v4836
    %v4843 = vsel %vm1088, %v4829, 0
    %4845 = vmatprep.subr.bf16.mxu0 0
    %4846 = vmatpush1.bf16.msra.mxu0 0
    %4847 = vmatprep.subr.bf16.mxu0 0
    %4848 = vmatpush1.bf16.msra.mxu0 0
    %4849 = vmatprep.subr.bf16.mxu0 0
    %4850 = vmatpush1.bf16.msra.mxu0 0
    %4851 = vmatprep.subr.bf16.mxu0 0
    %4852 = vmatpush1.bf16.msra.mxu0 0
    %4853 = vmatprep.subr.bf16.mxu0 0
    %4854 = vmatpush1.bf16.msra.mxu0 0
    %4855 = vmatprep.subr.bf16.mxu0 0
    %4856 = vmatpush1.bf16.msra.mxu0 0
    %4857 = vmatprep.subr.bf16.mxu0 0
    %4858 = vmatpush1.bf16.msra.mxu0 %v4839
    %4859 = vmatprep.subr.bf16.mxu0 0
    %4860 = vmatpush1.bf16.msra.mxu0 %v4838
    %4861 = vmatprep.subr.bf16.mxu0 0
    %4862 = vmatpush2.bf16.msra.mxu0 0
    %4863 = vmatprep.subr.bf16.mxu0 0
    %4864 = vmatpush2.bf16.msra.mxu0 0
    %4865 = vmatprep.subr.bf16.mxu0 0
    %4866 = vmatpush2.bf16.msra.mxu0 0
    %4867 = vmatprep.subr.bf16.mxu0 0
    %4868 = vmatpush2.bf16.msra.mxu0 0
    %4869 = vmatprep.subr.bf16.mxu0 0
    %4870 = vmatpush2.bf16.msra.mxu0 0
    %4871 = vmatprep.subr.bf16.mxu0 0
    %4872 = vmatpush2.bf16.msra.mxu0 0
    %4873 = vmatprep.subr.bf16.mxu0 0
    %4874 = vmatpush2.bf16.msra.mxu0 0
    %4875 = vmatprep.subr.bf16.mxu0 0
    %4876 = vmatpush2.bf16.msra.mxu0 0
    %4877 = vmatprep.mubr.bf16.mxu0 0
    %4878 = vmatmul.mubr.bf16.gmra.mxu0 %v4843
    %v4879 = vpop.f32.mrf.mxu0
    %v4880 = vadd.f32 0.0, %v4879
    %v4881 = vpop.f32.mrf.mxu0
    %v4882 = vpop.f32.mrf.mxu0
    %v4883 = vadd.f32 0.0, %v4882
    %v4884 = vpop.f32.mrf.mxu0
    %4885 = vdwg.mxu0
    %v4886 = vadd.f32 %v4493, %v4880
    %v4887 = vadd.f32 %v4496, %v4883
    %4888 = vrot.lane.b32.xlu0 %v3667, 32
    %v4889 = vpop.permute.xlu0 %4888
    %4890 = vrot.lane.b32.xlu0 %v3669, 32
    %v4891 = vpop.permute.xlu0 %4890
    %v4892 = vsel %vm1088, %v4889, 0
    %v4894 = vsel %vm1088, %v4891, 0
    %4896 = vmatprep.subr.mxu0 0.0
    %4897 = vmatpush1.xpose.msra.mxu0 0.0
    %4898 = vmatprep.subr.mxu0 0.0
    %4899 = vmatpush1.xpose.msra.mxu0 0.0
    %4900 = vmatprep.subr.mxu0 0.0
    %4901 = vmatpush1.xpose.msra.mxu0 0.0
    %4902 = vmatprep.subr.mxu0 0.0
    %4903 = vmatpush1.xpose.msra.mxu0 0.0
    %4904 = vmatprep.subr.mxu0 0.0
    %4905 = vmatpush1.xpose.msra.mxu0 0.0
    %4906 = vmatprep.subr.mxu0 0.0
    %4907 = vmatpush1.xpose.msra.mxu0 0.0
    %4908 = vmatprep.subr.mxu0 0.0
    %4909 = vmatpush1.xpose.msra.mxu0 0.0
    %4910 = vmatprep.subr.mxu0 0.0
    %4911 = vmatpush1.xpose.msra.mxu0 0.0
    %4912 = vmatprep.subr.mxu0 0.0
    %4913 = vmatpush1.xpose.msra.mxu0 0.0
    %4914 = vmatprep.subr.mxu0 0.0
    %4915 = vmatpush1.xpose.msra.mxu0 0.0
    %4916 = vmatprep.subr.mxu0 0.0
    %4917 = vmatpush1.xpose.msra.mxu0 0.0
    %4918 = vmatprep.subr.mxu0 0.0
    %4919 = vmatpush1.xpose.msra.mxu0 0.0
    %4920 = vmatprep.subr.mxu0 0.0
    %4921 = vmatpush1.xpose.msra.mxu0 0.0
    %4922 = vmatprep.subr.mxu0 0.0
    %4923 = vmatpush1.xpose.msra.mxu0 0.0
    %4924 = vmatprep.subr.mxu0 0.0
    %4925 = vmatpush1.xpose.msra.mxu0 0.0
    %4926 = vmatprep.subr.mxu0 0.0
    %4927 = vmatpush1.xpose.msra.mxu0 %v4894
    %4928 = vmatprep.subr.mxu0 0.0
    %4929 = vmatpush2.xpose.msra.mxu0 0.0
    %4930 = vmatprep.subr.mxu0 0.0
    %4931 = vmatpush2.xpose.msra.mxu0 0.0
    %4932 = vmatprep.subr.mxu0 0.0
    %4933 = vmatpush2.xpose.msra.mxu0 0.0
    %4934 = vmatprep.subr.mxu0 0.0
    %4935 = vmatpush2.xpose.msra.mxu0 0.0
    %4936 = vmatprep.subr.mxu0 0.0
    %4937 = vmatpush2.xpose.msra.mxu0 0.0
    %4938 = vmatprep.subr.mxu0 0.0
    %4939 = vmatpush2.xpose.msra.mxu0 0.0
    %4940 = vmatprep.subr.mxu0 0.0
    %4941 = vmatpush2.xpose.msra.mxu0 0.0
    %4942 = vmatprep.subr.mxu0 0.0
    %4943 = vmatpush2.xpose.msra.mxu0 0.0
    %4944 = vmatprep.subr.mxu0 0.0
    %4945 = vmatpush2.xpose.msra.mxu0 0.0
    %4946 = vmatprep.subr.mxu0 0.0
    %4947 = vmatpush2.xpose.msra.mxu0 0.0
    %4948 = vmatprep.subr.mxu0 0.0
    %4949 = vmatpush2.xpose.msra.mxu0 0.0
    %4950 = vmatprep.subr.mxu0 0.0
    %4951 = vmatpush2.xpose.msra.mxu0 0.0
    %4952 = vmatprep.subr.mxu0 0.0
    %4953 = vmatpush2.xpose.msra.mxu0 0.0
    %4954 = vmatprep.subr.mxu0 0.0
    %4955 = vmatpush2.xpose.msra.mxu0 0.0
    %4956 = vmatprep.subr.mxu0 0.0
    %4957 = vmatpush2.xpose.msra.mxu0 0.0
    %4958 = vmatprep.subr.mxu0 0.0
    %4959 = vmatpush2.xpose.msra.mxu0 0.0
    %4960 = vmatprep.mubr.f32.mxu0 0.0
    %4961 = vmatmul.mubr.f32.gmra.mxu0 %v4892
    %v4962 = vpop.f32.mrf.mxu0
    %v4963 = vadd.f32 %v1081, %v4962
    %v4964 = vpop.f32.mrf.mxu0
    %4965 = vdwg.mxu0
    %4966 = vrot.lane.b32.xlu0 %v3671, 32
    %v4967 = vpop.permute.xlu0 %4966
    %4968 = vrot.lane.b32.xlu0 %v3673, 32
    %v4969 = vpop.permute.xlu0 %4968
    %v4970 = vsel %vm1088, %v4967, 0
    %v4972 = vsel %vm1088, %v4969, 0
    %4974 = vmatprep.subr.mxu0 0.0
    %4975 = vmatpush1.xpose.msra.mxu0 0.0
    %4976 = vmatprep.subr.mxu0 0.0
    %4977 = vmatpush1.xpose.msra.mxu0 0.0
    %4978 = vmatprep.subr.mxu0 0.0
    %4979 = vmatpush1.xpose.msra.mxu0 0.0
    %4980 = vmatprep.subr.mxu0 0.0
    %4981 = vmatpush1.xpose.msra.mxu0 0.0
    %4982 = vmatprep.subr.mxu0 0.0
    %4983 = vmatpush1.xpose.msra.mxu0 0.0
    %4984 = vmatprep.subr.mxu0 0.0
    %4985 = vmatpush1.xpose.msra.mxu0 0.0
    %4986 = vmatprep.subr.mxu0 0.0
    %4987 = vmatpush1.xpose.msra.mxu0 0.0
    %4988 = vmatprep.subr.mxu0 0.0
    %4989 = vmatpush1.xpose.msra.mxu0 0.0
    %4990 = vmatprep.subr.mxu0 0.0
    %4991 = vmatpush1.xpose.msra.mxu0 0.0
    %4992 = vmatprep.subr.mxu0 0.0
    %4993 = vmatpush1.xpose.msra.mxu0 0.0
    %4994 = vmatprep.subr.mxu0 0.0
    %4995 = vmatpush1.xpose.msra.mxu0 0.0
    %4996 = vmatprep.subr.mxu0 0.0
    %4997 = vmatpush1.xpose.msra.mxu0 0.0
    %4998 = vmatprep.subr.mxu0 0.0
    %4999 = vmatpush1.xpose.msra.mxu0 0.0
    %5000 = vmatprep.subr.mxu0 0.0
    %5001 = vmatpush1.xpose.msra.mxu0 0.0
    %5002 = vmatprep.subr.mxu0 0.0
    %5003 = vmatpush1.xpose.msra.mxu0 0.0
    %5004 = vmatprep.subr.mxu0 0.0
    %5005 = vmatpush1.xpose.msra.mxu0 %v4972
    %5006 = vmatprep.subr.mxu0 0.0
    %5007 = vmatpush2.xpose.msra.mxu0 0.0
    %5008 = vmatprep.subr.mxu0 0.0
    %5009 = vmatpush2.xpose.msra.mxu0 0.0
    %5010 = vmatprep.subr.mxu0 0.0
    %5011 = vmatpush2.xpose.msra.mxu0 0.0
    %5012 = vmatprep.subr.mxu0 0.0
    %5013 = vmatpush2.xpose.msra.mxu0 0.0
    %5014 = vmatprep.subr.mxu0 0.0
    %5015 = vmatpush2.xpose.msra.mxu0 0.0
    %5016 = vmatprep.subr.mxu0 0.0
    %5017 = vmatpush2.xpose.msra.mxu0 0.0
    %5018 = vmatprep.subr.mxu0 0.0
    %5019 = vmatpush2.xpose.msra.mxu0 0.0
    %5020 = vmatprep.subr.mxu0 0.0
    %5021 = vmatpush2.xpose.msra.mxu0 0.0
    %5022 = vmatprep.subr.mxu0 0.0
    %5023 = vmatpush2.xpose.msra.mxu0 0.0
    %5024 = vmatprep.subr.mxu0 0.0
    %5025 = vmatpush2.xpose.msra.mxu0 0.0
    %5026 = vmatprep.subr.mxu0 0.0
    %5027 = vmatpush2.xpose.msra.mxu0 0.0
    %5028 = vmatprep.subr.mxu0 0.0
    %5029 = vmatpush2.xpose.msra.mxu0 0.0
    %5030 = vmatprep.subr.mxu0 0.0
    %5031 = vmatpush2.xpose.msra.mxu0 0.0
    %5032 = vmatprep.subr.mxu0 0.0
    %5033 = vmatpush2.xpose.msra.mxu0 0.0
    %5034 = vmatprep.subr.mxu0 0.0
    %5035 = vmatpush2.xpose.msra.mxu0 0.0
    %5036 = vmatprep.subr.mxu0 0.0
    %5037 = vmatpush2.xpose.msra.mxu0 0.0
    %5038 = vmatprep.mubr.f32.mxu0 0.0
    %5039 = vmatmul.mubr.f32.gmra.mxu0 %v4970
    %v5040 = vpop.f32.mrf.mxu0
    %v5041 = vadd.f32 %v1085, %v5040
    %v5042 = vpop.f32.mrf.mxu0
    %5043 = vdwg.mxu0
    %v5044 = vsel %vm1241, %v4963, -inf
    %5045 = vmax.xlane.f32.xlu0 %v5044
    %v5046 = vpop.xlane.xlu0 %5045
    %v5047 = vsel %vm1241, %v5041, -inf
    %5048 = vmax.xlane.f32.xlu0 %v5047
    %v5049 = vpop.xlane.xlu0 %5048
    %v5050 = vsub.f32 %v4963, %v5046
    %v5051 = vsub.f32 %v5041, %v5049
    %v5052 = vmul.f32 %v5050, 1.442695
    %v5053 = vpow.pop %v5052
    %v5054 = vmul.f32 %v5051, 1.442695
    %v5055 = vpow.pop %v5054
    %v5056 = vsel %vm1241, %v5053, 0.0
    %5057 = vadd.xlane.f32.xlu0 %v5056
    %v5058 = vpop.xlane.xlu0 %5057
    %v5059 = vsel %vm1241, %v5055, 0.0
    %5060 = vadd.xlane.f32.xlu0 %v5059
    %v5061 = vpop.xlane.xlu0 %5060
    %v5062 = vrcp.pop %v5058
    %v5063 = vrcp.pop %v5061
    %v5064 = vmul.f32 %v5053, %v5062
    %v5065 = vmul.f32 %v5055, %v5063
    %5066 = vrot.lane.b32.xlu0 %v3710, 32
    %v5067 = vpop.permute.xlu0 %5066
    %v5070 = vsel %vm1241, %v5064, 0
    %5072 = vmatprep.subr.mxu0 0.0
    %5073 = vmatpush1.msra.mxu0 0.0
    %5074 = vmatprep.subr.mxu0 0.0
    %5075 = vmatpush1.msra.mxu0 0.0
    %5076 = vmatprep.subr.mxu0 0.0
    %5077 = vmatpush1.msra.mxu0 0.0
    %5078 = vmatprep.subr.mxu0 0.0
    %5079 = vmatpush1.msra.mxu0 0.0
    %5080 = vmatprep.subr.mxu0 0.0
    %5081 = vmatpush1.msra.mxu0 0.0
    %5082 = vmatprep.subr.mxu0 0.0
    %5083 = vmatpush1.msra.mxu0 0.0
    %5084 = vmatprep.subr.mxu0 0.0
    %5085 = vmatpush1.msra.mxu0 0.0
    %5086 = vmatprep.subr.mxu0 0.0
    %5087 = vmatpush1.msra.mxu0 0.0
    %5088 = vmatprep.subr.mxu0 0.0
    %5089 = vmatpush1.msra.mxu0 0.0
    %5090 = vmatprep.subr.mxu0 0.0
    %5091 = vmatpush1.msra.mxu0 0.0
    %5092 = vmatprep.subr.mxu0 0.0
    %5093 = vmatpush1.msra.mxu0 0.0
    %5094 = vmatprep.subr.mxu0 0.0
    %5095 = vmatpush1.msra.mxu0 0.0
    %5096 = vmatprep.subr.mxu0 0.0
    %5097 = vmatpush1.msra.mxu0 0.0
    %5098 = vmatprep.subr.mxu0 0.0
    %5099 = vmatpush1.msra.mxu0 0.0
    %5100 = vmatprep.subr.mxu0 0.0
    %5101 = vmatpush1.msra.mxu0 0.0
    %5102 = vmatprep.subr.mxu0 0.0
    %5103 = vmatpush1.msra.mxu0 %v5067
    %5104 = vmatprep.subr.mxu0 0.0
    %5105 = vmatpush2.msra.mxu0 0.0
    %5106 = vmatprep.subr.mxu0 0.0
    %5107 = vmatpush2.msra.mxu0 0.0
    %5108 = vmatprep.subr.mxu0 0.0
    %5109 = vmatpush2.msra.mxu0 0.0
    %5110 = vmatprep.subr.mxu0 0.0
    %5111 = vmatpush2.msra.mxu0 0.0
    %5112 = vmatprep.subr.mxu0 0.0
    %5113 = vmatpush2.msra.mxu0 0.0
    %5114 = vmatprep.subr.mxu0 0.0
    %5115 = vmatpush2.msra.mxu0 0.0
    %5116 = vmatprep.subr.mxu0 0.0
    %5117 = vmatpush2.msra.mxu0 0.0
    %5118 = vmatprep.subr.mxu0 0.0
    %5119 = vmatpush2.msra.mxu0 0.0
    %5120 = vmatprep.subr.mxu0 0.0
    %5121 = vmatpush2.msra.mxu0 0.0
    %5122 = vmatprep.subr.mxu0 0.0
    %5123 = vmatpush2.msra.mxu0 0.0
    %5124 = vmatprep.subr.mxu0 0.0
    %5125 = vmatpush2.msra.mxu0 0.0
    %5126 = vmatprep.subr.mxu0 0.0
    %5127 = vmatpush2.msra.mxu0 0.0
    %5128 = vmatprep.subr.mxu0 0.0
    %5129 = vmatpush2.msra.mxu0 0.0
    %5130 = vmatprep.subr.mxu0 0.0
    %5131 = vmatpush2.msra.mxu0 0.0
    %5132 = vmatprep.subr.mxu0 0.0
    %5133 = vmatpush2.msra.mxu0 0.0
    %5134 = vmatprep.subr.mxu0 0.0
    %5135 = vmatpush2.msra.mxu0 0.0
    %5136 = vmatprep.mubr.f32.mxu0 0.0
    %5137 = vmatmul.mubr.f32.gmra.mxu0 %v5070
    %v5138 = vpop.f32.mrf.mxu0
    %v5139 = vadd.f32 0.0, %v5138
    %v5140 = vpop.f32.mrf.mxu0
    %5141 = vdwg.mxu0
    %5142 = vrot.lane.b32.xlu0 %v3713, 32
    %v5143 = vpop.permute.xlu0 %5142
    %v5146 = vsel %vm1241, %v5065, 0
    %5148 = vmatprep.subr.mxu0 0.0
    %5149 = vmatpush1.msra.mxu0 0.0
    %5150 = vmatprep.subr.mxu0 0.0
    %5151 = vmatpush1.msra.mxu0 0.0
    %5152 = vmatprep.subr.mxu0 0.0
    %5153 = vmatpush1.msra.mxu0 0.0
    %5154 = vmatprep.subr.mxu0 0.0
    %5155 = vmatpush1.msra.mxu0 0.0
    %5156 = vmatprep.subr.mxu0 0.0
    %5157 = vmatpush1.msra.mxu0 0.0
    %5158 = vmatprep.subr.mxu0 0.0
    %5159 = vmatpush1.msra.mxu0 0.0
    %5160 = vmatprep.subr.mxu0 0.0
    %5161 = vmatpush1.msra.mxu0 0.0
    %5162 = vmatprep.subr.mxu0 0.0
    %5163 = vmatpush1.msra.mxu0 0.0
    %5164 = vmatprep.subr.mxu0 0.0
    %5165 = vmatpush1.msra.mxu0 0.0
    %5166 = vmatprep.subr.mxu0 0.0
    %5167 = vmatpush1.msra.mxu0 0.0
    %5168 = vmatprep.subr.mxu0 0.0
    %5169 = vmatpush1.msra.mxu0 0.0
    %5170 = vmatprep.subr.mxu0 0.0
    %5171 = vmatpush1.msra.mxu0 0.0
    %5172 = vmatprep.subr.mxu0 0.0
    %5173 = vmatpush1.msra.mxu0 0.0
    %5174 = vmatprep.subr.mxu0 0.0
    %5175 = vmatpush1.msra.mxu0 0.0
    %5176 = vmatprep.subr.mxu0 0.0
    %5177 = vmatpush1.msra.mxu0 0.0
    %5178 = vmatprep.subr.mxu0 0.0
    %5179 = vmatpush1.msra.mxu0 %v5143
    %5180 = vmatprep.subr.mxu0 0.0
    %5181 = vmatpush2.msra.mxu0 0.0
    %5182 = vmatprep.subr.mxu0 0.0
    %5183 = vmatpush2.msra.mxu0 0.0
    %5184 = vmatprep.subr.mxu0 0.0
    %5185 = vmatpush2.msra.mxu0 0.0
    %5186 = vmatprep.subr.mxu0 0.0
    %5187 = vmatpush2.msra.mxu0 0.0
    %5188 = vmatprep.subr.mxu0 0.0
    %5189 = vmatpush2.msra.mxu0 0.0
    %5190 = vmatprep.subr.mxu0 0.0
    %5191 = vmatpush2.msra.mxu0 0.0
    %5192 = vmatprep.subr.mxu0 0.0
    %5193 = vmatpush2.msra.mxu0 0.0
    %5194 = vmatprep.subr.mxu0 0.0
    %5195 = vmatpush2.msra.mxu0 0.0
    %5196 = vmatprep.subr.mxu0 0.0
    %5197 = vmatpush2.msra.mxu0 0.0
    %5198 = vmatprep.subr.mxu0 0.0
    %5199 = vmatpush2.msra.mxu0 0.0
    %5200 = vmatprep.subr.mxu0 0.0
    %5201 = vmatpush2.msra.mxu0 0.0
    %5202 = vmatprep.subr.mxu0 0.0
    %5203 = vmatpush2.msra.mxu0 0.0
    %5204 = vmatprep.subr.mxu0 0.0
    %5205 = vmatpush2.msra.mxu0 0.0
    %5206 = vmatprep.subr.mxu0 0.0
    %5207 = vmatpush2.msra.mxu0 0.0
    %5208 = vmatprep.subr.mxu0 0.0
    %5209 = vmatpush2.msra.mxu0 0.0
    %5210 = vmatprep.subr.mxu0 0.0
    %5211 = vmatpush2.msra.mxu0 0.0
    %5212 = vmatprep.mubr.f32.mxu0 0.0
    %5213 = vmatmul.mubr.f32.gmra.mxu0 %v5146
    %v5214 = vpop.f32.mrf.mxu0
    %v5215 = vadd.f32 0.0, %v5214
    %v5216 = vpop.f32.mrf.mxu0
    %5217 = vdwg.mxu0
    %v5218 = vpack.c.bf16 %v5215, %v5139
    %v5223 = vunpack.c.l.b16 %v3729
    %v5224 = vunpack.c.l.b16 %v3730
    %v5225 = vunpack.c.l.b16 %v3731
    %v5226 = vunpack.c.l.b16 %v3732
    %v5227 = vpack.c.b16 %v5224, %v5223
    %v5228 = vpack.c.b16 %v5226, %v5225
    %v5232 = vsel %vm1088, %v5218, 0
    %5234 = vmatprep.subr.bf16.mxu0 0
    %5235 = vmatpush1.bf16.msra.mxu0 0
    %5236 = vmatprep.subr.bf16.mxu0 0
    %5237 = vmatpush1.bf16.msra.mxu0 0
    %5238 = vmatprep.subr.bf16.mxu0 0
    %5239 = vmatpush1.bf16.msra.mxu0 0
    %5240 = vmatprep.subr.bf16.mxu0 0
    %5241 = vmatpush1.bf16.msra.mxu0 0
    %5242 = vmatprep.subr.bf16.mxu0 0
    %5243 = vmatpush1.bf16.msra.mxu0 0
    %5244 = vmatprep.subr.bf16.mxu0 0
    %5245 = vmatpush1.bf16.msra.mxu0 0
    %5246 = vmatprep.subr.bf16.mxu0 0
    %5247 = vmatpush1.bf16.msra.mxu0 %v5228
    %5248 = vmatprep.subr.bf16.mxu0 0
    %5249 = vmatpush1.bf16.msra.mxu0 %v5227
    %5250 = vmatprep.subr.bf16.mxu0 0
    %5251 = vmatpush2.bf16.msra.mxu0 0
    %5252 = vmatprep.subr.bf16.mxu0 0
    %5253 = vmatpush2.bf16.msra.mxu0 0
    %5254 = vmatprep.subr.bf16.mxu0 0
    %5255 = vmatpush2.bf16.msra.mxu0 0
    %5256 = vmatprep.subr.bf16.mxu0 0
    %5257 = vmatpush2.bf16.msra.mxu0 0
    %5258 = vmatprep.subr.bf16.mxu0 0
    %5259 = vmatpush2.bf16.msra.mxu0 0
    %5260 = vmatprep.subr.bf16.mxu0 0
    %5261 = vmatpush2.bf16.msra.mxu0 0
    %5262 = vmatprep.subr.bf16.mxu0 0
    %5263 = vmatpush2.bf16.msra.mxu0 0
    %5264 = vmatprep.subr.bf16.mxu0 0
    %5265 = vmatpush2.bf16.msra.mxu0 0
    %5266 = vmatprep.mubr.bf16.mxu0 0
    %5267 = vmatmul.mubr.bf16.gmra.mxu0 %v5232
    %v5268 = vpop.f32.mrf.mxu0
    %v5269 = vadd.f32 0.0, %v5268
    %v5270 = vpop.f32.mrf.mxu0
    %v5271 = vpop.f32.mrf.mxu0
    %v5272 = vadd.f32 0.0, %v5271
    %v5273 = vpop.f32.mrf.mxu0
    %5274 = vdwg.mxu0
    %v5275 = vadd.f32 %v4886, %v5269
    %v5276 = vadd.f32 %v4887, %v5272
    %s5277 = scalar_lea.vmem %s10, 1
    %v5278 = vld [vmem:[%s5277] sm:$0x1]
    %v5280 = vlaneseq
    %v5281 = vshrl.u32 %v5280, 7
    %v5282 = vsub.s32 0, %v5281
    %v5283 = vrot.slane %v5278, %v5282
    %v5285 = vadd.f32 %v5275, %v5283
    %v5286 = vadd.f32 %v5276, %v5283
    %v5287 = vadd.f32 %v3447, %v5285
    %v5288 = vadd.f32 %v3448, %v5286
    %s5289 = scalar_lea.vmem %s11, 1
    %v5290 = vld [vmem:[%s5289] sm:$0x1]
    %s5291 = scalar_lea.vmem [#allocation17], 1
    %v5292 = vld [vmem:[%s5291] sm:$0x1]
    %5293 = vadd.xlane.f32.xlu0 %v5287
    %v5294 = vpop.xlane.xlu0 %5293
    %5295 = vadd.xlane.f32.xlu0 %v5288
    %v5296 = vpop.xlane.xlu0 %5295
    %v5297 = vmul.f32 %v5294, %v737
    %v5298 = vmul.f32 %v5296, %v737
    %v5299 = vsub.f32 %v5287, %v5297
    %v5300 = vsub.f32 %v5288, %v5298
    %v5301 = vmul.f32 %v5299, %v5299
    %v5302 = vmul.f32 %v5300, %v5300
    %5303 = vadd.xlane.f32.xlu0 %v5301
    %v5304 = vpop.xlane.xlu0 %5303
    %5305 = vadd.xlane.f32.xlu0 %v5302
    %v5306 = vpop.xlane.xlu0 %5305
    %v5307 = vmul.f32 %v5304, %v737
    %v5308 = vmul.f32 %v5306, %v737
    %v5309 = vadd.f32 %v5307, 1e-12
    %v5310 = vadd.f32 %v5308, 1e-12
    %v5311 = vrsqrt.pop %v5309
    %v5312 = vrsqrt.pop %v5310
    %v5313 = vmul.f32 %v5299, %v5311
    %v5314 = vmul.f32 %v5300, %v5312
    %v5316 = vlaneseq
    %v5317 = vshrl.u32 %v5316, 7
    %v5318 = vsub.s32 0, %v5317
    %v5319 = vrot.slane %v5290, %v5318
    %v5321 = vmul.f32 %v5313, %v5319
    %v5322 = vmul.f32 %v5314, %v5319
    %v5324 = vlaneseq
    %v5325 = vshrl.u32 %v5324, 7
    %v5326 = vsub.s32 0, %v5325
    %v5327 = vrot.slane %v5292, %v5326
    %v5329 = vadd.f32 %v5321, %v5327
    %v5330 = vadd.f32 %v5322, %v5327
    %v5331 = vpack.c.bf16 %v5330, %v5329
    %s5332 = scalar_lea.vmem [#allocation18], 256
    %v5333 = vld [vmem:[%s5332] sm:$0xff]
    %v5334 = vld [vmem:[%s5332 + $0x8] sm:$0xff]
    %v5335 = vld [vmem:[%s5332 + $0x10] sm:$0xff]
    %v5336 = vld [vmem:[%s5332 + $0x18] sm:$0xff]
    %v5337 = vld [vmem:[%s5332 + $0x20] sm:$0xff]
    %v5338 = vld [vmem:[%s5332 + $0x28] sm:$0xff]
    %v5339 = vld [vmem:[%s5332 + $0x30] sm:$0xff]
    %v5340 = vld [vmem:[%s5332 + $0x38] sm:$0xff]
    %v5341 = vld [vmem:[%s5332 + $0x40] sm:$0xff]
    %v5342 = vld [vmem:[%s5332 + $0x48] sm:$0xff]
    %v5343 = vld [vmem:[%s5332 + $0x50] sm:$0xff]
    %v5344 = vld [vmem:[%s5332 + $0x58] sm:$0xff]
    %v5345 = vld [vmem:[%s5332 + $0x60] sm:$0xff]
    %v5346 = vld [vmem:[%s5332 + $0x68] sm:$0xff]
    %v5347 = vld [vmem:[%s5332 + $0x70] sm:$0xff]
    %v5348 = vld [vmem:[%s5332 + $0x78] sm:$0xff]
    %v5349 = vld [vmem:[%s5332 + $0x80] sm:$0xff]
    %v5350 = vld [vmem:[%s5332 + $0x88] sm:$0xff]
    %v5351 = vld [vmem:[%s5332 + $0x90] sm:$0xff]
    %v5352 = vld [vmem:[%s5332 + $0x98] sm:$0xff]
    %v5353 = vld [vmem:[%s5332 + $0xa0] sm:$0xff]
    %v5354 = vld [vmem:[%s5332 + $0xa8] sm:$0xff]
    %v5355 = vld [vmem:[%s5332 + $0xb0] sm:$0xff]
    %v5356 = vld [vmem:[%s5332 + $0xb8] sm:$0xff]
    %v5357 = vld [vmem:[%s5332 + $0xc0] sm:$0xff]
    %v5358 = vld [vmem:[%s5332 + $0xc8] sm:$0xff]
    %v5359 = vld [vmem:[%s5332 + $0xd0] sm:$0xff]
    %v5360 = vld [vmem:[%s5332 + $0xd8] sm:$0xff]
    %v5361 = vld [vmem:[%s5332 + $0xe0] sm:$0xff]
    %v5362 = vld [vmem:[%s5332 + $0xe8] sm:$0xff]
    %v5363 = vld [vmem:[%s5332 + $0xf0] sm:$0xff]
    %v5364 = vld [vmem:[%s5332 + $0xf8] sm:$0xff]
    %s5365 = scalar_lea.vmem %s14, 4
    %v5366 = vld [vmem:[%s5365] sm:$0xf]
    %v5368 = vlaneseq
    %v5369 = vshrl.u32 %v5368, 7
    %v5370 = vsub.s32 0, %v5369
    %v5371 = vrot.slane %v5366, %v5370
    %v5372 = vlaneseq
    %v5373 = vshrl.u32 %v5372, 7
    %v5374 = vsub.s32 1, %v5373
    %v5375 = vrot.slane %v5366, %v5374
    %v5376 = vlaneseq
    %v5377 = vshrl.u32 %v5376, 7
    %v5378 = vsub.s32 2, %v5377
    %v5379 = vrot.slane %v5366, %v5378
    %v5380 = vlaneseq
    %v5381 = vshrl.u32 %v5380, 7
    %v5382 = vsub.s32 3, %v5381
    %v5383 = vrot.slane %v5366, %v5382
    %v5420 = vunpack.c.l.b16 %v5333
    %v5421 = vunpack.c.h.b16 %v5333
    %v5422 = vunpack.c.l.b16 %v5334
    %v5423 = vunpack.c.h.b16 %v5334
    %v5424 = vunpack.c.l.b16 %v5335
    %v5425 = vunpack.c.h.b16 %v5335
    %v5426 = vunpack.c.l.b16 %v5336
    %v5427 = vunpack.c.h.b16 %v5336
    %v5428 = vunpack.c.l.b16 %v5337
    %v5429 = vunpack.c.h.b16 %v5337
    %v5430 = vunpack.c.l.b16 %v5338
    %v5431 = vunpack.c.h.b16 %v5338
    %v5432 = vunpack.c.l.b16 %v5339
    %v5433 = vunpack.c.h.b16 %v5339
    %v5434 = vunpack.c.l.b16 %v5340
    %v5435 = vunpack.c.h.b16 %v5340
    %v5436 = vunpack.c.l.b16 %v5341
    %v5437 = vunpack.c.h.b16 %v5341
    %v5438 = vunpack.c.l.b16 %v5342
    %v5439 = vunpack.c.h.b16 %v5342
    %v5440 = vunpack.c.l.b16 %v5343
    %v5441 = vunpack.c.h.b16 %v5343
    %v5442 = vunpack.c.l.b16 %v5344
    %v5443 = vunpack.c.h.b16 %v5344
    %v5444 = vunpack.c.l.b16 %v5345
    %v5445 = vunpack.c.h.b16 %v5345
    %v5446 = vunpack.c.l.b16 %v5346
    %v5447 = vunpack.c.h.b16 %v5346
    %v5448 = vunpack.c.l.b16 %v5347
    %v5449 = vunpack.c.h.b16 %v5347
    %v5450 = vunpack.c.l.b16 %v5348
    %v5451 = vunpack.c.h.b16 %v5348
    %v5452 = vunpack.c.l.b16 %v5349
    %v5453 = vunpack.c.h.b16 %v5349
    %v5454 = vunpack.c.l.b16 %v5350
    %v5455 = vunpack.c.h.b16 %v5350
    %v5456 = vunpack.c.l.b16 %v5351
    %v5457 = vunpack.c.h.b16 %v5351
    %v5458 = vunpack.c.l.b16 %v5352
    %v5459 = vunpack.c.h.b16 %v5352
    %v5460 = vunpack.c.l.b16 %v5353
    %v5461 = vunpack.c.h.b16 %v5353
    %v5462 = vunpack.c.l.b16 %v5354
    %v5463 = vunpack.c.h.b16 %v5354
    %v5464 = vunpack.c.l.b16 %v5355
    %v5465 = vunpack.c.h.b16 %v5355
    %v5466 = vunpack.c.l.b16 %v5356
    %v5467 = vunpack.c.h.b16 %v5356
    %v5468 = vunpack.c.l.b16 %v5357
    %v5469 = vunpack.c.h.b16 %v5357
    %v5470 = vunpack.c.l.b16 %v5358
    %v5471 = vunpack.c.h.b16 %v5358
    %v5472 = vunpack.c.l.b16 %v5359
    %v5473 = vunpack.c.h.b16 %v5359
    %v5474 = vunpack.c.l.b16 %v5360
    %v5475 = vunpack.c.h.b16 %v5360
    %v5476 = vunpack.c.l.b16 %v5361
    %v5477 = vunpack.c.h.b16 %v5361
    %v5478 = vunpack.c.l.b16 %v5362
    %v5479 = vunpack.c.h.b16 %v5362
    %v5480 = vunpack.c.l.b16 %v5363
    %v5481 = vunpack.c.h.b16 %v5363
    %v5482 = vunpack.c.l.b16 %v5364
    %v5483 = vunpack.c.h.b16 %v5364
    %v5484 = vpack.c.b16 %v5424, %v5420
    %v5485 = vpack.c.b16 %v5425, %v5421
    %v5486 = vpack.c.b16 %v5426, %v5422
    %v5487 = vpack.c.b16 %v5427, %v5423
    %v5488 = vpack.c.b16 %v5432, %v5428
    %v5489 = vpack.c.b16 %v5433, %v5429
    %v5490 = vpack.c.b16 %v5434, %v5430
    %v5491 = vpack.c.b16 %v5435, %v5431
    %v5492 = vpack.c.b16 %v5440, %v5436
    %v5493 = vpack.c.b16 %v5441, %v5437
    %v5494 = vpack.c.b16 %v5442, %v5438
    %v5495 = vpack.c.b16 %v5443, %v5439
    %v5496 = vpack.c.b16 %v5448, %v5444
    %v5497 = vpack.c.b16 %v5449, %v5445
    %v5498 = vpack.c.b16 %v5450, %v5446
    %v5499 = vpack.c.b16 %v5451, %v5447
    %v5500 = vpack.c.b16 %v5456, %v5452
    %v5501 = vpack.c.b16 %v5457, %v5453
    %v5502 = vpack.c.b16 %v5458, %v5454
    %v5503 = vpack.c.b16 %v5459, %v5455
    %v5504 = vpack.c.b16 %v5464, %v5460
    %v5505 = vpack.c.b16 %v5465, %v5461
    %v5506 = vpack.c.b16 %v5466, %v5462
    %v5507 = vpack.c.b16 %v5467, %v5463
    %v5508 = vpack.c.b16 %v5472, %v5468
    %v5509 = vpack.c.b16 %v5473, %v5469
    %v5510 = vpack.c.b16 %v5474, %v5470
    %v5511 = vpack.c.b16 %v5475, %v5471
    %v5512 = vpack.c.b16 %v5480, %v5476
    %v5513 = vpack.c.b16 %v5481, %v5477
    %v5514 = vpack.c.b16 %v5482, %v5478
    %v5515 = vpack.c.b16 %v5483, %v5479
    %5548 = vmatprep.subr.bf16.mxu0 %v5513
    %5549 = vmatpush1.bf16.msra.mxu0 %v5512
    %5550 = vmatprep.subr.bf16.mxu0 %v5509
    %5551 = vmatpush1.bf16.msra.mxu0 %v5508
    %5552 = vmatprep.subr.bf16.mxu0 %v5505
    %5553 = vmatpush1.bf16.msra.mxu0 %v5504
    %5554 = vmatprep.subr.bf16.mxu0 %v5501
    %5555 = vmatpush1.bf16.msra.mxu0 %v5500
    %5556 = vmatprep.subr.bf16.mxu0 %v5497
    %5557 = vmatpush1.bf16.msra.mxu0 %v5496
    %5558 = vmatprep.subr.bf16.mxu0 %v5493
    %5559 = vmatpush1.bf16.msra.mxu0 %v5492
    %5560 = vmatprep.subr.bf16.mxu0 %v5489
    %5561 = vmatpush1.bf16.msra.mxu0 %v5488
    %5562 = vmatprep.subr.bf16.mxu0 %v5485
    %5563 = vmatpush1.bf16.msra.mxu0 %v5484
    %5564 = vmatprep.subr.bf16.mxu0 0
    %5565 = vmatpush2.bf16.msra.mxu0 0
    %5566 = vmatprep.subr.bf16.mxu0 0
    %5567 = vmatpush2.bf16.msra.mxu0 0
    %5568 = vmatprep.subr.bf16.mxu0 0
    %5569 = vmatpush2.bf16.msra.mxu0 0
    %5570 = vmatprep.subr.bf16.mxu0 0
    %5571 = vmatpush2.bf16.msra.mxu0 0
    %5572 = vmatprep.subr.bf16.mxu0 0
    %5573 = vmatpush2.bf16.msra.mxu0 0
    %5574 = vmatprep.subr.bf16.mxu0 0
    %5575 = vmatpush2.bf16.msra.mxu0 0
    %5576 = vmatprep.subr.bf16.mxu0 0
    %5577 = vmatpush2.bf16.msra.mxu0 0
    %5578 = vmatprep.subr.bf16.mxu0 0
    %5579 = vmatpush2.bf16.msra.mxu0 0
    %5580 = vmatprep.mubr.bf16.mxu0 0
    %5581 = vmatmul.mubr.bf16.gmra.mxu0 %v5331
    %v5582 = vpop.f32.mrf.mxu0
    %v5583 = vadd.f32 %v5371, %v5582
    %v5584 = vpop.f32.mrf.mxu0
    %v5585 = vadd.f32 %v5375, %v5584
    %v5586 = vpop.f32.mrf.mxu0
    %v5587 = vadd.f32 %v5371, %v5586
    %v5588 = vpop.f32.mrf.mxu0
    %v5589 = vadd.f32 %v5375, %v5588
    %5590 = vdwg.mxu0
    %5591 = vmatprep.subr.bf16.mxu0 %v5515
    %5592 = vmatpush1.bf16.msra.mxu0 %v5514
    %5593 = vmatprep.subr.bf16.mxu0 %v5511
    %5594 = vmatpush1.bf16.msra.mxu0 %v5510
    %5595 = vmatprep.subr.bf16.mxu0 %v5507
    %5596 = vmatpush1.bf16.msra.mxu0 %v5506
    %5597 = vmatprep.subr.bf16.mxu0 %v5503
    %5598 = vmatpush1.bf16.msra.mxu0 %v5502
    %5599 = vmatprep.subr.bf16.mxu0 %v5499
    %5600 = vmatpush1.bf16.msra.mxu0 %v5498
    %5601 = vmatprep.subr.bf16.mxu0 %v5495
    %5602 = vmatpush1.bf16.msra.mxu0 %v5494
    %5603 = vmatprep.subr.bf16.mxu0 %v5491
    %5604 = vmatpush1.bf16.msra.mxu0 %v5490
    %5605 = vmatprep.subr.bf16.mxu0 %v5487
    %5606 = vmatpush1.bf16.msra.mxu0 %v5486
    %5607 = vmatprep.subr.bf16.mxu0 0
    %5608 = vmatpush2.bf16.msra.mxu0 0
    %5609 = vmatprep.subr.bf16.mxu0 0
    %5610 = vmatpush2.bf16.msra.mxu0 0
    %5611 = vmatprep.subr.bf16.mxu0 0
    %5612 = vmatpush2.bf16.msra.mxu0 0
    %5613 = vmatprep.subr.bf16.mxu0 0
    %5614 = vmatpush2.bf16.msra.mxu0 0
    %5615 = vmatprep.subr.bf16.mxu0 0
    %5616 = vmatpush2.bf16.msra.mxu0 0
    %5617 = vmatprep.subr.bf16.mxu0 0
    %5618 = vmatpush2.bf16.msra.mxu0 0
    %5619 = vmatprep.subr.bf16.mxu0 0
    %5620 = vmatpush2.bf16.msra.mxu0 0
    %5621 = vmatprep.subr.bf16.mxu0 0
    %5622 = vmatpush2.bf16.msra.mxu0 0
    %5623 = vmatprep.mubr.bf16.mxu0 0
    %5624 = vmatmul.mubr.bf16.gmra.mxu0 %v5331
    %v5625 = vpop.f32.mrf.mxu0
    %v5626 = vadd.f32 %v5379, %v5625
    %v5627 = vpop.f32.mrf.mxu0
    %v5628 = vadd.f32 %v5383, %v5627
    %v5629 = vpop.f32.mrf.mxu0
    %v5630 = vadd.f32 %v5379, %v5629
    %v5631 = vpop.f32.mrf.mxu0
    %v5632 = vadd.f32 %v5383, %v5631
    %5633 = vdwg.mxu0
    %v5634 = vmul.f32 %v5583, %v5583
    %v5635 = vmul.f32 %v5585, %v5585
    %v5636 = vmul.f32 %v5626, %v5626
    %v5637 = vmul.f32 %v5628, %v5628
    %v5638 = vmul.f32 %v5587, %v5587
    %v5639 = vmul.f32 %v5589, %v5589
    %v5640 = vmul.f32 %v5630, %v5630
    %v5641 = vmul.f32 %v5632, %v5632
    %v5642 = vmul.f32 %v5583, %v5634
    %v5643 = vmul.f32 %v5585, %v5635
    %v5644 = vmul.f32 %v5626, %v5636
    %v5645 = vmul.f32 %v5628, %v5637
    %v5646 = vmul.f32 %v5587, %v5638
    %v5647 = vmul.f32 %v5589, %v5639
    %v5648 = vmul.f32 %v5630, %v5640
    %v5649 = vmul.f32 %v5632, %v5641
    %v5650 = vmul.f32 %v5642, 0.044715
    %v5651 = vmul.f32 %v5643, 0.044715
    %v5652 = vmul.f32 %v5644, 0.044715
    %v5653 = vmul.f32 %v5645, 0.044715
    %v5654 = vmul.f32 %v5646, 0.044715
    %v5655 = vmul.f32 %v5647, 0.044715
    %v5656 = vmul.f32 %v5648, 0.044715
    %v5657 = vmul.f32 %v5649, 0.044715
    %v5658 = vadd.f32 %v5583, %v5650
    %v5659 = vadd.f32 %v5585, %v5651
    %v5660 = vadd.f32 %v5626, %v5652
    %v5661 = vadd.f32 %v5628, %v5653
    %v5662 = vadd.f32 %v5587, %v5654
    %v5663 = vadd.f32 %v5589, %v5655
    %v5664 = vadd.f32 %v5630, %v5656
    %v5665 = vadd.f32 %v5632, %v5657
    %v5666 = vmul.f32 %v5658, 0.7978846
    %v5667 = vmul.f32 %v5659, 0.7978846
    %v5668 = vmul.f32 %v5660, 0.7978846
    %v5669 = vmul.f32 %v5661, 0.7978846
    %v5670 = vmul.f32 %v5662, 0.7978846
    %v5671 = vmul.f32 %v5663, 0.7978846
    %v5672 = vmul.f32 %v5664, 0.7978846
    %v5673 = vmul.f32 %v5665, 0.7978846
    %v5674 = vtanh.pop %v5666
    %v5675 = vtanh.pop %v5667
    %v5676 = vtanh.pop %v5668
    %v5677 = vtanh.pop %v5669
    %v5678 = vtanh.pop %v5670
    %v5679 = vtanh.pop %v5671
    %v5680 = vtanh.pop %v5672
    %v5681 = vtanh.pop %v5673
    %v5682 = vadd.f32 %v5674, 1.0
    %v5683 = vadd.f32 %v5675, 1.0
    %v5684 = vadd.f32 %v5676, 1.0
    %v5685 = vadd.f32 %v5677, 1.0
    %v5686 = vadd.f32 %v5678, 1.0
    %v5687 = vadd.f32 %v5679, 1.0
    %v5688 = vadd.f32 %v5680, 1.0
    %v5689 = vadd.f32 %v5681, 1.0
    %v5690 = vmul.f32 %v5682, 0.5
    %v5691 = vmul.f32 %v5683, 0.5
    %v5692 = vmul.f32 %v5684, 0.5
    %v5693 = vmul.f32 %v5685, 0.5
    %v5694 = vmul.f32 %v5686, 0.5
    %v5695 = vmul.f32 %v5687, 0.5
    %v5696 = vmul.f32 %v5688, 0.5
    %v5697 = vmul.f32 %v5689, 0.5
    %v5698 = vmul.f32 %v5583, %v5690
    %v5699 = vmul.f32 %v5585, %v5691
    %v5700 = vmul.f32 %v5626, %v5692
    %v5701 = vmul.f32 %v5628, %v5693
    %v5702 = vmul.f32 %v5587, %v5694
    %v5703 = vmul.f32 %v5589, %v5695
    %v5704 = vmul.f32 %v5630, %v5696
    %v5705 = vmul.f32 %v5632, %v5697
    %v5706 = vpack.c.bf16 %v5702, %v5698
    %v5707 = vpack.c.bf16 %v5703, %v5699
    %v5708 = vpack.c.bf16 %v5704, %v5700
    %v5709 = vpack.c.bf16 %v5705, %v5701
    %s5710 = scalar_lea.vmem [#allocation20], 256
    %v5711 = vld [vmem:[%s5710] sm:$0xf]
    %v5712 = vld [vmem:[%s5710 + $0x4] sm:$0xf]
    %v5713 = vld [vmem:[%s5710 + $0x8] sm:$0xf]
    %v5714 = vld [vmem:[%s5710 + $0xc] sm:$0xf]
    %v5715 = vld [vmem:[%s5710 + $0x10] sm:$0xf]
    %v5716 = vld [vmem:[%s5710 + $0x14] sm:$0xf]
    %v5717 = vld [vmem:[%s5710 + $0x18] sm:$0xf]
    %v5718 = vld [vmem:[%s5710 + $0x1c] sm:$0xf]
    %v5719 = vld [vmem:[%s5710 + $0x20] sm:$0xf]
    %v5720 = vld [vmem:[%s5710 + $0x24] sm:$0xf]
    %v5721 = vld [vmem:[%s5710 + $0x28] sm:$0xf]
    %v5722 = vld [vmem:[%s5710 + $0x2c] sm:$0xf]
    %v5723 = vld [vmem:[%s5710 + $0x30] sm:$0xf]
    %v5724 = vld [vmem:[%s5710 + $0x34] sm:$0xf]
    %v5725 = vld [vmem:[%s5710 + $0x38] sm:$0xf]
    %v5726 = vld [vmem:[%s5710 + $0x3c] sm:$0xf]
    %v5727 = vld [vmem:[%s5710 + $0x40] sm:$0xf]
    %v5728 = vld [vmem:[%s5710 + $0x44] sm:$0xf]
    %v5729 = vld [vmem:[%s5710 + $0x48] sm:$0xf]
    %v5730 = vld [vmem:[%s5710 + $0x4c] sm:$0xf]
    %v5731 = vld [vmem:[%s5710 + $0x50] sm:$0xf]
    %v5732 = vld [vmem:[%s5710 + $0x54] sm:$0xf]
    %v5733 = vld [vmem:[%s5710 + $0x58] sm:$0xf]
    %v5734 = vld [vmem:[%s5710 + $0x5c] sm:$0xf]
    %v5735 = vld [vmem:[%s5710 + $0x60] sm:$0xf]
    %v5736 = vld [vmem:[%s5710 + $0x64] sm:$0xf]
    %v5737 = vld [vmem:[%s5710 + $0x68] sm:$0xf]
    %v5738 = vld [vmem:[%s5710 + $0x6c] sm:$0xf]
    %v5739 = vld [vmem:[%s5710 + $0x70] sm:$0xf]
    %v5740 = vld [vmem:[%s5710 + $0x74] sm:$0xf]
    %v5741 = vld [vmem:[%s5710 + $0x78] sm:$0xf]
    %v5742 = vld [vmem:[%s5710 + $0x7c] sm:$0xf]
    %v5743 = vld [vmem:[%s5710 + $0x80] sm:$0xf]
    %v5744 = vld [vmem:[%s5710 + $0x84] sm:$0xf]
    %v5745 = vld [vmem:[%s5710 + $0x88] sm:$0xf]
    %v5746 = vld [vmem:[%s5710 + $0x8c] sm:$0xf]
    %v5747 = vld [vmem:[%s5710 + $0x90] sm:$0xf]
    %v5748 = vld [vmem:[%s5710 + $0x94] sm:$0xf]
    %v5749 = vld [vmem:[%s5710 + $0x98] sm:$0xf]
    %v5750 = vld [vmem:[%s5710 + $0x9c] sm:$0xf]
    %v5751 = vld [vmem:[%s5710 + $0xa0] sm:$0xf]
    %v5752 = vld [vmem:[%s5710 + $0xa4] sm:$0xf]
    %v5753 = vld [vmem:[%s5710 + $0xa8] sm:$0xf]
    %v5754 = vld [vmem:[%s5710 + $0xac] sm:$0xf]
    %v5755 = vld [vmem:[%s5710 + $0xb0] sm:$0xf]
    %v5756 = vld [vmem:[%s5710 + $0xb4] sm:$0xf]
    %v5757 = vld [vmem:[%s5710 + $0xb8] sm:$0xf]
    %v5758 = vld [vmem:[%s5710 + $0xbc] sm:$0xf]
    %v5759 = vld [vmem:[%s5710 + $0xc0] sm:$0xf]
    %v5760 = vld [vmem:[%s5710 + $0xc4] sm:$0xf]
    %v5761 = vld [vmem:[%s5710 + $0xc8] sm:$0xf]
    %v5762 = vld [vmem:[%s5710 + $0xcc] sm:$0xf]
    %v5763 = vld [vmem:[%s5710 + $0xd0] sm:$0xf]
    %v5764 = vld [vmem:[%s5710 + $0xd4] sm:$0xf]
    %v5765 = vld [vmem:[%s5710 + $0xd8] sm:$0xf]
    %v5766 = vld [vmem:[%s5710 + $0xdc] sm:$0xf]
    %v5767 = vld [vmem:[%s5710 + $0xe0] sm:$0xf]
    %v5768 = vld [vmem:[%s5710 + $0xe4] sm:$0xf]
    %v5769 = vld [vmem:[%s5710 + $0xe8] sm:$0xf]
    %v5770 = vld [vmem:[%s5710 + $0xec] sm:$0xf]
    %v5771 = vld [vmem:[%s5710 + $0xf0] sm:$0xf]
    %v5772 = vld [vmem:[%s5710 + $0xf4] sm:$0xf]
    %v5773 = vld [vmem:[%s5710 + $0xf8] sm:$0xf]
    %v5774 = vld [vmem:[%s5710 + $0xfc] sm:$0xf]
    %s5775 = scalar_lea.vmem %s16, 1
    %v5776 = vld [vmem:[%s5775] sm:$0x1]
    %v5778 = vlaneseq
    %v5779 = vshrl.u32 %v5778, 7
    %v5780 = vsub.s32 0, %v5779
    %v5781 = vrot.slane %v5776, %v5780
    %v5847 = vunpack.c.l.b16 %v5711
    %v5848 = vunpack.c.l.b16 %v5712
    %v5849 = vunpack.c.l.b16 %v5713
    %v5850 = vunpack.c.l.b16 %v5714
    %v5851 = vunpack.c.l.b16 %v5715
    %v5852 = vunpack.c.l.b16 %v5716
    %v5853 = vunpack.c.l.b16 %v5717
    %v5854 = vunpack.c.l.b16 %v5718
    %v5855 = vunpack.c.l.b16 %v5719
    %v5856 = vunpack.c.l.b16 %v5720
    %v5857 = vunpack.c.l.b16 %v5721
    %v5858 = vunpack.c.l.b16 %v5722
    %v5859 = vunpack.c.l.b16 %v5723
    %v5860 = vunpack.c.l.b16 %v5724
    %v5861 = vunpack.c.l.b16 %v5725
    %v5862 = vunpack.c.l.b16 %v5726
    %v5863 = vunpack.c.l.b16 %v5727
    %v5864 = vunpack.c.l.b16 %v5728
    %v5865 = vunpack.c.l.b16 %v5729
    %v5866 = vunpack.c.l.b16 %v5730
    %v5867 = vunpack.c.l.b16 %v5731
    %v5868 = vunpack.c.l.b16 %v5732
    %v5869 = vunpack.c.l.b16 %v5733
    %v5870 = vunpack.c.l.b16 %v5734
    %v5871 = vunpack.c.l.b16 %v5735
    %v5872 = vunpack.c.l.b16 %v5736
    %v5873 = vunpack.c.l.b16 %v5737
    %v5874 = vunpack.c.l.b16 %v5738
    %v5875 = vunpack.c.l.b16 %v5739
    %v5876 = vunpack.c.l.b16 %v5740
    %v5877 = vunpack.c.l.b16 %v5741
    %v5878 = vunpack.c.l.b16 %v5742
    %v5879 = vunpack.c.l.b16 %v5743
    %v5880 = vunpack.c.l.b16 %v5744
    %v5881 = vunpack.c.l.b16 %v5745
    %v5882 = vunpack.c.l.b16 %v5746
    %v5883 = vunpack.c.l.b16 %v5747
    %v5884 = vunpack.c.l.b16 %v5748
    %v5885 = vunpack.c.l.b16 %v5749
    %v5886 = vunpack.c.l.b16 %v5750
    %v5887 = vunpack.c.l.b16 %v5751
    %v5888 = vunpack.c.l.b16 %v5752
    %v5889 = vunpack.c.l.b16 %v5753
    %v5890 = vunpack.c.l.b16 %v5754
    %v5891 = vunpack.c.l.b16 %v5755
    %v5892 = vunpack.c.l.b16 %v5756
    %v5893 = vunpack.c.l.b16 %v5757
    %v5894 = vunpack.c.l.b16 %v5758
    %v5895 = vunpack.c.l.b16 %v5759
    %v5896 = vunpack.c.l.b16 %v5760
    %v5897 = vunpack.c.l.b16 %v5761
    %v5898 = vunpack.c.l.b16 %v5762
    %v5899 = vunpack.c.l.b16 %v5763
    %v5900 = vunpack.c.l.b16 %v5764
    %v5901 = vunpack.c.l.b16 %v5765
    %v5902 = vunpack.c.l.b16 %v5766
    %v5903 = vunpack.c.l.b16 %v5767
    %v5904 = vunpack.c.l.b16 %v5768
    %v5905 = vunpack.c.l.b16 %v5769
    %v5906 = vunpack.c.l.b16 %v5770
    %v5907 = vunpack.c.l.b16 %v5771
    %v5908 = vunpack.c.l.b16 %v5772
    %v5909 = vunpack.c.l.b16 %v5773
    %v5910 = vunpack.c.l.b16 %v5774
    %v5911 = vpack.c.b16 %v5848, %v5847
    %v5912 = vpack.c.b16 %v5850, %v5849
    %v5913 = vpack.c.b16 %v5852, %v5851
    %v5914 = vpack.c.b16 %v5854, %v5853
    %v5915 = vpack.c.b16 %v5856, %v5855
    %v5916 = vpack.c.b16 %v5858, %v5857
    %v5917 = vpack.c.b16 %v5860, %v5859
    %v5918 = vpack.c.b16 %v5862, %v5861
    %v5919 = vpack.c.b16 %v5864, %v5863
    %v5920 = vpack.c.b16 %v5866, %v5865
    %v5921 = vpack.c.b16 %v5868, %v5867
    %v5922 = vpack.c.b16 %v5870, %v5869
    %v5923 = vpack.c.b16 %v5872, %v5871
    %v5924 = vpack.c.b16 %v5874, %v5873
    %v5925 = vpack.c.b16 %v5876, %v5875
    %v5926 = vpack.c.b16 %v5878, %v5877
    %v5927 = vpack.c.b16 %v5880, %v5879
    %v5928 = vpack.c.b16 %v5882, %v5881
    %v5929 = vpack.c.b16 %v5884, %v5883
    %v5930 = vpack.c.b16 %v5886, %v5885
    %v5931 = vpack.c.b16 %v5888, %v5887
    %v5932 = vpack.c.b16 %v5890, %v5889
    %v5933 = vpack.c.b16 %v5892, %v5891
    %v5934 = vpack.c.b16 %v5894, %v5893
    %v5935 = vpack.c.b16 %v5896, %v5895
    %v5936 = vpack.c.b16 %v5898, %v5897
    %v5937 = vpack.c.b16 %v5900, %v5899
    %v5938 = vpack.c.b16 %v5902, %v5901
    %v5939 = vpack.c.b16 %v5904, %v5903
    %v5940 = vpack.c.b16 %v5906, %v5905
    %v5941 = vpack.c.b16 %v5908, %v5907
    %v5942 = vpack.c.b16 %v5910, %v5909
    %5975 = vmatprep.subr.bf16.mxu0 0
    %5976 = vmatpush1.bf16.msra.mxu0 %v5918
    %5977 = vmatprep.subr.bf16.mxu0 0
    %5978 = vmatpush1.bf16.msra.mxu0 %v5917
    %5979 = vmatprep.subr.bf16.mxu0 0
    %5980 = vmatpush1.bf16.msra.mxu0 %v5916
    %5981 = vmatprep.subr.bf16.mxu0 0
    %5982 = vmatpush1.bf16.msra.mxu0 %v5915
    %5983 = vmatprep.subr.bf16.mxu0 0
    %5984 = vmatpush1.bf16.msra.mxu0 %v5914
    %5985 = vmatprep.subr.bf16.mxu0 0
    %5986 = vmatpush1.bf16.msra.mxu0 %v5913
    %5987 = vmatprep.subr.bf16.mxu0 0
    %5988 = vmatpush1.bf16.msra.mxu0 %v5912
    %5989 = vmatprep.subr.bf16.mxu0 0
    %5990 = vmatpush1.bf16.msra.mxu0 %v5911
    %5991 = vmatprep.subr.bf16.mxu0 0
    %5992 = vmatpush2.bf16.msra.mxu0 %v5926
    %5993 = vmatprep.subr.bf16.mxu0 0
    %5994 = vmatpush2.bf16.msra.mxu0 %v5925
    %5995 = vmatprep.subr.bf16.mxu0 0
    %5996 = vmatpush2.bf16.msra.mxu0 %v5924
    %5997 = vmatprep.subr.bf16.mxu0 0
    %5998 = vmatpush2.bf16.msra.mxu0 %v5923
    %5999 = vmatprep.subr.bf16.mxu0 0
    %6000 = vmatpush2.bf16.msra.mxu0 %v5922
    %6001 = vmatprep.subr.bf16.mxu0 0
    %6002 = vmatpush2.bf16.msra.mxu0 %v5921
    %6003 = vmatprep.subr.bf16.mxu0 0
    %6004 = vmatpush2.bf16.msra.mxu0 %v5920
    %6005 = vmatprep.subr.bf16.mxu0 0
    %6006 = vmatpush2.bf16.msra.mxu0 %v5919
    %6007 = vmatprep.mubr.bf16.mxu0 %v5707
    %6008 = vmatmul.mubr.bf16.gmra.mxu0 %v5706
    %v6009 = vpop.f32.mrf.mxu0
    %v6010 = vadd.f32 %v5781, %v6009
    %v6011 = vpop.f32.mrf.mxu0
    %v6012 = vpop.f32.mrf.mxu0
    %v6013 = vadd.f32 %v5781, %v6012
    %v6014 = vpop.f32.mrf.mxu0
    %6015 = vdwg.mxu0
    %6016 = vmatprep.subr.bf16.mxu0 0
    %6017 = vmatpush1.bf16.msra.mxu0 %v5934
    %6018 = vmatprep.subr.bf16.mxu0 0
    %6019 = vmatpush1.bf16.msra.mxu0 %v5933
    %6020 = vmatprep.subr.bf16.mxu0 0
    %6021 = vmatpush1.bf16.msra.mxu0 %v5932
    %6022 = vmatprep.subr.bf16.mxu0 0
    %6023 = vmatpush1.bf16.msra.mxu0 %v5931
    %6024 = vmatprep.subr.bf16.mxu0 0
    %6025 = vmatpush1.bf16.msra.mxu0 %v5930
    %6026 = vmatprep.subr.bf16.mxu0 0
    %6027 = vmatpush1.bf16.msra.mxu0 %v5929
    %6028 = vmatprep.subr.bf16.mxu0 0
    %6029 = vmatpush1.bf16.msra.mxu0 %v5928
    %6030 = vmatprep.subr.bf16.mxu0 0
    %6031 = vmatpush1.bf16.msra.mxu0 %v5927
    %6032 = vmatprep.subr.bf16.mxu0 0
    %6033 = vmatpush2.bf16.msra.mxu0 %v5942
    %6034 = vmatprep.subr.bf16.mxu0 0
    %6035 = vmatpush2.bf16.msra.mxu0 %v5941
    %6036 = vmatprep.subr.bf16.mxu0 0
    %6037 = vmatpush2.bf16.msra.mxu0 %v5940
    %6038 = vmatprep.subr.bf16.mxu0 0
    %6039 = vmatpush2.bf16.msra.mxu0 %v5939
    %6040 = vmatprep.subr.bf16.mxu0 0
    %6041 = vmatpush2.bf16.msra.mxu0 %v5938
    %6042 = vmatprep.subr.bf16.mxu0 0
    %6043 = vmatpush2.bf16.msra.mxu0 %v5937
    %6044 = vmatprep.subr.bf16.mxu0 0
    %6045 = vmatpush2.bf16.msra.mxu0 %v5936
    %6046 = vmatprep.subr.bf16.mxu0 0
    %6047 = vmatpush2.bf16.msra.mxu0 %v5935
    %6048 = vmatprep.mubr.bf16.mxu0 %v5709
    %6049 = vmatmul.mubr.bf16.gmra.mxu0 %v5708
    %v6050 = vpop.f32.mrf.mxu0
    %v6051 = vadd.f32 %v6010, %v6050
    %v6052 = vpop.f32.mrf.mxu0
    %v6053 = vpop.f32.mrf.mxu0
    %v6054 = vadd.f32 %v6013, %v6053
    %v6055 = vpop.f32.mrf.mxu0
    %6056 = vdwg.mxu0
    %v6057 = vadd.f32 %v5329, %v6051
    %v6058 = vadd.f32 %v5330, %v6054
    %s6059 = scalar_lea.vmem %s17, 1
    %v6060 = vld [vmem:[%s6059] sm:$0x1]
    %s6061 = scalar_lea.vmem %s18, 1
    %v6062 = vld [vmem:[%s6061] sm:$0x1]
    %6063 = vadd.xlane.f32.xlu0 %v6057
    %v6064 = vpop.xlane.xlu0 %6063
    %6065 = vadd.xlane.f32.xlu0 %v6058
    %v6066 = vpop.xlane.xlu0 %6065
    %v6067 = vmul.f32 %v6064, %v737
    %v6068 = vmul.f32 %v6066, %v737
    %v6069 = vsub.f32 %v6057, %v6067
    %v6070 = vsub.f32 %v6058, %v6068
    %v6071 = vmul.f32 %v6069, %v6069
    %v6072 = vmul.f32 %v6070, %v6070
    %6073 = vadd.xlane.f32.xlu0 %v6071
    %v6074 = vpop.xlane.xlu0 %6073
    %6075 = vadd.xlane.f32.xlu0 %v6072
    %v6076 = vpop.xlane.xlu0 %6075
    %v6077 = vmul.f32 %v6074, %v737
    %v6078 = vmul.f32 %v6076, %v737
    %v6079 = vadd.f32 %v6077, 1e-12
    %v6080 = vadd.f32 %v6078, 1e-12
    %v6081 = vrsqrt.pop %v6079
    %v6082 = vrsqrt.pop %v6080
    %v6083 = vmul.f32 %v6069, %v6081
    %v6084 = vmul.f32 %v6070, %v6082
    %v6086 = vlaneseq
    %v6087 = vshrl.u32 %v6086, 7
    %v6088 = vsub.s32 0, %v6087
    %v6089 = vrot.slane %v6060, %v6088
    %v6091 = vmul.f32 %v6083, %v6089
    %v6092 = vmul.f32 %v6084, %v6089
    %v6094 = vlaneseq
    %v6095 = vshrl.u32 %v6094, 7
    %v6096 = vsub.s32 0, %v6095
    %v6097 = vrot.slane %v6062, %v6096
    %v6099 = vadd.f32 %v6091, %v6097
    %v6100 = vadd.f32 %v6092, %v6097
    %s6101 = scalar_lea.vmem [#allocation25], 32
    %6102 = vst [vmem:[%s6101] sm:$0xff] %v6099
    %6103 = vst [vmem:[%s6101 + $0x8] sm:$0xff] %v6100
    %v6104 = vpack.c.bf16 %v6100, %v6099
    %v6105 = vld [vmem:[#allocation21] sm:$0xf]
    %v6106 = vld [vmem:[#allocation21 + $0x4] sm:$0xf]
    %v6107 = vld [vmem:[#allocation21 + $0x8] sm:$0xf]
    %v6108 = vld [vmem:[#allocation21 + $0xc] sm:$0xf]
    %v6109 = vld [vmem:[#allocation21 + $0x10] sm:$0xf]
    %v6110 = vld [vmem:[#allocation21 + $0x14] sm:$0xf]
    %v6111 = vld [vmem:[#allocation21 + $0x18] sm:$0xf]
    %v6112 = vld [vmem:[#allocation21 + $0x1c] sm:$0xf]
    %v6113 = vld [vmem:[#allocation21 + $0x20] sm:$0xf]
    %v6114 = vld [vmem:[#allocation21 + $0x24] sm:$0xf]
    %v6115 = vld [vmem:[#allocation21 + $0x28] sm:$0xf]
    %v6116 = vld [vmem:[#allocation21 + $0x2c] sm:$0xf]
    %v6117 = vld [vmem:[#allocation21 + $0x30] sm:$0xf]
    %v6118 = vld [vmem:[#allocation21 + $0x34] sm:$0xf]
    %v6119 = vld [vmem:[#allocation21 + $0x38] sm:$0xf]
    %v6120 = vld [vmem:[#allocation21 + $0x3c] sm:$0xf]
    %v6121 = vld [vmem:[%s20] sm:$0x1]
    %v6123 = vlaneseq
    %v6124 = vshrl.u32 %v6123, 7
    %v6125 = vsub.s32 0, %v6124
    %v6126 = vrot.slane %v6121, %v6125
    %v6144 = vunpack.c.l.b16 %v6105
    %v6145 = vunpack.c.l.b16 %v6106
    %v6146 = vunpack.c.l.b16 %v6107
    %v6147 = vunpack.c.l.b16 %v6108
    %v6148 = vunpack.c.l.b16 %v6109
    %v6149 = vunpack.c.l.b16 %v6110
    %v6150 = vunpack.c.l.b16 %v6111
    %v6151 = vunpack.c.l.b16 %v6112
    %v6152 = vunpack.c.l.b16 %v6113
    %v6153 = vunpack.c.l.b16 %v6114
    %v6154 = vunpack.c.l.b16 %v6115
    %v6155 = vunpack.c.l.b16 %v6116
    %v6156 = vunpack.c.l.b16 %v6117
    %v6157 = vunpack.c.l.b16 %v6118
    %v6158 = vunpack.c.l.b16 %v6119
    %v6159 = vunpack.c.l.b16 %v6120
    %v6160 = vpack.c.b16 %v6145, %v6144
    %v6161 = vpack.c.b16 %v6147, %v6146
    %v6162 = vpack.c.b16 %v6149, %v6148
    %v6163 = vpack.c.b16 %v6151, %v6150
    %v6164 = vpack.c.b16 %v6153, %v6152
    %v6165 = vpack.c.b16 %v6155, %v6154
    %v6166 = vpack.c.b16 %v6157, %v6156
    %v6167 = vpack.c.b16 %v6159, %v6158
    %6176 = vmatprep.subr.bf16.mxu0 0
    %6177 = vmatpush1.bf16.msra.mxu0 %v6167
    %6178 = vmatprep.subr.bf16.mxu0 0
    %6179 = vmatpush1.bf16.msra.mxu0 %v6166
    %6180 = vmatprep.subr.bf16.mxu0 0
    %6181 = vmatpush1.bf16.msra.mxu0 %v6165
    %6182 = vmatprep.subr.bf16.mxu0 0
    %6183 = vmatpush1.bf16.msra.mxu0 %v6164
    %6184 = vmatprep.subr.bf16.mxu0 0
    %6185 = vmatpush1.bf16.msra.mxu0 %v6163
    %6186 = vmatprep.subr.bf16.mxu0 0
    %6187 = vmatpush1.bf16.msra.mxu0 %v6162
    %6188 = vmatprep.subr.bf16.mxu0 0
    %6189 = vmatpush1.bf16.msra.mxu0 %v6161
    %6190 = vmatprep.subr.bf16.mxu0 0
    %6191 = vmatpush1.bf16.msra.mxu0 %v6160
    %6192 = vmatprep.subr.bf16.mxu0 0
    %6193 = vmatpush2.bf16.msra.mxu0 0
    %6194 = vmatprep.subr.bf16.mxu0 0
    %6195 = vmatpush2.bf16.msra.mxu0 0
    %6196 = vmatprep.subr.bf16.mxu0 0
    %6197 = vmatpush2.bf16.msra.mxu0 0
    %6198 = vmatprep.subr.bf16.mxu0 0
    %6199 = vmatpush2.bf16.msra.mxu0 0
    %6200 = vmatprep.subr.bf16.mxu0 0
    %6201 = vmatpush2.bf16.msra.mxu0 0
    %6202 = vmatprep.subr.bf16.mxu0 0
    %6203 = vmatpush2.bf16.msra.mxu0 0
    %6204 = vmatprep.subr.bf16.mxu0 0
    %6205 = vmatpush2.bf16.msra.mxu0 0
    %6206 = vmatprep.subr.bf16.mxu0 0
    %6207 = vmatpush2.bf16.msra.mxu0 0
    %6208 = vmatprep.mubr.bf16.mxu0 0
    %6209 = vmatmul.mubr.bf16.gmra.mxu0 %v6104
    %v6210 = vpop.f32.mrf.mxu0
    %v6211 = vadd.f32 %v6126, %v6210
    %v6212 = vpop.f32.mrf.mxu0
    %v6213 = vpop.f32.mrf.mxu0
    %v6214 = vadd.f32 %v6126, %v6213
    %v6215 = vpop.f32.mrf.mxu0
    %6216 = vdwg.mxu0
    %6217 = vst [vmem:[#allocation23] sm:$0xff] %v6211
    %6218 = vst [vmem:[#allocation23 + $0x8] sm:$0xff] %v6214
    %v6219 = vld [vmem:[%s2] sm:$0x3]
    %6220 = vmax.xlane.f32.xlu0 %v6211
    %v6221 = vpop.xlane.xlu0 %6220
    %6222 = vmax.xlane.f32.xlu0 %v6214
    %v6223 = vpop.xlane.xlu0 %6222
    %v6224 = vsub.f32 %v6211, %v6221
    %v6225 = vsub.f32 %v6214, %v6223
    %v6226 = vmul.f32 %v6224, 1.442695
    %v6227 = vpow.pop %v6226
    %v6228 = vmul.f32 %v6225, 1.442695
    %v6229 = vpow.pop %v6228
    %6230 = vadd.xlane.f32.xlu0 %v6227
    %v6231 = vpop.xlane.xlu0 %6230
    %6232 = vadd.xlane.f32.xlu0 %v6229
    %v6233 = vpop.xlane.xlu0 %6232
    %v6234 = vlog2.pop %v6231
    %v6235 = vmul.f32 %v6234, 0.6931472
    %v6236 = vlog2.pop %v6233
    %v6237 = vmul.f32 %v6236, 0.6931472
    %v6238 = vadd.f32 %v6221, %v6235
    %v6239 = vadd.f32 %v6223, %v6237
    %v6240 = vlaneseq
    %v6241 = vshrl.u32 %v6240, 7
    %v6242 = vsub.s32 0, %v6241
    %v6243 = vrot.slane %v6219, %v6242
    %6245 = vbcast.lane.b32.xlu0 %v6243, 256
    %v6246 = vpop.permute.xlu0 %6245
    %v6247 = vlaneseq
    %v6248 = vshrl.u32 %v6247, 7
    %v6249 = vsub.s32 1, %v6248
    %v6250 = vrot.slane %v6219, %v6249
    %6252 = vbcast.lane.b32.xlu0 %v6250, 256
    %v6253 = vpop.permute.xlu0 %6252
    %vm6254 = vcmp.eq.s32.totalorder %v230, %v6246
    %vm6255 = vcmp.eq.s32.totalorder %v230, %v6253
    %v6256 = vsel %vm6254, 1, 0
    %v6257 = vsel %vm6255, 1, 0
    %v6258 = vcvt.s32.f32 %v6256
    %v6259 = vcvt.s32.f32 %v6257
    %v6260 = vmul.f32 %v6258, %v6211
    %v6261 = vmul.f32 %v6259, %v6214
    %6262 = vadd.xlane.f32.xlu0 %v6260
    %v6263 = vpop.xlane.xlu0 %6262
    %6264 = vadd.xlane.f32.xlu0 %v6261
    %v6265 = vpop.xlane.xlu0 %6264
    %vm6266 = vcmp.ne.s32.totalorder %v6219, 4294967196
    %v6267 = vsel %vm6266, 1, 0
    %v6268 = vcvt.s32.f32 %v6267
    %v6269 = vsub.f32 %v6238, %v6263
    %v6270 = vsub.f32 %v6239, %v6265
    %v6272 = vlaneseq
    %v6273 = vshrl.u32 %v6272, 7
    %v6274 = vsub.s32 0, %v6273
    %v6275 = vrot.slane %v6268, %v6274
    %6277 = vbcast.lane.b32.xlu0 %v6275, 256
    %v6278 = vpop.permute.xlu0 %6277
    %v6279 = vlaneseq
    %v6280 = vshrl.u32 %v6279, 7
    %v6281 = vsub.s32 1, %v6280
    %v6282 = vrot.slane %v6268, %v6281
    %6284 = vbcast.lane.b32.xlu0 %v6282, 256
    %v6285 = vpop.permute.xlu0 %6284
    %v6288 = vmul.f32 %v6269, %v6278
    %v6289 = vmul.f32 %v6270, %v6285
    %6292 = vset.pattern.permute.xlu0 0
    %6293 = vperm.xlu0 %6292, %v6288
    %v6294 = vpop.permute.xlu0 %6293
    %6295 = vset.pattern.permute.xlu0 0
    %6296 = vperm.xlu0 %6295, %v6289
    %v6297 = vpop.permute.xlu0 %6296
    %v6298 = vlaneseq
    %v6299 = vshrl.u32 %v6298, 7
    %v6300 = vsub.s32 %v230, %v6299
    %v6301 = vrot.slane %v6294, %v6300
    %v6302 = vlaneseq
    %v6303 = vshrl.u32 %v6302, 7
    %v6304 = vsub.s32 %v230, %v6303
    %v6305 = vrot.slane %v6297, %v6304
    %vm6306 = vcmask 1041409
    %v6307 = vsel %vm6306, %v6305, %v6301
    %vm6309 = vcmask 58368
    %v6310 = vsel %vm6309, %v6307, 0.0
    %6311 = vadd.xlane.f32.xlu0 %v6310
    %v6312 = vpop.xlane.xlu0 %6311
    %v6313 = vrot.slane %v6312, 4
    %v6314 = vadd.f32 %v6312, %v6313
    %v6315 = vrot.slane %v6314, 2
    %v6316 = vadd.f32 %v6314, %v6315
    %v6317 = vrot.slane %v6316, 1
    %v6318 = vadd.f32 %v6316, %v6317
    %s6319 = vtos %v6318
    %v6320 = vsel %vm6309, %v6268, 0.0
    %6321 = vadd.xlane.f32.xlu0 %v6320
    %v6322 = vpop.xlane.xlu0 %6321
    %v6323 = vrot.slane %v6322, 4
    %v6324 = vadd.f32 %v6322, %v6323
    %v6325 = vrot.slane %v6324, 2
    %v6326 = vadd.f32 %v6324, %v6325
    %v6327 = vrot.slane %v6326, 1
    %v6328 = vadd.f32 %v6326, %v6327
    %s6329 = vtos %v6328
    %s6330 = smax.f32 %s6329, 1.0
    %v6331 = vstv %s6330
    %v6332 = vrcp.pop %v6331
    %s6333 = vtos %v6332
    %s6334 = smul.f32 %s6319, %s6333
    %s6335 = scalar_lea.smem [#allocation24], 0
    %6336 = sst [smem:[%s6335]] %s6334
    // Predicated region
    $region134: #{tpu_custom_call.1} parent=1 // pred_check
      _
    $region135: #{tpu_custom_call.1} parent=1 // pred_check_branch
      %6338 = sbr.rel (0) target = $region137
    $region136: #{tpu_custom_call.1} parent=1 // pred_region
      %s6340 = ssub.s32 256, 256
      %6341 = vsyncadd [#allocation4], %s6340
      %s6342 = sshll.u32 [#allocation23], 4
      %s6343 = int_to_ptr.vmem [resolvable:$true] %s6342
      %6348 = dma.vmem_to_hbm [thread:$0]  %s6343, 256, %s21, [#allocation4], 128, 128, 8
    $region137: #{tpu_custom_call.1} parent=1 // pred_fallthru
      _
    // Predicated region
    $region138: #{tpu_custom_call.1} parent=1 // pred_check
      _
    $region139: #{tpu_custom_call.1} parent=1 // pred_check_branch
      %6350 = sbr.rel (0) target = $region141
    $region140: #{tpu_custom_call.1} parent=1 // pred_region
      %s6352 = ssub.s32 16, 16
      %6353 = vsyncadd [#allocation5], %s6352
      %6356 = dma.smem_to_hbm [#allocation24], 16, %s22, [#allocation5]
    $region141: #{tpu_custom_call.1} parent=1 // pred_fallthru
      _
    // Predicated region
    $region142: #{tpu_custom_call.1} parent=1 // pred_check
      _
    $region143: #{tpu_custom_call.1} parent=1 // pred_check_branch
      %6358 = sbr.rel (0) target = $region145
    $region144: #{tpu_custom_call.1} parent=1 // pred_region
      %s6360 = ssub.s32 768, 768
      %6361 = vsyncadd [#allocation26], %s6360
      %s6362 = sshll.u32 [#allocation25], 4
      %s6363 = int_to_ptr.vmem [resolvable:$true] %s6362
      %6368 = dma.vmem_to_hbm [thread:$0]  %s6363, 768, %s23, [#allocation26], 128, 128, 8
    $region145: #{tpu_custom_call.1} parent=1 // pred_fallthru
      _
    // Predicated region
    $region146: #{tpu_custom_call.1} parent=1 // pred_check
      _
    $region147: #{tpu_custom_call.1} parent=1 // pred_check_branch
      %6370 = sbr.rel (0) target = $region149
    $region148: #{tpu_custom_call.1} parent=1 // pred_region
      %6371 = dma.done [#allocation4], 256
    $region149: #{tpu_custom_call.1} parent=1 // pred_fallthru
      _
    // Predicated region
    $region150: #{tpu_custom_call.1} parent=1 // pred_check
      _
    $region151: #{tpu_custom_call.1} parent=1 // pred_check_branch
      %6373 = sbr.rel (0) target = $region153
    $region152: #{tpu_custom_call.1} parent=1 // pred_region
      %6374 = dma.done [#allocation5], 16
    $region153: #{tpu_custom_call.1} parent=1 // pred_fallthru
      _
    // Predicated region
    $region154: #{tpu_custom_call.1} parent=1 // pred_check
      _
    $region155: #{tpu_custom_call.1} parent=1 // pred_check_branch
      %6376 = sbr.rel (0) target = $region157
    $region156: #{tpu_custom_call.1} parent=1 // pred_region
      %6377 = dma.done [#allocation26], 768
    $region157: #{tpu_custom_call.1} parent=1 // pred_fallthru
      _
    %6378 = sfence
    %6379 = vsyncpa [#allocation3], 1
    %6380 = vsyncpa [#allocation7], 1
    %6381 = vsyncpa [#allocation10], 1
    %6382 = vsyncpa [#allocation13], 1
    %6383 = vsyncpa [#allocation16], 1
    %6384 = vsyncpa [#allocation19], 1
    %6385 = vsyncpa [#allocation22], 1
    %6386 = vsyncpa [#allocation4], 1
    %6387 = vsyncpa [#allocation26], 1
    %6388 = vsyncpa [#allocation5], 1

</llo_original>
